<compile_context>
chip_gen: v5e
topology: v5e:2x2
jax: 0.10.0
libtpu: 0.0.40
codegen_flags: <defaults>
</compile_context>

<pallas_src>
import jax
import jax.numpy as jnp
from jax.experimental import pallas as pl
from jax.experimental.pallas import tpu as pltpu

# CUBA neuron hyper-parameters from the module's neuron_params.
THRESHOLD = 1.25
CURRENT_DECAY = 0.25
VOLTAGE_DECAY = 0.03
# bias = 0, Dropout(p=0.05) is identity at inference.
# TODO(synk): learnable axonal delay (delay=True) is initialized to 0, which
#             makes the time-shift an identity; the shift is not applied.
# TODO(synk): lava-dl's fixed-point (p_scale/w_scale) quantization of decays
#             and weights is not replicated; this is the analytic f32/bf16 path.

C_IN = 34 * 34 * 2      # 2312
C_IN_PAD = 2432         # 19 * 128 : lane-aligned K for the first matmul
HEAD_PAD = 128          # fused task1(10) + task2(2) outputs, lane-padded


def _cuba_scan(z, T, Bp, out_ref=None):
    """CUBA LIF dynamics on (T*Bp, Cout) synaptic currents.

    Vectorized over batch (Bp = 8 rows / step -> full sublane tiles); the time
    loop is fully unrolled (T is static) so state and z slabs live in vregs.

    If `out_ref` is given, each timestep's spike slab is stored directly into
    the output ref (full-lane vst, no intermediate (T*Bp, Cout) slab) and None
    is returned; otherwise the concatenated (T*Bp, Cout) f32 spikes return.
    """
    cout = z.shape[-1]
    cur = jnp.zeros((Bp, cout), jnp.float32)
    vol = jnp.zeros((Bp, cout), jnp.float32)
    spikes = []
    for t in range(T):                                  # static -> fully unrolled
        z_t = z[t * Bp:(t + 1) * Bp, :]                 # aligned (8, Cout) slab
        cur = (1.0 - CURRENT_DECAY) * cur + z_t         # current state
        vol = (1.0 - VOLTAGE_DECAY) * vol + cur         # voltage state (bias = 0)
        spk = (vol >= THRESHOLD).astype(jnp.float32)    # spike generation
        vol = vol * (1.0 - spk)                         # reset-to-zero on spike
        if out_ref is None:
            spikes.append(spk)
        else:
            out_ref[t * Bp:(t + 1) * Bp, :] = spk       # stream straight to output
    if out_ref is None:
        return jnp.concatenate(spikes, axis=0)          # (T*Bp, Cout) f32
    return None


def _fused_network_kernel(T, Bp):
    """Whole network (feature block + both fused heads) in a single kernel body."""

    def kernel(s_ref, w1_ref, w2_ref, w3_ref, w4_ref, o_ref):
        def layer(spk_bf16, w_ref, out_ref=None):
            # Batched synapse matmul over all (T, Bp) rows on the MXU,
            # bf16 operands / f32 accumulation.
            z = jnp.dot(spk_bf16, w_ref[...],
                        preferred_element_type=jnp.float32)
            return _cuba_scan(z, T, Bp, out_ref)

        s = s_ref[...]                                        # (T*Bp, 2432) bf16
        s = layer(s, w1_ref).astype(jnp.bfloat16)             # feature 1 -> 512
        s = layer(s, w2_ref).astype(jnp.bfloat16)             # feature 2 -> 512
        s = layer(s, w3_ref).astype(jnp.bfloat16)             # fused heads L1 -> 256
        layer(s, w4_ref, out_ref=o_ref)                       # fused heads L2 -> 128

    return kernel


def weight_norm(v, g):
    # torch.nn.utils.weight_norm(dim=0): W[o, :] = g[o] * v[o, :] / ||v[o, :]||
    norm = jnp.sqrt(jnp.sum(v * v, axis=1, keepdims=True)) + 1e-12
    w = g[:, None] * v / norm            # (Cout, Cin), torch orientation
    return w.T                           # kernel wants (Cin, Cout)


def init_dense_params(key, cin, cout):
    scale = 2.0 / (cin ** 0.5)
    v = jax.random.normal(key, (cout, cin), jnp.float32) * scale
    g = jnp.sqrt(jnp.sum(v * v, axis=1))     # weight_norm init: g = ||v|| row-wise
    return v, g


def network_forward(spike_nct, params):
    """Matches Network.forward: shared feature block, then two heads."""
    B, C, T = spike_nct.shape
    Bp = ((B + 7) // 8) * 8                       # sublane-pad batch to 8

    # ---- build fused, lane/K-padded, bf16 weights --------------------------
    wf1 = weight_norm(*params["feature"][0])                  # (2312, 512)
    wf1 = jnp.pad(wf1, ((0, C_IN_PAD - C_IN), (0, 0)))        # K pad -> 2432
    wf2 = weight_norm(*params["feature"][1])                  # (512, 512)
    wt1a = weight_norm(*params["task1"][0])                   # (512, 128)
    wt2a = weight_norm(*params["task2"][0])                   # (512, 128)
    w3 = jnp.concatenate([wt1a, wt2a], axis=1)                # (512, 256)
    wt1b = weight_norm(*params["task1"][1])                   # (128, 10)
    wt2b = weight_norm(*params["task2"][1])                   # (128, 2)
    w4 = jnp.zeros((256, HEAD_PAD), jnp.float32)              # block-diagonal,
    w4 = w4.at[:128, :10].set(wt1b)                           # lane-padded heads
    w4 = w4.at[128:, 10:12].set(wt2b)

    bf16 = lambda x: x.astype(jnp.bfloat16)

    # ---- input: (N, C, T) -> (T, Bp, C_pad) -> (T*Bp, C_pad), bf16 ---------
    s = jnp.transpose(spike_nct, (2, 0, 1))                   # (T, B, C)
    s = jnp.pad(s, ((0, 0), (0, Bp - B), (0, C_IN_PAD - C)))
    s = bf16(s.reshape(T * Bp, C_IN_PAD))

    out = pl.pallas_call(
        _fused_network_kernel(T, Bp),
        out_shape=jax.ShapeDtypeStruct((T * Bp, HEAD_PAD), jnp.float32),
        grid=(1,),
        in_specs=[
            pl.BlockSpec((T * Bp, C_IN_PAD), lambda i: (0, 0)),   # spikes
            pl.BlockSpec((C_IN_PAD, 512), lambda i: (0, 0)),      # feature 1
            pl.BlockSpec((512, 512), lambda i: (0, 0)),           # feature 2
            pl.BlockSpec((512, 256), lambda i: (0, 0)),           # fused heads L1
            pl.BlockSpec((256, HEAD_PAD), lambda i: (0, 0)),      # fused heads L2
        ],
        out_specs=pl.BlockSpec((T * Bp, HEAD_PAD), lambda i: (0, 0)),
        compiler_params=pltpu.CompilerParams(
            dimension_semantics=("arbitrary",),
            vmem_limit_bytes=64 << 20),
    )(s, bf16(wf1), bf16(wf2), bf16(w3), bf16(w4))

    # ---- back to lava-dl layout (N, C, T); padded rows/lanes are all-zero --
    out = out.reshape(T, Bp, HEAD_PAD)
    task1 = jnp.transpose(out[:, :B, :10], (1, 2, 0))         # (B, 10, T)
    task2 = jnp.transpose(out[:, :B, 10:12], (1, 2, 0))       # (B, 2, T)
    return task1, task2


if __name__ == "__main__":
    key = jax.random.PRNGKey(0)
    B, T = 2, 8

    dims_feature = [(C_IN, 512), (512, 512)]
    dims_task1 = [(512, 128), (128, 10)]
    dims_task2 = [(512, 128), (128, 2)]

    keys = jax.random.split(key, 7)
    params = {
        "feature": [init_dense_params(keys[i], ci, co)
                    for i, (ci, co) in enumerate(dims_feature)],
        "task1": [init_dense_params(keys[2 + i], ci, co)
                  for i, (ci, co) in enumerate(dims_task1)],
        "task2": [init_dense_params(keys[4 + i], ci, co)
                  for i, (ci, co) in enumerate(dims_task2)],
    }

    # Binary input spike train, lava-dl layout (N, C, T).
    spike = (jax.random.uniform(keys[6], (B, C_IN, T)) < 0.3).astype(jnp.float32)

    out_task1, out_task2 = jax.jit(network_forward)(spike, params)
    jax.block_until_ready((out_task1, out_task2))

    assert out_task1.shape == (B, 10, T), out_task1.shape
    assert out_task2.shape == (B, 2, T), out_task2.shape
    assert bool(jnp.all(jnp.isfinite(out_task1))) and bool(jnp.all(jnp.isfinite(out_task2)))
    print("KERNEL_OK")
</pallas_src>

<mosaic_0001>
module attributes {stable_mosaic.version = 11 : i64} {
  func.func @kernel(%arg0: i32, %arg1: memref<64x2432xbf16, #tpu.memory_space<vmem>>, %arg2: memref<2432x512xbf16, #tpu.memory_space<vmem>>, %arg3: memref<512x512xbf16, #tpu.memory_space<vmem>>, %arg4: memref<512x256xbf16, #tpu.memory_space<vmem>>, %arg5: memref<256x128xbf16, #tpu.memory_space<vmem>>, %arg6: memref<64x128xf32, #tpu.memory_space<vmem>>) attributes {dimension_semantics = [#tpu.dimension_semantics<arbitrary>], iteration_bounds = array<i64: 1>, scalar_prefetch = 0 : i64, scratch_operands = 0 : i64, tpu.core_type = #tpu.core_type<tc>, window_params = [{pipeline_mode = #tpu.pipeline_mode<synchronous>, transform_indices = @transform_0, window_bounds = array<i64: 64, 2432>}, {pipeline_mode = #tpu.pipeline_mode<synchronous>, transform_indices = @transform_1, window_bounds = array<i64: 2432, 512>}, {pipeline_mode = #tpu.pipeline_mode<synchronous>, transform_indices = @transform_2, window_bounds = array<i64: 512, 512>}, {pipeline_mode = #tpu.pipeline_mode<synchronous>, transform_indices = @transform_3, window_bounds = array<i64: 512, 256>}, {pipeline_mode = #tpu.pipeline_mode<synchronous>, transform_indices = @transform_4, window_bounds = array<i64: 256, 128>}, {pipeline_mode = #tpu.pipeline_mode<synchronous>, transform_indices = @transform_5, window_bounds = array<i64: 64, 128>}]} {
    %c0 = arith.constant 0 : index
    %c0_0 = arith.constant 0 : index
    %0 = vector.load %arg1[%c0, %c0_0] : memref<64x2432xbf16, #tpu.memory_space<vmem>>, vector<64x2432xbf16>
    %c0_1 = arith.constant 0 : index
    %c0_2 = arith.constant 0 : index
    %1 = vector.load %arg2[%c0_1, %c0_2] : memref<2432x512xbf16, #tpu.memory_space<vmem>>, vector<2432x512xbf16>
    %cst = arith.constant dense<0.000000e+00> : vector<64x512xf32>
    %2 = tpu.matmul %0, %1, %cst {dimension_numbers = #tpu.dot_dimension_numbers<[1], [0], [0], [1], [0, 0, 1, 1], [], []>} : vector<64x2432xbf16>, vector<2432x512xbf16>, vector<64x512xf32> -> vector<64x512xf32>
    %cst_3 = arith.constant 0.000000e+00 : f32
    %3 = vector.broadcast %cst_3 : f32 to vector<8x512xf32>
    %cst_4 = arith.constant 0.000000e+00 : f32
    %4 = vector.broadcast %cst_4 : f32 to vector<8x512xf32>
    %5 = vector.extract_strided_slice %2 {offsets = [0, 0], sizes = [8, 512], strides = [1, 1]} : vector<64x512xf32> to vector<8x512xf32>
    %cst_5 = arith.constant 7.500000e-01 : f32
    %6 = vector.broadcast %cst_5 : f32 to vector<8x512xf32>
    %7 = arith.mulf %6, %3 : vector<8x512xf32>
    %8 = arith.addf %7, %5 : vector<8x512xf32>
    %cst_6 = arith.constant 9.700000e-01 : f32
    %9 = vector.broadcast %cst_6 : f32 to vector<8x512xf32>
    %10 = arith.mulf %9, %4 : vector<8x512xf32>
    %11 = arith.addf %10, %8 : vector<8x512xf32>
    %cst_7 = arith.constant 1.250000e+00 : f32
    %12 = vector.broadcast %cst_7 : f32 to vector<8x512xf32>
    %13 = arith.cmpf oge, %11, %12 : vector<8x512xf32>
    %14 = arith.extui %13 : vector<8x512xi1> to vector<8x512xi32>
    %15 = arith.sitofp %14 : vector<8x512xi32> to vector<8x512xf32>
    %cst_8 = arith.constant 1.000000e+00 : f32
    %16 = vector.broadcast %cst_8 : f32 to vector<8x512xf32>
    %17 = arith.subf %16, %15 : vector<8x512xf32>
    %18 = arith.mulf %11, %17 : vector<8x512xf32>
    %19 = vector.extract_strided_slice %2 {offsets = [8, 0], sizes = [8, 512], strides = [1, 1]} : vector<64x512xf32> to vector<8x512xf32>
    %cst_9 = arith.constant 7.500000e-01 : f32
    %20 = vector.broadcast %cst_9 : f32 to vector<8x512xf32>
    %21 = arith.mulf %20, %8 : vector<8x512xf32>
    %22 = arith.addf %21, %19 : vector<8x512xf32>
    %cst_10 = arith.constant 9.700000e-01 : f32
    %23 = vector.broadcast %cst_10 : f32 to vector<8x512xf32>
    %24 = arith.mulf %23, %18 : vector<8x512xf32>
    %25 = arith.addf %24, %22 : vector<8x512xf32>
    %cst_11 = arith.constant 1.250000e+00 : f32
    %26 = vector.broadcast %cst_11 : f32 to vector<8x512xf32>
    %27 = arith.cmpf oge, %25, %26 : vector<8x512xf32>
    %28 = arith.extui %27 : vector<8x512xi1> to vector<8x512xi32>
    %29 = arith.sitofp %28 : vector<8x512xi32> to vector<8x512xf32>
    %cst_12 = arith.constant 1.000000e+00 : f32
    %30 = vector.broadcast %cst_12 : f32 to vector<8x512xf32>
    %31 = arith.subf %30, %29 : vector<8x512xf32>
    %32 = arith.mulf %25, %31 : vector<8x512xf32>
    %33 = vector.extract_strided_slice %2 {offsets = [16, 0], sizes = [8, 512], strides = [1, 1]} : vector<64x512xf32> to vector<8x512xf32>
    %cst_13 = arith.constant 7.500000e-01 : f32
    %34 = vector.broadcast %cst_13 : f32 to vector<8x512xf32>
    %35 = arith.mulf %34, %22 : vector<8x512xf32>
    %36 = arith.addf %35, %33 : vector<8x512xf32>
    %cst_14 = arith.constant 9.700000e-01 : f32
    %37 = vector.broadcast %cst_14 : f32 to vector<8x512xf32>
    %38 = arith.mulf %37, %32 : vector<8x512xf32>
    %39 = arith.addf %38, %36 : vector<8x512xf32>
    %cst_15 = arith.constant 1.250000e+00 : f32
    %40 = vector.broadcast %cst_15 : f32 to vector<8x512xf32>
    %41 = arith.cmpf oge, %39, %40 : vector<8x512xf32>
    %42 = arith.extui %41 : vector<8x512xi1> to vector<8x512xi32>
    %43 = arith.sitofp %42 : vector<8x512xi32> to vector<8x512xf32>
    %cst_16 = arith.constant 1.000000e+00 : f32
    %44 = vector.broadcast %cst_16 : f32 to vector<8x512xf32>
    %45 = arith.subf %44, %43 : vector<8x512xf32>
    %46 = arith.mulf %39, %45 : vector<8x512xf32>
    %47 = vector.extract_strided_slice %2 {offsets = [24, 0], sizes = [8, 512], strides = [1, 1]} : vector<64x512xf32> to vector<8x512xf32>
    %cst_17 = arith.constant 7.500000e-01 : f32
    %48 = vector.broadcast %cst_17 : f32 to vector<8x512xf32>
    %49 = arith.mulf %48, %36 : vector<8x512xf32>
    %50 = arith.addf %49, %47 : vector<8x512xf32>
    %cst_18 = arith.constant 9.700000e-01 : f32
    %51 = vector.broadcast %cst_18 : f32 to vector<8x512xf32>
    %52 = arith.mulf %51, %46 : vector<8x512xf32>
    %53 = arith.addf %52, %50 : vector<8x512xf32>
    %cst_19 = arith.constant 1.250000e+00 : f32
    %54 = vector.broadcast %cst_19 : f32 to vector<8x512xf32>
    %55 = arith.cmpf oge, %53, %54 : vector<8x512xf32>
    %56 = arith.extui %55 : vector<8x512xi1> to vector<8x512xi32>
    %57 = arith.sitofp %56 : vector<8x512xi32> to vector<8x512xf32>
    %cst_20 = arith.constant 1.000000e+00 : f32
    %58 = vector.broadcast %cst_20 : f32 to vector<8x512xf32>
    %59 = arith.subf %58, %57 : vector<8x512xf32>
    %60 = arith.mulf %53, %59 : vector<8x512xf32>
    %61 = vector.extract_strided_slice %2 {offsets = [32, 0], sizes = [8, 512], strides = [1, 1]} : vector<64x512xf32> to vector<8x512xf32>
    %cst_21 = arith.constant 7.500000e-01 : f32
    %62 = vector.broadcast %cst_21 : f32 to vector<8x512xf32>
    %63 = arith.mulf %62, %50 : vector<8x512xf32>
    %64 = arith.addf %63, %61 : vector<8x512xf32>
    %cst_22 = arith.constant 9.700000e-01 : f32
    %65 = vector.broadcast %cst_22 : f32 to vector<8x512xf32>
    %66 = arith.mulf %65, %60 : vector<8x512xf32>
    %67 = arith.addf %66, %64 : vector<8x512xf32>
    %cst_23 = arith.constant 1.250000e+00 : f32
    %68 = vector.broadcast %cst_23 : f32 to vector<8x512xf32>
    %69 = arith.cmpf oge, %67, %68 : vector<8x512xf32>
    %70 = arith.extui %69 : vector<8x512xi1> to vector<8x512xi32>
    %71 = arith.sitofp %70 : vector<8x512xi32> to vector<8x512xf32>
    %cst_24 = arith.constant 1.000000e+00 : f32
    %72 = vector.broadcast %cst_24 : f32 to vector<8x512xf32>
    %73 = arith.subf %72, %71 : vector<8x512xf32>
    %74 = arith.mulf %67, %73 : vector<8x512xf32>
    %75 = vector.extract_strided_slice %2 {offsets = [40, 0], sizes = [8, 512], strides = [1, 1]} : vector<64x512xf32> to vector<8x512xf32>
    %cst_25 = arith.constant 7.500000e-01 : f32
    %76 = vector.broadcast %cst_25 : f32 to vector<8x512xf32>
    %77 = arith.mulf %76, %64 : vector<8x512xf32>
    %78 = arith.addf %77, %75 : vector<8x512xf32>
    %cst_26 = arith.constant 9.700000e-01 : f32
    %79 = vector.broadcast %cst_26 : f32 to vector<8x512xf32>
    %80 = arith.mulf %79, %74 : vector<8x512xf32>
    %81 = arith.addf %80, %78 : vector<8x512xf32>
    %cst_27 = arith.constant 1.250000e+00 : f32
    %82 = vector.broadcast %cst_27 : f32 to vector<8x512xf32>
    %83 = arith.cmpf oge, %81, %82 : vector<8x512xf32>
    %84 = arith.extui %83 : vector<8x512xi1> to vector<8x512xi32>
    %85 = arith.sitofp %84 : vector<8x512xi32> to vector<8x512xf32>
    %cst_28 = arith.constant 1.000000e+00 : f32
    %86 = vector.broadcast %cst_28 : f32 to vector<8x512xf32>
    %87 = arith.subf %86, %85 : vector<8x512xf32>
    %88 = arith.mulf %81, %87 : vector<8x512xf32>
    %89 = vector.extract_strided_slice %2 {offsets = [48, 0], sizes = [8, 512], strides = [1, 1]} : vector<64x512xf32> to vector<8x512xf32>
    %cst_29 = arith.constant 7.500000e-01 : f32
    %90 = vector.broadcast %cst_29 : f32 to vector<8x512xf32>
    %91 = arith.mulf %90, %78 : vector<8x512xf32>
    %92 = arith.addf %91, %89 : vector<8x512xf32>
    %cst_30 = arith.constant 9.700000e-01 : f32
    %93 = vector.broadcast %cst_30 : f32 to vector<8x512xf32>
    %94 = arith.mulf %93, %88 : vector<8x512xf32>
    %95 = arith.addf %94, %92 : vector<8x512xf32>
    %cst_31 = arith.constant 1.250000e+00 : f32
    %96 = vector.broadcast %cst_31 : f32 to vector<8x512xf32>
    %97 = arith.cmpf oge, %95, %96 : vector<8x512xf32>
    %98 = arith.extui %97 : vector<8x512xi1> to vector<8x512xi32>
    %99 = arith.sitofp %98 : vector<8x512xi32> to vector<8x512xf32>
    %cst_32 = arith.constant 1.000000e+00 : f32
    %100 = vector.broadcast %cst_32 : f32 to vector<8x512xf32>
    %101 = arith.subf %100, %99 : vector<8x512xf32>
    %102 = arith.mulf %95, %101 : vector<8x512xf32>
    %103 = vector.extract_strided_slice %2 {offsets = [56, 0], sizes = [8, 512], strides = [1, 1]} : vector<64x512xf32> to vector<8x512xf32>
    %cst_33 = arith.constant 7.500000e-01 : f32
    %104 = vector.broadcast %cst_33 : f32 to vector<8x512xf32>
    %105 = arith.mulf %104, %92 : vector<8x512xf32>
    %106 = arith.addf %105, %103 : vector<8x512xf32>
    %cst_34 = arith.constant 9.700000e-01 : f32
    %107 = vector.broadcast %cst_34 : f32 to vector<8x512xf32>
    %108 = arith.mulf %107, %102 : vector<8x512xf32>
    %109 = arith.addf %108, %106 : vector<8x512xf32>
    %cst_35 = arith.constant 1.250000e+00 : f32
    %110 = vector.broadcast %cst_35 : f32 to vector<8x512xf32>
    %111 = arith.cmpf oge, %109, %110 : vector<8x512xf32>
    %112 = arith.extui %111 : vector<8x512xi1> to vector<8x512xi32>
    %113 = arith.sitofp %112 : vector<8x512xi32> to vector<8x512xf32>
    %114 = tpu.concatenate %15, %29, %43, %57, %71, %85, %99, %113 in 0 : vector<8x512xf32>, vector<8x512xf32>, vector<8x512xf32>, vector<8x512xf32>, vector<8x512xf32>, vector<8x512xf32>, vector<8x512xf32>, vector<8x512xf32> -> vector<64x512xf32>
    %115 = arith.truncf %114 : vector<64x512xf32> to vector<64x512xbf16>
    %c0_36 = arith.constant 0 : index
    %c0_37 = arith.constant 0 : index
    %116 = vector.load %arg3[%c0_36, %c0_37] : memref<512x512xbf16, #tpu.memory_space<vmem>>, vector<512x512xbf16>
    %cst_38 = arith.constant dense<0.000000e+00> : vector<64x512xf32>
    %117 = tpu.matmul %115, %116, %cst_38 {dimension_numbers = #tpu.dot_dimension_numbers<[1], [0], [0], [1], [0, 0, 1, 1], [], []>} : vector<64x512xbf16>, vector<512x512xbf16>, vector<64x512xf32> -> vector<64x512xf32>
    %cst_39 = arith.constant 0.000000e+00 : f32
    %118 = vector.broadcast %cst_39 : f32 to vector<8x512xf32>
    %cst_40 = arith.constant 0.000000e+00 : f32
    %119 = vector.broadcast %cst_40 : f32 to vector<8x512xf32>
    %120 = vector.extract_strided_slice %117 {offsets = [0, 0], sizes = [8, 512], strides = [1, 1]} : vector<64x512xf32> to vector<8x512xf32>
    %cst_41 = arith.constant 7.500000e-01 : f32
    %121 = vector.broadcast %cst_41 : f32 to vector<8x512xf32>
    %122 = arith.mulf %121, %118 : vector<8x512xf32>
    %123 = arith.addf %122, %120 : vector<8x512xf32>
    %cst_42 = arith.constant 9.700000e-01 : f32
    %124 = vector.broadcast %cst_42 : f32 to vector<8x512xf32>
    %125 = arith.mulf %124, %119 : vector<8x512xf32>
    %126 = arith.addf %125, %123 : vector<8x512xf32>
    %cst_43 = arith.constant 1.250000e+00 : f32
    %127 = vector.broadcast %cst_43 : f32 to vector<8x512xf32>
    %128 = arith.cmpf oge, %126, %127 : vector<8x512xf32>
    %129 = arith.extui %128 : vector<8x512xi1> to vector<8x512xi32>
    %130 = arith.sitofp %129 : vector<8x512xi32> to vector<8x512xf32>
    %cst_44 = arith.constant 1.000000e+00 : f32
    %131 = vector.broadcast %cst_44 : f32 to vector<8x512xf32>
    %132 = arith.subf %131, %130 : vector<8x512xf32>
    %133 = arith.mulf %126, %132 : vector<8x512xf32>
    %134 = vector.extract_strided_slice %117 {offsets = [8, 0], sizes = [8, 512], strides = [1, 1]} : vector<64x512xf32> to vector<8x512xf32>
    %cst_45 = arith.constant 7.500000e-01 : f32
    %135 = vector.broadcast %cst_45 : f32 to vector<8x512xf32>
    %136 = arith.mulf %135, %123 : vector<8x512xf32>
    %137 = arith.addf %136, %134 : vector<8x512xf32>
    %cst_46 = arith.constant 9.700000e-01 : f32
    %138 = vector.broadcast %cst_46 : f32 to vector<8x512xf32>
    %139 = arith.mulf %138, %133 : vector<8x512xf32>
    %140 = arith.addf %139, %137 : vector<8x512xf32>
    %cst_47 = arith.constant 1.250000e+00 : f32
    %141 = vector.broadcast %cst_47 : f32 to vector<8x512xf32>
    %142 = arith.cmpf oge, %140, %141 : vector<8x512xf32>
    %143 = arith.extui %142 : vector<8x512xi1> to vector<8x512xi32>
    %144 = arith.sitofp %143 : vector<8x512xi32> to vector<8x512xf32>
    %cst_48 = arith.constant 1.000000e+00 : f32
    %145 = vector.broadcast %cst_48 : f32 to vector<8x512xf32>
    %146 = arith.subf %145, %144 : vector<8x512xf32>
    %147 = arith.mulf %140, %146 : vector<8x512xf32>
    %148 = vector.extract_strided_slice %117 {offsets = [16, 0], sizes = [8, 512], strides = [1, 1]} : vector<64x512xf32> to vector<8x512xf32>
    %cst_49 = arith.constant 7.500000e-01 : f32
    %149 = vector.broadcast %cst_49 : f32 to vector<8x512xf32>
    %150 = arith.mulf %149, %137 : vector<8x512xf32>
    %151 = arith.addf %150, %148 : vector<8x512xf32>
    %cst_50 = arith.constant 9.700000e-01 : f32
    %152 = vector.broadcast %cst_50 : f32 to vector<8x512xf32>
    %153 = arith.mulf %152, %147 : vector<8x512xf32>
    %154 = arith.addf %153, %151 : vector<8x512xf32>
    %cst_51 = arith.constant 1.250000e+00 : f32
    %155 = vector.broadcast %cst_51 : f32 to vector<8x512xf32>
    %156 = arith.cmpf oge, %154, %155 : vector<8x512xf32>
    %157 = arith.extui %156 : vector<8x512xi1> to vector<8x512xi32>
    %158 = arith.sitofp %157 : vector<8x512xi32> to vector<8x512xf32>
    %cst_52 = arith.constant 1.000000e+00 : f32
    %159 = vector.broadcast %cst_52 : f32 to vector<8x512xf32>
    %160 = arith.subf %159, %158 : vector<8x512xf32>
    %161 = arith.mulf %154, %160 : vector<8x512xf32>
    %162 = vector.extract_strided_slice %117 {offsets = [24, 0], sizes = [8, 512], strides = [1, 1]} : vector<64x512xf32> to vector<8x512xf32>
    %cst_53 = arith.constant 7.500000e-01 : f32
    %163 = vector.broadcast %cst_53 : f32 to vector<8x512xf32>
    %164 = arith.mulf %163, %151 : vector<8x512xf32>
    %165 = arith.addf %164, %162 : vector<8x512xf32>
    %cst_54 = arith.constant 9.700000e-01 : f32
    %166 = vector.broadcast %cst_54 : f32 to vector<8x512xf32>
    %167 = arith.mulf %166, %161 : vector<8x512xf32>
    %168 = arith.addf %167, %165 : vector<8x512xf32>
    %cst_55 = arith.constant 1.250000e+00 : f32
    %169 = vector.broadcast %cst_55 : f32 to vector<8x512xf32>
    %170 = arith.cmpf oge, %168, %169 : vector<8x512xf32>
    %171 = arith.extui %170 : vector<8x512xi1> to vector<8x512xi32>
    %172 = arith.sitofp %171 : vector<8x512xi32> to vector<8x512xf32>
    %cst_56 = arith.constant 1.000000e+00 : f32
    %173 = vector.broadcast %cst_56 : f32 to vector<8x512xf32>
    %174 = arith.subf %173, %172 : vector<8x512xf32>
    %175 = arith.mulf %168, %174 : vector<8x512xf32>
    %176 = vector.extract_strided_slice %117 {offsets = [32, 0], sizes = [8, 512], strides = [1, 1]} : vector<64x512xf32> to vector<8x512xf32>
    %cst_57 = arith.constant 7.500000e-01 : f32
    %177 = vector.broadcast %cst_57 : f32 to vector<8x512xf32>
    %178 = arith.mulf %177, %165 : vector<8x512xf32>
    %179 = arith.addf %178, %176 : vector<8x512xf32>
    %cst_58 = arith.constant 9.700000e-01 : f32
    %180 = vector.broadcast %cst_58 : f32 to vector<8x512xf32>
    %181 = arith.mulf %180, %175 : vector<8x512xf32>
    %182 = arith.addf %181, %179 : vector<8x512xf32>
    %cst_59 = arith.constant 1.250000e+00 : f32
    %183 = vector.broadcast %cst_59 : f32 to vector<8x512xf32>
    %184 = arith.cmpf oge, %182, %183 : vector<8x512xf32>
    %185 = arith.extui %184 : vector<8x512xi1> to vector<8x512xi32>
    %186 = arith.sitofp %185 : vector<8x512xi32> to vector<8x512xf32>
    %cst_60 = arith.constant 1.000000e+00 : f32
    %187 = vector.broadcast %cst_60 : f32 to vector<8x512xf32>
    %188 = arith.subf %187, %186 : vector<8x512xf32>
    %189 = arith.mulf %182, %188 : vector<8x512xf32>
    %190 = vector.extract_strided_slice %117 {offsets = [40, 0], sizes = [8, 512], strides = [1, 1]} : vector<64x512xf32> to vector<8x512xf32>
    %cst_61 = arith.constant 7.500000e-01 : f32
    %191 = vector.broadcast %cst_61 : f32 to vector<8x512xf32>
    %192 = arith.mulf %191, %179 : vector<8x512xf32>
    %193 = arith.addf %192, %190 : vector<8x512xf32>
    %cst_62 = arith.constant 9.700000e-01 : f32
    %194 = vector.broadcast %cst_62 : f32 to vector<8x512xf32>
    %195 = arith.mulf %194, %189 : vector<8x512xf32>
    %196 = arith.addf %195, %193 : vector<8x512xf32>
    %cst_63 = arith.constant 1.250000e+00 : f32
    %197 = vector.broadcast %cst_63 : f32 to vector<8x512xf32>
    %198 = arith.cmpf oge, %196, %197 : vector<8x512xf32>
    %199 = arith.extui %198 : vector<8x512xi1> to vector<8x512xi32>
    %200 = arith.sitofp %199 : vector<8x512xi32> to vector<8x512xf32>
    %cst_64 = arith.constant 1.000000e+00 : f32
    %201 = vector.broadcast %cst_64 : f32 to vector<8x512xf32>
    %202 = arith.subf %201, %200 : vector<8x512xf32>
    %203 = arith.mulf %196, %202 : vector<8x512xf32>
    %204 = vector.extract_strided_slice %117 {offsets = [48, 0], sizes = [8, 512], strides = [1, 1]} : vector<64x512xf32> to vector<8x512xf32>
    %cst_65 = arith.constant 7.500000e-01 : f32
    %205 = vector.broadcast %cst_65 : f32 to vector<8x512xf32>
    %206 = arith.mulf %205, %193 : vector<8x512xf32>
    %207 = arith.addf %206, %204 : vector<8x512xf32>
    %cst_66 = arith.constant 9.700000e-01 : f32
    %208 = vector.broadcast %cst_66 : f32 to vector<8x512xf32>
    %209 = arith.mulf %208, %203 : vector<8x512xf32>
    %210 = arith.addf %209, %207 : vector<8x512xf32>
    %cst_67 = arith.constant 1.250000e+00 : f32
    %211 = vector.broadcast %cst_67 : f32 to vector<8x512xf32>
    %212 = arith.cmpf oge, %210, %211 : vector<8x512xf32>
    %213 = arith.extui %212 : vector<8x512xi1> to vector<8x512xi32>
    %214 = arith.sitofp %213 : vector<8x512xi32> to vector<8x512xf32>
    %cst_68 = arith.constant 1.000000e+00 : f32
    %215 = vector.broadcast %cst_68 : f32 to vector<8x512xf32>
    %216 = arith.subf %215, %214 : vector<8x512xf32>
    %217 = arith.mulf %210, %216 : vector<8x512xf32>
    %218 = vector.extract_strided_slice %117 {offsets = [56, 0], sizes = [8, 512], strides = [1, 1]} : vector<64x512xf32> to vector<8x512xf32>
    %cst_69 = arith.constant 7.500000e-01 : f32
    %219 = vector.broadcast %cst_69 : f32 to vector<8x512xf32>
    %220 = arith.mulf %219, %207 : vector<8x512xf32>
    %221 = arith.addf %220, %218 : vector<8x512xf32>
    %cst_70 = arith.constant 9.700000e-01 : f32
    %222 = vector.broadcast %cst_70 : f32 to vector<8x512xf32>
    %223 = arith.mulf %222, %217 : vector<8x512xf32>
    %224 = arith.addf %223, %221 : vector<8x512xf32>
    %cst_71 = arith.constant 1.250000e+00 : f32
    %225 = vector.broadcast %cst_71 : f32 to vector<8x512xf32>
    %226 = arith.cmpf oge, %224, %225 : vector<8x512xf32>
    %227 = arith.extui %226 : vector<8x512xi1> to vector<8x512xi32>
    %228 = arith.sitofp %227 : vector<8x512xi32> to vector<8x512xf32>
    %229 = tpu.concatenate %130, %144, %158, %172, %186, %200, %214, %228 in 0 : vector<8x512xf32>, vector<8x512xf32>, vector<8x512xf32>, vector<8x512xf32>, vector<8x512xf32>, vector<8x512xf32>, vector<8x512xf32>, vector<8x512xf32> -> vector<64x512xf32>
    %230 = arith.truncf %229 : vector<64x512xf32> to vector<64x512xbf16>
    %c0_72 = arith.constant 0 : index
    %c0_73 = arith.constant 0 : index
    %231 = vector.load %arg4[%c0_72, %c0_73] : memref<512x256xbf16, #tpu.memory_space<vmem>>, vector<512x256xbf16>
    %cst_74 = arith.constant dense<0.000000e+00> : vector<64x256xf32>
    %232 = tpu.matmul %230, %231, %cst_74 {dimension_numbers = #tpu.dot_dimension_numbers<[1], [0], [0], [1], [0, 0, 1, 1], [], []>} : vector<64x512xbf16>, vector<512x256xbf16>, vector<64x256xf32> -> vector<64x256xf32>
    %cst_75 = arith.constant 0.000000e+00 : f32
    %233 = vector.broadcast %cst_75 : f32 to vector<8x256xf32>
    %cst_76 = arith.constant 0.000000e+00 : f32
    %234 = vector.broadcast %cst_76 : f32 to vector<8x256xf32>
    %235 = vector.extract_strided_slice %232 {offsets = [0, 0], sizes = [8, 256], strides = [1, 1]} : vector<64x256xf32> to vector<8x256xf32>
    %cst_77 = arith.constant 7.500000e-01 : f32
    %236 = vector.broadcast %cst_77 : f32 to vector<8x256xf32>
    %237 = arith.mulf %236, %233 : vector<8x256xf32>
    %238 = arith.addf %237, %235 : vector<8x256xf32>
    %cst_78 = arith.constant 9.700000e-01 : f32
    %239 = vector.broadcast %cst_78 : f32 to vector<8x256xf32>
    %240 = arith.mulf %239, %234 : vector<8x256xf32>
    %241 = arith.addf %240, %238 : vector<8x256xf32>
    %cst_79 = arith.constant 1.250000e+00 : f32
    %242 = vector.broadcast %cst_79 : f32 to vector<8x256xf32>
    %243 = arith.cmpf oge, %241, %242 : vector<8x256xf32>
    %244 = arith.extui %243 : vector<8x256xi1> to vector<8x256xi32>
    %245 = arith.sitofp %244 : vector<8x256xi32> to vector<8x256xf32>
    %cst_80 = arith.constant 1.000000e+00 : f32
    %246 = vector.broadcast %cst_80 : f32 to vector<8x256xf32>
    %247 = arith.subf %246, %245 : vector<8x256xf32>
    %248 = arith.mulf %241, %247 : vector<8x256xf32>
    %249 = vector.extract_strided_slice %232 {offsets = [8, 0], sizes = [8, 256], strides = [1, 1]} : vector<64x256xf32> to vector<8x256xf32>
    %cst_81 = arith.constant 7.500000e-01 : f32
    %250 = vector.broadcast %cst_81 : f32 to vector<8x256xf32>
    %251 = arith.mulf %250, %238 : vector<8x256xf32>
    %252 = arith.addf %251, %249 : vector<8x256xf32>
    %cst_82 = arith.constant 9.700000e-01 : f32
    %253 = vector.broadcast %cst_82 : f32 to vector<8x256xf32>
    %254 = arith.mulf %253, %248 : vector<8x256xf32>
    %255 = arith.addf %254, %252 : vector<8x256xf32>
    %cst_83 = arith.constant 1.250000e+00 : f32
    %256 = vector.broadcast %cst_83 : f32 to vector<8x256xf32>
    %257 = arith.cmpf oge, %255, %256 : vector<8x256xf32>
    %258 = arith.extui %257 : vector<8x256xi1> to vector<8x256xi32>
    %259 = arith.sitofp %258 : vector<8x256xi32> to vector<8x256xf32>
    %cst_84 = arith.constant 1.000000e+00 : f32
    %260 = vector.broadcast %cst_84 : f32 to vector<8x256xf32>
    %261 = arith.subf %260, %259 : vector<8x256xf32>
    %262 = arith.mulf %255, %261 : vector<8x256xf32>
    %263 = vector.extract_strided_slice %232 {offsets = [16, 0], sizes = [8, 256], strides = [1, 1]} : vector<64x256xf32> to vector<8x256xf32>
    %cst_85 = arith.constant 7.500000e-01 : f32
    %264 = vector.broadcast %cst_85 : f32 to vector<8x256xf32>
    %265 = arith.mulf %264, %252 : vector<8x256xf32>
    %266 = arith.addf %265, %263 : vector<8x256xf32>
    %cst_86 = arith.constant 9.700000e-01 : f32
    %267 = vector.broadcast %cst_86 : f32 to vector<8x256xf32>
    %268 = arith.mulf %267, %262 : vector<8x256xf32>
    %269 = arith.addf %268, %266 : vector<8x256xf32>
    %cst_87 = arith.constant 1.250000e+00 : f32
    %270 = vector.broadcast %cst_87 : f32 to vector<8x256xf32>
    %271 = arith.cmpf oge, %269, %270 : vector<8x256xf32>
    %272 = arith.extui %271 : vector<8x256xi1> to vector<8x256xi32>
    %273 = arith.sitofp %272 : vector<8x256xi32> to vector<8x256xf32>
    %cst_88 = arith.constant 1.000000e+00 : f32
    %274 = vector.broadcast %cst_88 : f32 to vector<8x256xf32>
    %275 = arith.subf %274, %273 : vector<8x256xf32>
    %276 = arith.mulf %269, %275 : vector<8x256xf32>
    %277 = vector.extract_strided_slice %232 {offsets = [24, 0], sizes = [8, 256], strides = [1, 1]} : vector<64x256xf32> to vector<8x256xf32>
    %cst_89 = arith.constant 7.500000e-01 : f32
    %278 = vector.broadcast %cst_89 : f32 to vector<8x256xf32>
    %279 = arith.mulf %278, %266 : vector<8x256xf32>
    %280 = arith.addf %279, %277 : vector<8x256xf32>
    %cst_90 = arith.constant 9.700000e-01 : f32
    %281 = vector.broadcast %cst_90 : f32 to vector<8x256xf32>
    %282 = arith.mulf %281, %276 : vector<8x256xf32>
    %283 = arith.addf %282, %280 : vector<8x256xf32>
    %cst_91 = arith.constant 1.250000e+00 : f32
    %284 = vector.broadcast %cst_91 : f32 to vector<8x256xf32>
    %285 = arith.cmpf oge, %283, %284 : vector<8x256xf32>
    %286 = arith.extui %285 : vector<8x256xi1> to vector<8x256xi32>
    %287 = arith.sitofp %286 : vector<8x256xi32> to vector<8x256xf32>
    %cst_92 = arith.constant 1.000000e+00 : f32
    %288 = vector.broadcast %cst_92 : f32 to vector<8x256xf32>
    %289 = arith.subf %288, %287 : vector<8x256xf32>
    %290 = arith.mulf %283, %289 : vector<8x256xf32>
    %291 = vector.extract_strided_slice %232 {offsets = [32, 0], sizes = [8, 256], strides = [1, 1]} : vector<64x256xf32> to vector<8x256xf32>
    %cst_93 = arith.constant 7.500000e-01 : f32
    %292 = vector.broadcast %cst_93 : f32 to vector<8x256xf32>
    %293 = arith.mulf %292, %280 : vector<8x256xf32>
    %294 = arith.addf %293, %291 : vector<8x256xf32>
    %cst_94 = arith.constant 9.700000e-01 : f32
    %295 = vector.broadcast %cst_94 : f32 to vector<8x256xf32>
    %296 = arith.mulf %295, %290 : vector<8x256xf32>
    %297 = arith.addf %296, %294 : vector<8x256xf32>
    %cst_95 = arith.constant 1.250000e+00 : f32
    %298 = vector.broadcast %cst_95 : f32 to vector<8x256xf32>
    %299 = arith.cmpf oge, %297, %298 : vector<8x256xf32>
    %300 = arith.extui %299 : vector<8x256xi1> to vector<8x256xi32>
    %301 = arith.sitofp %300 : vector<8x256xi32> to vector<8x256xf32>
    %cst_96 = arith.constant 1.000000e+00 : f32
    %302 = vector.broadcast %cst_96 : f32 to vector<8x256xf32>
    %303 = arith.subf %302, %301 : vector<8x256xf32>
    %304 = arith.mulf %297, %303 : vector<8x256xf32>
    %305 = vector.extract_strided_slice %232 {offsets = [40, 0], sizes = [8, 256], strides = [1, 1]} : vector<64x256xf32> to vector<8x256xf32>
    %cst_97 = arith.constant 7.500000e-01 : f32
    %306 = vector.broadcast %cst_97 : f32 to vector<8x256xf32>
    %307 = arith.mulf %306, %294 : vector<8x256xf32>
    %308 = arith.addf %307, %305 : vector<8x256xf32>
    %cst_98 = arith.constant 9.700000e-01 : f32
    %309 = vector.broadcast %cst_98 : f32 to vector<8x256xf32>
    %310 = arith.mulf %309, %304 : vector<8x256xf32>
    %311 = arith.addf %310, %308 : vector<8x256xf32>
    %cst_99 = arith.constant 1.250000e+00 : f32
    %312 = vector.broadcast %cst_99 : f32 to vector<8x256xf32>
    %313 = arith.cmpf oge, %311, %312 : vector<8x256xf32>
    %314 = arith.extui %313 : vector<8x256xi1> to vector<8x256xi32>
    %315 = arith.sitofp %314 : vector<8x256xi32> to vector<8x256xf32>
    %cst_100 = arith.constant 1.000000e+00 : f32
    %316 = vector.broadcast %cst_100 : f32 to vector<8x256xf32>
    %317 = arith.subf %316, %315 : vector<8x256xf32>
    %318 = arith.mulf %311, %317 : vector<8x256xf32>
    %319 = vector.extract_strided_slice %232 {offsets = [48, 0], sizes = [8, 256], strides = [1, 1]} : vector<64x256xf32> to vector<8x256xf32>
    %cst_101 = arith.constant 7.500000e-01 : f32
    %320 = vector.broadcast %cst_101 : f32 to vector<8x256xf32>
    %321 = arith.mulf %320, %308 : vector<8x256xf32>
    %322 = arith.addf %321, %319 : vector<8x256xf32>
    %cst_102 = arith.constant 9.700000e-01 : f32
    %323 = vector.broadcast %cst_102 : f32 to vector<8x256xf32>
    %324 = arith.mulf %323, %318 : vector<8x256xf32>
    %325 = arith.addf %324, %322 : vector<8x256xf32>
    %cst_103 = arith.constant 1.250000e+00 : f32
    %326 = vector.broadcast %cst_103 : f32 to vector<8x256xf32>
    %327 = arith.cmpf oge, %325, %326 : vector<8x256xf32>
    %328 = arith.extui %327 : vector<8x256xi1> to vector<8x256xi32>
    %329 = arith.sitofp %328 : vector<8x256xi32> to vector<8x256xf32>
    %cst_104 = arith.constant 1.000000e+00 : f32
    %330 = vector.broadcast %cst_104 : f32 to vector<8x256xf32>
    %331 = arith.subf %330, %329 : vector<8x256xf32>
    %332 = arith.mulf %325, %331 : vector<8x256xf32>
    %333 = vector.extract_strided_slice %232 {offsets = [56, 0], sizes = [8, 256], strides = [1, 1]} : vector<64x256xf32> to vector<8x256xf32>
    %cst_105 = arith.constant 7.500000e-01 : f32
    %334 = vector.broadcast %cst_105 : f32 to vector<8x256xf32>
    %335 = arith.mulf %334, %322 : vector<8x256xf32>
    %336 = arith.addf %335, %333 : vector<8x256xf32>
    %cst_106 = arith.constant 9.700000e-01 : f32
    %337 = vector.broadcast %cst_106 : f32 to vector<8x256xf32>
    %338 = arith.mulf %337, %332 : vector<8x256xf32>
    %339 = arith.addf %338, %336 : vector<8x256xf32>
    %cst_107 = arith.constant 1.250000e+00 : f32
    %340 = vector.broadcast %cst_107 : f32 to vector<8x256xf32>
    %341 = arith.cmpf oge, %339, %340 : vector<8x256xf32>
    %342 = arith.extui %341 : vector<8x256xi1> to vector<8x256xi32>
    %343 = arith.sitofp %342 : vector<8x256xi32> to vector<8x256xf32>
    %344 = tpu.concatenate %245, %259, %273, %287, %301, %315, %329, %343 in 0 : vector<8x256xf32>, vector<8x256xf32>, vector<8x256xf32>, vector<8x256xf32>, vector<8x256xf32>, vector<8x256xf32>, vector<8x256xf32>, vector<8x256xf32> -> vector<64x256xf32>
    %345 = arith.truncf %344 : vector<64x256xf32> to vector<64x256xbf16>
    %c0_108 = arith.constant 0 : index
    %c0_109 = arith.constant 0 : index
    %346 = vector.load %arg5[%c0_108, %c0_109] : memref<256x128xbf16, #tpu.memory_space<vmem>>, vector<256x128xbf16>
    %cst_110 = arith.constant dense<0.000000e+00> : vector<64x128xf32>
    %347 = tpu.matmul %345, %346, %cst_110 {dimension_numbers = #tpu.dot_dimension_numbers<[1], [0], [0], [1], [0, 0, 1, 1], [], []>} : vector<64x256xbf16>, vector<256x128xbf16>, vector<64x128xf32> -> vector<64x128xf32>
    %cst_111 = arith.constant 0.000000e+00 : f32
    %348 = vector.broadcast %cst_111 : f32 to vector<8x128xf32>
    %cst_112 = arith.constant 0.000000e+00 : f32
    %349 = vector.broadcast %cst_112 : f32 to vector<8x128xf32>
    %350 = vector.extract_strided_slice %347 {offsets = [0, 0], sizes = [8, 128], strides = [1, 1]} : vector<64x128xf32> to vector<8x128xf32>
    %cst_113 = arith.constant 7.500000e-01 : f32
    %351 = vector.broadcast %cst_113 : f32 to vector<8x128xf32>
    %352 = arith.mulf %351, %348 : vector<8x128xf32>
    %353 = arith.addf %352, %350 : vector<8x128xf32>
    %cst_114 = arith.constant 9.700000e-01 : f32
    %354 = vector.broadcast %cst_114 : f32 to vector<8x128xf32>
    %355 = arith.mulf %354, %349 : vector<8x128xf32>
    %356 = arith.addf %355, %353 : vector<8x128xf32>
    %cst_115 = arith.constant 1.250000e+00 : f32
    %357 = vector.broadcast %cst_115 : f32 to vector<8x128xf32>
    %358 = arith.cmpf oge, %356, %357 : vector<8x128xf32>
    %359 = arith.extui %358 : vector<8x128xi1> to vector<8x128xi32>
    %360 = arith.sitofp %359 : vector<8x128xi32> to vector<8x128xf32>
    %cst_116 = arith.constant 1.000000e+00 : f32
    %361 = vector.broadcast %cst_116 : f32 to vector<8x128xf32>
    %362 = arith.subf %361, %360 : vector<8x128xf32>
    %363 = arith.mulf %356, %362 : vector<8x128xf32>
    %c0_117 = arith.constant 0 : index
    %c0_118 = arith.constant 0 : index
    %364 = vector.load %arg6[%c0_117, %c0_118] : memref<64x128xf32, #tpu.memory_space<vmem>>, vector<8x128xf32>
    tpu.vector_store %arg6[%c0_117, %c0_118], %360 {strides = array<i32>} : memref<64x128xf32, #tpu.memory_space<vmem>>, vector<8x128xf32>,
    %365 = vector.extract_strided_slice %347 {offsets = [8, 0], sizes = [8, 128], strides = [1, 1]} : vector<64x128xf32> to vector<8x128xf32>
    %cst_119 = arith.constant 7.500000e-01 : f32
    %366 = vector.broadcast %cst_119 : f32 to vector<8x128xf32>
    %367 = arith.mulf %366, %353 : vector<8x128xf32>
    %368 = arith.addf %367, %365 : vector<8x128xf32>
    %cst_120 = arith.constant 9.700000e-01 : f32
    %369 = vector.broadcast %cst_120 : f32 to vector<8x128xf32>
    %370 = arith.mulf %369, %363 : vector<8x128xf32>
    %371 = arith.addf %370, %368 : vector<8x128xf32>
    %cst_121 = arith.constant 1.250000e+00 : f32
    %372 = vector.broadcast %cst_121 : f32 to vector<8x128xf32>
    %373 = arith.cmpf oge, %371, %372 : vector<8x128xf32>
    %374 = arith.extui %373 : vector<8x128xi1> to vector<8x128xi32>
    %375 = arith.sitofp %374 : vector<8x128xi32> to vector<8x128xf32>
    %cst_122 = arith.constant 1.000000e+00 : f32
    %376 = vector.broadcast %cst_122 : f32 to vector<8x128xf32>
    %377 = arith.subf %376, %375 : vector<8x128xf32>
    %378 = arith.mulf %371, %377 : vector<8x128xf32>
    %c8 = arith.constant 8 : index
    %c0_123 = arith.constant 0 : index
    %379 = vector.load %arg6[%c8, %c0_123] : memref<64x128xf32, #tpu.memory_space<vmem>>, vector<8x128xf32>
    tpu.vector_store %arg6[%c8, %c0_123], %375 {strides = array<i32>} : memref<64x128xf32, #tpu.memory_space<vmem>>, vector<8x128xf32>,
    %380 = vector.extract_strided_slice %347 {offsets = [16, 0], sizes = [8, 128], strides = [1, 1]} : vector<64x128xf32> to vector<8x128xf32>
    %cst_124 = arith.constant 7.500000e-01 : f32
    %381 = vector.broadcast %cst_124 : f32 to vector<8x128xf32>
    %382 = arith.mulf %381, %368 : vector<8x128xf32>
    %383 = arith.addf %382, %380 : vector<8x128xf32>
    %cst_125 = arith.constant 9.700000e-01 : f32
    %384 = vector.broadcast %cst_125 : f32 to vector<8x128xf32>
    %385 = arith.mulf %384, %378 : vector<8x128xf32>
    %386 = arith.addf %385, %383 : vector<8x128xf32>
    %cst_126 = arith.constant 1.250000e+00 : f32
    %387 = vector.broadcast %cst_126 : f32 to vector<8x128xf32>
    %388 = arith.cmpf oge, %386, %387 : vector<8x128xf32>
    %389 = arith.extui %388 : vector<8x128xi1> to vector<8x128xi32>
    %390 = arith.sitofp %389 : vector<8x128xi32> to vector<8x128xf32>
    %cst_127 = arith.constant 1.000000e+00 : f32
    %391 = vector.broadcast %cst_127 : f32 to vector<8x128xf32>
    %392 = arith.subf %391, %390 : vector<8x128xf32>
    %393 = arith.mulf %386, %392 : vector<8x128xf32>
    %c16 = arith.constant 16 : index
    %c0_128 = arith.constant 0 : index
    %394 = vector.load %arg6[%c16, %c0_128] : memref<64x128xf32, #tpu.memory_space<vmem>>, vector<8x128xf32>
    tpu.vector_store %arg6[%c16, %c0_128], %390 {strides = array<i32>} : memref<64x128xf32, #tpu.memory_space<vmem>>, vector<8x128xf32>,
    %395 = vector.extract_strided_slice %347 {offsets = [24, 0], sizes = [8, 128], strides = [1, 1]} : vector<64x128xf32> to vector<8x128xf32>
    %cst_129 = arith.constant 7.500000e-01 : f32
    %396 = vector.broadcast %cst_129 : f32 to vector<8x128xf32>
    %397 = arith.mulf %396, %383 : vector<8x128xf32>
    %398 = arith.addf %397, %395 : vector<8x128xf32>
    %cst_130 = arith.constant 9.700000e-01 : f32
    %399 = vector.broadcast %cst_130 : f32 to vector<8x128xf32>
    %400 = arith.mulf %399, %393 : vector<8x128xf32>
    %401 = arith.addf %400, %398 : vector<8x128xf32>
    %cst_131 = arith.constant 1.250000e+00 : f32
    %402 = vector.broadcast %cst_131 : f32 to vector<8x128xf32>
    %403 = arith.cmpf oge, %401, %402 : vector<8x128xf32>
    %404 = arith.extui %403 : vector<8x128xi1> to vector<8x128xi32>
    %405 = arith.sitofp %404 : vector<8x128xi32> to vector<8x128xf32>
    %cst_132 = arith.constant 1.000000e+00 : f32
    %406 = vector.broadcast %cst_132 : f32 to vector<8x128xf32>
    %407 = arith.subf %406, %405 : vector<8x128xf32>
    %408 = arith.mulf %401, %407 : vector<8x128xf32>
    %c24 = arith.constant 24 : index
    %c0_133 = arith.constant 0 : index
    %409 = vector.load %arg6[%c24, %c0_133] : memref<64x128xf32, #tpu.memory_space<vmem>>, vector<8x128xf32>
    tpu.vector_store %arg6[%c24, %c0_133], %405 {strides = array<i32>} : memref<64x128xf32, #tpu.memory_space<vmem>>, vector<8x128xf32>,
    %410 = vector.extract_strided_slice %347 {offsets = [32, 0], sizes = [8, 128], strides = [1, 1]} : vector<64x128xf32> to vector<8x128xf32>
    %cst_134 = arith.constant 7.500000e-01 : f32
    %411 = vector.broadcast %cst_134 : f32 to vector<8x128xf32>
    %412 = arith.mulf %411, %398 : vector<8x128xf32>
    %413 = arith.addf %412, %410 : vector<8x128xf32>
    %cst_135 = arith.constant 9.700000e-01 : f32
    %414 = vector.broadcast %cst_135 : f32 to vector<8x128xf32>
    %415 = arith.mulf %414, %408 : vector<8x128xf32>
    %416 = arith.addf %415, %413 : vector<8x128xf32>
    %cst_136 = arith.constant 1.250000e+00 : f32
    %417 = vector.broadcast %cst_136 : f32 to vector<8x128xf32>
    %418 = arith.cmpf oge, %416, %417 : vector<8x128xf32>
    %419 = arith.extui %418 : vector<8x128xi1> to vector<8x128xi32>
    %420 = arith.sitofp %419 : vector<8x128xi32> to vector<8x128xf32>
    %cst_137 = arith.constant 1.000000e+00 : f32
    %421 = vector.broadcast %cst_137 : f32 to vector<8x128xf32>
    %422 = arith.subf %421, %420 : vector<8x128xf32>
    %423 = arith.mulf %416, %422 : vector<8x128xf32>
    %c32 = arith.constant 32 : index
    %c0_138 = arith.constant 0 : index
    %424 = vector.load %arg6[%c32, %c0_138] : memref<64x128xf32, #tpu.memory_space<vmem>>, vector<8x128xf32>
    tpu.vector_store %arg6[%c32, %c0_138], %420 {strides = array<i32>} : memref<64x128xf32, #tpu.memory_space<vmem>>, vector<8x128xf32>,
    %425 = vector.extract_strided_slice %347 {offsets = [40, 0], sizes = [8, 128], strides = [1, 1]} : vector<64x128xf32> to vector<8x128xf32>
    %cst_139 = arith.constant 7.500000e-01 : f32
    %426 = vector.broadcast %cst_139 : f32 to vector<8x128xf32>
    %427 = arith.mulf %426, %413 : vector<8x128xf32>
    %428 = arith.addf %427, %425 : vector<8x128xf32>
    %cst_140 = arith.constant 9.700000e-01 : f32
    %429 = vector.broadcast %cst_140 : f32 to vector<8x128xf32>
    %430 = arith.mulf %429, %423 : vector<8x128xf32>
    %431 = arith.addf %430, %428 : vector<8x128xf32>
    %cst_141 = arith.constant 1.250000e+00 : f32
    %432 = vector.broadcast %cst_141 : f32 to vector<8x128xf32>
    %433 = arith.cmpf oge, %431, %432 : vector<8x128xf32>
    %434 = arith.extui %433 : vector<8x128xi1> to vector<8x128xi32>
    %435 = arith.sitofp %434 : vector<8x128xi32> to vector<8x128xf32>
    %cst_142 = arith.constant 1.000000e+00 : f32
    %436 = vector.broadcast %cst_142 : f32 to vector<8x128xf32>
    %437 = arith.subf %436, %435 : vector<8x128xf32>
    %438 = arith.mulf %431, %437 : vector<8x128xf32>
    %c40 = arith.constant 40 : index
    %c0_143 = arith.constant 0 : index
    %439 = vector.load %arg6[%c40, %c0_143] : memref<64x128xf32, #tpu.memory_space<vmem>>, vector<8x128xf32>
    tpu.vector_store %arg6[%c40, %c0_143], %435 {strides = array<i32>} : memref<64x128xf32, #tpu.memory_space<vmem>>, vector<8x128xf32>,
    %440 = vector.extract_strided_slice %347 {offsets = [48, 0], sizes = [8, 128], strides = [1, 1]} : vector<64x128xf32> to vector<8x128xf32>
    %cst_144 = arith.constant 7.500000e-01 : f32
    %441 = vector.broadcast %cst_144 : f32 to vector<8x128xf32>
    %442 = arith.mulf %441, %428 : vector<8x128xf32>
    %443 = arith.addf %442, %440 : vector<8x128xf32>
    %cst_145 = arith.constant 9.700000e-01 : f32
    %444 = vector.broadcast %cst_145 : f32 to vector<8x128xf32>
    %445 = arith.mulf %444, %438 : vector<8x128xf32>
    %446 = arith.addf %445, %443 : vector<8x128xf32>
    %cst_146 = arith.constant 1.250000e+00 : f32
    %447 = vector.broadcast %cst_146 : f32 to vector<8x128xf32>
    %448 = arith.cmpf oge, %446, %447 : vector<8x128xf32>
    %449 = arith.extui %448 : vector<8x128xi1> to vector<8x128xi32>
    %450 = arith.sitofp %449 : vector<8x128xi32> to vector<8x128xf32>
    %cst_147 = arith.constant 1.000000e+00 : f32
    %451 = vector.broadcast %cst_147 : f32 to vector<8x128xf32>
    %452 = arith.subf %451, %450 : vector<8x128xf32>
    %453 = arith.mulf %446, %452 : vector<8x128xf32>
    %c48 = arith.constant 48 : index
    %c0_148 = arith.constant 0 : index
    %454 = vector.load %arg6[%c48, %c0_148] : memref<64x128xf32, #tpu.memory_space<vmem>>, vector<8x128xf32>
    tpu.vector_store %arg6[%c48, %c0_148], %450 {strides = array<i32>} : memref<64x128xf32, #tpu.memory_space<vmem>>, vector<8x128xf32>,
    %455 = vector.extract_strided_slice %347 {offsets = [56, 0], sizes = [8, 128], strides = [1, 1]} : vector<64x128xf32> to vector<8x128xf32>
    %cst_149 = arith.constant 7.500000e-01 : f32
    %456 = vector.broadcast %cst_149 : f32 to vector<8x128xf32>
    %457 = arith.mulf %456, %443 : vector<8x128xf32>
    %458 = arith.addf %457, %455 : vector<8x128xf32>
    %cst_150 = arith.constant 9.700000e-01 : f32
    %459 = vector.broadcast %cst_150 : f32 to vector<8x128xf32>
    %460 = arith.mulf %459, %453 : vector<8x128xf32>
    %461 = arith.addf %460, %458 : vector<8x128xf32>
    %cst_151 = arith.constant 1.250000e+00 : f32
    %462 = vector.broadcast %cst_151 : f32 to vector<8x128xf32>
    %463 = arith.cmpf oge, %461, %462 : vector<8x128xf32>
    %464 = arith.extui %463 : vector<8x128xi1> to vector<8x128xi32>
    %465 = arith.sitofp %464 : vector<8x128xi32> to vector<8x128xf32>
    %c56 = arith.constant 56 : index
    %c0_152 = arith.constant 0 : index
    %466 = vector.load %arg6[%c56, %c0_152] : memref<64x128xf32, #tpu.memory_space<vmem>>, vector<8x128xf32>
    tpu.vector_store %arg6[%c56, %c0_152], %465 {strides = array<i32>} : memref<64x128xf32, #tpu.memory_space<vmem>>, vector<8x128xf32>,
    return
  }
  func.func @transform_0(%arg0: i32) -> (i32, i32) {
    %c0_i32 = arith.constant 0 : i32
    %c0_i32_0 = arith.constant 0 : i32
    %c0_i32_1 = arith.constant 0 : i32
    return %c0_i32, %c0_i32_0 : i32, i32
  }
  func.func @transform_1(%arg0: i32) -> (i32, i32) {
    %c0_i32 = arith.constant 0 : i32
    %c0_i32_0 = arith.constant 0 : i32
    %c0_i32_1 = arith.constant 0 : i32
    return %c0_i32, %c0_i32_0 : i32, i32
  }
  func.func @transform_2(%arg0: i32) -> (i32, i32) {
    %c0_i32 = arith.constant 0 : i32
    %c0_i32_0 = arith.constant 0 : i32
    %c0_i32_1 = arith.constant 0 : i32
    return %c0_i32, %c0_i32_0 : i32, i32
  }
  func.func @transform_3(%arg0: i32) -> (i32, i32) {
    %c0_i32 = arith.constant 0 : i32
    %c0_i32_0 = arith.constant 0 : i32
    %c0_i32_1 = arith.constant 0 : i32
    return %c0_i32, %c0_i32_0 : i32, i32
  }
  func.func @transform_4(%arg0: i32) -> (i32, i32) {
    %c0_i32 = arith.constant 0 : i32
    %c0_i32_0 = arith.constant 0 : i32
    %c0_i32_1 = arith.constant 0 : i32
    return %c0_i32, %c0_i32_0 : i32, i32
  }
  func.func @transform_5(%arg0: i32) -> (i32, i32) {
    %c0_i32 = arith.constant 0 : i32
    %c0_i32_0 = arith.constant 0 : i32
    %c0_i32_1 = arith.constant 0 : i32
    return %c0_i32, %c0_i32_0 : i32, i32
  }
}

</mosaic_0001>

<llo_original>
// kernel: network_forward.1
$region0: #{network_forward.1}
  #allocation0 [shape = 'u32[]', space=smem, size = 0x4, offset = 0x4, fixed_abs, tag = 'smem constant byte address 0x4 - core index']
  #allocation1 [shape = 'u32[72,128]{1,0:T(1,128)}', space=vmem, size = 0x9000, scoped, tag = 'internal scratch']
  %s0 = inlined_call_operand.vmem [shape: bf16[64,2432], index: 0, kind: input, shape index: {}]
  %s1 = inlined_call_operand.vmem [shape: bf16[2432,512], index: 1, kind: input, shape index: {}]
  %s2 = inlined_call_operand.vmem [shape: bf16[512,512], index: 2, kind: input, shape index: {}]
  %s3 = inlined_call_operand.vmem [shape: bf16[512,256], index: 3, kind: input, shape index: {}]
  %s4 = inlined_call_operand.vmem [shape: bf16[256,128], index: 4, kind: input, shape index: {}]
  %s5 = inlined_call_operand.vmem [shape: f32[64,128], index: 5, kind: output, shape index: {}]
  %s6 = sld [smem:[#allocation0]]
  $region30: #{network_forward.1} parent=0
    _
  %s8 = ssub.s32 1, %s6
  %s9 = scalar_select 0, %s8, %s6
  // Predicated region
  $region2: #{network_forward.1} parent=0 // pred_check
    _
  $region3: #{network_forward.1} parent=0 // pred_check_branch
    %11 = sbr.rel (0) target = $region5
  $region4: #{network_forward.1} parent=0 // pred_region
    _
  $region5: #{network_forward.1} parent=0 // pred_fallthru
    _
  // Predicated region
  $region6: #{network_forward.1} parent=0 // pred_check
    _
  $region7: #{network_forward.1} parent=0 // pred_check_branch
    %13 = sbr.rel (0) target = $region9
  $region8: #{network_forward.1} parent=0 // pred_region
    _
  $region9: #{network_forward.1} parent=0 // pred_fallthru
    _
  // Predicated region
  $region10: #{network_forward.1} parent=0 // pred_check
    _
  $region11: #{network_forward.1} parent=0 // pred_check_branch
    %15 = sbr.rel (0) target = $region13
  $region12: #{network_forward.1} parent=0 // pred_region
    _
  $region13: #{network_forward.1} parent=0 // pred_fallthru
    _
  // Predicated region
  $region14: #{network_forward.1} parent=0 // pred_check
    _
  $region15: #{network_forward.1} parent=0 // pred_check_branch
    %17 = sbr.rel (0) target = $region17
  $region16: #{network_forward.1} parent=0 // pred_region
    _
  $region17: #{network_forward.1} parent=0 // pred_fallthru
    _
  // Predicated region
  $region18: #{network_forward.1} parent=0 // pred_check
    _
  $region19: #{network_forward.1} parent=0 // pred_check_branch
    %19 = sbr.rel (0) target = $region21
  $region20: #{network_forward.1} parent=0 // pred_region
    _
  $region21: #{network_forward.1} parent=0 // pred_fallthru
    _
  %v20 = vld [vmem:[%s0] sm:$0xff]
  %v21 = vld [vmem:[%s0 + $0x8] sm:$0xff]
  %v22 = vld [vmem:[%s0 + $0x10] sm:$0xff]
  %v23 = vld [vmem:[%s0 + $0x18] sm:$0xff]
  %v24 = vld [vmem:[%s0 + $0x20] sm:$0xff]
  %v25 = vld [vmem:[%s0 + $0x28] sm:$0xff]
  %v26 = vld [vmem:[%s0 + $0x30] sm:$0xff]
  %v27 = vld [vmem:[%s0 + $0x38] sm:$0xff]
  %v28 = vld [vmem:[%s0 + $0x40] sm:$0xff]
  %v29 = vld [vmem:[%s0 + $0x48] sm:$0xf]
  %v30 = vld [vmem:[%s0 + $0x4c] sm:$0xff]
  %v31 = vld [vmem:[%s0 + $0x54] sm:$0xff]
  %v32 = vld [vmem:[%s0 + $0x5c] sm:$0xff]
  %v33 = vld [vmem:[%s0 + $0x64] sm:$0xff]
  %v34 = vld [vmem:[%s0 + $0x6c] sm:$0xff]
  %v35 = vld [vmem:[%s0 + $0x74] sm:$0xff]
  %v36 = vld [vmem:[%s0 + $0x7c] sm:$0xff]
  %v37 = vld [vmem:[%s0 + $0x84] sm:$0xff]
  %v38 = vld [vmem:[%s0 + $0x8c] sm:$0xff]
  %v39 = vld [vmem:[%s0 + $0x94] sm:$0xf]
  %v40 = vld [vmem:[%s0 + $0x98] sm:$0xff]
  %v41 = vld [vmem:[%s0 + $0xa0] sm:$0xff]
  %v42 = vld [vmem:[%s0 + $0xa8] sm:$0xff]
  %v43 = vld [vmem:[%s0 + $0xb0] sm:$0xff]
  %v44 = vld [vmem:[%s0 + $0xb8] sm:$0xff]
  %v45 = vld [vmem:[%s0 + $0xc0] sm:$0xff]
  %v46 = vld [vmem:[%s0 + $0xc8] sm:$0xff]
  %v47 = vld [vmem:[%s0 + $0xd0] sm:$0xff]
  %v48 = vld [vmem:[%s0 + $0xd8] sm:$0xff]
  %v49 = vld [vmem:[%s0 + $0xe0] sm:$0xf]
  %v50 = vld [vmem:[%s0 + $0xe4] sm:$0xff]
  %v51 = vld [vmem:[%s0 + $0xec] sm:$0xff]
  %v52 = vld [vmem:[%s0 + $0xf4] sm:$0xff]
  %v53 = vld [vmem:[%s0 + $0xfc] sm:$0xff]
  %v54 = vld [vmem:[%s0 + $0x104] sm:$0xff]
  %v55 = vld [vmem:[%s0 + $0x10c] sm:$0xff]
  %v56 = vld [vmem:[%s0 + $0x114] sm:$0xff]
  %v57 = vld [vmem:[%s0 + $0x11c] sm:$0xff]
  %v58 = vld [vmem:[%s0 + $0x124] sm:$0xff]
  %v59 = vld [vmem:[%s0 + $0x12c] sm:$0xf]
  %v60 = vld [vmem:[%s0 + $0x130] sm:$0xff]
  %v61 = vld [vmem:[%s0 + $0x138] sm:$0xff]
  %v62 = vld [vmem:[%s0 + $0x140] sm:$0xff]
  %v63 = vld [vmem:[%s0 + $0x148] sm:$0xff]
  %v64 = vld [vmem:[%s0 + $0x150] sm:$0xff]
  %v65 = vld [vmem:[%s0 + $0x158] sm:$0xff]
  %v66 = vld [vmem:[%s0 + $0x160] sm:$0xff]
  %v67 = vld [vmem:[%s0 + $0x168] sm:$0xff]
  %v68 = vld [vmem:[%s0 + $0x170] sm:$0xff]
  %v69 = vld [vmem:[%s0 + $0x178] sm:$0xf]
  %v70 = vld [vmem:[%s0 + $0x17c] sm:$0xff]
  %v71 = vld [vmem:[%s0 + $0x184] sm:$0xff]
  %v72 = vld [vmem:[%s0 + $0x18c] sm:$0xff]
  %v73 = vld [vmem:[%s0 + $0x194] sm:$0xff]
  %v74 = vld [vmem:[%s0 + $0x19c] sm:$0xff]
  %v75 = vld [vmem:[%s0 + $0x1a4] sm:$0xff]
  %v76 = vld [vmem:[%s0 + $0x1ac] sm:$0xff]
  %v77 = vld [vmem:[%s0 + $0x1b4] sm:$0xff]
  %v78 = vld [vmem:[%s0 + $0x1bc] sm:$0xff]
  %v79 = vld [vmem:[%s0 + $0x1c4] sm:$0xf]
  %v80 = vld [vmem:[%s0 + $0x1c8] sm:$0xff]
  %v81 = vld [vmem:[%s0 + $0x1d0] sm:$0xff]
  %v82 = vld [vmem:[%s0 + $0x1d8] sm:$0xff]
  %v83 = vld [vmem:[%s0 + $0x1e0] sm:$0xff]
  %v84 = vld [vmem:[%s0 + $0x1e8] sm:$0xff]
  %v85 = vld [vmem:[%s0 + $0x1f0] sm:$0xff]
  %v86 = vld [vmem:[%s0 + $0x1f8] sm:$0xff]
  %v87 = vld [vmem:[%s0 + $0x200] sm:$0xff]
  %v88 = vld [vmem:[%s0 + $0x208] sm:$0xff]
  %v89 = vld [vmem:[%s0 + $0x210] sm:$0xf]
  %v90 = vld [vmem:[%s0 + $0x214] sm:$0xff]
  %v91 = vld [vmem:[%s0 + $0x21c] sm:$0xff]
  %v92 = vld [vmem:[%s0 + $0x224] sm:$0xff]
  %v93 = vld [vmem:[%s0 + $0x22c] sm:$0xff]
  %v94 = vld [vmem:[%s0 + $0x234] sm:$0xff]
  %v95 = vld [vmem:[%s0 + $0x23c] sm:$0xff]
  %v96 = vld [vmem:[%s0 + $0x244] sm:$0xff]
  %v97 = vld [vmem:[%s0 + $0x24c] sm:$0xff]
  %v98 = vld [vmem:[%s0 + $0x254] sm:$0xff]
  %v99 = vld [vmem:[%s0 + $0x25c] sm:$0xf]
  %v100 = vld [vmem:[%s1] sm:$0xff]
  %v101 = vld [vmem:[%s1 + $0x8] sm:$0xff]
  %v102 = vld [vmem:[%s1 + $0x10] sm:$0xff]
  %v103 = vld [vmem:[%s1 + $0x18] sm:$0xff]
  %v104 = vld [vmem:[%s1 + $0x20] sm:$0xff]
  %v105 = vld [vmem:[%s1 + $0x28] sm:$0xff]
  %v106 = vld [vmem:[%s1 + $0x30] sm:$0xff]
  %v107 = vld [vmem:[%s1 + $0x38] sm:$0xff]
  %v108 = vld [vmem:[%s1 + $0x40] sm:$0xff]
  %v109 = vld [vmem:[%s1 + $0x48] sm:$0xff]
  %v110 = vld [vmem:[%s1 + $0x50] sm:$0xff]
  %v111 = vld [vmem:[%s1 + $0x58] sm:$0xff]
  %v112 = vld [vmem:[%s1 + $0x60] sm:$0xff]
  %v113 = vld [vmem:[%s1 + $0x68] sm:$0xff]
  %v114 = vld [vmem:[%s1 + $0x70] sm:$0xff]
  %v115 = vld [vmem:[%s1 + $0x78] sm:$0xff]
  %v116 = vld [vmem:[%s1 + $0x80] sm:$0xff]
  %v117 = vld [vmem:[%s1 + $0x88] sm:$0xff]
  %v118 = vld [vmem:[%s1 + $0x90] sm:$0xff]
  %v119 = vld [vmem:[%s1 + $0x98] sm:$0xff]
  %v120 = vld [vmem:[%s1 + $0xa0] sm:$0xff]
  %v121 = vld [vmem:[%s1 + $0xa8] sm:$0xff]
  %v122 = vld [vmem:[%s1 + $0xb0] sm:$0xff]
  %v123 = vld [vmem:[%s1 + $0xb8] sm:$0xff]
  %v124 = vld [vmem:[%s1 + $0xc0] sm:$0xff]
  %v125 = vld [vmem:[%s1 + $0xc8] sm:$0xff]
  %v126 = vld [vmem:[%s1 + $0xd0] sm:$0xff]
  %v127 = vld [vmem:[%s1 + $0xd8] sm:$0xff]
  %v128 = vld [vmem:[%s1 + $0xe0] sm:$0xff]
  %v129 = vld [vmem:[%s1 + $0xe8] sm:$0xff]
  %v130 = vld [vmem:[%s1 + $0xf0] sm:$0xff]
  %v131 = vld [vmem:[%s1 + $0xf8] sm:$0xff]
  %v132 = vld [vmem:[%s1 + $0x100] sm:$0xff]
  %v133 = vld [vmem:[%s1 + $0x108] sm:$0xff]
  %v134 = vld [vmem:[%s1 + $0x110] sm:$0xff]
  %v135 = vld [vmem:[%s1 + $0x118] sm:$0xff]
  %v136 = vld [vmem:[%s1 + $0x120] sm:$0xff]
  %v137 = vld [vmem:[%s1 + $0x128] sm:$0xff]
  %v138 = vld [vmem:[%s1 + $0x130] sm:$0xff]
  %v139 = vld [vmem:[%s1 + $0x138] sm:$0xff]
  %v140 = vld [vmem:[%s1 + $0x140] sm:$0xff]
  %v141 = vld [vmem:[%s1 + $0x148] sm:$0xff]
  %v142 = vld [vmem:[%s1 + $0x150] sm:$0xff]
  %v143 = vld [vmem:[%s1 + $0x158] sm:$0xff]
  %v144 = vld [vmem:[%s1 + $0x160] sm:$0xff]
  %v145 = vld [vmem:[%s1 + $0x168] sm:$0xff]
  %v146 = vld [vmem:[%s1 + $0x170] sm:$0xff]
  %v147 = vld [vmem:[%s1 + $0x178] sm:$0xff]
  %v148 = vld [vmem:[%s1 + $0x180] sm:$0xff]
  %v149 = vld [vmem:[%s1 + $0x188] sm:$0xff]
  %v150 = vld [vmem:[%s1 + $0x190] sm:$0xff]
  %v151 = vld [vmem:[%s1 + $0x198] sm:$0xff]
  %v152 = vld [vmem:[%s1 + $0x1a0] sm:$0xff]
  %v153 = vld [vmem:[%s1 + $0x1a8] sm:$0xff]
  %v154 = vld [vmem:[%s1 + $0x1b0] sm:$0xff]
  %v155 = vld [vmem:[%s1 + $0x1b8] sm:$0xff]
  %v156 = vld [vmem:[%s1 + $0x1c0] sm:$0xff]
  %v157 = vld [vmem:[%s1 + $0x1c8] sm:$0xff]
  %v158 = vld [vmem:[%s1 + $0x1d0] sm:$0xff]
  %v159 = vld [vmem:[%s1 + $0x1d8] sm:$0xff]
  %v160 = vld [vmem:[%s1 + $0x1e0] sm:$0xff]
  %v161 = vld [vmem:[%s1 + $0x1e8] sm:$0xff]
  %v162 = vld [vmem:[%s1 + $0x1f0] sm:$0xff]
  %v163 = vld [vmem:[%s1 + $0x1f8] sm:$0xff]
  %v164 = vld [vmem:[%s1 + $0x200] sm:$0xff]
  %v165 = vld [vmem:[%s1 + $0x208] sm:$0xff]
  %v166 = vld [vmem:[%s1 + $0x210] sm:$0xff]
  %v167 = vld [vmem:[%s1 + $0x218] sm:$0xff]
  %v168 = vld [vmem:[%s1 + $0x220] sm:$0xff]
  %v169 = vld [vmem:[%s1 + $0x228] sm:$0xff]
  %v170 = vld [vmem:[%s1 + $0x230] sm:$0xff]
  %v171 = vld [vmem:[%s1 + $0x238] sm:$0xff]
  %v172 = vld [vmem:[%s1 + $0x240] sm:$0xff]
  %v173 = vld [vmem:[%s1 + $0x248] sm:$0xff]
  %v174 = vld [vmem:[%s1 + $0x250] sm:$0xff]
  %v175 = vld [vmem:[%s1 + $0x258] sm:$0xff]
  %v176 = vld [vmem:[%s1 + $0x260] sm:$0xff]
  %v177 = vld [vmem:[%s1 + $0x268] sm:$0xff]
  %v178 = vld [vmem:[%s1 + $0x270] sm:$0xff]
  %v179 = vld [vmem:[%s1 + $0x278] sm:$0xff]
  %v180 = vld [vmem:[%s1 + $0x280] sm:$0xff]
  %v181 = vld [vmem:[%s1 + $0x288] sm:$0xff]
  %v182 = vld [vmem:[%s1 + $0x290] sm:$0xff]
  %v183 = vld [vmem:[%s1 + $0x298] sm:$0xff]
  %v184 = vld [vmem:[%s1 + $0x2a0] sm:$0xff]
  %v185 = vld [vmem:[%s1 + $0x2a8] sm:$0xff]
  %v186 = vld [vmem:[%s1 + $0x2b0] sm:$0xff]
  %v187 = vld [vmem:[%s1 + $0x2b8] sm:$0xff]
  %v188 = vld [vmem:[%s1 + $0x2c0] sm:$0xff]
  %v189 = vld [vmem:[%s1 + $0x2c8] sm:$0xff]
  %v190 = vld [vmem:[%s1 + $0x2d0] sm:$0xff]
  %v191 = vld [vmem:[%s1 + $0x2d8] sm:$0xff]
  %v192 = vld [vmem:[%s1 + $0x2e0] sm:$0xff]
  %v193 = vld [vmem:[%s1 + $0x2e8] sm:$0xff]
  %v194 = vld [vmem:[%s1 + $0x2f0] sm:$0xff]
  %v195 = vld [vmem:[%s1 + $0x2f8] sm:$0xff]
  %v196 = vld [vmem:[%s1 + $0x300] sm:$0xff]
  %v197 = vld [vmem:[%s1 + $0x308] sm:$0xff]
  %v198 = vld [vmem:[%s1 + $0x310] sm:$0xff]
  %v199 = vld [vmem:[%s1 + $0x318] sm:$0xff]
  %v200 = vld [vmem:[%s1 + $0x320] sm:$0xff]
  %v201 = vld [vmem:[%s1 + $0x328] sm:$0xff]
  %v202 = vld [vmem:[%s1 + $0x330] sm:$0xff]
  %v203 = vld [vmem:[%s1 + $0x338] sm:$0xff]
  %v204 = vld [vmem:[%s1 + $0x340] sm:$0xff]
  %v205 = vld [vmem:[%s1 + $0x348] sm:$0xff]
  %v206 = vld [vmem:[%s1 + $0x350] sm:$0xff]
  %v207 = vld [vmem:[%s1 + $0x358] sm:$0xff]
  %v208 = vld [vmem:[%s1 + $0x360] sm:$0xff]
  %v209 = vld [vmem:[%s1 + $0x368] sm:$0xff]
  %v210 = vld [vmem:[%s1 + $0x370] sm:$0xff]
  %v211 = vld [vmem:[%s1 + $0x378] sm:$0xff]
  %v212 = vld [vmem:[%s1 + $0x380] sm:$0xff]
  %v213 = vld [vmem:[%s1 + $0x388] sm:$0xff]
  %v214 = vld [vmem:[%s1 + $0x390] sm:$0xff]
  %v215 = vld [vmem:[%s1 + $0x398] sm:$0xff]
  %v216 = vld [vmem:[%s1 + $0x3a0] sm:$0xff]
  %v217 = vld [vmem:[%s1 + $0x3a8] sm:$0xff]
  %v218 = vld [vmem:[%s1 + $0x3b0] sm:$0xff]
  %v219 = vld [vmem:[%s1 + $0x3b8] sm:$0xff]
  %v220 = vld [vmem:[%s1 + $0x3c0] sm:$0xff]
  %v221 = vld [vmem:[%s1 + $0x3c8] sm:$0xff]
  %v222 = vld [vmem:[%s1 + $0x3d0] sm:$0xff]
  %v223 = vld [vmem:[%s1 + $0x3d8] sm:$0xff]
  %v224 = vld [vmem:[%s1 + $0x3e0] sm:$0xff]
  %v225 = vld [vmem:[%s1 + $0x3e8] sm:$0xff]
  %v226 = vld [vmem:[%s1 + $0x3f0] sm:$0xff]
  %v227 = vld [vmem:[%s1 + $0x3f8] sm:$0xff]
  %v228 = vld [vmem:[%s1 + $0x400] sm:$0xff]
  %v229 = vld [vmem:[%s1 + $0x408] sm:$0xff]
  %v230 = vld [vmem:[%s1 + $0x410] sm:$0xff]
  %v231 = vld [vmem:[%s1 + $0x418] sm:$0xff]
  %v232 = vld [vmem:[%s1 + $0x420] sm:$0xff]
  %v233 = vld [vmem:[%s1 + $0x428] sm:$0xff]
  %v234 = vld [vmem:[%s1 + $0x430] sm:$0xff]
  %v235 = vld [vmem:[%s1 + $0x438] sm:$0xff]
  %v236 = vld [vmem:[%s1 + $0x440] sm:$0xff]
  %v237 = vld [vmem:[%s1 + $0x448] sm:$0xff]
  %v238 = vld [vmem:[%s1 + $0x450] sm:$0xff]
  %v239 = vld [vmem:[%s1 + $0x458] sm:$0xff]
  %v240 = vld [vmem:[%s1 + $0x460] sm:$0xff]
  %v241 = vld [vmem:[%s1 + $0x468] sm:$0xff]
  %v242 = vld [vmem:[%s1 + $0x470] sm:$0xff]
  %v243 = vld [vmem:[%s1 + $0x478] sm:$0xff]
  %v244 = vld [vmem:[%s1 + $0x480] sm:$0xff]
  %v245 = vld [vmem:[%s1 + $0x488] sm:$0xff]
  %v246 = vld [vmem:[%s1 + $0x490] sm:$0xff]
  %v247 = vld [vmem:[%s1 + $0x498] sm:$0xff]
  %v248 = vld [vmem:[%s1 + $0x4a0] sm:$0xff]
  %v249 = vld [vmem:[%s1 + $0x4a8] sm:$0xff]
  %v250 = vld [vmem:[%s1 + $0x4b0] sm:$0xff]
  %v251 = vld [vmem:[%s1 + $0x4b8] sm:$0xff]
  %v252 = vld [vmem:[%s1 + $0x4c0] sm:$0xff]
  %v253 = vld [vmem:[%s1 + $0x4c8] sm:$0xff]
  %v254 = vld [vmem:[%s1 + $0x4d0] sm:$0xff]
  %v255 = vld [vmem:[%s1 + $0x4d8] sm:$0xff]
  %v256 = vld [vmem:[%s1 + $0x4e0] sm:$0xff]
  %v257 = vld [vmem:[%s1 + $0x4e8] sm:$0xff]
  %v258 = vld [vmem:[%s1 + $0x4f0] sm:$0xff]
  %v259 = vld [vmem:[%s1 + $0x4f8] sm:$0xff]
  %v260 = vld [vmem:[%s1 + $0x500] sm:$0xff]
  %v261 = vld [vmem:[%s1 + $0x508] sm:$0xff]
  %v262 = vld [vmem:[%s1 + $0x510] sm:$0xff]
  %v263 = vld [vmem:[%s1 + $0x518] sm:$0xff]
  %v264 = vld [vmem:[%s1 + $0x520] sm:$0xff]
  %v265 = vld [vmem:[%s1 + $0x528] sm:$0xff]
  %v266 = vld [vmem:[%s1 + $0x530] sm:$0xff]
  %v267 = vld [vmem:[%s1 + $0x538] sm:$0xff]
  %v268 = vld [vmem:[%s1 + $0x540] sm:$0xff]
  %v269 = vld [vmem:[%s1 + $0x548] sm:$0xff]
  %v270 = vld [vmem:[%s1 + $0x550] sm:$0xff]
  %v271 = vld [vmem:[%s1 + $0x558] sm:$0xff]
  %v272 = vld [vmem:[%s1 + $0x560] sm:$0xff]
  %v273 = vld [vmem:[%s1 + $0x568] sm:$0xff]
  %v274 = vld [vmem:[%s1 + $0x570] sm:$0xff]
  %v275 = vld [vmem:[%s1 + $0x578] sm:$0xff]
  %v276 = vld [vmem:[%s1 + $0x580] sm:$0xff]
  %v277 = vld [vmem:[%s1 + $0x588] sm:$0xff]
  %v278 = vld [vmem:[%s1 + $0x590] sm:$0xff]
  %v279 = vld [vmem:[%s1 + $0x598] sm:$0xff]
  %v280 = vld [vmem:[%s1 + $0x5a0] sm:$0xff]
  %v281 = vld [vmem:[%s1 + $0x5a8] sm:$0xff]
  %v282 = vld [vmem:[%s1 + $0x5b0] sm:$0xff]
  %v283 = vld [vmem:[%s1 + $0x5b8] sm:$0xff]
  %v284 = vld [vmem:[%s1 + $0x5c0] sm:$0xff]
  %v285 = vld [vmem:[%s1 + $0x5c8] sm:$0xff]
  %v286 = vld [vmem:[%s1 + $0x5d0] sm:$0xff]
  %v287 = vld [vmem:[%s1 + $0x5d8] sm:$0xff]
  %v288 = vld [vmem:[%s1 + $0x5e0] sm:$0xff]
  %v289 = vld [vmem:[%s1 + $0x5e8] sm:$0xff]
  %v290 = vld [vmem:[%s1 + $0x5f0] sm:$0xff]
  %v291 = vld [vmem:[%s1 + $0x5f8] sm:$0xff]
  %v292 = vld [vmem:[%s1 + $0x600] sm:$0xff]
  %v293 = vld [vmem:[%s1 + $0x608] sm:$0xff]
  %v294 = vld [vmem:[%s1 + $0x610] sm:$0xff]
  %v295 = vld [vmem:[%s1 + $0x618] sm:$0xff]
  %v296 = vld [vmem:[%s1 + $0x620] sm:$0xff]
  %v297 = vld [vmem:[%s1 + $0x628] sm:$0xff]
  %v298 = vld [vmem:[%s1 + $0x630] sm:$0xff]
  %v299 = vld [vmem:[%s1 + $0x638] sm:$0xff]
  %v300 = vld [vmem:[%s1 + $0x640] sm:$0xff]
  %v301 = vld [vmem:[%s1 + $0x648] sm:$0xff]
  %v302 = vld [vmem:[%s1 + $0x650] sm:$0xff]
  %v303 = vld [vmem:[%s1 + $0x658] sm:$0xff]
  %v304 = vld [vmem:[%s1 + $0x660] sm:$0xff]
  %v305 = vld [vmem:[%s1 + $0x668] sm:$0xff]
  %v306 = vld [vmem:[%s1 + $0x670] sm:$0xff]
  %v307 = vld [vmem:[%s1 + $0x678] sm:$0xff]
  %v308 = vld [vmem:[%s1 + $0x680] sm:$0xff]
  %v309 = vld [vmem:[%s1 + $0x688] sm:$0xff]
  %v310 = vld [vmem:[%s1 + $0x690] sm:$0xff]
  %v311 = vld [vmem:[%s1 + $0x698] sm:$0xff]
  %v312 = vld [vmem:[%s1 + $0x6a0] sm:$0xff]
  %v313 = vld [vmem:[%s1 + $0x6a8] sm:$0xff]
  %v314 = vld [vmem:[%s1 + $0x6b0] sm:$0xff]
  %v315 = vld [vmem:[%s1 + $0x6b8] sm:$0xff]
  %v316 = vld [vmem:[%s1 + $0x6c0] sm:$0xff]
  %v317 = vld [vmem:[%s1 + $0x6c8] sm:$0xff]
  %v318 = vld [vmem:[%s1 + $0x6d0] sm:$0xff]
  %v319 = vld [vmem:[%s1 + $0x6d8] sm:$0xff]
  %v320 = vld [vmem:[%s1 + $0x6e0] sm:$0xff]
  %v321 = vld [vmem:[%s1 + $0x6e8] sm:$0xff]
  %v322 = vld [vmem:[%s1 + $0x6f0] sm:$0xff]
  %v323 = vld [vmem:[%s1 + $0x6f8] sm:$0xff]
  %v324 = vld [vmem:[%s1 + $0x700] sm:$0xff]
  %v325 = vld [vmem:[%s1 + $0x708] sm:$0xff]
  %v326 = vld [vmem:[%s1 + $0x710] sm:$0xff]
  %v327 = vld [vmem:[%s1 + $0x718] sm:$0xff]
  %v328 = vld [vmem:[%s1 + $0x720] sm:$0xff]
  %v329 = vld [vmem:[%s1 + $0x728] sm:$0xff]
  %v330 = vld [vmem:[%s1 + $0x730] sm:$0xff]
  %v331 = vld [vmem:[%s1 + $0x738] sm:$0xff]
  %v332 = vld [vmem:[%s1 + $0x740] sm:$0xff]
  %v333 = vld [vmem:[%s1 + $0x748] sm:$0xff]
  %v334 = vld [vmem:[%s1 + $0x750] sm:$0xff]
  %v335 = vld [vmem:[%s1 + $0x758] sm:$0xff]
  %v336 = vld [vmem:[%s1 + $0x760] sm:$0xff]
  %v337 = vld [vmem:[%s1 + $0x768] sm:$0xff]
  %v338 = vld [vmem:[%s1 + $0x770] sm:$0xff]
  %v339 = vld [vmem:[%s1 + $0x778] sm:$0xff]
  %v340 = vld [vmem:[%s1 + $0x780] sm:$0xff]
  %v341 = vld [vmem:[%s1 + $0x788] sm:$0xff]
  %v342 = vld [vmem:[%s1 + $0x790] sm:$0xff]
  %v343 = vld [vmem:[%s1 + $0x798] sm:$0xff]
  %v344 = vld [vmem:[%s1 + $0x7a0] sm:$0xff]
  %v345 = vld [vmem:[%s1 + $0x7a8] sm:$0xff]
  %v346 = vld [vmem:[%s1 + $0x7b0] sm:$0xff]
  %v347 = vld [vmem:[%s1 + $0x7b8] sm:$0xff]
  %v348 = vld [vmem:[%s1 + $0x7c0] sm:$0xff]
  %v349 = vld [vmem:[%s1 + $0x7c8] sm:$0xff]
  %v350 = vld [vmem:[%s1 + $0x7d0] sm:$0xff]
  %v351 = vld [vmem:[%s1 + $0x7d8] sm:$0xff]
  %v352 = vld [vmem:[%s1 + $0x7e0] sm:$0xff]
  %v353 = vld [vmem:[%s1 + $0x7e8] sm:$0xff]
  %v354 = vld [vmem:[%s1 + $0x7f0] sm:$0xff]
  %v355 = vld [vmem:[%s1 + $0x7f8] sm:$0xff]
  %v356 = vld [vmem:[%s1 + $0x800] sm:$0xff]
  %v357 = vld [vmem:[%s1 + $0x808] sm:$0xff]
  %v358 = vld [vmem:[%s1 + $0x810] sm:$0xff]
  %v359 = vld [vmem:[%s1 + $0x818] sm:$0xff]
  %v360 = vld [vmem:[%s1 + $0x820] sm:$0xff]
  %v361 = vld [vmem:[%s1 + $0x828] sm:$0xff]
  %v362 = vld [vmem:[%s1 + $0x830] sm:$0xff]
  %v363 = vld [vmem:[%s1 + $0x838] sm:$0xff]
  %v364 = vld [vmem:[%s1 + $0x840] sm:$0xff]
  %v365 = vld [vmem:[%s1 + $0x848] sm:$0xff]
  %v366 = vld [vmem:[%s1 + $0x850] sm:$0xff]
  %v367 = vld [vmem:[%s1 + $0x858] sm:$0xff]
  %v368 = vld [vmem:[%s1 + $0x860] sm:$0xff]
  %v369 = vld [vmem:[%s1 + $0x868] sm:$0xff]
  %v370 = vld [vmem:[%s1 + $0x870] sm:$0xff]
  %v371 = vld [vmem:[%s1 + $0x878] sm:$0xff]
  %v372 = vld [vmem:[%s1 + $0x880] sm:$0xff]
  %v373 = vld [vmem:[%s1 + $0x888] sm:$0xff]
  %v374 = vld [vmem:[%s1 + $0x890] sm:$0xff]
  %v375 = vld [vmem:[%s1 + $0x898] sm:$0xff]
  %v376 = vld [vmem:[%s1 + $0x8a0] sm:$0xff]
  %v377 = vld [vmem:[%s1 + $0x8a8] sm:$0xff]
  %v378 = vld [vmem:[%s1 + $0x8b0] sm:$0xff]
  %v379 = vld [vmem:[%s1 + $0x8b8] sm:$0xff]
  %v380 = vld [vmem:[%s1 + $0x8c0] sm:$0xff]
  %v381 = vld [vmem:[%s1 + $0x8c8] sm:$0xff]
  %v382 = vld [vmem:[%s1 + $0x8d0] sm:$0xff]
  %v383 = vld [vmem:[%s1 + $0x8d8] sm:$0xff]
  %v384 = vld [vmem:[%s1 + $0x8e0] sm:$0xff]
  %v385 = vld [vmem:[%s1 + $0x8e8] sm:$0xff]
  %v386 = vld [vmem:[%s1 + $0x8f0] sm:$0xff]
  %v387 = vld [vmem:[%s1 + $0x8f8] sm:$0xff]
  %v388 = vld [vmem:[%s1 + $0x900] sm:$0xff]
  %v389 = vld [vmem:[%s1 + $0x908] sm:$0xff]
  %v390 = vld [vmem:[%s1 + $0x910] sm:$0xff]
  %v391 = vld [vmem:[%s1 + $0x918] sm:$0xff]
  %v392 = vld [vmem:[%s1 + $0x920] sm:$0xff]
  %v393 = vld [vmem:[%s1 + $0x928] sm:$0xff]
  %v394 = vld [vmem:[%s1 + $0x930] sm:$0xff]
  %v395 = vld [vmem:[%s1 + $0x938] sm:$0xff]
  %v396 = vld [vmem:[%s1 + $0x940] sm:$0xff]
  %v397 = vld [vmem:[%s1 + $0x948] sm:$0xff]
  %v398 = vld [vmem:[%s1 + $0x950] sm:$0xff]
  %v399 = vld [vmem:[%s1 + $0x958] sm:$0xff]
  %v400 = vld [vmem:[%s1 + $0x960] sm:$0xff]
  %v401 = vld [vmem:[%s1 + $0x968] sm:$0xff]
  %v402 = vld [vmem:[%s1 + $0x970] sm:$0xff]
  %v403 = vld [vmem:[%s1 + $0x978] sm:$0xff]
  %v404 = vld [vmem:[%s1 + $0x980] sm:$0xff]
  %v405 = vld [vmem:[%s1 + $0x988] sm:$0xff]
  %v406 = vld [vmem:[%s1 + $0x990] sm:$0xff]
  %v407 = vld [vmem:[%s1 + $0x998] sm:$0xff]
  %v408 = vld [vmem:[%s1 + $0x9a0] sm:$0xff]
  %v409 = vld [vmem:[%s1 + $0x9a8] sm:$0xff]
  %v410 = vld [vmem:[%s1 + $0x9b0] sm:$0xff]
  %v411 = vld [vmem:[%s1 + $0x9b8] sm:$0xff]
  %v412 = vld [vmem:[%s1 + $0x9c0] sm:$0xff]
  %v413 = vld [vmem:[%s1 + $0x9c8] sm:$0xff]
  %v414 = vld [vmem:[%s1 + $0x9d0] sm:$0xff]
  %v415 = vld [vmem:[%s1 + $0x9d8] sm:$0xff]
  %v416 = vld [vmem:[%s1 + $0x9e0] sm:$0xff]
  %v417 = vld [vmem:[%s1 + $0x9e8] sm:$0xff]
  %v418 = vld [vmem:[%s1 + $0x9f0] sm:$0xff]
  %v419 = vld [vmem:[%s1 + $0x9f8] sm:$0xff]
  %v420 = vld [vmem:[%s1 + $0xa00] sm:$0xff]
  %v421 = vld [vmem:[%s1 + $0xa08] sm:$0xff]
  %v422 = vld [vmem:[%s1 + $0xa10] sm:$0xff]
  %v423 = vld [vmem:[%s1 + $0xa18] sm:$0xff]
  %v424 = vld [vmem:[%s1 + $0xa20] sm:$0xff]
  %v425 = vld [vmem:[%s1 + $0xa28] sm:$0xff]
  %v426 = vld [vmem:[%s1 + $0xa30] sm:$0xff]
  %v427 = vld [vmem:[%s1 + $0xa38] sm:$0xff]
  %v428 = vld [vmem:[%s1 + $0xa40] sm:$0xff]
  %v429 = vld [vmem:[%s1 + $0xa48] sm:$0xff]
  %v430 = vld [vmem:[%s1 + $0xa50] sm:$0xff]
  %v431 = vld [vmem:[%s1 + $0xa58] sm:$0xff]
  %v432 = vld [vmem:[%s1 + $0xa60] sm:$0xff]
  %v433 = vld [vmem:[%s1 + $0xa68] sm:$0xff]
  %v434 = vld [vmem:[%s1 + $0xa70] sm:$0xff]
  %v435 = vld [vmem:[%s1 + $0xa78] sm:$0xff]
  %v436 = vld [vmem:[%s1 + $0xa80] sm:$0xff]
  %v437 = vld [vmem:[%s1 + $0xa88] sm:$0xff]
  %v438 = vld [vmem:[%s1 + $0xa90] sm:$0xff]
  %v439 = vld [vmem:[%s1 + $0xa98] sm:$0xff]
  %v440 = vld [vmem:[%s1 + $0xaa0] sm:$0xff]
  %v441 = vld [vmem:[%s1 + $0xaa8] sm:$0xff]
  %v442 = vld [vmem:[%s1 + $0xab0] sm:$0xff]
  %v443 = vld [vmem:[%s1 + $0xab8] sm:$0xff]
  %v444 = vld [vmem:[%s1 + $0xac0] sm:$0xff]
  %v445 = vld [vmem:[%s1 + $0xac8] sm:$0xff]
  %v446 = vld [vmem:[%s1 + $0xad0] sm:$0xff]
  %v447 = vld [vmem:[%s1 + $0xad8] sm:$0xff]
  %v448 = vld [vmem:[%s1 + $0xae0] sm:$0xff]
  %v449 = vld [vmem:[%s1 + $0xae8] sm:$0xff]
  %v450 = vld [vmem:[%s1 + $0xaf0] sm:$0xff]
  %v451 = vld [vmem:[%s1 + $0xaf8] sm:$0xff]
  %v452 = vld [vmem:[%s1 + $0xb00] sm:$0xff]
  %v453 = vld [vmem:[%s1 + $0xb08] sm:$0xff]
  %v454 = vld [vmem:[%s1 + $0xb10] sm:$0xff]
  %v455 = vld [vmem:[%s1 + $0xb18] sm:$0xff]
  %v456 = vld [vmem:[%s1 + $0xb20] sm:$0xff]
  %v457 = vld [vmem:[%s1 + $0xb28] sm:$0xff]
  %v458 = vld [vmem:[%s1 + $0xb30] sm:$0xff]
  %v459 = vld [vmem:[%s1 + $0xb38] sm:$0xff]
  %v460 = vld [vmem:[%s1 + $0xb40] sm:$0xff]
  %v461 = vld [vmem:[%s1 + $0xb48] sm:$0xff]
  %v462 = vld [vmem:[%s1 + $0xb50] sm:$0xff]
  %v463 = vld [vmem:[%s1 + $0xb58] sm:$0xff]
  %v464 = vld [vmem:[%s1 + $0xb60] sm:$0xff]
  %v465 = vld [vmem:[%s1 + $0xb68] sm:$0xff]
  %v466 = vld [vmem:[%s1 + $0xb70] sm:$0xff]
  %v467 = vld [vmem:[%s1 + $0xb78] sm:$0xff]
  %v468 = vld [vmem:[%s1 + $0xb80] sm:$0xff]
  %v469 = vld [vmem:[%s1 + $0xb88] sm:$0xff]
  %v470 = vld [vmem:[%s1 + $0xb90] sm:$0xff]
  %v471 = vld [vmem:[%s1 + $0xb98] sm:$0xff]
  %v472 = vld [vmem:[%s1 + $0xba0] sm:$0xff]
  %v473 = vld [vmem:[%s1 + $0xba8] sm:$0xff]
  %v474 = vld [vmem:[%s1 + $0xbb0] sm:$0xff]
  %v475 = vld [vmem:[%s1 + $0xbb8] sm:$0xff]
  %v476 = vld [vmem:[%s1 + $0xbc0] sm:$0xff]
  %v477 = vld [vmem:[%s1 + $0xbc8] sm:$0xff]
  %v478 = vld [vmem:[%s1 + $0xbd0] sm:$0xff]
  %v479 = vld [vmem:[%s1 + $0xbd8] sm:$0xff]
  %v480 = vld [vmem:[%s1 + $0xbe0] sm:$0xff]
  %v481 = vld [vmem:[%s1 + $0xbe8] sm:$0xff]
  %v482 = vld [vmem:[%s1 + $0xbf0] sm:$0xff]
  %v483 = vld [vmem:[%s1 + $0xbf8] sm:$0xff]
  %v484 = vld [vmem:[%s1 + $0xc00] sm:$0xff]
  %v485 = vld [vmem:[%s1 + $0xc08] sm:$0xff]
  %v486 = vld [vmem:[%s1 + $0xc10] sm:$0xff]
  %v487 = vld [vmem:[%s1 + $0xc18] sm:$0xff]
  %v488 = vld [vmem:[%s1 + $0xc20] sm:$0xff]
  %v489 = vld [vmem:[%s1 + $0xc28] sm:$0xff]
  %v490 = vld [vmem:[%s1 + $0xc30] sm:$0xff]
  %v491 = vld [vmem:[%s1 + $0xc38] sm:$0xff]
  %v492 = vld [vmem:[%s1 + $0xc40] sm:$0xff]
  %v493 = vld [vmem:[%s1 + $0xc48] sm:$0xff]
  %v494 = vld [vmem:[%s1 + $0xc50] sm:$0xff]
  %v495 = vld [vmem:[%s1 + $0xc58] sm:$0xff]
  %v496 = vld [vmem:[%s1 + $0xc60] sm:$0xff]
  %v497 = vld [vmem:[%s1 + $0xc68] sm:$0xff]
  %v498 = vld [vmem:[%s1 + $0xc70] sm:$0xff]
  %v499 = vld [vmem:[%s1 + $0xc78] sm:$0xff]
  %v500 = vld [vmem:[%s1 + $0xc80] sm:$0xff]
  %v501 = vld [vmem:[%s1 + $0xc88] sm:$0xff]
  %v502 = vld [vmem:[%s1 + $0xc90] sm:$0xff]
  %v503 = vld [vmem:[%s1 + $0xc98] sm:$0xff]
  %v504 = vld [vmem:[%s1 + $0xca0] sm:$0xff]
  %v505 = vld [vmem:[%s1 + $0xca8] sm:$0xff]
  %v506 = vld [vmem:[%s1 + $0xcb0] sm:$0xff]
  %v507 = vld [vmem:[%s1 + $0xcb8] sm:$0xff]
  %v508 = vld [vmem:[%s1 + $0xcc0] sm:$0xff]
  %v509 = vld [vmem:[%s1 + $0xcc8] sm:$0xff]
  %v510 = vld [vmem:[%s1 + $0xcd0] sm:$0xff]
  %v511 = vld [vmem:[%s1 + $0xcd8] sm:$0xff]
  %v512 = vld [vmem:[%s1 + $0xce0] sm:$0xff]
  %v513 = vld [vmem:[%s1 + $0xce8] sm:$0xff]
  %v514 = vld [vmem:[%s1 + $0xcf0] sm:$0xff]
  %v515 = vld [vmem:[%s1 + $0xcf8] sm:$0xff]
  %v516 = vld [vmem:[%s1 + $0xd00] sm:$0xff]
  %v517 = vld [vmem:[%s1 + $0xd08] sm:$0xff]
  %v518 = vld [vmem:[%s1 + $0xd10] sm:$0xff]
  %v519 = vld [vmem:[%s1 + $0xd18] sm:$0xff]
  %v520 = vld [vmem:[%s1 + $0xd20] sm:$0xff]
  %v521 = vld [vmem:[%s1 + $0xd28] sm:$0xff]
  %v522 = vld [vmem:[%s1 + $0xd30] sm:$0xff]
  %v523 = vld [vmem:[%s1 + $0xd38] sm:$0xff]
  %v524 = vld [vmem:[%s1 + $0xd40] sm:$0xff]
  %v525 = vld [vmem:[%s1 + $0xd48] sm:$0xff]
  %v526 = vld [vmem:[%s1 + $0xd50] sm:$0xff]
  %v527 = vld [vmem:[%s1 + $0xd58] sm:$0xff]
  %v528 = vld [vmem:[%s1 + $0xd60] sm:$0xff]
  %v529 = vld [vmem:[%s1 + $0xd68] sm:$0xff]
  %v530 = vld [vmem:[%s1 + $0xd70] sm:$0xff]
  %v531 = vld [vmem:[%s1 + $0xd78] sm:$0xff]
  %v532 = vld [vmem:[%s1 + $0xd80] sm:$0xff]
  %v533 = vld [vmem:[%s1 + $0xd88] sm:$0xff]
  %v534 = vld [vmem:[%s1 + $0xd90] sm:$0xff]
  %v535 = vld [vmem:[%s1 + $0xd98] sm:$0xff]
  %v536 = vld [vmem:[%s1 + $0xda0] sm:$0xff]
  %v537 = vld [vmem:[%s1 + $0xda8] sm:$0xff]
  %v538 = vld [vmem:[%s1 + $0xdb0] sm:$0xff]
  %v539 = vld [vmem:[%s1 + $0xdb8] sm:$0xff]
  %v540 = vld [vmem:[%s1 + $0xdc0] sm:$0xff]
  %v541 = vld [vmem:[%s1 + $0xdc8] sm:$0xff]
  %v542 = vld [vmem:[%s1 + $0xdd0] sm:$0xff]
  %v543 = vld [vmem:[%s1 + $0xdd8] sm:$0xff]
  %v544 = vld [vmem:[%s1 + $0xde0] sm:$0xff]
  %v545 = vld [vmem:[%s1 + $0xde8] sm:$0xff]
  %v546 = vld [vmem:[%s1 + $0xdf0] sm:$0xff]
  %v547 = vld [vmem:[%s1 + $0xdf8] sm:$0xff]
  %v548 = vld [vmem:[%s1 + $0xe00] sm:$0xff]
  %v549 = vld [vmem:[%s1 + $0xe08] sm:$0xff]
  %v550 = vld [vmem:[%s1 + $0xe10] sm:$0xff]
  %v551 = vld [vmem:[%s1 + $0xe18] sm:$0xff]
  %v552 = vld [vmem:[%s1 + $0xe20] sm:$0xff]
  %v553 = vld [vmem:[%s1 + $0xe28] sm:$0xff]
  %v554 = vld [vmem:[%s1 + $0xe30] sm:$0xff]
  %v555 = vld [vmem:[%s1 + $0xe38] sm:$0xff]
  %v556 = vld [vmem:[%s1 + $0xe40] sm:$0xff]
  %v557 = vld [vmem:[%s1 + $0xe48] sm:$0xff]
  %v558 = vld [vmem:[%s1 + $0xe50] sm:$0xff]
  %v559 = vld [vmem:[%s1 + $0xe58] sm:$0xff]
  %v560 = vld [vmem:[%s1 + $0xe60] sm:$0xff]
  %v561 = vld [vmem:[%s1 + $0xe68] sm:$0xff]
  %v562 = vld [vmem:[%s1 + $0xe70] sm:$0xff]
  %v563 = vld [vmem:[%s1 + $0xe78] sm:$0xff]
  %v564 = vld [vmem:[%s1 + $0xe80] sm:$0xff]
  %v565 = vld [vmem:[%s1 + $0xe88] sm:$0xff]
  %v566 = vld [vmem:[%s1 + $0xe90] sm:$0xff]
  %v567 = vld [vmem:[%s1 + $0xe98] sm:$0xff]
  %v568 = vld [vmem:[%s1 + $0xea0] sm:$0xff]
  %v569 = vld [vmem:[%s1 + $0xea8] sm:$0xff]
  %v570 = vld [vmem:[%s1 + $0xeb0] sm:$0xff]
  %v571 = vld [vmem:[%s1 + $0xeb8] sm:$0xff]
  %v572 = vld [vmem:[%s1 + $0xec0] sm:$0xff]
  %v573 = vld [vmem:[%s1 + $0xec8] sm:$0xff]
  %v574 = vld [vmem:[%s1 + $0xed0] sm:$0xff]
  %v575 = vld [vmem:[%s1 + $0xed8] sm:$0xff]
  %v576 = vld [vmem:[%s1 + $0xee0] sm:$0xff]
  %v577 = vld [vmem:[%s1 + $0xee8] sm:$0xff]
  %v578 = vld [vmem:[%s1 + $0xef0] sm:$0xff]
  %v579 = vld [vmem:[%s1 + $0xef8] sm:$0xff]
  %v580 = vld [vmem:[%s1 + $0xf00] sm:$0xff]
  %v581 = vld [vmem:[%s1 + $0xf08] sm:$0xff]
  %v582 = vld [vmem:[%s1 + $0xf10] sm:$0xff]
  %v583 = vld [vmem:[%s1 + $0xf18] sm:$0xff]
  %v584 = vld [vmem:[%s1 + $0xf20] sm:$0xff]
  %v585 = vld [vmem:[%s1 + $0xf28] sm:$0xff]
  %v586 = vld [vmem:[%s1 + $0xf30] sm:$0xff]
  %v587 = vld [vmem:[%s1 + $0xf38] sm:$0xff]
  %v588 = vld [vmem:[%s1 + $0xf40] sm:$0xff]
  %v589 = vld [vmem:[%s1 + $0xf48] sm:$0xff]
  %v590 = vld [vmem:[%s1 + $0xf50] sm:$0xff]
  %v591 = vld [vmem:[%s1 + $0xf58] sm:$0xff]
  %v592 = vld [vmem:[%s1 + $0xf60] sm:$0xff]
  %v593 = vld [vmem:[%s1 + $0xf68] sm:$0xff]
  %v594 = vld [vmem:[%s1 + $0xf70] sm:$0xff]
  %v595 = vld [vmem:[%s1 + $0xf78] sm:$0xff]
  %v596 = vld [vmem:[%s1 + $0xf80] sm:$0xff]
  %v597 = vld [vmem:[%s1 + $0xf88] sm:$0xff]
  %v598 = vld [vmem:[%s1 + $0xf90] sm:$0xff]
  %v599 = vld [vmem:[%s1 + $0xf98] sm:$0xff]
  %v600 = vld [vmem:[%s1 + $0xfa0] sm:$0xff]
  %v601 = vld [vmem:[%s1 + $0xfa8] sm:$0xff]
  %v602 = vld [vmem:[%s1 + $0xfb0] sm:$0xff]
  %v603 = vld [vmem:[%s1 + $0xfb8] sm:$0xff]
  %v604 = vld [vmem:[%s1 + $0xfc0] sm:$0xff]
  %v605 = vld [vmem:[%s1 + $0xfc8] sm:$0xff]
  %v606 = vld [vmem:[%s1 + $0xfd0] sm:$0xff]
  %v607 = vld [vmem:[%s1 + $0xfd8] sm:$0xff]
  %v608 = vld [vmem:[%s1 + $0xfe0] sm:$0xff]
  %v609 = vld [vmem:[%s1 + $0xfe8] sm:$0xff]
  %v610 = vld [vmem:[%s1 + $0xff0] sm:$0xff]
  %v611 = vld [vmem:[%s1 + $0xff8] sm:$0xff]
  %v612 = vld [vmem:[%s1 + $0x1000] sm:$0xff]
  %v613 = vld [vmem:[%s1 + $0x1008] sm:$0xff]
  %v614 = vld [vmem:[%s1 + $0x1010] sm:$0xff]
  %v615 = vld [vmem:[%s1 + $0x1018] sm:$0xff]
  %v616 = vld [vmem:[%s1 + $0x1020] sm:$0xff]
  %v617 = vld [vmem:[%s1 + $0x1028] sm:$0xff]
  %v618 = vld [vmem:[%s1 + $0x1030] sm:$0xff]
  %v619 = vld [vmem:[%s1 + $0x1038] sm:$0xff]
  %v620 = vld [vmem:[%s1 + $0x1040] sm:$0xff]
  %v621 = vld [vmem:[%s1 + $0x1048] sm:$0xff]
  %v622 = vld [vmem:[%s1 + $0x1050] sm:$0xff]
  %v623 = vld [vmem:[%s1 + $0x1058] sm:$0xff]
  %v624 = vld [vmem:[%s1 + $0x1060] sm:$0xff]
  %v625 = vld [vmem:[%s1 + $0x1068] sm:$0xff]
  %v626 = vld [vmem:[%s1 + $0x1070] sm:$0xff]
  %v627 = vld [vmem:[%s1 + $0x1078] sm:$0xff]
  %v628 = vld [vmem:[%s1 + $0x1080] sm:$0xff]
  %v629 = vld [vmem:[%s1 + $0x1088] sm:$0xff]
  %v630 = vld [vmem:[%s1 + $0x1090] sm:$0xff]
  %v631 = vld [vmem:[%s1 + $0x1098] sm:$0xff]
  %v632 = vld [vmem:[%s1 + $0x10a0] sm:$0xff]
  %v633 = vld [vmem:[%s1 + $0x10a8] sm:$0xff]
  %v634 = vld [vmem:[%s1 + $0x10b0] sm:$0xff]
  %v635 = vld [vmem:[%s1 + $0x10b8] sm:$0xff]
  %v636 = vld [vmem:[%s1 + $0x10c0] sm:$0xff]
  %v637 = vld [vmem:[%s1 + $0x10c8] sm:$0xff]
  %v638 = vld [vmem:[%s1 + $0x10d0] sm:$0xff]
  %v639 = vld [vmem:[%s1 + $0x10d8] sm:$0xff]
  %v640 = vld [vmem:[%s1 + $0x10e0] sm:$0xff]
  %v641 = vld [vmem:[%s1 + $0x10e8] sm:$0xff]
  %v642 = vld [vmem:[%s1 + $0x10f0] sm:$0xff]
  %v643 = vld [vmem:[%s1 + $0x10f8] sm:$0xff]
  %v644 = vld [vmem:[%s1 + $0x1100] sm:$0xff]
  %v645 = vld [vmem:[%s1 + $0x1108] sm:$0xff]
  %v646 = vld [vmem:[%s1 + $0x1110] sm:$0xff]
  %v647 = vld [vmem:[%s1 + $0x1118] sm:$0xff]
  %v648 = vld [vmem:[%s1 + $0x1120] sm:$0xff]
  %v649 = vld [vmem:[%s1 + $0x1128] sm:$0xff]
  %v650 = vld [vmem:[%s1 + $0x1130] sm:$0xff]
  %v651 = vld [vmem:[%s1 + $0x1138] sm:$0xff]
  %v652 = vld [vmem:[%s1 + $0x1140] sm:$0xff]
  %v653 = vld [vmem:[%s1 + $0x1148] sm:$0xff]
  %v654 = vld [vmem:[%s1 + $0x1150] sm:$0xff]
  %v655 = vld [vmem:[%s1 + $0x1158] sm:$0xff]
  %v656 = vld [vmem:[%s1 + $0x1160] sm:$0xff]
  %v657 = vld [vmem:[%s1 + $0x1168] sm:$0xff]
  %v658 = vld [vmem:[%s1 + $0x1170] sm:$0xff]
  %v659 = vld [vmem:[%s1 + $0x1178] sm:$0xff]
  %v660 = vld [vmem:[%s1 + $0x1180] sm:$0xff]
  %v661 = vld [vmem:[%s1 + $0x1188] sm:$0xff]
  %v662 = vld [vmem:[%s1 + $0x1190] sm:$0xff]
  %v663 = vld [vmem:[%s1 + $0x1198] sm:$0xff]
  %v664 = vld [vmem:[%s1 + $0x11a0] sm:$0xff]
  %v665 = vld [vmem:[%s1 + $0x11a8] sm:$0xff]
  %v666 = vld [vmem:[%s1 + $0x11b0] sm:$0xff]
  %v667 = vld [vmem:[%s1 + $0x11b8] sm:$0xff]
  %v668 = vld [vmem:[%s1 + $0x11c0] sm:$0xff]
  %v669 = vld [vmem:[%s1 + $0x11c8] sm:$0xff]
  %v670 = vld [vmem:[%s1 + $0x11d0] sm:$0xff]
  %v671 = vld [vmem:[%s1 + $0x11d8] sm:$0xff]
  %v672 = vld [vmem:[%s1 + $0x11e0] sm:$0xff]
  %v673 = vld [vmem:[%s1 + $0x11e8] sm:$0xff]
  %v674 = vld [vmem:[%s1 + $0x11f0] sm:$0xff]
  %v675 = vld [vmem:[%s1 + $0x11f8] sm:$0xff]
  %v676 = vld [vmem:[%s1 + $0x1200] sm:$0xff]
  %v677 = vld [vmem:[%s1 + $0x1208] sm:$0xff]
  %v678 = vld [vmem:[%s1 + $0x1210] sm:$0xff]
  %v679 = vld [vmem:[%s1 + $0x1218] sm:$0xff]
  %v680 = vld [vmem:[%s1 + $0x1220] sm:$0xff]
  %v681 = vld [vmem:[%s1 + $0x1228] sm:$0xff]
  %v682 = vld [vmem:[%s1 + $0x1230] sm:$0xff]
  %v683 = vld [vmem:[%s1 + $0x1238] sm:$0xff]
  %v684 = vld [vmem:[%s1 + $0x1240] sm:$0xff]
  %v685 = vld [vmem:[%s1 + $0x1248] sm:$0xff]
  %v686 = vld [vmem:[%s1 + $0x1250] sm:$0xff]
  %v687 = vld [vmem:[%s1 + $0x1258] sm:$0xff]
  %v688 = vld [vmem:[%s1 + $0x1260] sm:$0xff]
  %v689 = vld [vmem:[%s1 + $0x1268] sm:$0xff]
  %v690 = vld [vmem:[%s1 + $0x1270] sm:$0xff]
  %v691 = vld [vmem:[%s1 + $0x1278] sm:$0xff]
  %v692 = vld [vmem:[%s1 + $0x1280] sm:$0xff]
  %v693 = vld [vmem:[%s1 + $0x1288] sm:$0xff]
  %v694 = vld [vmem:[%s1 + $0x1290] sm:$0xff]
  %v695 = vld [vmem:[%s1 + $0x1298] sm:$0xff]
  %v696 = vld [vmem:[%s1 + $0x12a0] sm:$0xff]
  %v697 = vld [vmem:[%s1 + $0x12a8] sm:$0xff]
  %v698 = vld [vmem:[%s1 + $0x12b0] sm:$0xff]
  %v699 = vld [vmem:[%s1 + $0x12b8] sm:$0xff]
  %v700 = vld [vmem:[%s1 + $0x12c0] sm:$0xff]
  %v701 = vld [vmem:[%s1 + $0x12c8] sm:$0xff]
  %v702 = vld [vmem:[%s1 + $0x12d0] sm:$0xff]
  %v703 = vld [vmem:[%s1 + $0x12d8] sm:$0xff]
  %v704 = vld [vmem:[%s1 + $0x12e0] sm:$0xff]
  %v705 = vld [vmem:[%s1 + $0x12e8] sm:$0xff]
  %v706 = vld [vmem:[%s1 + $0x12f0] sm:$0xff]
  %v707 = vld [vmem:[%s1 + $0x12f8] sm:$0xff]
  %v788 = vunpack.c.l.b16 %v20
  %v789 = vunpack.c.h.b16 %v20
  %v790 = vunpack.c.l.b16 %v21
  %v791 = vunpack.c.h.b16 %v21
  %v792 = vunpack.c.l.b16 %v22
  %v793 = vunpack.c.h.b16 %v22
  %v794 = vunpack.c.l.b16 %v23
  %v795 = vunpack.c.h.b16 %v23
  %v796 = vunpack.c.l.b16 %v24
  %v797 = vunpack.c.h.b16 %v24
  %v798 = vunpack.c.l.b16 %v25
  %v799 = vunpack.c.h.b16 %v25
  %v800 = vunpack.c.l.b16 %v26
  %v801 = vunpack.c.h.b16 %v26
  %v802 = vunpack.c.l.b16 %v27
  %v803 = vunpack.c.h.b16 %v27
  %v804 = vunpack.c.l.b16 %v28
  %v805 = vunpack.c.h.b16 %v28
  %v806 = vunpack.c.l.b16 %v29
  %v807 = vunpack.c.l.b16 %v30
  %v808 = vunpack.c.h.b16 %v30
  %v809 = vunpack.c.l.b16 %v31
  %v810 = vunpack.c.h.b16 %v31
  %v811 = vunpack.c.l.b16 %v32
  %v812 = vunpack.c.h.b16 %v32
  %v813 = vunpack.c.l.b16 %v33
  %v814 = vunpack.c.h.b16 %v33
  %v815 = vunpack.c.l.b16 %v34
  %v816 = vunpack.c.h.b16 %v34
  %v817 = vunpack.c.l.b16 %v35
  %v818 = vunpack.c.h.b16 %v35
  %v819 = vunpack.c.l.b16 %v36
  %v820 = vunpack.c.h.b16 %v36
  %v821 = vunpack.c.l.b16 %v37
  %v822 = vunpack.c.h.b16 %v37
  %v823 = vunpack.c.l.b16 %v38
  %v824 = vunpack.c.h.b16 %v38
  %v825 = vunpack.c.l.b16 %v39
  %v826 = vunpack.c.l.b16 %v40
  %v827 = vunpack.c.h.b16 %v40
  %v828 = vunpack.c.l.b16 %v41
  %v829 = vunpack.c.h.b16 %v41
  %v830 = vunpack.c.l.b16 %v42
  %v831 = vunpack.c.h.b16 %v42
  %v832 = vunpack.c.l.b16 %v43
  %v833 = vunpack.c.h.b16 %v43
  %v834 = vunpack.c.l.b16 %v44
  %v835 = vunpack.c.h.b16 %v44
  %v836 = vunpack.c.l.b16 %v45
  %v837 = vunpack.c.h.b16 %v45
  %v838 = vunpack.c.l.b16 %v46
  %v839 = vunpack.c.h.b16 %v46
  %v840 = vunpack.c.l.b16 %v47
  %v841 = vunpack.c.h.b16 %v47
  %v842 = vunpack.c.l.b16 %v48
  %v843 = vunpack.c.h.b16 %v48
  %v844 = vunpack.c.l.b16 %v49
  %v845 = vunpack.c.l.b16 %v50
  %v846 = vunpack.c.h.b16 %v50
  %v847 = vunpack.c.l.b16 %v51
  %v848 = vunpack.c.h.b16 %v51
  %v849 = vunpack.c.l.b16 %v52
  %v850 = vunpack.c.h.b16 %v52
  %v851 = vunpack.c.l.b16 %v53
  %v852 = vunpack.c.h.b16 %v53
  %v853 = vunpack.c.l.b16 %v54
  %v854 = vunpack.c.h.b16 %v54
  %v855 = vunpack.c.l.b16 %v55
  %v856 = vunpack.c.h.b16 %v55
  %v857 = vunpack.c.l.b16 %v56
  %v858 = vunpack.c.h.b16 %v56
  %v859 = vunpack.c.l.b16 %v57
  %v860 = vunpack.c.h.b16 %v57
  %v861 = vunpack.c.l.b16 %v58
  %v862 = vunpack.c.h.b16 %v58
  %v863 = vunpack.c.l.b16 %v59
  %v864 = vunpack.c.l.b16 %v60
  %v865 = vunpack.c.h.b16 %v60
  %v866 = vunpack.c.l.b16 %v61
  %v867 = vunpack.c.h.b16 %v61
  %v868 = vunpack.c.l.b16 %v62
  %v869 = vunpack.c.h.b16 %v62
  %v870 = vunpack.c.l.b16 %v63
  %v871 = vunpack.c.h.b16 %v63
  %v872 = vunpack.c.l.b16 %v64
  %v873 = vunpack.c.h.b16 %v64
  %v874 = vunpack.c.l.b16 %v65
  %v875 = vunpack.c.h.b16 %v65
  %v876 = vunpack.c.l.b16 %v66
  %v877 = vunpack.c.h.b16 %v66
  %v878 = vunpack.c.l.b16 %v67
  %v879 = vunpack.c.h.b16 %v67
  %v880 = vunpack.c.l.b16 %v68
  %v881 = vunpack.c.h.b16 %v68
  %v882 = vunpack.c.l.b16 %v69
  %v883 = vunpack.c.l.b16 %v70
  %v884 = vunpack.c.h.b16 %v70
  %v885 = vunpack.c.l.b16 %v71
  %v886 = vunpack.c.h.b16 %v71
  %v887 = vunpack.c.l.b16 %v72
  %v888 = vunpack.c.h.b16 %v72
  %v889 = vunpack.c.l.b16 %v73
  %v890 = vunpack.c.h.b16 %v73
  %v891 = vunpack.c.l.b16 %v74
  %v892 = vunpack.c.h.b16 %v74
  %v893 = vunpack.c.l.b16 %v75
  %v894 = vunpack.c.h.b16 %v75
  %v895 = vunpack.c.l.b16 %v76
  %v896 = vunpack.c.h.b16 %v76
  %v897 = vunpack.c.l.b16 %v77
  %v898 = vunpack.c.h.b16 %v77
  %v899 = vunpack.c.l.b16 %v78
  %v900 = vunpack.c.h.b16 %v78
  %v901 = vunpack.c.l.b16 %v79
  %v902 = vunpack.c.l.b16 %v80
  %v903 = vunpack.c.h.b16 %v80
  %v904 = vunpack.c.l.b16 %v81
  %v905 = vunpack.c.h.b16 %v81
  %v906 = vunpack.c.l.b16 %v82
  %v907 = vunpack.c.h.b16 %v82
  %v908 = vunpack.c.l.b16 %v83
  %v909 = vunpack.c.h.b16 %v83
  %v910 = vunpack.c.l.b16 %v84
  %v911 = vunpack.c.h.b16 %v84
  %v912 = vunpack.c.l.b16 %v85
  %v913 = vunpack.c.h.b16 %v85
  %v914 = vunpack.c.l.b16 %v86
  %v915 = vunpack.c.h.b16 %v86
  %v916 = vunpack.c.l.b16 %v87
  %v917 = vunpack.c.h.b16 %v87
  %v918 = vunpack.c.l.b16 %v88
  %v919 = vunpack.c.h.b16 %v88
  %v920 = vunpack.c.l.b16 %v89
  %v921 = vunpack.c.l.b16 %v90
  %v922 = vunpack.c.h.b16 %v90
  %v923 = vunpack.c.l.b16 %v91
  %v924 = vunpack.c.h.b16 %v91
  %v925 = vunpack.c.l.b16 %v92
  %v926 = vunpack.c.h.b16 %v92
  %v927 = vunpack.c.l.b16 %v93
  %v928 = vunpack.c.h.b16 %v93
  %v929 = vunpack.c.l.b16 %v94
  %v930 = vunpack.c.h.b16 %v94
  %v931 = vunpack.c.l.b16 %v95
  %v932 = vunpack.c.h.b16 %v95
  %v933 = vunpack.c.l.b16 %v96
  %v934 = vunpack.c.h.b16 %v96
  %v935 = vunpack.c.l.b16 %v97
  %v936 = vunpack.c.h.b16 %v97
  %v937 = vunpack.c.l.b16 %v98
  %v938 = vunpack.c.h.b16 %v98
  %v939 = vunpack.c.l.b16 %v99
  %v940 = vpack.c.b16 %v807, %v788
  %v941 = vpack.c.b16 %v808, %v789
  %v942 = vpack.c.b16 %v809, %v790
  %v943 = vpack.c.b16 %v810, %v791
  %v944 = vpack.c.b16 %v811, %v792
  %v945 = vpack.c.b16 %v812, %v793
  %v946 = vpack.c.b16 %v813, %v794
  %v947 = vpack.c.b16 %v814, %v795
  %v948 = vpack.c.b16 %v815, %v796
  %v949 = vpack.c.b16 %v816, %v797
  %v950 = vpack.c.b16 %v817, %v798
  %v951 = vpack.c.b16 %v818, %v799
  %v952 = vpack.c.b16 %v819, %v800
  %v953 = vpack.c.b16 %v820, %v801
  %v954 = vpack.c.b16 %v821, %v802
  %v955 = vpack.c.b16 %v822, %v803
  %v956 = vpack.c.b16 %v823, %v804
  %v957 = vpack.c.b16 %v824, %v805
  %v958 = vpack.c.b16 %v825, %v806
  %v959 = vpack.c.b16 %v845, %v826
  %v960 = vpack.c.b16 %v846, %v827
  %v961 = vpack.c.b16 %v847, %v828
  %v962 = vpack.c.b16 %v848, %v829
  %v963 = vpack.c.b16 %v849, %v830
  %v964 = vpack.c.b16 %v850, %v831
  %v965 = vpack.c.b16 %v851, %v832
  %v966 = vpack.c.b16 %v852, %v833
  %v967 = vpack.c.b16 %v853, %v834
  %v968 = vpack.c.b16 %v854, %v835
  %v969 = vpack.c.b16 %v855, %v836
  %v970 = vpack.c.b16 %v856, %v837
  %v971 = vpack.c.b16 %v857, %v838
  %v972 = vpack.c.b16 %v858, %v839
  %v973 = vpack.c.b16 %v859, %v840
  %v974 = vpack.c.b16 %v860, %v841
  %v975 = vpack.c.b16 %v861, %v842
  %v976 = vpack.c.b16 %v862, %v843
  %v977 = vpack.c.b16 %v863, %v844
  %v978 = vpack.c.b16 %v883, %v864
  %v979 = vpack.c.b16 %v884, %v865
  %v980 = vpack.c.b16 %v885, %v866
  %v981 = vpack.c.b16 %v886, %v867
  %v982 = vpack.c.b16 %v887, %v868
  %v983 = vpack.c.b16 %v888, %v869
  %v984 = vpack.c.b16 %v889, %v870
  %v985 = vpack.c.b16 %v890, %v871
  %v986 = vpack.c.b16 %v891, %v872
  %v987 = vpack.c.b16 %v892, %v873
  %v988 = vpack.c.b16 %v893, %v874
  %v989 = vpack.c.b16 %v894, %v875
  %v990 = vpack.c.b16 %v895, %v876
  %v991 = vpack.c.b16 %v896, %v877
  %v992 = vpack.c.b16 %v897, %v878
  %v993 = vpack.c.b16 %v898, %v879
  %v994 = vpack.c.b16 %v899, %v880
  %v995 = vpack.c.b16 %v900, %v881
  %v996 = vpack.c.b16 %v901, %v882
  %v997 = vpack.c.b16 %v921, %v902
  %v998 = vpack.c.b16 %v922, %v903
  %v999 = vpack.c.b16 %v923, %v904
  %v1000 = vpack.c.b16 %v924, %v905
  %v1001 = vpack.c.b16 %v925, %v906
  %v1002 = vpack.c.b16 %v926, %v907
  %v1003 = vpack.c.b16 %v927, %v908
  %v1004 = vpack.c.b16 %v928, %v909
  %v1005 = vpack.c.b16 %v929, %v910
  %v1006 = vpack.c.b16 %v930, %v911
  %v1007 = vpack.c.b16 %v931, %v912
  %v1008 = vpack.c.b16 %v932, %v913
  %v1009 = vpack.c.b16 %v933, %v914
  %v1010 = vpack.c.b16 %v934, %v915
  %v1011 = vpack.c.b16 %v935, %v916
  %v1012 = vpack.c.b16 %v936, %v917
  %v1013 = vpack.c.b16 %v937, %v918
  %v1014 = vpack.c.b16 %v938, %v919
  %v1015 = vpack.c.b16 %v939, %v920
  %v1700 = vunpack.c.l.b16 %v100
  %v1701 = vunpack.c.h.b16 %v100
  %v1702 = vunpack.c.l.b16 %v101
  %v1703 = vunpack.c.h.b16 %v101
  %v1704 = vunpack.c.l.b16 %v102
  %v1705 = vunpack.c.h.b16 %v102
  %v1706 = vunpack.c.l.b16 %v103
  %v1707 = vunpack.c.h.b16 %v103
  %v1708 = vunpack.c.l.b16 %v104
  %v1709 = vunpack.c.h.b16 %v104
  %v1710 = vunpack.c.l.b16 %v105
  %v1711 = vunpack.c.h.b16 %v105
  %v1712 = vunpack.c.l.b16 %v106
  %v1713 = vunpack.c.h.b16 %v106
  %v1714 = vunpack.c.l.b16 %v107
  %v1715 = vunpack.c.h.b16 %v107
  %v1716 = vunpack.c.l.b16 %v108
  %v1717 = vunpack.c.h.b16 %v108
  %v1718 = vunpack.c.l.b16 %v109
  %v1719 = vunpack.c.h.b16 %v109
  %v1720 = vunpack.c.l.b16 %v110
  %v1721 = vunpack.c.h.b16 %v110
  %v1722 = vunpack.c.l.b16 %v111
  %v1723 = vunpack.c.h.b16 %v111
  %v1724 = vunpack.c.l.b16 %v112
  %v1725 = vunpack.c.h.b16 %v112
  %v1726 = vunpack.c.l.b16 %v113
  %v1727 = vunpack.c.h.b16 %v113
  %v1728 = vunpack.c.l.b16 %v114
  %v1729 = vunpack.c.h.b16 %v114
  %v1730 = vunpack.c.l.b16 %v115
  %v1731 = vunpack.c.h.b16 %v115
  %v1732 = vunpack.c.l.b16 %v116
  %v1733 = vunpack.c.h.b16 %v116
  %v1734 = vunpack.c.l.b16 %v117
  %v1735 = vunpack.c.h.b16 %v117
  %v1736 = vunpack.c.l.b16 %v118
  %v1737 = vunpack.c.h.b16 %v118
  %v1738 = vunpack.c.l.b16 %v119
  %v1739 = vunpack.c.h.b16 %v119
  %v1740 = vunpack.c.l.b16 %v120
  %v1741 = vunpack.c.h.b16 %v120
  %v1742 = vunpack.c.l.b16 %v121
  %v1743 = vunpack.c.h.b16 %v121
  %v1744 = vunpack.c.l.b16 %v122
  %v1745 = vunpack.c.h.b16 %v122
  %v1746 = vunpack.c.l.b16 %v123
  %v1747 = vunpack.c.h.b16 %v123
  %v1748 = vunpack.c.l.b16 %v124
  %v1749 = vunpack.c.h.b16 %v124
  %v1750 = vunpack.c.l.b16 %v125
  %v1751 = vunpack.c.h.b16 %v125
  %v1752 = vunpack.c.l.b16 %v126
  %v1753 = vunpack.c.h.b16 %v126
  %v1754 = vunpack.c.l.b16 %v127
  %v1755 = vunpack.c.h.b16 %v127
  %v1756 = vunpack.c.l.b16 %v128
  %v1757 = vunpack.c.h.b16 %v128
  %v1758 = vunpack.c.l.b16 %v129
  %v1759 = vunpack.c.h.b16 %v129
  %v1760 = vunpack.c.l.b16 %v130
  %v1761 = vunpack.c.h.b16 %v130
  %v1762 = vunpack.c.l.b16 %v131
  %v1763 = vunpack.c.h.b16 %v131
  %v1764 = vunpack.c.l.b16 %v132
  %v1765 = vunpack.c.h.b16 %v132
  %v1766 = vunpack.c.l.b16 %v133
  %v1767 = vunpack.c.h.b16 %v133
  %v1768 = vunpack.c.l.b16 %v134
  %v1769 = vunpack.c.h.b16 %v134
  %v1770 = vunpack.c.l.b16 %v135
  %v1771 = vunpack.c.h.b16 %v135
  %v1772 = vunpack.c.l.b16 %v136
  %v1773 = vunpack.c.h.b16 %v136
  %v1774 = vunpack.c.l.b16 %v137
  %v1775 = vunpack.c.h.b16 %v137
  %v1776 = vunpack.c.l.b16 %v138
  %v1777 = vunpack.c.h.b16 %v138
  %v1778 = vunpack.c.l.b16 %v139
  %v1779 = vunpack.c.h.b16 %v139
  %v1780 = vunpack.c.l.b16 %v140
  %v1781 = vunpack.c.h.b16 %v140
  %v1782 = vunpack.c.l.b16 %v141
  %v1783 = vunpack.c.h.b16 %v141
  %v1784 = vunpack.c.l.b16 %v142
  %v1785 = vunpack.c.h.b16 %v142
  %v1786 = vunpack.c.l.b16 %v143
  %v1787 = vunpack.c.h.b16 %v143
  %v1788 = vunpack.c.l.b16 %v144
  %v1789 = vunpack.c.h.b16 %v144
  %v1790 = vunpack.c.l.b16 %v145
  %v1791 = vunpack.c.h.b16 %v145
  %v1792 = vunpack.c.l.b16 %v146
  %v1793 = vunpack.c.h.b16 %v146
  %v1794 = vunpack.c.l.b16 %v147
  %v1795 = vunpack.c.h.b16 %v147
  %v1796 = vunpack.c.l.b16 %v148
  %v1797 = vunpack.c.h.b16 %v148
  %v1798 = vunpack.c.l.b16 %v149
  %v1799 = vunpack.c.h.b16 %v149
  %v1800 = vunpack.c.l.b16 %v150
  %v1801 = vunpack.c.h.b16 %v150
  %v1802 = vunpack.c.l.b16 %v151
  %v1803 = vunpack.c.h.b16 %v151
  %v1804 = vunpack.c.l.b16 %v152
  %v1805 = vunpack.c.h.b16 %v152
  %v1806 = vunpack.c.l.b16 %v153
  %v1807 = vunpack.c.h.b16 %v153
  %v1808 = vunpack.c.l.b16 %v154
  %v1809 = vunpack.c.h.b16 %v154
  %v1810 = vunpack.c.l.b16 %v155
  %v1811 = vunpack.c.h.b16 %v155
  %v1812 = vunpack.c.l.b16 %v156
  %v1813 = vunpack.c.h.b16 %v156
  %v1814 = vunpack.c.l.b16 %v157
  %v1815 = vunpack.c.h.b16 %v157
  %v1816 = vunpack.c.l.b16 %v158
  %v1817 = vunpack.c.h.b16 %v158
  %v1818 = vunpack.c.l.b16 %v159
  %v1819 = vunpack.c.h.b16 %v159
  %v1820 = vunpack.c.l.b16 %v160
  %v1821 = vunpack.c.h.b16 %v160
  %v1822 = vunpack.c.l.b16 %v161
  %v1823 = vunpack.c.h.b16 %v161
  %v1824 = vunpack.c.l.b16 %v162
  %v1825 = vunpack.c.h.b16 %v162
  %v1826 = vunpack.c.l.b16 %v163
  %v1827 = vunpack.c.h.b16 %v163
  %v1828 = vunpack.c.l.b16 %v164
  %v1829 = vunpack.c.h.b16 %v164
  %v1830 = vunpack.c.l.b16 %v165
  %v1831 = vunpack.c.h.b16 %v165
  %v1832 = vunpack.c.l.b16 %v166
  %v1833 = vunpack.c.h.b16 %v166
  %v1834 = vunpack.c.l.b16 %v167
  %v1835 = vunpack.c.h.b16 %v167
  %v1836 = vunpack.c.l.b16 %v168
  %v1837 = vunpack.c.h.b16 %v168
  %v1838 = vunpack.c.l.b16 %v169
  %v1839 = vunpack.c.h.b16 %v169
  %v1840 = vunpack.c.l.b16 %v170
  %v1841 = vunpack.c.h.b16 %v170
  %v1842 = vunpack.c.l.b16 %v171
  %v1843 = vunpack.c.h.b16 %v171
  %v1844 = vunpack.c.l.b16 %v172
  %v1845 = vunpack.c.h.b16 %v172
  %v1846 = vunpack.c.l.b16 %v173
  %v1847 = vunpack.c.h.b16 %v173
  %v1848 = vunpack.c.l.b16 %v174
  %v1849 = vunpack.c.h.b16 %v174
  %v1850 = vunpack.c.l.b16 %v175
  %v1851 = vunpack.c.h.b16 %v175
  %v1852 = vunpack.c.l.b16 %v176
  %v1853 = vunpack.c.h.b16 %v176
  %v1854 = vunpack.c.l.b16 %v177
  %v1855 = vunpack.c.h.b16 %v177
  %v1856 = vunpack.c.l.b16 %v178
  %v1857 = vunpack.c.h.b16 %v178
  %v1858 = vunpack.c.l.b16 %v179
  %v1859 = vunpack.c.h.b16 %v179
  %v1860 = vunpack.c.l.b16 %v180
  %v1861 = vunpack.c.h.b16 %v180
  %v1862 = vunpack.c.l.b16 %v181
  %v1863 = vunpack.c.h.b16 %v181
  %v1864 = vunpack.c.l.b16 %v182
  %v1865 = vunpack.c.h.b16 %v182
  %v1866 = vunpack.c.l.b16 %v183
  %v1867 = vunpack.c.h.b16 %v183
  %v1868 = vunpack.c.l.b16 %v184
  %v1869 = vunpack.c.h.b16 %v184
  %v1870 = vunpack.c.l.b16 %v185
  %v1871 = vunpack.c.h.b16 %v185
  %v1872 = vunpack.c.l.b16 %v186
  %v1873 = vunpack.c.h.b16 %v186
  %v1874 = vunpack.c.l.b16 %v187
  %v1875 = vunpack.c.h.b16 %v187
  %v1876 = vunpack.c.l.b16 %v188
  %v1877 = vunpack.c.h.b16 %v188
  %v1878 = vunpack.c.l.b16 %v189
  %v1879 = vunpack.c.h.b16 %v189
  %v1880 = vunpack.c.l.b16 %v190
  %v1881 = vunpack.c.h.b16 %v190
  %v1882 = vunpack.c.l.b16 %v191
  %v1883 = vunpack.c.h.b16 %v191
  %v1884 = vunpack.c.l.b16 %v192
  %v1885 = vunpack.c.h.b16 %v192
  %v1886 = vunpack.c.l.b16 %v193
  %v1887 = vunpack.c.h.b16 %v193
  %v1888 = vunpack.c.l.b16 %v194
  %v1889 = vunpack.c.h.b16 %v194
  %v1890 = vunpack.c.l.b16 %v195
  %v1891 = vunpack.c.h.b16 %v195
  %v1892 = vunpack.c.l.b16 %v196
  %v1893 = vunpack.c.h.b16 %v196
  %v1894 = vunpack.c.l.b16 %v197
  %v1895 = vunpack.c.h.b16 %v197
  %v1896 = vunpack.c.l.b16 %v198
  %v1897 = vunpack.c.h.b16 %v198
  %v1898 = vunpack.c.l.b16 %v199
  %v1899 = vunpack.c.h.b16 %v199
  %v1900 = vunpack.c.l.b16 %v200
  %v1901 = vunpack.c.h.b16 %v200
  %v1902 = vunpack.c.l.b16 %v201
  %v1903 = vunpack.c.h.b16 %v201
  %v1904 = vunpack.c.l.b16 %v202
  %v1905 = vunpack.c.h.b16 %v202
  %v1906 = vunpack.c.l.b16 %v203
  %v1907 = vunpack.c.h.b16 %v203
  %v1908 = vunpack.c.l.b16 %v204
  %v1909 = vunpack.c.h.b16 %v204
  %v1910 = vunpack.c.l.b16 %v205
  %v1911 = vunpack.c.h.b16 %v205
  %v1912 = vunpack.c.l.b16 %v206
  %v1913 = vunpack.c.h.b16 %v206
  %v1914 = vunpack.c.l.b16 %v207
  %v1915 = vunpack.c.h.b16 %v207
  %v1916 = vunpack.c.l.b16 %v208
  %v1917 = vunpack.c.h.b16 %v208
  %v1918 = vunpack.c.l.b16 %v209
  %v1919 = vunpack.c.h.b16 %v209
  %v1920 = vunpack.c.l.b16 %v210
  %v1921 = vunpack.c.h.b16 %v210
  %v1922 = vunpack.c.l.b16 %v211
  %v1923 = vunpack.c.h.b16 %v211
  %v1924 = vunpack.c.l.b16 %v212
  %v1925 = vunpack.c.h.b16 %v212
  %v1926 = vunpack.c.l.b16 %v213
  %v1927 = vunpack.c.h.b16 %v213
  %v1928 = vunpack.c.l.b16 %v214
  %v1929 = vunpack.c.h.b16 %v214
  %v1930 = vunpack.c.l.b16 %v215
  %v1931 = vunpack.c.h.b16 %v215
  %v1932 = vunpack.c.l.b16 %v216
  %v1933 = vunpack.c.h.b16 %v216
  %v1934 = vunpack.c.l.b16 %v217
  %v1935 = vunpack.c.h.b16 %v217
  %v1936 = vunpack.c.l.b16 %v218
  %v1937 = vunpack.c.h.b16 %v218
  %v1938 = vunpack.c.l.b16 %v219
  %v1939 = vunpack.c.h.b16 %v219
  %v1940 = vunpack.c.l.b16 %v220
  %v1941 = vunpack.c.h.b16 %v220
  %v1942 = vunpack.c.l.b16 %v221
  %v1943 = vunpack.c.h.b16 %v221
  %v1944 = vunpack.c.l.b16 %v222
  %v1945 = vunpack.c.h.b16 %v222
  %v1946 = vunpack.c.l.b16 %v223
  %v1947 = vunpack.c.h.b16 %v223
  %v1948 = vunpack.c.l.b16 %v224
  %v1949 = vunpack.c.h.b16 %v224
  %v1950 = vunpack.c.l.b16 %v225
  %v1951 = vunpack.c.h.b16 %v225
  %v1952 = vunpack.c.l.b16 %v226
  %v1953 = vunpack.c.h.b16 %v226
  %v1954 = vunpack.c.l.b16 %v227
  %v1955 = vunpack.c.h.b16 %v227
  %v1956 = vunpack.c.l.b16 %v228
  %v1957 = vunpack.c.h.b16 %v228
  %v1958 = vunpack.c.l.b16 %v229
  %v1959 = vunpack.c.h.b16 %v229
  %v1960 = vunpack.c.l.b16 %v230
  %v1961 = vunpack.c.h.b16 %v230
  %v1962 = vunpack.c.l.b16 %v231
  %v1963 = vunpack.c.h.b16 %v231
  %v1964 = vunpack.c.l.b16 %v232
  %v1965 = vunpack.c.h.b16 %v232
  %v1966 = vunpack.c.l.b16 %v233
  %v1967 = vunpack.c.h.b16 %v233
  %v1968 = vunpack.c.l.b16 %v234
  %v1969 = vunpack.c.h.b16 %v234
  %v1970 = vunpack.c.l.b16 %v235
  %v1971 = vunpack.c.h.b16 %v235
  %v1972 = vunpack.c.l.b16 %v236
  %v1973 = vunpack.c.h.b16 %v236
  %v1974 = vunpack.c.l.b16 %v237
  %v1975 = vunpack.c.h.b16 %v237
  %v1976 = vunpack.c.l.b16 %v238
  %v1977 = vunpack.c.h.b16 %v238
  %v1978 = vunpack.c.l.b16 %v239
  %v1979 = vunpack.c.h.b16 %v239
  %v1980 = vunpack.c.l.b16 %v240
  %v1981 = vunpack.c.h.b16 %v240
  %v1982 = vunpack.c.l.b16 %v241
  %v1983 = vunpack.c.h.b16 %v241
  %v1984 = vunpack.c.l.b16 %v242
  %v1985 = vunpack.c.h.b16 %v242
  %v1986 = vunpack.c.l.b16 %v243
  %v1987 = vunpack.c.h.b16 %v243
  %v1988 = vunpack.c.l.b16 %v244
  %v1989 = vunpack.c.h.b16 %v244
  %v1990 = vunpack.c.l.b16 %v245
  %v1991 = vunpack.c.h.b16 %v245
  %v1992 = vunpack.c.l.b16 %v246
  %v1993 = vunpack.c.h.b16 %v246
  %v1994 = vunpack.c.l.b16 %v247
  %v1995 = vunpack.c.h.b16 %v247
  %v1996 = vunpack.c.l.b16 %v248
  %v1997 = vunpack.c.h.b16 %v248
  %v1998 = vunpack.c.l.b16 %v249
  %v1999 = vunpack.c.h.b16 %v249
  %v2000 = vunpack.c.l.b16 %v250
  %v2001 = vunpack.c.h.b16 %v250
  %v2002 = vunpack.c.l.b16 %v251
  %v2003 = vunpack.c.h.b16 %v251
  %v2004 = vunpack.c.l.b16 %v252
  %v2005 = vunpack.c.h.b16 %v252
  %v2006 = vunpack.c.l.b16 %v253
  %v2007 = vunpack.c.h.b16 %v253
  %v2008 = vunpack.c.l.b16 %v254
  %v2009 = vunpack.c.h.b16 %v254
  %v2010 = vunpack.c.l.b16 %v255
  %v2011 = vunpack.c.h.b16 %v255
  %v2012 = vunpack.c.l.b16 %v256
  %v2013 = vunpack.c.h.b16 %v256
  %v2014 = vunpack.c.l.b16 %v257
  %v2015 = vunpack.c.h.b16 %v257
  %v2016 = vunpack.c.l.b16 %v258
  %v2017 = vunpack.c.h.b16 %v258
  %v2018 = vunpack.c.l.b16 %v259
  %v2019 = vunpack.c.h.b16 %v259
  %v2020 = vunpack.c.l.b16 %v260
  %v2021 = vunpack.c.h.b16 %v260
  %v2022 = vunpack.c.l.b16 %v261
  %v2023 = vunpack.c.h.b16 %v261
  %v2024 = vunpack.c.l.b16 %v262
  %v2025 = vunpack.c.h.b16 %v262
  %v2026 = vunpack.c.l.b16 %v263
  %v2027 = vunpack.c.h.b16 %v263
  %v2028 = vunpack.c.l.b16 %v264
  %v2029 = vunpack.c.h.b16 %v264
  %v2030 = vunpack.c.l.b16 %v265
  %v2031 = vunpack.c.h.b16 %v265
  %v2032 = vunpack.c.l.b16 %v266
  %v2033 = vunpack.c.h.b16 %v266
  %v2034 = vunpack.c.l.b16 %v267
  %v2035 = vunpack.c.h.b16 %v267
  %v2036 = vunpack.c.l.b16 %v268
  %v2037 = vunpack.c.h.b16 %v268
  %v2038 = vunpack.c.l.b16 %v269
  %v2039 = vunpack.c.h.b16 %v269
  %v2040 = vunpack.c.l.b16 %v270
  %v2041 = vunpack.c.h.b16 %v270
  %v2042 = vunpack.c.l.b16 %v271
  %v2043 = vunpack.c.h.b16 %v271
  %v2044 = vunpack.c.l.b16 %v272
  %v2045 = vunpack.c.h.b16 %v272
  %v2046 = vunpack.c.l.b16 %v273
  %v2047 = vunpack.c.h.b16 %v273
  %v2048 = vunpack.c.l.b16 %v274
  %v2049 = vunpack.c.h.b16 %v274
  %v2050 = vunpack.c.l.b16 %v275
  %v2051 = vunpack.c.h.b16 %v275
  %v2052 = vunpack.c.l.b16 %v276
  %v2053 = vunpack.c.h.b16 %v276
  %v2054 = vunpack.c.l.b16 %v277
  %v2055 = vunpack.c.h.b16 %v277
  %v2056 = vunpack.c.l.b16 %v278
  %v2057 = vunpack.c.h.b16 %v278
  %v2058 = vunpack.c.l.b16 %v279
  %v2059 = vunpack.c.h.b16 %v279
  %v2060 = vunpack.c.l.b16 %v280
  %v2061 = vunpack.c.h.b16 %v280
  %v2062 = vunpack.c.l.b16 %v281
  %v2063 = vunpack.c.h.b16 %v281
  %v2064 = vunpack.c.l.b16 %v282
  %v2065 = vunpack.c.h.b16 %v282
  %v2066 = vunpack.c.l.b16 %v283
  %v2067 = vunpack.c.h.b16 %v283
  %v2068 = vunpack.c.l.b16 %v284
  %v2069 = vunpack.c.h.b16 %v284
  %v2070 = vunpack.c.l.b16 %v285
  %v2071 = vunpack.c.h.b16 %v285
  %v2072 = vunpack.c.l.b16 %v286
  %v2073 = vunpack.c.h.b16 %v286
  %v2074 = vunpack.c.l.b16 %v287
  %v2075 = vunpack.c.h.b16 %v287
  %v2076 = vunpack.c.l.b16 %v288
  %v2077 = vunpack.c.h.b16 %v288
  %v2078 = vunpack.c.l.b16 %v289
  %v2079 = vunpack.c.h.b16 %v289
  %v2080 = vunpack.c.l.b16 %v290
  %v2081 = vunpack.c.h.b16 %v290
  %v2082 = vunpack.c.l.b16 %v291
  %v2083 = vunpack.c.h.b16 %v291
  %v2084 = vunpack.c.l.b16 %v292
  %v2085 = vunpack.c.h.b16 %v292
  %v2086 = vunpack.c.l.b16 %v293
  %v2087 = vunpack.c.h.b16 %v293
  %v2088 = vunpack.c.l.b16 %v294
  %v2089 = vunpack.c.h.b16 %v294
  %v2090 = vunpack.c.l.b16 %v295
  %v2091 = vunpack.c.h.b16 %v295
  %v2092 = vunpack.c.l.b16 %v296
  %v2093 = vunpack.c.h.b16 %v296
  %v2094 = vunpack.c.l.b16 %v297
  %v2095 = vunpack.c.h.b16 %v297
  %v2096 = vunpack.c.l.b16 %v298
  %v2097 = vunpack.c.h.b16 %v298
  %v2098 = vunpack.c.l.b16 %v299
  %v2099 = vunpack.c.h.b16 %v299
  %v2100 = vunpack.c.l.b16 %v300
  %v2101 = vunpack.c.h.b16 %v300
  %v2102 = vunpack.c.l.b16 %v301
  %v2103 = vunpack.c.h.b16 %v301
  %v2104 = vunpack.c.l.b16 %v302
  %v2105 = vunpack.c.h.b16 %v302
  %v2106 = vunpack.c.l.b16 %v303
  %v2107 = vunpack.c.h.b16 %v303
  %v2108 = vunpack.c.l.b16 %v304
  %v2109 = vunpack.c.h.b16 %v304
  %v2110 = vunpack.c.l.b16 %v305
  %v2111 = vunpack.c.h.b16 %v305
  %v2112 = vunpack.c.l.b16 %v306
  %v2113 = vunpack.c.h.b16 %v306
  %v2114 = vunpack.c.l.b16 %v307
  %v2115 = vunpack.c.h.b16 %v307
  %v2116 = vunpack.c.l.b16 %v308
  %v2117 = vunpack.c.h.b16 %v308
  %v2118 = vunpack.c.l.b16 %v309
  %v2119 = vunpack.c.h.b16 %v309
  %v2120 = vunpack.c.l.b16 %v310
  %v2121 = vunpack.c.h.b16 %v310
  %v2122 = vunpack.c.l.b16 %v311
  %v2123 = vunpack.c.h.b16 %v311
  %v2124 = vunpack.c.l.b16 %v312
  %v2125 = vunpack.c.h.b16 %v312
  %v2126 = vunpack.c.l.b16 %v313
  %v2127 = vunpack.c.h.b16 %v313
  %v2128 = vunpack.c.l.b16 %v314
  %v2129 = vunpack.c.h.b16 %v314
  %v2130 = vunpack.c.l.b16 %v315
  %v2131 = vunpack.c.h.b16 %v315
  %v2132 = vunpack.c.l.b16 %v316
  %v2133 = vunpack.c.h.b16 %v316
  %v2134 = vunpack.c.l.b16 %v317
  %v2135 = vunpack.c.h.b16 %v317
  %v2136 = vunpack.c.l.b16 %v318
  %v2137 = vunpack.c.h.b16 %v318
  %v2138 = vunpack.c.l.b16 %v319
  %v2139 = vunpack.c.h.b16 %v319
  %v2140 = vunpack.c.l.b16 %v320
  %v2141 = vunpack.c.h.b16 %v320
  %v2142 = vunpack.c.l.b16 %v321
  %v2143 = vunpack.c.h.b16 %v321
  %v2144 = vunpack.c.l.b16 %v322
  %v2145 = vunpack.c.h.b16 %v322
  %v2146 = vunpack.c.l.b16 %v323
  %v2147 = vunpack.c.h.b16 %v323
  %v2148 = vunpack.c.l.b16 %v324
  %v2149 = vunpack.c.h.b16 %v324
  %v2150 = vunpack.c.l.b16 %v325
  %v2151 = vunpack.c.h.b16 %v325
  %v2152 = vunpack.c.l.b16 %v326
  %v2153 = vunpack.c.h.b16 %v326
  %v2154 = vunpack.c.l.b16 %v327
  %v2155 = vunpack.c.h.b16 %v327
  %v2156 = vunpack.c.l.b16 %v328
  %v2157 = vunpack.c.h.b16 %v328
  %v2158 = vunpack.c.l.b16 %v329
  %v2159 = vunpack.c.h.b16 %v329
  %v2160 = vunpack.c.l.b16 %v330
  %v2161 = vunpack.c.h.b16 %v330
  %v2162 = vunpack.c.l.b16 %v331
  %v2163 = vunpack.c.h.b16 %v331
  %v2164 = vunpack.c.l.b16 %v332
  %v2165 = vunpack.c.h.b16 %v332
  %v2166 = vunpack.c.l.b16 %v333
  %v2167 = vunpack.c.h.b16 %v333
  %v2168 = vunpack.c.l.b16 %v334
  %v2169 = vunpack.c.h.b16 %v334
  %v2170 = vunpack.c.l.b16 %v335
  %v2171 = vunpack.c.h.b16 %v335
  %v2172 = vunpack.c.l.b16 %v336
  %v2173 = vunpack.c.h.b16 %v336
  %v2174 = vunpack.c.l.b16 %v337
  %v2175 = vunpack.c.h.b16 %v337
  %v2176 = vunpack.c.l.b16 %v338
  %v2177 = vunpack.c.h.b16 %v338
  %v2178 = vunpack.c.l.b16 %v339
  %v2179 = vunpack.c.h.b16 %v339
  %v2180 = vunpack.c.l.b16 %v340
  %v2181 = vunpack.c.h.b16 %v340
  %v2182 = vunpack.c.l.b16 %v341
  %v2183 = vunpack.c.h.b16 %v341
  %v2184 = vunpack.c.l.b16 %v342
  %v2185 = vunpack.c.h.b16 %v342
  %v2186 = vunpack.c.l.b16 %v343
  %v2187 = vunpack.c.h.b16 %v343
  %v2188 = vunpack.c.l.b16 %v344
  %v2189 = vunpack.c.h.b16 %v344
  %v2190 = vunpack.c.l.b16 %v345
  %v2191 = vunpack.c.h.b16 %v345
  %v2192 = vunpack.c.l.b16 %v346
  %v2193 = vunpack.c.h.b16 %v346
  %v2194 = vunpack.c.l.b16 %v347
  %v2195 = vunpack.c.h.b16 %v347
  %v2196 = vunpack.c.l.b16 %v348
  %v2197 = vunpack.c.h.b16 %v348
  %v2198 = vunpack.c.l.b16 %v349
  %v2199 = vunpack.c.h.b16 %v349
  %v2200 = vunpack.c.l.b16 %v350
  %v2201 = vunpack.c.h.b16 %v350
  %v2202 = vunpack.c.l.b16 %v351
  %v2203 = vunpack.c.h.b16 %v351
  %v2204 = vunpack.c.l.b16 %v352
  %v2205 = vunpack.c.h.b16 %v352
  %v2206 = vunpack.c.l.b16 %v353
  %v2207 = vunpack.c.h.b16 %v353
  %v2208 = vunpack.c.l.b16 %v354
  %v2209 = vunpack.c.h.b16 %v354
  %v2210 = vunpack.c.l.b16 %v355
  %v2211 = vunpack.c.h.b16 %v355
  %v2212 = vunpack.c.l.b16 %v356
  %v2213 = vunpack.c.h.b16 %v356
  %v2214 = vunpack.c.l.b16 %v357
  %v2215 = vunpack.c.h.b16 %v357
  %v2216 = vunpack.c.l.b16 %v358
  %v2217 = vunpack.c.h.b16 %v358
  %v2218 = vunpack.c.l.b16 %v359
  %v2219 = vunpack.c.h.b16 %v359
  %v2220 = vunpack.c.l.b16 %v360
  %v2221 = vunpack.c.h.b16 %v360
  %v2222 = vunpack.c.l.b16 %v361
  %v2223 = vunpack.c.h.b16 %v361
  %v2224 = vunpack.c.l.b16 %v362
  %v2225 = vunpack.c.h.b16 %v362
  %v2226 = vunpack.c.l.b16 %v363
  %v2227 = vunpack.c.h.b16 %v363
  %v2228 = vunpack.c.l.b16 %v364
  %v2229 = vunpack.c.h.b16 %v364
  %v2230 = vunpack.c.l.b16 %v365
  %v2231 = vunpack.c.h.b16 %v365
  %v2232 = vunpack.c.l.b16 %v366
  %v2233 = vunpack.c.h.b16 %v366
  %v2234 = vunpack.c.l.b16 %v367
  %v2235 = vunpack.c.h.b16 %v367
  %v2236 = vunpack.c.l.b16 %v368
  %v2237 = vunpack.c.h.b16 %v368
  %v2238 = vunpack.c.l.b16 %v369
  %v2239 = vunpack.c.h.b16 %v369
  %v2240 = vunpack.c.l.b16 %v370
  %v2241 = vunpack.c.h.b16 %v370
  %v2242 = vunpack.c.l.b16 %v371
  %v2243 = vunpack.c.h.b16 %v371
  %v2244 = vunpack.c.l.b16 %v372
  %v2245 = vunpack.c.h.b16 %v372
  %v2246 = vunpack.c.l.b16 %v373
  %v2247 = vunpack.c.h.b16 %v373
  %v2248 = vunpack.c.l.b16 %v374
  %v2249 = vunpack.c.h.b16 %v374
  %v2250 = vunpack.c.l.b16 %v375
  %v2251 = vunpack.c.h.b16 %v375
  %v2252 = vunpack.c.l.b16 %v376
  %v2253 = vunpack.c.h.b16 %v376
  %v2254 = vunpack.c.l.b16 %v377
  %v2255 = vunpack.c.h.b16 %v377
  %v2256 = vunpack.c.l.b16 %v378
  %v2257 = vunpack.c.h.b16 %v378
  %v2258 = vunpack.c.l.b16 %v379
  %v2259 = vunpack.c.h.b16 %v379
  %v2260 = vunpack.c.l.b16 %v380
  %v2261 = vunpack.c.h.b16 %v380
  %v2262 = vunpack.c.l.b16 %v381
  %v2263 = vunpack.c.h.b16 %v381
  %v2264 = vunpack.c.l.b16 %v382
  %v2265 = vunpack.c.h.b16 %v382
  %v2266 = vunpack.c.l.b16 %v383
  %v2267 = vunpack.c.h.b16 %v383
  %v2268 = vunpack.c.l.b16 %v384
  %v2269 = vunpack.c.h.b16 %v384
  %v2270 = vunpack.c.l.b16 %v385
  %v2271 = vunpack.c.h.b16 %v385
  %v2272 = vunpack.c.l.b16 %v386
  %v2273 = vunpack.c.h.b16 %v386
  %v2274 = vunpack.c.l.b16 %v387
  %v2275 = vunpack.c.h.b16 %v387
  %v2276 = vunpack.c.l.b16 %v388
  %v2277 = vunpack.c.h.b16 %v388
  %v2278 = vunpack.c.l.b16 %v389
  %v2279 = vunpack.c.h.b16 %v389
  %v2280 = vunpack.c.l.b16 %v390
  %v2281 = vunpack.c.h.b16 %v390
  %v2282 = vunpack.c.l.b16 %v391
  %v2283 = vunpack.c.h.b16 %v391
  %v2284 = vunpack.c.l.b16 %v392
  %v2285 = vunpack.c.h.b16 %v392
  %v2286 = vunpack.c.l.b16 %v393
  %v2287 = vunpack.c.h.b16 %v393
  %v2288 = vunpack.c.l.b16 %v394
  %v2289 = vunpack.c.h.b16 %v394
  %v2290 = vunpack.c.l.b16 %v395
  %v2291 = vunpack.c.h.b16 %v395
  %v2292 = vunpack.c.l.b16 %v396
  %v2293 = vunpack.c.h.b16 %v396
  %v2294 = vunpack.c.l.b16 %v397
  %v2295 = vunpack.c.h.b16 %v397
  %v2296 = vunpack.c.l.b16 %v398
  %v2297 = vunpack.c.h.b16 %v398
  %v2298 = vunpack.c.l.b16 %v399
  %v2299 = vunpack.c.h.b16 %v399
  %v2300 = vunpack.c.l.b16 %v400
  %v2301 = vunpack.c.h.b16 %v400
  %v2302 = vunpack.c.l.b16 %v401
  %v2303 = vunpack.c.h.b16 %v401
  %v2304 = vunpack.c.l.b16 %v402
  %v2305 = vunpack.c.h.b16 %v402
  %v2306 = vunpack.c.l.b16 %v403
  %v2307 = vunpack.c.h.b16 %v403
  %v2308 = vunpack.c.l.b16 %v404
  %v2309 = vunpack.c.h.b16 %v404
  %v2310 = vunpack.c.l.b16 %v405
  %v2311 = vunpack.c.h.b16 %v405
  %v2312 = vunpack.c.l.b16 %v406
  %v2313 = vunpack.c.h.b16 %v406
  %v2314 = vunpack.c.l.b16 %v407
  %v2315 = vunpack.c.h.b16 %v407
  %v2316 = vunpack.c.l.b16 %v408
  %v2317 = vunpack.c.h.b16 %v408
  %v2318 = vunpack.c.l.b16 %v409
  %v2319 = vunpack.c.h.b16 %v409
  %v2320 = vunpack.c.l.b16 %v410
  %v2321 = vunpack.c.h.b16 %v410
  %v2322 = vunpack.c.l.b16 %v411
  %v2323 = vunpack.c.h.b16 %v411
  %v2324 = vunpack.c.l.b16 %v412
  %v2325 = vunpack.c.h.b16 %v412
  %v2326 = vunpack.c.l.b16 %v413
  %v2327 = vunpack.c.h.b16 %v413
  %v2328 = vunpack.c.l.b16 %v414
  %v2329 = vunpack.c.h.b16 %v414
  %v2330 = vunpack.c.l.b16 %v415
  %v2331 = vunpack.c.h.b16 %v415
  %v2332 = vunpack.c.l.b16 %v416
  %v2333 = vunpack.c.h.b16 %v416
  %v2334 = vunpack.c.l.b16 %v417
  %v2335 = vunpack.c.h.b16 %v417
  %v2336 = vunpack.c.l.b16 %v418
  %v2337 = vunpack.c.h.b16 %v418
  %v2338 = vunpack.c.l.b16 %v419
  %v2339 = vunpack.c.h.b16 %v419
  %v2340 = vunpack.c.l.b16 %v420
  %v2341 = vunpack.c.h.b16 %v420
  %v2342 = vunpack.c.l.b16 %v421
  %v2343 = vunpack.c.h.b16 %v421
  %v2344 = vunpack.c.l.b16 %v422
  %v2345 = vunpack.c.h.b16 %v422
  %v2346 = vunpack.c.l.b16 %v423
  %v2347 = vunpack.c.h.b16 %v423
  %v2348 = vunpack.c.l.b16 %v424
  %v2349 = vunpack.c.h.b16 %v424
  %v2350 = vunpack.c.l.b16 %v425
  %v2351 = vunpack.c.h.b16 %v425
  %v2352 = vunpack.c.l.b16 %v426
  %v2353 = vunpack.c.h.b16 %v426
  %v2354 = vunpack.c.l.b16 %v427
  %v2355 = vunpack.c.h.b16 %v427
  %v2356 = vunpack.c.l.b16 %v428
  %v2357 = vunpack.c.h.b16 %v428
  %v2358 = vunpack.c.l.b16 %v429
  %v2359 = vunpack.c.h.b16 %v429
  %v2360 = vunpack.c.l.b16 %v430
  %v2361 = vunpack.c.h.b16 %v430
  %v2362 = vunpack.c.l.b16 %v431
  %v2363 = vunpack.c.h.b16 %v431
  %v2364 = vunpack.c.l.b16 %v432
  %v2365 = vunpack.c.h.b16 %v432
  %v2366 = vunpack.c.l.b16 %v433
  %v2367 = vunpack.c.h.b16 %v433
  %v2368 = vunpack.c.l.b16 %v434
  %v2369 = vunpack.c.h.b16 %v434
  %v2370 = vunpack.c.l.b16 %v435
  %v2371 = vunpack.c.h.b16 %v435
  %v2372 = vunpack.c.l.b16 %v436
  %v2373 = vunpack.c.h.b16 %v436
  %v2374 = vunpack.c.l.b16 %v437
  %v2375 = vunpack.c.h.b16 %v437
  %v2376 = vunpack.c.l.b16 %v438
  %v2377 = vunpack.c.h.b16 %v438
  %v2378 = vunpack.c.l.b16 %v439
  %v2379 = vunpack.c.h.b16 %v439
  %v2380 = vunpack.c.l.b16 %v440
  %v2381 = vunpack.c.h.b16 %v440
  %v2382 = vunpack.c.l.b16 %v441
  %v2383 = vunpack.c.h.b16 %v441
  %v2384 = vunpack.c.l.b16 %v442
  %v2385 = vunpack.c.h.b16 %v442
  %v2386 = vunpack.c.l.b16 %v443
  %v2387 = vunpack.c.h.b16 %v443
  %v2388 = vunpack.c.l.b16 %v444
  %v2389 = vunpack.c.h.b16 %v444
  %v2390 = vunpack.c.l.b16 %v445
  %v2391 = vunpack.c.h.b16 %v445
  %v2392 = vunpack.c.l.b16 %v446
  %v2393 = vunpack.c.h.b16 %v446
  %v2394 = vunpack.c.l.b16 %v447
  %v2395 = vunpack.c.h.b16 %v447
  %v2396 = vunpack.c.l.b16 %v448
  %v2397 = vunpack.c.h.b16 %v448
  %v2398 = vunpack.c.l.b16 %v449
  %v2399 = vunpack.c.h.b16 %v449
  %v2400 = vunpack.c.l.b16 %v450
  %v2401 = vunpack.c.h.b16 %v450
  %v2402 = vunpack.c.l.b16 %v451
  %v2403 = vunpack.c.h.b16 %v451
  %v2404 = vunpack.c.l.b16 %v452
  %v2405 = vunpack.c.h.b16 %v452
  %v2406 = vunpack.c.l.b16 %v453
  %v2407 = vunpack.c.h.b16 %v453
  %v2408 = vunpack.c.l.b16 %v454
  %v2409 = vunpack.c.h.b16 %v454
  %v2410 = vunpack.c.l.b16 %v455
  %v2411 = vunpack.c.h.b16 %v455
  %v2412 = vunpack.c.l.b16 %v456
  %v2413 = vunpack.c.h.b16 %v456
  %v2414 = vunpack.c.l.b16 %v457
  %v2415 = vunpack.c.h.b16 %v457
  %v2416 = vunpack.c.l.b16 %v458
  %v2417 = vunpack.c.h.b16 %v458
  %v2418 = vunpack.c.l.b16 %v459
  %v2419 = vunpack.c.h.b16 %v459
  %v2420 = vunpack.c.l.b16 %v460
  %v2421 = vunpack.c.h.b16 %v460
  %v2422 = vunpack.c.l.b16 %v461
  %v2423 = vunpack.c.h.b16 %v461
  %v2424 = vunpack.c.l.b16 %v462
  %v2425 = vunpack.c.h.b16 %v462
  %v2426 = vunpack.c.l.b16 %v463
  %v2427 = vunpack.c.h.b16 %v463
  %v2428 = vunpack.c.l.b16 %v464
  %v2429 = vunpack.c.h.b16 %v464
  %v2430 = vunpack.c.l.b16 %v465
  %v2431 = vunpack.c.h.b16 %v465
  %v2432 = vunpack.c.l.b16 %v466
  %v2433 = vunpack.c.h.b16 %v466
  %v2434 = vunpack.c.l.b16 %v467
  %v2435 = vunpack.c.h.b16 %v467
  %v2436 = vunpack.c.l.b16 %v468
  %v2437 = vunpack.c.h.b16 %v468
  %v2438 = vunpack.c.l.b16 %v469
  %v2439 = vunpack.c.h.b16 %v469
  %v2440 = vunpack.c.l.b16 %v470
  %v2441 = vunpack.c.h.b16 %v470
  %v2442 = vunpack.c.l.b16 %v471
  %v2443 = vunpack.c.h.b16 %v471
  %v2444 = vunpack.c.l.b16 %v472
  %v2445 = vunpack.c.h.b16 %v472
  %v2446 = vunpack.c.l.b16 %v473
  %v2447 = vunpack.c.h.b16 %v473
  %v2448 = vunpack.c.l.b16 %v474
  %v2449 = vunpack.c.h.b16 %v474
  %v2450 = vunpack.c.l.b16 %v475
  %v2451 = vunpack.c.h.b16 %v475
  %v2452 = vunpack.c.l.b16 %v476
  %v2453 = vunpack.c.h.b16 %v476
  %v2454 = vunpack.c.l.b16 %v477
  %v2455 = vunpack.c.h.b16 %v477
  %v2456 = vunpack.c.l.b16 %v478
  %v2457 = vunpack.c.h.b16 %v478
  %v2458 = vunpack.c.l.b16 %v479
  %v2459 = vunpack.c.h.b16 %v479
  %v2460 = vunpack.c.l.b16 %v480
  %v2461 = vunpack.c.h.b16 %v480
  %v2462 = vunpack.c.l.b16 %v481
  %v2463 = vunpack.c.h.b16 %v481
  %v2464 = vunpack.c.l.b16 %v482
  %v2465 = vunpack.c.h.b16 %v482
  %v2466 = vunpack.c.l.b16 %v483
  %v2467 = vunpack.c.h.b16 %v483
  %v2468 = vunpack.c.l.b16 %v484
  %v2469 = vunpack.c.h.b16 %v484
  %v2470 = vunpack.c.l.b16 %v485
  %v2471 = vunpack.c.h.b16 %v485
  %v2472 = vunpack.c.l.b16 %v486
  %v2473 = vunpack.c.h.b16 %v486
  %v2474 = vunpack.c.l.b16 %v487
  %v2475 = vunpack.c.h.b16 %v487
  %v2476 = vunpack.c.l.b16 %v488
  %v2477 = vunpack.c.h.b16 %v488
  %v2478 = vunpack.c.l.b16 %v489
  %v2479 = vunpack.c.h.b16 %v489
  %v2480 = vunpack.c.l.b16 %v490
  %v2481 = vunpack.c.h.b16 %v490
  %v2482 = vunpack.c.l.b16 %v491
  %v2483 = vunpack.c.h.b16 %v491
  %v2484 = vunpack.c.l.b16 %v492
  %v2485 = vunpack.c.h.b16 %v492
  %v2486 = vunpack.c.l.b16 %v493
  %v2487 = vunpack.c.h.b16 %v493
  %v2488 = vunpack.c.l.b16 %v494
  %v2489 = vunpack.c.h.b16 %v494
  %v2490 = vunpack.c.l.b16 %v495
  %v2491 = vunpack.c.h.b16 %v495
  %v2492 = vunpack.c.l.b16 %v496
  %v2493 = vunpack.c.h.b16 %v496
  %v2494 = vunpack.c.l.b16 %v497
  %v2495 = vunpack.c.h.b16 %v497
  %v2496 = vunpack.c.l.b16 %v498
  %v2497 = vunpack.c.h.b16 %v498
  %v2498 = vunpack.c.l.b16 %v499
  %v2499 = vunpack.c.h.b16 %v499
  %v2500 = vunpack.c.l.b16 %v500
  %v2501 = vunpack.c.h.b16 %v500
  %v2502 = vunpack.c.l.b16 %v501
  %v2503 = vunpack.c.h.b16 %v501
  %v2504 = vunpack.c.l.b16 %v502
  %v2505 = vunpack.c.h.b16 %v502
  %v2506 = vunpack.c.l.b16 %v503
  %v2507 = vunpack.c.h.b16 %v503
  %v2508 = vunpack.c.l.b16 %v504
  %v2509 = vunpack.c.h.b16 %v504
  %v2510 = vunpack.c.l.b16 %v505
  %v2511 = vunpack.c.h.b16 %v505
  %v2512 = vunpack.c.l.b16 %v506
  %v2513 = vunpack.c.h.b16 %v506
  %v2514 = vunpack.c.l.b16 %v507
  %v2515 = vunpack.c.h.b16 %v507
  %v2516 = vunpack.c.l.b16 %v508
  %v2517 = vunpack.c.h.b16 %v508
  %v2518 = vunpack.c.l.b16 %v509
  %v2519 = vunpack.c.h.b16 %v509
  %v2520 = vunpack.c.l.b16 %v510
  %v2521 = vunpack.c.h.b16 %v510
  %v2522 = vunpack.c.l.b16 %v511
  %v2523 = vunpack.c.h.b16 %v511
  %v2524 = vunpack.c.l.b16 %v512
  %v2525 = vunpack.c.h.b16 %v512
  %v2526 = vunpack.c.l.b16 %v513
  %v2527 = vunpack.c.h.b16 %v513
  %v2528 = vunpack.c.l.b16 %v514
  %v2529 = vunpack.c.h.b16 %v514
  %v2530 = vunpack.c.l.b16 %v515
  %v2531 = vunpack.c.h.b16 %v515
  %v2532 = vunpack.c.l.b16 %v516
  %v2533 = vunpack.c.h.b16 %v516
  %v2534 = vunpack.c.l.b16 %v517
  %v2535 = vunpack.c.h.b16 %v517
  %v2536 = vunpack.c.l.b16 %v518
  %v2537 = vunpack.c.h.b16 %v518
  %v2538 = vunpack.c.l.b16 %v519
  %v2539 = vunpack.c.h.b16 %v519
  %v2540 = vunpack.c.l.b16 %v520
  %v2541 = vunpack.c.h.b16 %v520
  %v2542 = vunpack.c.l.b16 %v521
  %v2543 = vunpack.c.h.b16 %v521
  %v2544 = vunpack.c.l.b16 %v522
  %v2545 = vunpack.c.h.b16 %v522
  %v2546 = vunpack.c.l.b16 %v523
  %v2547 = vunpack.c.h.b16 %v523
  %v2548 = vunpack.c.l.b16 %v524
  %v2549 = vunpack.c.h.b16 %v524
  %v2550 = vunpack.c.l.b16 %v525
  %v2551 = vunpack.c.h.b16 %v525
  %v2552 = vunpack.c.l.b16 %v526
  %v2553 = vunpack.c.h.b16 %v526
  %v2554 = vunpack.c.l.b16 %v527
  %v2555 = vunpack.c.h.b16 %v527
  %v2556 = vunpack.c.l.b16 %v528
  %v2557 = vunpack.c.h.b16 %v528
  %v2558 = vunpack.c.l.b16 %v529
  %v2559 = vunpack.c.h.b16 %v529
  %v2560 = vunpack.c.l.b16 %v530
  %v2561 = vunpack.c.h.b16 %v530
  %v2562 = vunpack.c.l.b16 %v531
  %v2563 = vunpack.c.h.b16 %v531
  %v2564 = vunpack.c.l.b16 %v532
  %v2565 = vunpack.c.h.b16 %v532
  %v2566 = vunpack.c.l.b16 %v533
  %v2567 = vunpack.c.h.b16 %v533
  %v2568 = vunpack.c.l.b16 %v534
  %v2569 = vunpack.c.h.b16 %v534
  %v2570 = vunpack.c.l.b16 %v535
  %v2571 = vunpack.c.h.b16 %v535
  %v2572 = vunpack.c.l.b16 %v536
  %v2573 = vunpack.c.h.b16 %v536
  %v2574 = vunpack.c.l.b16 %v537
  %v2575 = vunpack.c.h.b16 %v537
  %v2576 = vunpack.c.l.b16 %v538
  %v2577 = vunpack.c.h.b16 %v538
  %v2578 = vunpack.c.l.b16 %v539
  %v2579 = vunpack.c.h.b16 %v539
  %v2580 = vunpack.c.l.b16 %v540
  %v2581 = vunpack.c.h.b16 %v540
  %v2582 = vunpack.c.l.b16 %v541
  %v2583 = vunpack.c.h.b16 %v541
  %v2584 = vunpack.c.l.b16 %v542
  %v2585 = vunpack.c.h.b16 %v542
  %v2586 = vunpack.c.l.b16 %v543
  %v2587 = vunpack.c.h.b16 %v543
  %v2588 = vunpack.c.l.b16 %v544
  %v2589 = vunpack.c.h.b16 %v544
  %v2590 = vunpack.c.l.b16 %v545
  %v2591 = vunpack.c.h.b16 %v545
  %v2592 = vunpack.c.l.b16 %v546
  %v2593 = vunpack.c.h.b16 %v546
  %v2594 = vunpack.c.l.b16 %v547
  %v2595 = vunpack.c.h.b16 %v547
  %v2596 = vunpack.c.l.b16 %v548
  %v2597 = vunpack.c.h.b16 %v548
  %v2598 = vunpack.c.l.b16 %v549
  %v2599 = vunpack.c.h.b16 %v549
  %v2600 = vunpack.c.l.b16 %v550
  %v2601 = vunpack.c.h.b16 %v550
  %v2602 = vunpack.c.l.b16 %v551
  %v2603 = vunpack.c.h.b16 %v551
  %v2604 = vunpack.c.l.b16 %v552
  %v2605 = vunpack.c.h.b16 %v552
  %v2606 = vunpack.c.l.b16 %v553
  %v2607 = vunpack.c.h.b16 %v553
  %v2608 = vunpack.c.l.b16 %v554
  %v2609 = vunpack.c.h.b16 %v554
  %v2610 = vunpack.c.l.b16 %v555
  %v2611 = vunpack.c.h.b16 %v555
  %v2612 = vunpack.c.l.b16 %v556
  %v2613 = vunpack.c.h.b16 %v556
  %v2614 = vunpack.c.l.b16 %v557
  %v2615 = vunpack.c.h.b16 %v557
  %v2616 = vunpack.c.l.b16 %v558
  %v2617 = vunpack.c.h.b16 %v558
  %v2618 = vunpack.c.l.b16 %v559
  %v2619 = vunpack.c.h.b16 %v559
  %v2620 = vunpack.c.l.b16 %v560
  %v2621 = vunpack.c.h.b16 %v560
  %v2622 = vunpack.c.l.b16 %v561
  %v2623 = vunpack.c.h.b16 %v561
  %v2624 = vunpack.c.l.b16 %v562
  %v2625 = vunpack.c.h.b16 %v562
  %v2626 = vunpack.c.l.b16 %v563
  %v2627 = vunpack.c.h.b16 %v563
  %v2628 = vunpack.c.l.b16 %v564
  %v2629 = vunpack.c.h.b16 %v564
  %v2630 = vunpack.c.l.b16 %v565
  %v2631 = vunpack.c.h.b16 %v565
  %v2632 = vunpack.c.l.b16 %v566
  %v2633 = vunpack.c.h.b16 %v566
  %v2634 = vunpack.c.l.b16 %v567
  %v2635 = vunpack.c.h.b16 %v567
  %v2636 = vunpack.c.l.b16 %v568
  %v2637 = vunpack.c.h.b16 %v568
  %v2638 = vunpack.c.l.b16 %v569
  %v2639 = vunpack.c.h.b16 %v569
  %v2640 = vunpack.c.l.b16 %v570
  %v2641 = vunpack.c.h.b16 %v570
  %v2642 = vunpack.c.l.b16 %v571
  %v2643 = vunpack.c.h.b16 %v571
  %v2644 = vunpack.c.l.b16 %v572
  %v2645 = vunpack.c.h.b16 %v572
  %v2646 = vunpack.c.l.b16 %v573
  %v2647 = vunpack.c.h.b16 %v573
  %v2648 = vunpack.c.l.b16 %v574
  %v2649 = vunpack.c.h.b16 %v574
  %v2650 = vunpack.c.l.b16 %v575
  %v2651 = vunpack.c.h.b16 %v575
  %v2652 = vunpack.c.l.b16 %v576
  %v2653 = vunpack.c.h.b16 %v576
  %v2654 = vunpack.c.l.b16 %v577
  %v2655 = vunpack.c.h.b16 %v577
  %v2656 = vunpack.c.l.b16 %v578
  %v2657 = vunpack.c.h.b16 %v578
  %v2658 = vunpack.c.l.b16 %v579
  %v2659 = vunpack.c.h.b16 %v579
  %v2660 = vunpack.c.l.b16 %v580
  %v2661 = vunpack.c.h.b16 %v580
  %v2662 = vunpack.c.l.b16 %v581
  %v2663 = vunpack.c.h.b16 %v581
  %v2664 = vunpack.c.l.b16 %v582
  %v2665 = vunpack.c.h.b16 %v582
  %v2666 = vunpack.c.l.b16 %v583
  %v2667 = vunpack.c.h.b16 %v583
  %v2668 = vunpack.c.l.b16 %v584
  %v2669 = vunpack.c.h.b16 %v584
  %v2670 = vunpack.c.l.b16 %v585
  %v2671 = vunpack.c.h.b16 %v585
  %v2672 = vunpack.c.l.b16 %v586
  %v2673 = vunpack.c.h.b16 %v586
  %v2674 = vunpack.c.l.b16 %v587
  %v2675 = vunpack.c.h.b16 %v587
  %v2676 = vunpack.c.l.b16 %v588
  %v2677 = vunpack.c.h.b16 %v588
  %v2678 = vunpack.c.l.b16 %v589
  %v2679 = vunpack.c.h.b16 %v589
  %v2680 = vunpack.c.l.b16 %v590
  %v2681 = vunpack.c.h.b16 %v590
  %v2682 = vunpack.c.l.b16 %v591
  %v2683 = vunpack.c.h.b16 %v591
  %v2684 = vunpack.c.l.b16 %v592
  %v2685 = vunpack.c.h.b16 %v592
  %v2686 = vunpack.c.l.b16 %v593
  %v2687 = vunpack.c.h.b16 %v593
  %v2688 = vunpack.c.l.b16 %v594
  %v2689 = vunpack.c.h.b16 %v594
  %v2690 = vunpack.c.l.b16 %v595
  %v2691 = vunpack.c.h.b16 %v595
  %v2692 = vunpack.c.l.b16 %v596
  %v2693 = vunpack.c.h.b16 %v596
  %v2694 = vunpack.c.l.b16 %v597
  %v2695 = vunpack.c.h.b16 %v597
  %v2696 = vunpack.c.l.b16 %v598
  %v2697 = vunpack.c.h.b16 %v598
  %v2698 = vunpack.c.l.b16 %v599
  %v2699 = vunpack.c.h.b16 %v599
  %v2700 = vunpack.c.l.b16 %v600
  %v2701 = vunpack.c.h.b16 %v600
  %v2702 = vunpack.c.l.b16 %v601
  %v2703 = vunpack.c.h.b16 %v601
  %v2704 = vunpack.c.l.b16 %v602
  %v2705 = vunpack.c.h.b16 %v602
  %v2706 = vunpack.c.l.b16 %v603
  %v2707 = vunpack.c.h.b16 %v603
  %v2708 = vunpack.c.l.b16 %v604
  %v2709 = vunpack.c.h.b16 %v604
  %v2710 = vunpack.c.l.b16 %v605
  %v2711 = vunpack.c.h.b16 %v605
  %v2712 = vunpack.c.l.b16 %v606
  %v2713 = vunpack.c.h.b16 %v606
  %v2714 = vunpack.c.l.b16 %v607
  %v2715 = vunpack.c.h.b16 %v607
  %v2716 = vunpack.c.l.b16 %v608
  %v2717 = vunpack.c.h.b16 %v608
  %v2718 = vunpack.c.l.b16 %v609
  %v2719 = vunpack.c.h.b16 %v609
  %v2720 = vunpack.c.l.b16 %v610
  %v2721 = vunpack.c.h.b16 %v610
  %v2722 = vunpack.c.l.b16 %v611
  %v2723 = vunpack.c.h.b16 %v611
  %v2724 = vunpack.c.l.b16 %v612
  %v2725 = vunpack.c.h.b16 %v612
  %v2726 = vunpack.c.l.b16 %v613
  %v2727 = vunpack.c.h.b16 %v613
  %v2728 = vunpack.c.l.b16 %v614
  %v2729 = vunpack.c.h.b16 %v614
  %v2730 = vunpack.c.l.b16 %v615
  %v2731 = vunpack.c.h.b16 %v615
  %v2732 = vunpack.c.l.b16 %v616
  %v2733 = vunpack.c.h.b16 %v616
  %v2734 = vunpack.c.l.b16 %v617
  %v2735 = vunpack.c.h.b16 %v617
  %v2736 = vunpack.c.l.b16 %v618
  %v2737 = vunpack.c.h.b16 %v618
  %v2738 = vunpack.c.l.b16 %v619
  %v2739 = vunpack.c.h.b16 %v619
  %v2740 = vunpack.c.l.b16 %v620
  %v2741 = vunpack.c.h.b16 %v620
  %v2742 = vunpack.c.l.b16 %v621
  %v2743 = vunpack.c.h.b16 %v621
  %v2744 = vunpack.c.l.b16 %v622
  %v2745 = vunpack.c.h.b16 %v622
  %v2746 = vunpack.c.l.b16 %v623
  %v2747 = vunpack.c.h.b16 %v623
  %v2748 = vunpack.c.l.b16 %v624
  %v2749 = vunpack.c.h.b16 %v624
  %v2750 = vunpack.c.l.b16 %v625
  %v2751 = vunpack.c.h.b16 %v625
  %v2752 = vunpack.c.l.b16 %v626
  %v2753 = vunpack.c.h.b16 %v626
  %v2754 = vunpack.c.l.b16 %v627
  %v2755 = vunpack.c.h.b16 %v627
  %v2756 = vunpack.c.l.b16 %v628
  %v2757 = vunpack.c.h.b16 %v628
  %v2758 = vunpack.c.l.b16 %v629
  %v2759 = vunpack.c.h.b16 %v629
  %v2760 = vunpack.c.l.b16 %v630
  %v2761 = vunpack.c.h.b16 %v630
  %v2762 = vunpack.c.l.b16 %v631
  %v2763 = vunpack.c.h.b16 %v631
  %v2764 = vunpack.c.l.b16 %v632
  %v2765 = vunpack.c.h.b16 %v632
  %v2766 = vunpack.c.l.b16 %v633
  %v2767 = vunpack.c.h.b16 %v633
  %v2768 = vunpack.c.l.b16 %v634
  %v2769 = vunpack.c.h.b16 %v634
  %v2770 = vunpack.c.l.b16 %v635
  %v2771 = vunpack.c.h.b16 %v635
  %v2772 = vunpack.c.l.b16 %v636
  %v2773 = vunpack.c.h.b16 %v636
  %v2774 = vunpack.c.l.b16 %v637
  %v2775 = vunpack.c.h.b16 %v637
  %v2776 = vunpack.c.l.b16 %v638
  %v2777 = vunpack.c.h.b16 %v638
  %v2778 = vunpack.c.l.b16 %v639
  %v2779 = vunpack.c.h.b16 %v639
  %v2780 = vunpack.c.l.b16 %v640
  %v2781 = vunpack.c.h.b16 %v640
  %v2782 = vunpack.c.l.b16 %v641
  %v2783 = vunpack.c.h.b16 %v641
  %v2784 = vunpack.c.l.b16 %v642
  %v2785 = vunpack.c.h.b16 %v642
  %v2786 = vunpack.c.l.b16 %v643
  %v2787 = vunpack.c.h.b16 %v643
  %v2788 = vunpack.c.l.b16 %v644
  %v2789 = vunpack.c.h.b16 %v644
  %v2790 = vunpack.c.l.b16 %v645
  %v2791 = vunpack.c.h.b16 %v645
  %v2792 = vunpack.c.l.b16 %v646
  %v2793 = vunpack.c.h.b16 %v646
  %v2794 = vunpack.c.l.b16 %v647
  %v2795 = vunpack.c.h.b16 %v647
  %v2796 = vunpack.c.l.b16 %v648
  %v2797 = vunpack.c.h.b16 %v648
  %v2798 = vunpack.c.l.b16 %v649
  %v2799 = vunpack.c.h.b16 %v649
  %v2800 = vunpack.c.l.b16 %v650
  %v2801 = vunpack.c.h.b16 %v650
  %v2802 = vunpack.c.l.b16 %v651
  %v2803 = vunpack.c.h.b16 %v651
  %v2804 = vunpack.c.l.b16 %v652
  %v2805 = vunpack.c.h.b16 %v652
  %v2806 = vunpack.c.l.b16 %v653
  %v2807 = vunpack.c.h.b16 %v653
  %v2808 = vunpack.c.l.b16 %v654
  %v2809 = vunpack.c.h.b16 %v654
  %v2810 = vunpack.c.l.b16 %v655
  %v2811 = vunpack.c.h.b16 %v655
  %v2812 = vunpack.c.l.b16 %v656
  %v2813 = vunpack.c.h.b16 %v656
  %v2814 = vunpack.c.l.b16 %v657
  %v2815 = vunpack.c.h.b16 %v657
  %v2816 = vunpack.c.l.b16 %v658
  %v2817 = vunpack.c.h.b16 %v658
  %v2818 = vunpack.c.l.b16 %v659
  %v2819 = vunpack.c.h.b16 %v659
  %v2820 = vunpack.c.l.b16 %v660
  %v2821 = vunpack.c.h.b16 %v660
  %v2822 = vunpack.c.l.b16 %v661
  %v2823 = vunpack.c.h.b16 %v661
  %v2824 = vunpack.c.l.b16 %v662
  %v2825 = vunpack.c.h.b16 %v662
  %v2826 = vunpack.c.l.b16 %v663
  %v2827 = vunpack.c.h.b16 %v663
  %v2828 = vunpack.c.l.b16 %v664
  %v2829 = vunpack.c.h.b16 %v664
  %v2830 = vunpack.c.l.b16 %v665
  %v2831 = vunpack.c.h.b16 %v665
  %v2832 = vunpack.c.l.b16 %v666
  %v2833 = vunpack.c.h.b16 %v666
  %v2834 = vunpack.c.l.b16 %v667
  %v2835 = vunpack.c.h.b16 %v667
  %v2836 = vunpack.c.l.b16 %v668
  %v2837 = vunpack.c.h.b16 %v668
  %v2838 = vunpack.c.l.b16 %v669
  %v2839 = vunpack.c.h.b16 %v669
  %v2840 = vunpack.c.l.b16 %v670
  %v2841 = vunpack.c.h.b16 %v670
  %v2842 = vunpack.c.l.b16 %v671
  %v2843 = vunpack.c.h.b16 %v671
  %v2844 = vunpack.c.l.b16 %v672
  %v2845 = vunpack.c.h.b16 %v672
  %v2846 = vunpack.c.l.b16 %v673
  %v2847 = vunpack.c.h.b16 %v673
  %v2848 = vunpack.c.l.b16 %v674
  %v2849 = vunpack.c.h.b16 %v674
  %v2850 = vunpack.c.l.b16 %v675
  %v2851 = vunpack.c.h.b16 %v675
  %v2852 = vunpack.c.l.b16 %v676
  %v2853 = vunpack.c.h.b16 %v676
  %v2854 = vunpack.c.l.b16 %v677
  %v2855 = vunpack.c.h.b16 %v677
  %v2856 = vunpack.c.l.b16 %v678
  %v2857 = vunpack.c.h.b16 %v678
  %v2858 = vunpack.c.l.b16 %v679
  %v2859 = vunpack.c.h.b16 %v679
  %v2860 = vunpack.c.l.b16 %v680
  %v2861 = vunpack.c.h.b16 %v680
  %v2862 = vunpack.c.l.b16 %v681
  %v2863 = vunpack.c.h.b16 %v681
  %v2864 = vunpack.c.l.b16 %v682
  %v2865 = vunpack.c.h.b16 %v682
  %v2866 = vunpack.c.l.b16 %v683
  %v2867 = vunpack.c.h.b16 %v683
  %v2868 = vunpack.c.l.b16 %v684
  %v2869 = vunpack.c.h.b16 %v684
  %v2870 = vunpack.c.l.b16 %v685
  %v2871 = vunpack.c.h.b16 %v685
  %v2872 = vunpack.c.l.b16 %v686
  %v2873 = vunpack.c.h.b16 %v686
  %v2874 = vunpack.c.l.b16 %v687
  %v2875 = vunpack.c.h.b16 %v687
  %v2876 = vunpack.c.l.b16 %v688
  %v2877 = vunpack.c.h.b16 %v688
  %v2878 = vunpack.c.l.b16 %v689
  %v2879 = vunpack.c.h.b16 %v689
  %v2880 = vunpack.c.l.b16 %v690
  %v2881 = vunpack.c.h.b16 %v690
  %v2882 = vunpack.c.l.b16 %v691
  %v2883 = vunpack.c.h.b16 %v691
  %v2884 = vunpack.c.l.b16 %v692
  %v2885 = vunpack.c.h.b16 %v692
  %v2886 = vunpack.c.l.b16 %v693
  %v2887 = vunpack.c.h.b16 %v693
  %v2888 = vunpack.c.l.b16 %v694
  %v2889 = vunpack.c.h.b16 %v694
  %v2890 = vunpack.c.l.b16 %v695
  %v2891 = vunpack.c.h.b16 %v695
  %v2892 = vunpack.c.l.b16 %v696
  %v2893 = vunpack.c.h.b16 %v696
  %v2894 = vunpack.c.l.b16 %v697
  %v2895 = vunpack.c.h.b16 %v697
  %v2896 = vunpack.c.l.b16 %v698
  %v2897 = vunpack.c.h.b16 %v698
  %v2898 = vunpack.c.l.b16 %v699
  %v2899 = vunpack.c.h.b16 %v699
  %v2900 = vunpack.c.l.b16 %v700
  %v2901 = vunpack.c.h.b16 %v700
  %v2902 = vunpack.c.l.b16 %v701
  %v2903 = vunpack.c.h.b16 %v701
  %v2904 = vunpack.c.l.b16 %v702
  %v2905 = vunpack.c.h.b16 %v702
  %v2906 = vunpack.c.l.b16 %v703
  %v2907 = vunpack.c.h.b16 %v703
  %v2908 = vunpack.c.l.b16 %v704
  %v2909 = vunpack.c.h.b16 %v704
  %v2910 = vunpack.c.l.b16 %v705
  %v2911 = vunpack.c.h.b16 %v705
  %v2912 = vunpack.c.l.b16 %v706
  %v2913 = vunpack.c.h.b16 %v706
  %v2914 = vunpack.c.l.b16 %v707
  %v2915 = vunpack.c.h.b16 %v707
  %v2916 = vpack.c.b16 %v1704, %v1700
  %v2917 = vpack.c.b16 %v1705, %v1701
  %v2918 = vpack.c.b16 %v1706, %v1702
  %v2919 = vpack.c.b16 %v1707, %v1703
  %v2920 = vpack.c.b16 %v1712, %v1708
  %v2921 = vpack.c.b16 %v1713, %v1709
  %v2922 = vpack.c.b16 %v1714, %v1710
  %v2923 = vpack.c.b16 %v1715, %v1711
  %v2924 = vpack.c.b16 %v1720, %v1716
  %v2925 = vpack.c.b16 %v1721, %v1717
  %v2926 = vpack.c.b16 %v1722, %v1718
  %v2927 = vpack.c.b16 %v1723, %v1719
  %v2928 = vpack.c.b16 %v1728, %v1724
  %v2929 = vpack.c.b16 %v1729, %v1725
  %v2930 = vpack.c.b16 %v1730, %v1726
  %v2931 = vpack.c.b16 %v1731, %v1727
  %v2932 = vpack.c.b16 %v1736, %v1732
  %v2933 = vpack.c.b16 %v1737, %v1733
  %v2934 = vpack.c.b16 %v1738, %v1734
  %v2935 = vpack.c.b16 %v1739, %v1735
  %v2936 = vpack.c.b16 %v1744, %v1740
  %v2937 = vpack.c.b16 %v1745, %v1741
  %v2938 = vpack.c.b16 %v1746, %v1742
  %v2939 = vpack.c.b16 %v1747, %v1743
  %v2940 = vpack.c.b16 %v1752, %v1748
  %v2941 = vpack.c.b16 %v1753, %v1749
  %v2942 = vpack.c.b16 %v1754, %v1750
  %v2943 = vpack.c.b16 %v1755, %v1751
  %v2944 = vpack.c.b16 %v1760, %v1756
  %v2945 = vpack.c.b16 %v1761, %v1757
  %v2946 = vpack.c.b16 %v1762, %v1758
  %v2947 = vpack.c.b16 %v1763, %v1759
  %v2948 = vpack.c.b16 %v1768, %v1764
  %v2949 = vpack.c.b16 %v1769, %v1765
  %v2950 = vpack.c.b16 %v1770, %v1766
  %v2951 = vpack.c.b16 %v1771, %v1767
  %v2952 = vpack.c.b16 %v1776, %v1772
  %v2953 = vpack.c.b16 %v1777, %v1773
  %v2954 = vpack.c.b16 %v1778, %v1774
  %v2955 = vpack.c.b16 %v1779, %v1775
  %v2956 = vpack.c.b16 %v1784, %v1780
  %v2957 = vpack.c.b16 %v1785, %v1781
  %v2958 = vpack.c.b16 %v1786, %v1782
  %v2959 = vpack.c.b16 %v1787, %v1783
  %v2960 = vpack.c.b16 %v1792, %v1788
  %v2961 = vpack.c.b16 %v1793, %v1789
  %v2962 = vpack.c.b16 %v1794, %v1790
  %v2963 = vpack.c.b16 %v1795, %v1791
  %v2964 = vpack.c.b16 %v1800, %v1796
  %v2965 = vpack.c.b16 %v1801, %v1797
  %v2966 = vpack.c.b16 %v1802, %v1798
  %v2967 = vpack.c.b16 %v1803, %v1799
  %v2968 = vpack.c.b16 %v1808, %v1804
  %v2969 = vpack.c.b16 %v1809, %v1805
  %v2970 = vpack.c.b16 %v1810, %v1806
  %v2971 = vpack.c.b16 %v1811, %v1807
  %v2972 = vpack.c.b16 %v1816, %v1812
  %v2973 = vpack.c.b16 %v1817, %v1813
  %v2974 = vpack.c.b16 %v1818, %v1814
  %v2975 = vpack.c.b16 %v1819, %v1815
  %v2976 = vpack.c.b16 %v1824, %v1820
  %v2977 = vpack.c.b16 %v1825, %v1821
  %v2978 = vpack.c.b16 %v1826, %v1822
  %v2979 = vpack.c.b16 %v1827, %v1823
  %v2980 = vpack.c.b16 %v1832, %v1828
  %v2981 = vpack.c.b16 %v1833, %v1829
  %v2982 = vpack.c.b16 %v1834, %v1830
  %v2983 = vpack.c.b16 %v1835, %v1831
  %v2984 = vpack.c.b16 %v1840, %v1836
  %v2985 = vpack.c.b16 %v1841, %v1837
  %v2986 = vpack.c.b16 %v1842, %v1838
  %v2987 = vpack.c.b16 %v1843, %v1839
  %v2988 = vpack.c.b16 %v1848, %v1844
  %v2989 = vpack.c.b16 %v1849, %v1845
  %v2990 = vpack.c.b16 %v1850, %v1846
  %v2991 = vpack.c.b16 %v1851, %v1847
  %v2992 = vpack.c.b16 %v1856, %v1852
  %v2993 = vpack.c.b16 %v1857, %v1853
  %v2994 = vpack.c.b16 %v1858, %v1854
  %v2995 = vpack.c.b16 %v1859, %v1855
  %v2996 = vpack.c.b16 %v1864, %v1860
  %v2997 = vpack.c.b16 %v1865, %v1861
  %v2998 = vpack.c.b16 %v1866, %v1862
  %v2999 = vpack.c.b16 %v1867, %v1863
  %v3000 = vpack.c.b16 %v1872, %v1868
  %v3001 = vpack.c.b16 %v1873, %v1869
  %v3002 = vpack.c.b16 %v1874, %v1870
  %v3003 = vpack.c.b16 %v1875, %v1871
  %v3004 = vpack.c.b16 %v1880, %v1876
  %v3005 = vpack.c.b16 %v1881, %v1877
  %v3006 = vpack.c.b16 %v1882, %v1878
  %v3007 = vpack.c.b16 %v1883, %v1879
  %v3008 = vpack.c.b16 %v1888, %v1884
  %v3009 = vpack.c.b16 %v1889, %v1885
  %v3010 = vpack.c.b16 %v1890, %v1886
  %v3011 = vpack.c.b16 %v1891, %v1887
  %v3012 = vpack.c.b16 %v1896, %v1892
  %v3013 = vpack.c.b16 %v1897, %v1893
  %v3014 = vpack.c.b16 %v1898, %v1894
  %v3015 = vpack.c.b16 %v1899, %v1895
  %v3016 = vpack.c.b16 %v1904, %v1900
  %v3017 = vpack.c.b16 %v1905, %v1901
  %v3018 = vpack.c.b16 %v1906, %v1902
  %v3019 = vpack.c.b16 %v1907, %v1903
  %v3020 = vpack.c.b16 %v1912, %v1908
  %v3021 = vpack.c.b16 %v1913, %v1909
  %v3022 = vpack.c.b16 %v1914, %v1910
  %v3023 = vpack.c.b16 %v1915, %v1911
  %v3024 = vpack.c.b16 %v1920, %v1916
  %v3025 = vpack.c.b16 %v1921, %v1917
  %v3026 = vpack.c.b16 %v1922, %v1918
  %v3027 = vpack.c.b16 %v1923, %v1919
  %v3028 = vpack.c.b16 %v1928, %v1924
  %v3029 = vpack.c.b16 %v1929, %v1925
  %v3030 = vpack.c.b16 %v1930, %v1926
  %v3031 = vpack.c.b16 %v1931, %v1927
  %v3032 = vpack.c.b16 %v1936, %v1932
  %v3033 = vpack.c.b16 %v1937, %v1933
  %v3034 = vpack.c.b16 %v1938, %v1934
  %v3035 = vpack.c.b16 %v1939, %v1935
  %v3036 = vpack.c.b16 %v1944, %v1940
  %v3037 = vpack.c.b16 %v1945, %v1941
  %v3038 = vpack.c.b16 %v1946, %v1942
  %v3039 = vpack.c.b16 %v1947, %v1943
  %v3040 = vpack.c.b16 %v1952, %v1948
  %v3041 = vpack.c.b16 %v1953, %v1949
  %v3042 = vpack.c.b16 %v1954, %v1950
  %v3043 = vpack.c.b16 %v1955, %v1951
  %v3044 = vpack.c.b16 %v1960, %v1956
  %v3045 = vpack.c.b16 %v1961, %v1957
  %v3046 = vpack.c.b16 %v1962, %v1958
  %v3047 = vpack.c.b16 %v1963, %v1959
  %v3048 = vpack.c.b16 %v1968, %v1964
  %v3049 = vpack.c.b16 %v1969, %v1965
  %v3050 = vpack.c.b16 %v1970, %v1966
  %v3051 = vpack.c.b16 %v1971, %v1967
  %v3052 = vpack.c.b16 %v1976, %v1972
  %v3053 = vpack.c.b16 %v1977, %v1973
  %v3054 = vpack.c.b16 %v1978, %v1974
  %v3055 = vpack.c.b16 %v1979, %v1975
  %v3056 = vpack.c.b16 %v1984, %v1980
  %v3057 = vpack.c.b16 %v1985, %v1981
  %v3058 = vpack.c.b16 %v1986, %v1982
  %v3059 = vpack.c.b16 %v1987, %v1983
  %v3060 = vpack.c.b16 %v1992, %v1988
  %v3061 = vpack.c.b16 %v1993, %v1989
  %v3062 = vpack.c.b16 %v1994, %v1990
  %v3063 = vpack.c.b16 %v1995, %v1991
  %v3064 = vpack.c.b16 %v2000, %v1996
  %v3065 = vpack.c.b16 %v2001, %v1997
  %v3066 = vpack.c.b16 %v2002, %v1998
  %v3067 = vpack.c.b16 %v2003, %v1999
  %v3068 = vpack.c.b16 %v2008, %v2004
  %v3069 = vpack.c.b16 %v2009, %v2005
  %v3070 = vpack.c.b16 %v2010, %v2006
  %v3071 = vpack.c.b16 %v2011, %v2007
  %v3072 = vpack.c.b16 %v2016, %v2012
  %v3073 = vpack.c.b16 %v2017, %v2013
  %v3074 = vpack.c.b16 %v2018, %v2014
  %v3075 = vpack.c.b16 %v2019, %v2015
  %v3076 = vpack.c.b16 %v2024, %v2020
  %v3077 = vpack.c.b16 %v2025, %v2021
  %v3078 = vpack.c.b16 %v2026, %v2022
  %v3079 = vpack.c.b16 %v2027, %v2023
  %v3080 = vpack.c.b16 %v2032, %v2028
  %v3081 = vpack.c.b16 %v2033, %v2029
  %v3082 = vpack.c.b16 %v2034, %v2030
  %v3083 = vpack.c.b16 %v2035, %v2031
  %v3084 = vpack.c.b16 %v2040, %v2036
  %v3085 = vpack.c.b16 %v2041, %v2037
  %v3086 = vpack.c.b16 %v2042, %v2038
  %v3087 = vpack.c.b16 %v2043, %v2039
  %v3088 = vpack.c.b16 %v2048, %v2044
  %v3089 = vpack.c.b16 %v2049, %v2045
  %v3090 = vpack.c.b16 %v2050, %v2046
  %v3091 = vpack.c.b16 %v2051, %v2047
  %v3092 = vpack.c.b16 %v2056, %v2052
  %v3093 = vpack.c.b16 %v2057, %v2053
  %v3094 = vpack.c.b16 %v2058, %v2054
  %v3095 = vpack.c.b16 %v2059, %v2055
  %v3096 = vpack.c.b16 %v2064, %v2060
  %v3097 = vpack.c.b16 %v2065, %v2061
  %v3098 = vpack.c.b16 %v2066, %v2062
  %v3099 = vpack.c.b16 %v2067, %v2063
  %v3100 = vpack.c.b16 %v2072, %v2068
  %v3101 = vpack.c.b16 %v2073, %v2069
  %v3102 = vpack.c.b16 %v2074, %v2070
  %v3103 = vpack.c.b16 %v2075, %v2071
  %v3104 = vpack.c.b16 %v2080, %v2076
  %v3105 = vpack.c.b16 %v2081, %v2077
  %v3106 = vpack.c.b16 %v2082, %v2078
  %v3107 = vpack.c.b16 %v2083, %v2079
  %v3108 = vpack.c.b16 %v2088, %v2084
  %v3109 = vpack.c.b16 %v2089, %v2085
  %v3110 = vpack.c.b16 %v2090, %v2086
  %v3111 = vpack.c.b16 %v2091, %v2087
  %v3112 = vpack.c.b16 %v2096, %v2092
  %v3113 = vpack.c.b16 %v2097, %v2093
  %v3114 = vpack.c.b16 %v2098, %v2094
  %v3115 = vpack.c.b16 %v2099, %v2095
  %v3116 = vpack.c.b16 %v2104, %v2100
  %v3117 = vpack.c.b16 %v2105, %v2101
  %v3118 = vpack.c.b16 %v2106, %v2102
  %v3119 = vpack.c.b16 %v2107, %v2103
  %v3120 = vpack.c.b16 %v2112, %v2108
  %v3121 = vpack.c.b16 %v2113, %v2109
  %v3122 = vpack.c.b16 %v2114, %v2110
  %v3123 = vpack.c.b16 %v2115, %v2111
  %v3124 = vpack.c.b16 %v2120, %v2116
  %v3125 = vpack.c.b16 %v2121, %v2117
  %v3126 = vpack.c.b16 %v2122, %v2118
  %v3127 = vpack.c.b16 %v2123, %v2119
  %v3128 = vpack.c.b16 %v2128, %v2124
  %v3129 = vpack.c.b16 %v2129, %v2125
  %v3130 = vpack.c.b16 %v2130, %v2126
  %v3131 = vpack.c.b16 %v2131, %v2127
  %v3132 = vpack.c.b16 %v2136, %v2132
  %v3133 = vpack.c.b16 %v2137, %v2133
  %v3134 = vpack.c.b16 %v2138, %v2134
  %v3135 = vpack.c.b16 %v2139, %v2135
  %v3136 = vpack.c.b16 %v2144, %v2140
  %v3137 = vpack.c.b16 %v2145, %v2141
  %v3138 = vpack.c.b16 %v2146, %v2142
  %v3139 = vpack.c.b16 %v2147, %v2143
  %v3140 = vpack.c.b16 %v2152, %v2148
  %v3141 = vpack.c.b16 %v2153, %v2149
  %v3142 = vpack.c.b16 %v2154, %v2150
  %v3143 = vpack.c.b16 %v2155, %v2151
  %v3144 = vpack.c.b16 %v2160, %v2156
  %v3145 = vpack.c.b16 %v2161, %v2157
  %v3146 = vpack.c.b16 %v2162, %v2158
  %v3147 = vpack.c.b16 %v2163, %v2159
  %v3148 = vpack.c.b16 %v2168, %v2164
  %v3149 = vpack.c.b16 %v2169, %v2165
  %v3150 = vpack.c.b16 %v2170, %v2166
  %v3151 = vpack.c.b16 %v2171, %v2167
  %v3152 = vpack.c.b16 %v2176, %v2172
  %v3153 = vpack.c.b16 %v2177, %v2173
  %v3154 = vpack.c.b16 %v2178, %v2174
  %v3155 = vpack.c.b16 %v2179, %v2175
  %v3156 = vpack.c.b16 %v2184, %v2180
  %v3157 = vpack.c.b16 %v2185, %v2181
  %v3158 = vpack.c.b16 %v2186, %v2182
  %v3159 = vpack.c.b16 %v2187, %v2183
  %v3160 = vpack.c.b16 %v2192, %v2188
  %v3161 = vpack.c.b16 %v2193, %v2189
  %v3162 = vpack.c.b16 %v2194, %v2190
  %v3163 = vpack.c.b16 %v2195, %v2191
  %v3164 = vpack.c.b16 %v2200, %v2196
  %v3165 = vpack.c.b16 %v2201, %v2197
  %v3166 = vpack.c.b16 %v2202, %v2198
  %v3167 = vpack.c.b16 %v2203, %v2199
  %v3168 = vpack.c.b16 %v2208, %v2204
  %v3169 = vpack.c.b16 %v2209, %v2205
  %v3170 = vpack.c.b16 %v2210, %v2206
  %v3171 = vpack.c.b16 %v2211, %v2207
  %v3172 = vpack.c.b16 %v2216, %v2212
  %v3173 = vpack.c.b16 %v2217, %v2213
  %v3174 = vpack.c.b16 %v2218, %v2214
  %v3175 = vpack.c.b16 %v2219, %v2215
  %v3176 = vpack.c.b16 %v2224, %v2220
  %v3177 = vpack.c.b16 %v2225, %v2221
  %v3178 = vpack.c.b16 %v2226, %v2222
  %v3179 = vpack.c.b16 %v2227, %v2223
  %v3180 = vpack.c.b16 %v2232, %v2228
  %v3181 = vpack.c.b16 %v2233, %v2229
  %v3182 = vpack.c.b16 %v2234, %v2230
  %v3183 = vpack.c.b16 %v2235, %v2231
  %v3184 = vpack.c.b16 %v2240, %v2236
  %v3185 = vpack.c.b16 %v2241, %v2237
  %v3186 = vpack.c.b16 %v2242, %v2238
  %v3187 = vpack.c.b16 %v2243, %v2239
  %v3188 = vpack.c.b16 %v2248, %v2244
  %v3189 = vpack.c.b16 %v2249, %v2245
  %v3190 = vpack.c.b16 %v2250, %v2246
  %v3191 = vpack.c.b16 %v2251, %v2247
  %v3192 = vpack.c.b16 %v2256, %v2252
  %v3193 = vpack.c.b16 %v2257, %v2253
  %v3194 = vpack.c.b16 %v2258, %v2254
  %v3195 = vpack.c.b16 %v2259, %v2255
  %v3196 = vpack.c.b16 %v2264, %v2260
  %v3197 = vpack.c.b16 %v2265, %v2261
  %v3198 = vpack.c.b16 %v2266, %v2262
  %v3199 = vpack.c.b16 %v2267, %v2263
  %v3200 = vpack.c.b16 %v2272, %v2268
  %v3201 = vpack.c.b16 %v2273, %v2269
  %v3202 = vpack.c.b16 %v2274, %v2270
  %v3203 = vpack.c.b16 %v2275, %v2271
  %v3204 = vpack.c.b16 %v2280, %v2276
  %v3205 = vpack.c.b16 %v2281, %v2277
  %v3206 = vpack.c.b16 %v2282, %v2278
  %v3207 = vpack.c.b16 %v2283, %v2279
  %v3208 = vpack.c.b16 %v2288, %v2284
  %v3209 = vpack.c.b16 %v2289, %v2285
  %v3210 = vpack.c.b16 %v2290, %v2286
  %v3211 = vpack.c.b16 %v2291, %v2287
  %v3212 = vpack.c.b16 %v2296, %v2292
  %v3213 = vpack.c.b16 %v2297, %v2293
  %v3214 = vpack.c.b16 %v2298, %v2294
  %v3215 = vpack.c.b16 %v2299, %v2295
  %v3216 = vpack.c.b16 %v2304, %v2300
  %v3217 = vpack.c.b16 %v2305, %v2301
  %v3218 = vpack.c.b16 %v2306, %v2302
  %v3219 = vpack.c.b16 %v2307, %v2303
  %v3220 = vpack.c.b16 %v2312, %v2308
  %v3221 = vpack.c.b16 %v2313, %v2309
  %v3222 = vpack.c.b16 %v2314, %v2310
  %v3223 = vpack.c.b16 %v2315, %v2311
  %v3224 = vpack.c.b16 %v2320, %v2316
  %v3225 = vpack.c.b16 %v2321, %v2317
  %v3226 = vpack.c.b16 %v2322, %v2318
  %v3227 = vpack.c.b16 %v2323, %v2319
  %v3228 = vpack.c.b16 %v2328, %v2324
  %v3229 = vpack.c.b16 %v2329, %v2325
  %v3230 = vpack.c.b16 %v2330, %v2326
  %v3231 = vpack.c.b16 %v2331, %v2327
  %v3232 = vpack.c.b16 %v2336, %v2332
  %v3233 = vpack.c.b16 %v2337, %v2333
  %v3234 = vpack.c.b16 %v2338, %v2334
  %v3235 = vpack.c.b16 %v2339, %v2335
  %v3236 = vpack.c.b16 %v2344, %v2340
  %v3237 = vpack.c.b16 %v2345, %v2341
  %v3238 = vpack.c.b16 %v2346, %v2342
  %v3239 = vpack.c.b16 %v2347, %v2343
  %v3240 = vpack.c.b16 %v2352, %v2348
  %v3241 = vpack.c.b16 %v2353, %v2349
  %v3242 = vpack.c.b16 %v2354, %v2350
  %v3243 = vpack.c.b16 %v2355, %v2351
  %v3244 = vpack.c.b16 %v2360, %v2356
  %v3245 = vpack.c.b16 %v2361, %v2357
  %v3246 = vpack.c.b16 %v2362, %v2358
  %v3247 = vpack.c.b16 %v2363, %v2359
  %v3248 = vpack.c.b16 %v2368, %v2364
  %v3249 = vpack.c.b16 %v2369, %v2365
  %v3250 = vpack.c.b16 %v2370, %v2366
  %v3251 = vpack.c.b16 %v2371, %v2367
  %v3252 = vpack.c.b16 %v2376, %v2372
  %v3253 = vpack.c.b16 %v2377, %v2373
  %v3254 = vpack.c.b16 %v2378, %v2374
  %v3255 = vpack.c.b16 %v2379, %v2375
  %v3256 = vpack.c.b16 %v2384, %v2380
  %v3257 = vpack.c.b16 %v2385, %v2381
  %v3258 = vpack.c.b16 %v2386, %v2382
  %v3259 = vpack.c.b16 %v2387, %v2383
  %v3260 = vpack.c.b16 %v2392, %v2388
  %v3261 = vpack.c.b16 %v2393, %v2389
  %v3262 = vpack.c.b16 %v2394, %v2390
  %v3263 = vpack.c.b16 %v2395, %v2391
  %v3264 = vpack.c.b16 %v2400, %v2396
  %v3265 = vpack.c.b16 %v2401, %v2397
  %v3266 = vpack.c.b16 %v2402, %v2398
  %v3267 = vpack.c.b16 %v2403, %v2399
  %v3268 = vpack.c.b16 %v2408, %v2404
  %v3269 = vpack.c.b16 %v2409, %v2405
  %v3270 = vpack.c.b16 %v2410, %v2406
  %v3271 = vpack.c.b16 %v2411, %v2407
  %v3272 = vpack.c.b16 %v2416, %v2412
  %v3273 = vpack.c.b16 %v2417, %v2413
  %v3274 = vpack.c.b16 %v2418, %v2414
  %v3275 = vpack.c.b16 %v2419, %v2415
  %v3276 = vpack.c.b16 %v2424, %v2420
  %v3277 = vpack.c.b16 %v2425, %v2421
  %v3278 = vpack.c.b16 %v2426, %v2422
  %v3279 = vpack.c.b16 %v2427, %v2423
  %v3280 = vpack.c.b16 %v2432, %v2428
  %v3281 = vpack.c.b16 %v2433, %v2429
  %v3282 = vpack.c.b16 %v2434, %v2430
  %v3283 = vpack.c.b16 %v2435, %v2431
  %v3284 = vpack.c.b16 %v2440, %v2436
  %v3285 = vpack.c.b16 %v2441, %v2437
  %v3286 = vpack.c.b16 %v2442, %v2438
  %v3287 = vpack.c.b16 %v2443, %v2439
  %v3288 = vpack.c.b16 %v2448, %v2444
  %v3289 = vpack.c.b16 %v2449, %v2445
  %v3290 = vpack.c.b16 %v2450, %v2446
  %v3291 = vpack.c.b16 %v2451, %v2447
  %v3292 = vpack.c.b16 %v2456, %v2452
  %v3293 = vpack.c.b16 %v2457, %v2453
  %v3294 = vpack.c.b16 %v2458, %v2454
  %v3295 = vpack.c.b16 %v2459, %v2455
  %v3296 = vpack.c.b16 %v2464, %v2460
  %v3297 = vpack.c.b16 %v2465, %v2461
  %v3298 = vpack.c.b16 %v2466, %v2462
  %v3299 = vpack.c.b16 %v2467, %v2463
  %v3300 = vpack.c.b16 %v2472, %v2468
  %v3301 = vpack.c.b16 %v2473, %v2469
  %v3302 = vpack.c.b16 %v2474, %v2470
  %v3303 = vpack.c.b16 %v2475, %v2471
  %v3304 = vpack.c.b16 %v2480, %v2476
  %v3305 = vpack.c.b16 %v2481, %v2477
  %v3306 = vpack.c.b16 %v2482, %v2478
  %v3307 = vpack.c.b16 %v2483, %v2479
  %v3308 = vpack.c.b16 %v2488, %v2484
  %v3309 = vpack.c.b16 %v2489, %v2485
  %v3310 = vpack.c.b16 %v2490, %v2486
  %v3311 = vpack.c.b16 %v2491, %v2487
  %v3312 = vpack.c.b16 %v2496, %v2492
  %v3313 = vpack.c.b16 %v2497, %v2493
  %v3314 = vpack.c.b16 %v2498, %v2494
  %v3315 = vpack.c.b16 %v2499, %v2495
  %v3316 = vpack.c.b16 %v2504, %v2500
  %v3317 = vpack.c.b16 %v2505, %v2501
  %v3318 = vpack.c.b16 %v2506, %v2502
  %v3319 = vpack.c.b16 %v2507, %v2503
  %v3320 = vpack.c.b16 %v2512, %v2508
  %v3321 = vpack.c.b16 %v2513, %v2509
  %v3322 = vpack.c.b16 %v2514, %v2510
  %v3323 = vpack.c.b16 %v2515, %v2511
  %v3324 = vpack.c.b16 %v2520, %v2516
  %v3325 = vpack.c.b16 %v2521, %v2517
  %v3326 = vpack.c.b16 %v2522, %v2518
  %v3327 = vpack.c.b16 %v2523, %v2519
  %v3328 = vpack.c.b16 %v2528, %v2524
  %v3329 = vpack.c.b16 %v2529, %v2525
  %v3330 = vpack.c.b16 %v2530, %v2526
  %v3331 = vpack.c.b16 %v2531, %v2527
  %v3332 = vpack.c.b16 %v2536, %v2532
  %v3333 = vpack.c.b16 %v2537, %v2533
  %v3334 = vpack.c.b16 %v2538, %v2534
  %v3335 = vpack.c.b16 %v2539, %v2535
  %v3336 = vpack.c.b16 %v2544, %v2540
  %v3337 = vpack.c.b16 %v2545, %v2541
  %v3338 = vpack.c.b16 %v2546, %v2542
  %v3339 = vpack.c.b16 %v2547, %v2543
  %v3340 = vpack.c.b16 %v2552, %v2548
  %v3341 = vpack.c.b16 %v2553, %v2549
  %v3342 = vpack.c.b16 %v2554, %v2550
  %v3343 = vpack.c.b16 %v2555, %v2551
  %v3344 = vpack.c.b16 %v2560, %v2556
  %v3345 = vpack.c.b16 %v2561, %v2557
  %v3346 = vpack.c.b16 %v2562, %v2558
  %v3347 = vpack.c.b16 %v2563, %v2559
  %v3348 = vpack.c.b16 %v2568, %v2564
  %v3349 = vpack.c.b16 %v2569, %v2565
  %v3350 = vpack.c.b16 %v2570, %v2566
  %v3351 = vpack.c.b16 %v2571, %v2567
  %v3352 = vpack.c.b16 %v2576, %v2572
  %v3353 = vpack.c.b16 %v2577, %v2573
  %v3354 = vpack.c.b16 %v2578, %v2574
  %v3355 = vpack.c.b16 %v2579, %v2575
  %v3356 = vpack.c.b16 %v2584, %v2580
  %v3357 = vpack.c.b16 %v2585, %v2581
  %v3358 = vpack.c.b16 %v2586, %v2582
  %v3359 = vpack.c.b16 %v2587, %v2583
  %v3360 = vpack.c.b16 %v2592, %v2588
  %v3361 = vpack.c.b16 %v2593, %v2589
  %v3362 = vpack.c.b16 %v2594, %v2590
  %v3363 = vpack.c.b16 %v2595, %v2591
  %v3364 = vpack.c.b16 %v2600, %v2596
  %v3365 = vpack.c.b16 %v2601, %v2597
  %v3366 = vpack.c.b16 %v2602, %v2598
  %v3367 = vpack.c.b16 %v2603, %v2599
  %v3368 = vpack.c.b16 %v2608, %v2604
  %v3369 = vpack.c.b16 %v2609, %v2605
  %v3370 = vpack.c.b16 %v2610, %v2606
  %v3371 = vpack.c.b16 %v2611, %v2607
  %v3372 = vpack.c.b16 %v2616, %v2612
  %v3373 = vpack.c.b16 %v2617, %v2613
  %v3374 = vpack.c.b16 %v2618, %v2614
  %v3375 = vpack.c.b16 %v2619, %v2615
  %v3376 = vpack.c.b16 %v2624, %v2620
  %v3377 = vpack.c.b16 %v2625, %v2621
  %v3378 = vpack.c.b16 %v2626, %v2622
  %v3379 = vpack.c.b16 %v2627, %v2623
  %v3380 = vpack.c.b16 %v2632, %v2628
  %v3381 = vpack.c.b16 %v2633, %v2629
  %v3382 = vpack.c.b16 %v2634, %v2630
  %v3383 = vpack.c.b16 %v2635, %v2631
  %v3384 = vpack.c.b16 %v2640, %v2636
  %v3385 = vpack.c.b16 %v2641, %v2637
  %v3386 = vpack.c.b16 %v2642, %v2638
  %v3387 = vpack.c.b16 %v2643, %v2639
  %v3388 = vpack.c.b16 %v2648, %v2644
  %v3389 = vpack.c.b16 %v2649, %v2645
  %v3390 = vpack.c.b16 %v2650, %v2646
  %v3391 = vpack.c.b16 %v2651, %v2647
  %v3392 = vpack.c.b16 %v2656, %v2652
  %v3393 = vpack.c.b16 %v2657, %v2653
  %v3394 = vpack.c.b16 %v2658, %v2654
  %v3395 = vpack.c.b16 %v2659, %v2655
  %v3396 = vpack.c.b16 %v2664, %v2660
  %v3397 = vpack.c.b16 %v2665, %v2661
  %v3398 = vpack.c.b16 %v2666, %v2662
  %v3399 = vpack.c.b16 %v2667, %v2663
  %v3400 = vpack.c.b16 %v2672, %v2668
  %v3401 = vpack.c.b16 %v2673, %v2669
  %v3402 = vpack.c.b16 %v2674, %v2670
  %v3403 = vpack.c.b16 %v2675, %v2671
  %v3404 = vpack.c.b16 %v2680, %v2676
  %v3405 = vpack.c.b16 %v2681, %v2677
  %v3406 = vpack.c.b16 %v2682, %v2678
  %v3407 = vpack.c.b16 %v2683, %v2679
  %v3408 = vpack.c.b16 %v2688, %v2684
  %v3409 = vpack.c.b16 %v2689, %v2685
  %v3410 = vpack.c.b16 %v2690, %v2686
  %v3411 = vpack.c.b16 %v2691, %v2687
  %v3412 = vpack.c.b16 %v2696, %v2692
  %v3413 = vpack.c.b16 %v2697, %v2693
  %v3414 = vpack.c.b16 %v2698, %v2694
  %v3415 = vpack.c.b16 %v2699, %v2695
  %v3416 = vpack.c.b16 %v2704, %v2700
  %v3417 = vpack.c.b16 %v2705, %v2701
  %v3418 = vpack.c.b16 %v2706, %v2702
  %v3419 = vpack.c.b16 %v2707, %v2703
  %v3420 = vpack.c.b16 %v2712, %v2708
  %v3421 = vpack.c.b16 %v2713, %v2709
  %v3422 = vpack.c.b16 %v2714, %v2710
  %v3423 = vpack.c.b16 %v2715, %v2711
  %v3424 = vpack.c.b16 %v2720, %v2716
  %v3425 = vpack.c.b16 %v2721, %v2717
  %v3426 = vpack.c.b16 %v2722, %v2718
  %v3427 = vpack.c.b16 %v2723, %v2719
  %v3428 = vpack.c.b16 %v2728, %v2724
  %v3429 = vpack.c.b16 %v2729, %v2725
  %v3430 = vpack.c.b16 %v2730, %v2726
  %v3431 = vpack.c.b16 %v2731, %v2727
  %v3432 = vpack.c.b16 %v2736, %v2732
  %v3433 = vpack.c.b16 %v2737, %v2733
  %v3434 = vpack.c.b16 %v2738, %v2734
  %v3435 = vpack.c.b16 %v2739, %v2735
  %v3436 = vpack.c.b16 %v2744, %v2740
  %v3437 = vpack.c.b16 %v2745, %v2741
  %v3438 = vpack.c.b16 %v2746, %v2742
  %v3439 = vpack.c.b16 %v2747, %v2743
  %v3440 = vpack.c.b16 %v2752, %v2748
  %v3441 = vpack.c.b16 %v2753, %v2749
  %v3442 = vpack.c.b16 %v2754, %v2750
  %v3443 = vpack.c.b16 %v2755, %v2751
  %v3444 = vpack.c.b16 %v2760, %v2756
  %v3445 = vpack.c.b16 %v2761, %v2757
  %v3446 = vpack.c.b16 %v2762, %v2758
  %v3447 = vpack.c.b16 %v2763, %v2759
  %v3448 = vpack.c.b16 %v2768, %v2764
  %v3449 = vpack.c.b16 %v2769, %v2765
  %v3450 = vpack.c.b16 %v2770, %v2766
  %v3451 = vpack.c.b16 %v2771, %v2767
  %v3452 = vpack.c.b16 %v2776, %v2772
  %v3453 = vpack.c.b16 %v2777, %v2773
  %v3454 = vpack.c.b16 %v2778, %v2774
  %v3455 = vpack.c.b16 %v2779, %v2775
  %v3456 = vpack.c.b16 %v2784, %v2780
  %v3457 = vpack.c.b16 %v2785, %v2781
  %v3458 = vpack.c.b16 %v2786, %v2782
  %v3459 = vpack.c.b16 %v2787, %v2783
  %v3460 = vpack.c.b16 %v2792, %v2788
  %v3461 = vpack.c.b16 %v2793, %v2789
  %v3462 = vpack.c.b16 %v2794, %v2790
  %v3463 = vpack.c.b16 %v2795, %v2791
  %v3464 = vpack.c.b16 %v2800, %v2796
  %v3465 = vpack.c.b16 %v2801, %v2797
  %v3466 = vpack.c.b16 %v2802, %v2798
  %v3467 = vpack.c.b16 %v2803, %v2799
  %v3468 = vpack.c.b16 %v2808, %v2804
  %v3469 = vpack.c.b16 %v2809, %v2805
  %v3470 = vpack.c.b16 %v2810, %v2806
  %v3471 = vpack.c.b16 %v2811, %v2807
  %v3472 = vpack.c.b16 %v2816, %v2812
  %v3473 = vpack.c.b16 %v2817, %v2813
  %v3474 = vpack.c.b16 %v2818, %v2814
  %v3475 = vpack.c.b16 %v2819, %v2815
  %v3476 = vpack.c.b16 %v2824, %v2820
  %v3477 = vpack.c.b16 %v2825, %v2821
  %v3478 = vpack.c.b16 %v2826, %v2822
  %v3479 = vpack.c.b16 %v2827, %v2823
  %v3480 = vpack.c.b16 %v2832, %v2828
  %v3481 = vpack.c.b16 %v2833, %v2829
  %v3482 = vpack.c.b16 %v2834, %v2830
  %v3483 = vpack.c.b16 %v2835, %v2831
  %v3484 = vpack.c.b16 %v2840, %v2836
  %v3485 = vpack.c.b16 %v2841, %v2837
  %v3486 = vpack.c.b16 %v2842, %v2838
  %v3487 = vpack.c.b16 %v2843, %v2839
  %v3488 = vpack.c.b16 %v2848, %v2844
  %v3489 = vpack.c.b16 %v2849, %v2845
  %v3490 = vpack.c.b16 %v2850, %v2846
  %v3491 = vpack.c.b16 %v2851, %v2847
  %v3492 = vpack.c.b16 %v2856, %v2852
  %v3493 = vpack.c.b16 %v2857, %v2853
  %v3494 = vpack.c.b16 %v2858, %v2854
  %v3495 = vpack.c.b16 %v2859, %v2855
  %v3496 = vpack.c.b16 %v2864, %v2860
  %v3497 = vpack.c.b16 %v2865, %v2861
  %v3498 = vpack.c.b16 %v2866, %v2862
  %v3499 = vpack.c.b16 %v2867, %v2863
  %v3500 = vpack.c.b16 %v2872, %v2868
  %v3501 = vpack.c.b16 %v2873, %v2869
  %v3502 = vpack.c.b16 %v2874, %v2870
  %v3503 = vpack.c.b16 %v2875, %v2871
  %v3504 = vpack.c.b16 %v2880, %v2876
  %v3505 = vpack.c.b16 %v2881, %v2877
  %v3506 = vpack.c.b16 %v2882, %v2878
  %v3507 = vpack.c.b16 %v2883, %v2879
  %v3508 = vpack.c.b16 %v2888, %v2884
  %v3509 = vpack.c.b16 %v2889, %v2885
  %v3510 = vpack.c.b16 %v2890, %v2886
  %v3511 = vpack.c.b16 %v2891, %v2887
  %v3512 = vpack.c.b16 %v2896, %v2892
  %v3513 = vpack.c.b16 %v2897, %v2893
  %v3514 = vpack.c.b16 %v2898, %v2894
  %v3515 = vpack.c.b16 %v2899, %v2895
  %v3516 = vpack.c.b16 %v2904, %v2900
  %v3517 = vpack.c.b16 %v2905, %v2901
  %v3518 = vpack.c.b16 %v2906, %v2902
  %v3519 = vpack.c.b16 %v2907, %v2903
  %v3520 = vpack.c.b16 %v2912, %v2908
  %v3521 = vpack.c.b16 %v2913, %v2909
  %v3522 = vpack.c.b16 %v2914, %v2910
  %v3523 = vpack.c.b16 %v2915, %v2911
  %4132 = vmatpush.bf16.msra.mxu0 %v2944
  %4133 = vmatpush.bf16.msra.mxu0 %v2940
  %4134 = vmatpush.bf16.msra.mxu0 %v2936
  %4135 = vmatpush.bf16.msra.mxu0 %v2932
  %4136 = vmatpush.bf16.msra.mxu0 %v2928
  %4137 = vmatpush.bf16.msra.mxu0 %v2924
  %4138 = vmatpush.bf16.msra.mxu0 %v2920
  %4139 = vmatpush.bf16.msra.mxu0 %v2916
  %4140 = vmatmul.bf16.gmra.mxu0 %v940
  %v4141 = vpop.f32.mrf.mxu0
  %v4142 = vadd.f32 0.0, %v4141
  %v4143 = vpop.f32.mrf.mxu0
  %v4144 = vadd.f32 0.0, %v4143
  %4145 = vmatmul.bf16.gmra.mxu0 %v959
  %v4146 = vpop.f32.mrf.mxu0
  %v4147 = vadd.f32 0.0, %v4146
  %v4148 = vpop.f32.mrf.mxu0
  %v4149 = vadd.f32 0.0, %v4148
  %4150 = vmatmul.bf16.gmra.mxu0 %v978
  %v4151 = vpop.f32.mrf.mxu0
  %v4152 = vadd.f32 0.0, %v4151
  %v4153 = vpop.f32.mrf.mxu0
  %v4154 = vadd.f32 0.0, %v4153
  %4155 = vmatmul.bf16.gmra.mxu0 %v997
  %v4156 = vpop.f32.mrf.mxu0
  %v4157 = vadd.f32 0.0, %v4156
  %v4158 = vpop.f32.mrf.mxu0
  %v4159 = vadd.f32 0.0, %v4158
  %4160 = vdwg.mxu0
  %4161 = vmatpush.bf16.msra.mxu0 %v2976
  %4162 = vmatpush.bf16.msra.mxu0 %v2972
  %4163 = vmatpush.bf16.msra.mxu0 %v2968
  %4164 = vmatpush.bf16.msra.mxu0 %v2964
  %4165 = vmatpush.bf16.msra.mxu0 %v2960
  %4166 = vmatpush.bf16.msra.mxu0 %v2956
  %4167 = vmatpush.bf16.msra.mxu0 %v2952
  %4168 = vmatpush.bf16.msra.mxu0 %v2948
  %4169 = vmatmul.bf16.gmra.mxu0 %v941
  %v4170 = vpop.f32.mrf.mxu0
  %v4171 = vadd.f32 %v4142, %v4170
  %v4172 = vpop.f32.mrf.mxu0
  %v4173 = vadd.f32 %v4144, %v4172
  %4174 = vmatmul.bf16.gmra.mxu0 %v960
  %v4175 = vpop.f32.mrf.mxu0
  %v4176 = vadd.f32 %v4147, %v4175
  %v4177 = vpop.f32.mrf.mxu0
  %v4178 = vadd.f32 %v4149, %v4177
  %4179 = vmatmul.bf16.gmra.mxu0 %v979
  %v4180 = vpop.f32.mrf.mxu0
  %v4181 = vadd.f32 %v4152, %v4180
  %v4182 = vpop.f32.mrf.mxu0
  %v4183 = vadd.f32 %v4154, %v4182
  %4184 = vmatmul.bf16.gmra.mxu0 %v998
  %v4185 = vpop.f32.mrf.mxu0
  %v4186 = vadd.f32 %v4157, %v4185
  %v4187 = vpop.f32.mrf.mxu0
  %v4188 = vadd.f32 %v4159, %v4187
  %4189 = vdwg.mxu0
  %4190 = vmatpush.bf16.msra.mxu0 %v3008
  %4191 = vmatpush.bf16.msra.mxu0 %v3004
  %4192 = vmatpush.bf16.msra.mxu0 %v3000
  %4193 = vmatpush.bf16.msra.mxu0 %v2996
  %4194 = vmatpush.bf16.msra.mxu0 %v2992
  %4195 = vmatpush.bf16.msra.mxu0 %v2988
  %4196 = vmatpush.bf16.msra.mxu0 %v2984
  %4197 = vmatpush.bf16.msra.mxu0 %v2980
  %4198 = vmatmul.bf16.gmra.mxu0 %v942
  %v4199 = vpop.f32.mrf.mxu0
  %v4200 = vadd.f32 %v4171, %v4199
  %v4201 = vpop.f32.mrf.mxu0
  %v4202 = vadd.f32 %v4173, %v4201
  %4203 = vmatmul.bf16.gmra.mxu0 %v961
  %v4204 = vpop.f32.mrf.mxu0
  %v4205 = vadd.f32 %v4176, %v4204
  %v4206 = vpop.f32.mrf.mxu0
  %v4207 = vadd.f32 %v4178, %v4206
  %4208 = vmatmul.bf16.gmra.mxu0 %v980
  %v4209 = vpop.f32.mrf.mxu0
  %v4210 = vadd.f32 %v4181, %v4209
  %v4211 = vpop.f32.mrf.mxu0
  %v4212 = vadd.f32 %v4183, %v4211
  %4213 = vmatmul.bf16.gmra.mxu0 %v999
  %v4214 = vpop.f32.mrf.mxu0
  %v4215 = vadd.f32 %v4186, %v4214
  %v4216 = vpop.f32.mrf.mxu0
  %v4217 = vadd.f32 %v4188, %v4216
  %4218 = vdwg.mxu0
  %4219 = vmatpush.bf16.msra.mxu0 %v3040
  %4220 = vmatpush.bf16.msra.mxu0 %v3036
  %4221 = vmatpush.bf16.msra.mxu0 %v3032
  %4222 = vmatpush.bf16.msra.mxu0 %v3028
  %4223 = vmatpush.bf16.msra.mxu0 %v3024
  %4224 = vmatpush.bf16.msra.mxu0 %v3020
  %4225 = vmatpush.bf16.msra.mxu0 %v3016
  %4226 = vmatpush.bf16.msra.mxu0 %v3012
  %4227 = vmatmul.bf16.gmra.mxu0 %v943
  %v4228 = vpop.f32.mrf.mxu0
  %v4229 = vadd.f32 %v4200, %v4228
  %v4230 = vpop.f32.mrf.mxu0
  %v4231 = vadd.f32 %v4202, %v4230
  %4232 = vmatmul.bf16.gmra.mxu0 %v962
  %v4233 = vpop.f32.mrf.mxu0
  %v4234 = vadd.f32 %v4205, %v4233
  %v4235 = vpop.f32.mrf.mxu0
  %v4236 = vadd.f32 %v4207, %v4235
  %4237 = vmatmul.bf16.gmra.mxu0 %v981
  %v4238 = vpop.f32.mrf.mxu0
  %v4239 = vadd.f32 %v4210, %v4238
  %v4240 = vpop.f32.mrf.mxu0
  %v4241 = vadd.f32 %v4212, %v4240
  %4242 = vmatmul.bf16.gmra.mxu0 %v1000
  %v4243 = vpop.f32.mrf.mxu0
  %v4244 = vadd.f32 %v4215, %v4243
  %v4245 = vpop.f32.mrf.mxu0
  %v4246 = vadd.f32 %v4217, %v4245
  %4247 = vdwg.mxu0
  %4248 = vmatpush.bf16.msra.mxu0 %v3072
  %4249 = vmatpush.bf16.msra.mxu0 %v3068
  %4250 = vmatpush.bf16.msra.mxu0 %v3064
  %4251 = vmatpush.bf16.msra.mxu0 %v3060
  %4252 = vmatpush.bf16.msra.mxu0 %v3056
  %4253 = vmatpush.bf16.msra.mxu0 %v3052
  %4254 = vmatpush.bf16.msra.mxu0 %v3048
  %4255 = vmatpush.bf16.msra.mxu0 %v3044
  %4256 = vmatmul.bf16.gmra.mxu0 %v944
  %v4257 = vpop.f32.mrf.mxu0
  %v4258 = vadd.f32 %v4229, %v4257
  %v4259 = vpop.f32.mrf.mxu0
  %v4260 = vadd.f32 %v4231, %v4259
  %4261 = vmatmul.bf16.gmra.mxu0 %v963
  %v4262 = vpop.f32.mrf.mxu0
  %v4263 = vadd.f32 %v4234, %v4262
  %v4264 = vpop.f32.mrf.mxu0
  %v4265 = vadd.f32 %v4236, %v4264
  %4266 = vmatmul.bf16.gmra.mxu0 %v982
  %v4267 = vpop.f32.mrf.mxu0
  %v4268 = vadd.f32 %v4239, %v4267
  %v4269 = vpop.f32.mrf.mxu0
  %v4270 = vadd.f32 %v4241, %v4269
  %4271 = vmatmul.bf16.gmra.mxu0 %v1001
  %v4272 = vpop.f32.mrf.mxu0
  %v4273 = vadd.f32 %v4244, %v4272
  %v4274 = vpop.f32.mrf.mxu0
  %v4275 = vadd.f32 %v4246, %v4274
  %4276 = vdwg.mxu0
  %4277 = vmatpush.bf16.msra.mxu0 %v3104
  %4278 = vmatpush.bf16.msra.mxu0 %v3100
  %4279 = vmatpush.bf16.msra.mxu0 %v3096
  %4280 = vmatpush.bf16.msra.mxu0 %v3092
  %4281 = vmatpush.bf16.msra.mxu0 %v3088
  %4282 = vmatpush.bf16.msra.mxu0 %v3084
  %4283 = vmatpush.bf16.msra.mxu0 %v3080
  %4284 = vmatpush.bf16.msra.mxu0 %v3076
  %4285 = vmatmul.bf16.gmra.mxu0 %v945
  %v4286 = vpop.f32.mrf.mxu0
  %v4287 = vadd.f32 %v4258, %v4286
  %v4288 = vpop.f32.mrf.mxu0
  %v4289 = vadd.f32 %v4260, %v4288
  %4290 = vmatmul.bf16.gmra.mxu0 %v964
  %v4291 = vpop.f32.mrf.mxu0
  %v4292 = vadd.f32 %v4263, %v4291
  %v4293 = vpop.f32.mrf.mxu0
  %v4294 = vadd.f32 %v4265, %v4293
  %4295 = vmatmul.bf16.gmra.mxu0 %v983
  %v4296 = vpop.f32.mrf.mxu0
  %v4297 = vadd.f32 %v4268, %v4296
  %v4298 = vpop.f32.mrf.mxu0
  %v4299 = vadd.f32 %v4270, %v4298
  %4300 = vmatmul.bf16.gmra.mxu0 %v1002
  %v4301 = vpop.f32.mrf.mxu0
  %v4302 = vadd.f32 %v4273, %v4301
  %v4303 = vpop.f32.mrf.mxu0
  %v4304 = vadd.f32 %v4275, %v4303
  %4305 = vdwg.mxu0
  %4306 = vmatpush.bf16.msra.mxu0 %v3136
  %4307 = vmatpush.bf16.msra.mxu0 %v3132
  %4308 = vmatpush.bf16.msra.mxu0 %v3128
  %4309 = vmatpush.bf16.msra.mxu0 %v3124
  %4310 = vmatpush.bf16.msra.mxu0 %v3120
  %4311 = vmatpush.bf16.msra.mxu0 %v3116
  %4312 = vmatpush.bf16.msra.mxu0 %v3112
  %4313 = vmatpush.bf16.msra.mxu0 %v3108
  %4314 = vmatmul.bf16.gmra.mxu0 %v946
  %v4315 = vpop.f32.mrf.mxu0
  %v4316 = vadd.f32 %v4287, %v4315
  %v4317 = vpop.f32.mrf.mxu0
  %v4318 = vadd.f32 %v4289, %v4317
  %4319 = vmatmul.bf16.gmra.mxu0 %v965
  %v4320 = vpop.f32.mrf.mxu0
  %v4321 = vadd.f32 %v4292, %v4320
  %v4322 = vpop.f32.mrf.mxu0
  %v4323 = vadd.f32 %v4294, %v4322
  %4324 = vmatmul.bf16.gmra.mxu0 %v984
  %v4325 = vpop.f32.mrf.mxu0
  %v4326 = vadd.f32 %v4297, %v4325
  %v4327 = vpop.f32.mrf.mxu0
  %v4328 = vadd.f32 %v4299, %v4327
  %4329 = vmatmul.bf16.gmra.mxu0 %v1003
  %v4330 = vpop.f32.mrf.mxu0
  %v4331 = vadd.f32 %v4302, %v4330
  %v4332 = vpop.f32.mrf.mxu0
  %v4333 = vadd.f32 %v4304, %v4332
  %4334 = vdwg.mxu0
  %4335 = vmatpush.bf16.msra.mxu0 %v3168
  %4336 = vmatpush.bf16.msra.mxu0 %v3164
  %4337 = vmatpush.bf16.msra.mxu0 %v3160
  %4338 = vmatpush.bf16.msra.mxu0 %v3156
  %4339 = vmatpush.bf16.msra.mxu0 %v3152
  %4340 = vmatpush.bf16.msra.mxu0 %v3148
  %4341 = vmatpush.bf16.msra.mxu0 %v3144
  %4342 = vmatpush.bf16.msra.mxu0 %v3140
  %4343 = vmatmul.bf16.gmra.mxu0 %v947
  %v4344 = vpop.f32.mrf.mxu0
  %v4345 = vadd.f32 %v4316, %v4344
  %v4346 = vpop.f32.mrf.mxu0
  %v4347 = vadd.f32 %v4318, %v4346
  %4348 = vmatmul.bf16.gmra.mxu0 %v966
  %v4349 = vpop.f32.mrf.mxu0
  %v4350 = vadd.f32 %v4321, %v4349
  %v4351 = vpop.f32.mrf.mxu0
  %v4352 = vadd.f32 %v4323, %v4351
  %4353 = vmatmul.bf16.gmra.mxu0 %v985
  %v4354 = vpop.f32.mrf.mxu0
  %v4355 = vadd.f32 %v4326, %v4354
  %v4356 = vpop.f32.mrf.mxu0
  %v4357 = vadd.f32 %v4328, %v4356
  %4358 = vmatmul.bf16.gmra.mxu0 %v1004
  %v4359 = vpop.f32.mrf.mxu0
  %v4360 = vadd.f32 %v4331, %v4359
  %v4361 = vpop.f32.mrf.mxu0
  %v4362 = vadd.f32 %v4333, %v4361
  %4363 = vdwg.mxu0
  %4364 = vmatpush.bf16.msra.mxu0 %v3200
  %4365 = vmatpush.bf16.msra.mxu0 %v3196
  %4366 = vmatpush.bf16.msra.mxu0 %v3192
  %4367 = vmatpush.bf16.msra.mxu0 %v3188
  %4368 = vmatpush.bf16.msra.mxu0 %v3184
  %4369 = vmatpush.bf16.msra.mxu0 %v3180
  %4370 = vmatpush.bf16.msra.mxu0 %v3176
  %4371 = vmatpush.bf16.msra.mxu0 %v3172
  %4372 = vmatmul.bf16.gmra.mxu0 %v948
  %v4373 = vpop.f32.mrf.mxu0
  %v4374 = vadd.f32 %v4345, %v4373
  %v4375 = vpop.f32.mrf.mxu0
  %v4376 = vadd.f32 %v4347, %v4375
  %4377 = vmatmul.bf16.gmra.mxu0 %v967
  %v4378 = vpop.f32.mrf.mxu0
  %v4379 = vadd.f32 %v4350, %v4378
  %v4380 = vpop.f32.mrf.mxu0
  %v4381 = vadd.f32 %v4352, %v4380
  %4382 = vmatmul.bf16.gmra.mxu0 %v986
  %v4383 = vpop.f32.mrf.mxu0
  %v4384 = vadd.f32 %v4355, %v4383
  %v4385 = vpop.f32.mrf.mxu0
  %v4386 = vadd.f32 %v4357, %v4385
  %4387 = vmatmul.bf16.gmra.mxu0 %v1005
  %v4388 = vpop.f32.mrf.mxu0
  %v4389 = vadd.f32 %v4360, %v4388
  %v4390 = vpop.f32.mrf.mxu0
  %v4391 = vadd.f32 %v4362, %v4390
  %4392 = vdwg.mxu0
  %4393 = vmatpush.bf16.msra.mxu0 %v3232
  %4394 = vmatpush.bf16.msra.mxu0 %v3228
  %4395 = vmatpush.bf16.msra.mxu0 %v3224
  %4396 = vmatpush.bf16.msra.mxu0 %v3220
  %4397 = vmatpush.bf16.msra.mxu0 %v3216
  %4398 = vmatpush.bf16.msra.mxu0 %v3212
  %4399 = vmatpush.bf16.msra.mxu0 %v3208
  %4400 = vmatpush.bf16.msra.mxu0 %v3204
  %4401 = vmatmul.bf16.gmra.mxu0 %v949
  %v4402 = vpop.f32.mrf.mxu0
  %v4403 = vadd.f32 %v4374, %v4402
  %v4404 = vpop.f32.mrf.mxu0
  %v4405 = vadd.f32 %v4376, %v4404
  %4406 = vmatmul.bf16.gmra.mxu0 %v968
  %v4407 = vpop.f32.mrf.mxu0
  %v4408 = vadd.f32 %v4379, %v4407
  %v4409 = vpop.f32.mrf.mxu0
  %v4410 = vadd.f32 %v4381, %v4409
  %4411 = vmatmul.bf16.gmra.mxu0 %v987
  %v4412 = vpop.f32.mrf.mxu0
  %v4413 = vadd.f32 %v4384, %v4412
  %v4414 = vpop.f32.mrf.mxu0
  %v4415 = vadd.f32 %v4386, %v4414
  %4416 = vmatmul.bf16.gmra.mxu0 %v1006
  %v4417 = vpop.f32.mrf.mxu0
  %v4418 = vadd.f32 %v4389, %v4417
  %v4419 = vpop.f32.mrf.mxu0
  %v4420 = vadd.f32 %v4391, %v4419
  %4421 = vdwg.mxu0
  %4422 = vmatpush.bf16.msra.mxu0 %v3264
  %4423 = vmatpush.bf16.msra.mxu0 %v3260
  %4424 = vmatpush.bf16.msra.mxu0 %v3256
  %4425 = vmatpush.bf16.msra.mxu0 %v3252
  %4426 = vmatpush.bf16.msra.mxu0 %v3248
  %4427 = vmatpush.bf16.msra.mxu0 %v3244
  %4428 = vmatpush.bf16.msra.mxu0 %v3240
  %4429 = vmatpush.bf16.msra.mxu0 %v3236
  %4430 = vmatmul.bf16.gmra.mxu0 %v950
  %v4431 = vpop.f32.mrf.mxu0
  %v4432 = vadd.f32 %v4403, %v4431
  %v4433 = vpop.f32.mrf.mxu0
  %v4434 = vadd.f32 %v4405, %v4433
  %4435 = vmatmul.bf16.gmra.mxu0 %v969
  %v4436 = vpop.f32.mrf.mxu0
  %v4437 = vadd.f32 %v4408, %v4436
  %v4438 = vpop.f32.mrf.mxu0
  %v4439 = vadd.f32 %v4410, %v4438
  %4440 = vmatmul.bf16.gmra.mxu0 %v988
  %v4441 = vpop.f32.mrf.mxu0
  %v4442 = vadd.f32 %v4413, %v4441
  %v4443 = vpop.f32.mrf.mxu0
  %v4444 = vadd.f32 %v4415, %v4443
  %4445 = vmatmul.bf16.gmra.mxu0 %v1007
  %v4446 = vpop.f32.mrf.mxu0
  %v4447 = vadd.f32 %v4418, %v4446
  %v4448 = vpop.f32.mrf.mxu0
  %v4449 = vadd.f32 %v4420, %v4448
  %4450 = vdwg.mxu0
  %4451 = vmatpush.bf16.msra.mxu0 %v3296
  %4452 = vmatpush.bf16.msra.mxu0 %v3292
  %4453 = vmatpush.bf16.msra.mxu0 %v3288
  %4454 = vmatpush.bf16.msra.mxu0 %v3284
  %4455 = vmatpush.bf16.msra.mxu0 %v3280
  %4456 = vmatpush.bf16.msra.mxu0 %v3276
  %4457 = vmatpush.bf16.msra.mxu0 %v3272
  %4458 = vmatpush.bf16.msra.mxu0 %v3268
  %4459 = vmatmul.bf16.gmra.mxu0 %v951
  %v4460 = vpop.f32.mrf.mxu0
  %v4461 = vadd.f32 %v4432, %v4460
  %v4462 = vpop.f32.mrf.mxu0
  %v4463 = vadd.f32 %v4434, %v4462
  %4464 = vmatmul.bf16.gmra.mxu0 %v970
  %v4465 = vpop.f32.mrf.mxu0
  %v4466 = vadd.f32 %v4437, %v4465
  %v4467 = vpop.f32.mrf.mxu0
  %v4468 = vadd.f32 %v4439, %v4467
  %4469 = vmatmul.bf16.gmra.mxu0 %v989
  %v4470 = vpop.f32.mrf.mxu0
  %v4471 = vadd.f32 %v4442, %v4470
  %v4472 = vpop.f32.mrf.mxu0
  %v4473 = vadd.f32 %v4444, %v4472
  %4474 = vmatmul.bf16.gmra.mxu0 %v1008
  %v4475 = vpop.f32.mrf.mxu0
  %v4476 = vadd.f32 %v4447, %v4475
  %v4477 = vpop.f32.mrf.mxu0
  %v4478 = vadd.f32 %v4449, %v4477
  %4479 = vdwg.mxu0
  %4480 = vmatpush.bf16.msra.mxu0 %v3328
  %4481 = vmatpush.bf16.msra.mxu0 %v3324
  %4482 = vmatpush.bf16.msra.mxu0 %v3320
  %4483 = vmatpush.bf16.msra.mxu0 %v3316
  %4484 = vmatpush.bf16.msra.mxu0 %v3312
  %4485 = vmatpush.bf16.msra.mxu0 %v3308
  %4486 = vmatpush.bf16.msra.mxu0 %v3304
  %4487 = vmatpush.bf16.msra.mxu0 %v3300
  %4488 = vmatmul.bf16.gmra.mxu0 %v952
  %v4489 = vpop.f32.mrf.mxu0
  %v4490 = vadd.f32 %v4461, %v4489
  %v4491 = vpop.f32.mrf.mxu0
  %v4492 = vadd.f32 %v4463, %v4491
  %4493 = vmatmul.bf16.gmra.mxu0 %v971
  %v4494 = vpop.f32.mrf.mxu0
  %v4495 = vadd.f32 %v4466, %v4494
  %v4496 = vpop.f32.mrf.mxu0
  %v4497 = vadd.f32 %v4468, %v4496
  %4498 = vmatmul.bf16.gmra.mxu0 %v990
  %v4499 = vpop.f32.mrf.mxu0
  %v4500 = vadd.f32 %v4471, %v4499
  %v4501 = vpop.f32.mrf.mxu0
  %v4502 = vadd.f32 %v4473, %v4501
  %4503 = vmatmul.bf16.gmra.mxu0 %v1009
  %v4504 = vpop.f32.mrf.mxu0
  %v4505 = vadd.f32 %v4476, %v4504
  %v4506 = vpop.f32.mrf.mxu0
  %v4507 = vadd.f32 %v4478, %v4506
  %4508 = vdwg.mxu0
  %4509 = vmatpush.bf16.msra.mxu0 %v3360
  %4510 = vmatpush.bf16.msra.mxu0 %v3356
  %4511 = vmatpush.bf16.msra.mxu0 %v3352
  %4512 = vmatpush.bf16.msra.mxu0 %v3348
  %4513 = vmatpush.bf16.msra.mxu0 %v3344
  %4514 = vmatpush.bf16.msra.mxu0 %v3340
  %4515 = vmatpush.bf16.msra.mxu0 %v3336
  %4516 = vmatpush.bf16.msra.mxu0 %v3332
  %4517 = vmatmul.bf16.gmra.mxu0 %v953
  %v4518 = vpop.f32.mrf.mxu0
  %v4519 = vadd.f32 %v4490, %v4518
  %v4520 = vpop.f32.mrf.mxu0
  %v4521 = vadd.f32 %v4492, %v4520
  %4522 = vmatmul.bf16.gmra.mxu0 %v972
  %v4523 = vpop.f32.mrf.mxu0
  %v4524 = vadd.f32 %v4495, %v4523
  %v4525 = vpop.f32.mrf.mxu0
  %v4526 = vadd.f32 %v4497, %v4525
  %4527 = vmatmul.bf16.gmra.mxu0 %v991
  %v4528 = vpop.f32.mrf.mxu0
  %v4529 = vadd.f32 %v4500, %v4528
  %v4530 = vpop.f32.mrf.mxu0
  %v4531 = vadd.f32 %v4502, %v4530
  %4532 = vmatmul.bf16.gmra.mxu0 %v1010
  %v4533 = vpop.f32.mrf.mxu0
  %v4534 = vadd.f32 %v4505, %v4533
  %v4535 = vpop.f32.mrf.mxu0
  %v4536 = vadd.f32 %v4507, %v4535
  %4537 = vdwg.mxu0
  %4538 = vmatpush.bf16.msra.mxu0 %v3392
  %4539 = vmatpush.bf16.msra.mxu0 %v3388
  %4540 = vmatpush.bf16.msra.mxu0 %v3384
  %4541 = vmatpush.bf16.msra.mxu0 %v3380
  %4542 = vmatpush.bf16.msra.mxu0 %v3376
  %4543 = vmatpush.bf16.msra.mxu0 %v3372
  %4544 = vmatpush.bf16.msra.mxu0 %v3368
  %4545 = vmatpush.bf16.msra.mxu0 %v3364
  %4546 = vmatmul.bf16.gmra.mxu0 %v954
  %v4547 = vpop.f32.mrf.mxu0
  %v4548 = vadd.f32 %v4519, %v4547
  %v4549 = vpop.f32.mrf.mxu0
  %v4550 = vadd.f32 %v4521, %v4549
  %4551 = vmatmul.bf16.gmra.mxu0 %v973
  %v4552 = vpop.f32.mrf.mxu0
  %v4553 = vadd.f32 %v4524, %v4552
  %v4554 = vpop.f32.mrf.mxu0
  %v4555 = vadd.f32 %v4526, %v4554
  %4556 = vmatmul.bf16.gmra.mxu0 %v992
  %v4557 = vpop.f32.mrf.mxu0
  %v4558 = vadd.f32 %v4529, %v4557
  %v4559 = vpop.f32.mrf.mxu0
  %v4560 = vadd.f32 %v4531, %v4559
  %4561 = vmatmul.bf16.gmra.mxu0 %v1011
  %v4562 = vpop.f32.mrf.mxu0
  %v4563 = vadd.f32 %v4534, %v4562
  %v4564 = vpop.f32.mrf.mxu0
  %v4565 = vadd.f32 %v4536, %v4564
  %4566 = vdwg.mxu0
  %4567 = vmatpush.bf16.msra.mxu0 %v3424
  %4568 = vmatpush.bf16.msra.mxu0 %v3420
  %4569 = vmatpush.bf16.msra.mxu0 %v3416
  %4570 = vmatpush.bf16.msra.mxu0 %v3412
  %4571 = vmatpush.bf16.msra.mxu0 %v3408
  %4572 = vmatpush.bf16.msra.mxu0 %v3404
  %4573 = vmatpush.bf16.msra.mxu0 %v3400
  %4574 = vmatpush.bf16.msra.mxu0 %v3396
  %4575 = vmatmul.bf16.gmra.mxu0 %v955
  %v4576 = vpop.f32.mrf.mxu0
  %v4577 = vadd.f32 %v4548, %v4576
  %v4578 = vpop.f32.mrf.mxu0
  %v4579 = vadd.f32 %v4550, %v4578
  %4580 = vmatmul.bf16.gmra.mxu0 %v974
  %v4581 = vpop.f32.mrf.mxu0
  %v4582 = vadd.f32 %v4553, %v4581
  %v4583 = vpop.f32.mrf.mxu0
  %v4584 = vadd.f32 %v4555, %v4583
  %4585 = vmatmul.bf16.gmra.mxu0 %v993
  %v4586 = vpop.f32.mrf.mxu0
  %v4587 = vadd.f32 %v4558, %v4586
  %v4588 = vpop.f32.mrf.mxu0
  %v4589 = vadd.f32 %v4560, %v4588
  %4590 = vmatmul.bf16.gmra.mxu0 %v1012
  %v4591 = vpop.f32.mrf.mxu0
  %v4592 = vadd.f32 %v4563, %v4591
  %v4593 = vpop.f32.mrf.mxu0
  %v4594 = vadd.f32 %v4565, %v4593
  %4595 = vdwg.mxu0
  %4596 = vmatpush.bf16.msra.mxu0 %v3456
  %4597 = vmatpush.bf16.msra.mxu0 %v3452
  %4598 = vmatpush.bf16.msra.mxu0 %v3448
  %4599 = vmatpush.bf16.msra.mxu0 %v3444
  %4600 = vmatpush.bf16.msra.mxu0 %v3440
  %4601 = vmatpush.bf16.msra.mxu0 %v3436
  %4602 = vmatpush.bf16.msra.mxu0 %v3432
  %4603 = vmatpush.bf16.msra.mxu0 %v3428
  %4604 = vmatmul.bf16.gmra.mxu0 %v956
  %v4605 = vpop.f32.mrf.mxu0
  %v4606 = vadd.f32 %v4577, %v4605
  %v4607 = vpop.f32.mrf.mxu0
  %v4608 = vadd.f32 %v4579, %v4607
  %4609 = vmatmul.bf16.gmra.mxu0 %v975
  %v4610 = vpop.f32.mrf.mxu0
  %v4611 = vadd.f32 %v4582, %v4610
  %v4612 = vpop.f32.mrf.mxu0
  %v4613 = vadd.f32 %v4584, %v4612
  %4614 = vmatmul.bf16.gmra.mxu0 %v994
  %v4615 = vpop.f32.mrf.mxu0
  %v4616 = vadd.f32 %v4587, %v4615
  %v4617 = vpop.f32.mrf.mxu0
  %v4618 = vadd.f32 %v4589, %v4617
  %4619 = vmatmul.bf16.gmra.mxu0 %v1013
  %v4620 = vpop.f32.mrf.mxu0
  %v4621 = vadd.f32 %v4592, %v4620
  %v4622 = vpop.f32.mrf.mxu0
  %v4623 = vadd.f32 %v4594, %v4622
  %4624 = vdwg.mxu0
  %4625 = vmatpush.bf16.msra.mxu0 %v3488
  %4626 = vmatpush.bf16.msra.mxu0 %v3484
  %4627 = vmatpush.bf16.msra.mxu0 %v3480
  %4628 = vmatpush.bf16.msra.mxu0 %v3476
  %4629 = vmatpush.bf16.msra.mxu0 %v3472
  %4630 = vmatpush.bf16.msra.mxu0 %v3468
  %4631 = vmatpush.bf16.msra.mxu0 %v3464
  %4632 = vmatpush.bf16.msra.mxu0 %v3460
  %4633 = vmatmul.bf16.gmra.mxu0 %v957
  %v4634 = vpop.f32.mrf.mxu0
  %v4635 = vadd.f32 %v4606, %v4634
  %v4636 = vpop.f32.mrf.mxu0
  %v4637 = vadd.f32 %v4608, %v4636
  %4638 = vmatmul.bf16.gmra.mxu0 %v976
  %v4639 = vpop.f32.mrf.mxu0
  %v4640 = vadd.f32 %v4611, %v4639
  %v4641 = vpop.f32.mrf.mxu0
  %v4642 = vadd.f32 %v4613, %v4641
  %4643 = vmatmul.bf16.gmra.mxu0 %v995
  %v4644 = vpop.f32.mrf.mxu0
  %v4645 = vadd.f32 %v4616, %v4644
  %v4646 = vpop.f32.mrf.mxu0
  %v4647 = vadd.f32 %v4618, %v4646
  %4648 = vmatmul.bf16.gmra.mxu0 %v1014
  %v4649 = vpop.f32.mrf.mxu0
  %v4650 = vadd.f32 %v4621, %v4649
  %v4651 = vpop.f32.mrf.mxu0
  %v4652 = vadd.f32 %v4623, %v4651
  %4653 = vdwg.mxu0
  %4654 = vmatpush.bf16.msra.mxu0 %v3520
  %4655 = vmatpush.bf16.msra.mxu0 %v3516
  %4656 = vmatpush.bf16.msra.mxu0 %v3512
  %4657 = vmatpush.bf16.msra.mxu0 %v3508
  %4658 = vmatpush.bf16.msra.mxu0 %v3504
  %4659 = vmatpush.bf16.msra.mxu0 %v3500
  %4660 = vmatpush.bf16.msra.mxu0 %v3496
  %4661 = vmatpush.bf16.msra.mxu0 %v3492
  %4662 = vmatmul.bf16.gmra.mxu0 %v958
  %v4663 = vpop.f32.mrf.mxu0
  %v4664 = vadd.f32 %v4635, %v4663
  %v4665 = vpop.f32.mrf.mxu0
  %v4666 = vadd.f32 %v4637, %v4665
  %4667 = vmatmul.bf16.gmra.mxu0 %v977
  %v4668 = vpop.f32.mrf.mxu0
  %v4669 = vadd.f32 %v4640, %v4668
  %v4670 = vpop.f32.mrf.mxu0
  %v4671 = vadd.f32 %v4642, %v4670
  %4672 = vmatmul.bf16.gmra.mxu0 %v996
  %v4673 = vpop.f32.mrf.mxu0
  %v4674 = vadd.f32 %v4645, %v4673
  %v4675 = vpop.f32.mrf.mxu0
  %v4676 = vadd.f32 %v4647, %v4675
  %4677 = vmatmul.bf16.gmra.mxu0 %v1015
  %v4678 = vpop.f32.mrf.mxu0
  %v4679 = vadd.f32 %v4650, %v4678
  %v4680 = vpop.f32.mrf.mxu0
  %v4681 = vadd.f32 %v4652, %v4680
  %4682 = vdwg.mxu0
  %4683 = vmatpush.bf16.msra.mxu0 %v2945
  %4684 = vmatpush.bf16.msra.mxu0 %v2941
  %4685 = vmatpush.bf16.msra.mxu0 %v2937
  %4686 = vmatpush.bf16.msra.mxu0 %v2933
  %4687 = vmatpush.bf16.msra.mxu0 %v2929
  %4688 = vmatpush.bf16.msra.mxu0 %v2925
  %4689 = vmatpush.bf16.msra.mxu0 %v2921
  %4690 = vmatpush.bf16.msra.mxu0 %v2917
  %4691 = vmatmul.bf16.gmra.mxu0 %v940
  %v4692 = vpop.f32.mrf.mxu0
  %v4693 = vadd.f32 0.0, %v4692
  %v4694 = vpop.f32.mrf.mxu0
  %v4695 = vadd.f32 0.0, %v4694
  %4696 = vmatmul.bf16.gmra.mxu0 %v959
  %v4697 = vpop.f32.mrf.mxu0
  %v4698 = vadd.f32 0.0, %v4697
  %v4699 = vpop.f32.mrf.mxu0
  %v4700 = vadd.f32 0.0, %v4699
  %4701 = vmatmul.bf16.gmra.mxu0 %v978
  %v4702 = vpop.f32.mrf.mxu0
  %v4703 = vadd.f32 0.0, %v4702
  %v4704 = vpop.f32.mrf.mxu0
  %v4705 = vadd.f32 0.0, %v4704
  %4706 = vmatmul.bf16.gmra.mxu0 %v997
  %v4707 = vpop.f32.mrf.mxu0
  %v4708 = vadd.f32 0.0, %v4707
  %v4709 = vpop.f32.mrf.mxu0
  %v4710 = vadd.f32 0.0, %v4709
  %4711 = vdwg.mxu0
  %4712 = vmatpush.bf16.msra.mxu0 %v2977
  %4713 = vmatpush.bf16.msra.mxu0 %v2973
  %4714 = vmatpush.bf16.msra.mxu0 %v2969
  %4715 = vmatpush.bf16.msra.mxu0 %v2965
  %4716 = vmatpush.bf16.msra.mxu0 %v2961
  %4717 = vmatpush.bf16.msra.mxu0 %v2957
  %4718 = vmatpush.bf16.msra.mxu0 %v2953
  %4719 = vmatpush.bf16.msra.mxu0 %v2949
  %4720 = vmatmul.bf16.gmra.mxu0 %v941
  %v4721 = vpop.f32.mrf.mxu0
  %v4722 = vadd.f32 %v4693, %v4721
  %v4723 = vpop.f32.mrf.mxu0
  %v4724 = vadd.f32 %v4695, %v4723
  %4725 = vmatmul.bf16.gmra.mxu0 %v960
  %v4726 = vpop.f32.mrf.mxu0
  %v4727 = vadd.f32 %v4698, %v4726
  %v4728 = vpop.f32.mrf.mxu0
  %v4729 = vadd.f32 %v4700, %v4728
  %4730 = vmatmul.bf16.gmra.mxu0 %v979
  %v4731 = vpop.f32.mrf.mxu0
  %v4732 = vadd.f32 %v4703, %v4731
  %v4733 = vpop.f32.mrf.mxu0
  %v4734 = vadd.f32 %v4705, %v4733
  %4735 = vmatmul.bf16.gmra.mxu0 %v998
  %v4736 = vpop.f32.mrf.mxu0
  %v4737 = vadd.f32 %v4708, %v4736
  %v4738 = vpop.f32.mrf.mxu0
  %v4739 = vadd.f32 %v4710, %v4738
  %4740 = vdwg.mxu0
  %4741 = vmatpush.bf16.msra.mxu0 %v3009
  %4742 = vmatpush.bf16.msra.mxu0 %v3005
  %4743 = vmatpush.bf16.msra.mxu0 %v3001
  %4744 = vmatpush.bf16.msra.mxu0 %v2997
  %4745 = vmatpush.bf16.msra.mxu0 %v2993
  %4746 = vmatpush.bf16.msra.mxu0 %v2989
  %4747 = vmatpush.bf16.msra.mxu0 %v2985
  %4748 = vmatpush.bf16.msra.mxu0 %v2981
  %4749 = vmatmul.bf16.gmra.mxu0 %v942
  %v4750 = vpop.f32.mrf.mxu0
  %v4751 = vadd.f32 %v4722, %v4750
  %v4752 = vpop.f32.mrf.mxu0
  %v4753 = vadd.f32 %v4724, %v4752
  %4754 = vmatmul.bf16.gmra.mxu0 %v961
  %v4755 = vpop.f32.mrf.mxu0
  %v4756 = vadd.f32 %v4727, %v4755
  %v4757 = vpop.f32.mrf.mxu0
  %v4758 = vadd.f32 %v4729, %v4757
  %4759 = vmatmul.bf16.gmra.mxu0 %v980
  %v4760 = vpop.f32.mrf.mxu0
  %v4761 = vadd.f32 %v4732, %v4760
  %v4762 = vpop.f32.mrf.mxu0
  %v4763 = vadd.f32 %v4734, %v4762
  %4764 = vmatmul.bf16.gmra.mxu0 %v999
  %v4765 = vpop.f32.mrf.mxu0
  %v4766 = vadd.f32 %v4737, %v4765
  %v4767 = vpop.f32.mrf.mxu0
  %v4768 = vadd.f32 %v4739, %v4767
  %4769 = vdwg.mxu0
  %4770 = vmatpush.bf16.msra.mxu0 %v3041
  %4771 = vmatpush.bf16.msra.mxu0 %v3037
  %4772 = vmatpush.bf16.msra.mxu0 %v3033
  %4773 = vmatpush.bf16.msra.mxu0 %v3029
  %4774 = vmatpush.bf16.msra.mxu0 %v3025
  %4775 = vmatpush.bf16.msra.mxu0 %v3021
  %4776 = vmatpush.bf16.msra.mxu0 %v3017
  %4777 = vmatpush.bf16.msra.mxu0 %v3013
  %4778 = vmatmul.bf16.gmra.mxu0 %v943
  %v4779 = vpop.f32.mrf.mxu0
  %v4780 = vadd.f32 %v4751, %v4779
  %v4781 = vpop.f32.mrf.mxu0
  %v4782 = vadd.f32 %v4753, %v4781
  %4783 = vmatmul.bf16.gmra.mxu0 %v962
  %v4784 = vpop.f32.mrf.mxu0
  %v4785 = vadd.f32 %v4756, %v4784
  %v4786 = vpop.f32.mrf.mxu0
  %v4787 = vadd.f32 %v4758, %v4786
  %4788 = vmatmul.bf16.gmra.mxu0 %v981
  %v4789 = vpop.f32.mrf.mxu0
  %v4790 = vadd.f32 %v4761, %v4789
  %v4791 = vpop.f32.mrf.mxu0
  %v4792 = vadd.f32 %v4763, %v4791
  %4793 = vmatmul.bf16.gmra.mxu0 %v1000
  %v4794 = vpop.f32.mrf.mxu0
  %v4795 = vadd.f32 %v4766, %v4794
  %v4796 = vpop.f32.mrf.mxu0
  %v4797 = vadd.f32 %v4768, %v4796
  %4798 = vdwg.mxu0
  %4799 = vmatpush.bf16.msra.mxu0 %v3073
  %4800 = vmatpush.bf16.msra.mxu0 %v3069
  %4801 = vmatpush.bf16.msra.mxu0 %v3065
  %4802 = vmatpush.bf16.msra.mxu0 %v3061
  %4803 = vmatpush.bf16.msra.mxu0 %v3057
  %4804 = vmatpush.bf16.msra.mxu0 %v3053
  %4805 = vmatpush.bf16.msra.mxu0 %v3049
  %4806 = vmatpush.bf16.msra.mxu0 %v3045
  %4807 = vmatmul.bf16.gmra.mxu0 %v944
  %v4808 = vpop.f32.mrf.mxu0
  %v4809 = vadd.f32 %v4780, %v4808
  %v4810 = vpop.f32.mrf.mxu0
  %v4811 = vadd.f32 %v4782, %v4810
  %4812 = vmatmul.bf16.gmra.mxu0 %v963
  %v4813 = vpop.f32.mrf.mxu0
  %v4814 = vadd.f32 %v4785, %v4813
  %v4815 = vpop.f32.mrf.mxu0
  %v4816 = vadd.f32 %v4787, %v4815
  %4817 = vmatmul.bf16.gmra.mxu0 %v982
  %v4818 = vpop.f32.mrf.mxu0
  %v4819 = vadd.f32 %v4790, %v4818
  %v4820 = vpop.f32.mrf.mxu0
  %v4821 = vadd.f32 %v4792, %v4820
  %4822 = vmatmul.bf16.gmra.mxu0 %v1001
  %v4823 = vpop.f32.mrf.mxu0
  %v4824 = vadd.f32 %v4795, %v4823
  %v4825 = vpop.f32.mrf.mxu0
  %v4826 = vadd.f32 %v4797, %v4825
  %4827 = vdwg.mxu0
  %4828 = vmatpush.bf16.msra.mxu0 %v3105
  %4829 = vmatpush.bf16.msra.mxu0 %v3101
  %4830 = vmatpush.bf16.msra.mxu0 %v3097
  %4831 = vmatpush.bf16.msra.mxu0 %v3093
  %4832 = vmatpush.bf16.msra.mxu0 %v3089
  %4833 = vmatpush.bf16.msra.mxu0 %v3085
  %4834 = vmatpush.bf16.msra.mxu0 %v3081
  %4835 = vmatpush.bf16.msra.mxu0 %v3077
  %4836 = vmatmul.bf16.gmra.mxu0 %v945
  %v4837 = vpop.f32.mrf.mxu0
  %v4838 = vadd.f32 %v4809, %v4837
  %v4839 = vpop.f32.mrf.mxu0
  %v4840 = vadd.f32 %v4811, %v4839
  %4841 = vmatmul.bf16.gmra.mxu0 %v964
  %v4842 = vpop.f32.mrf.mxu0
  %v4843 = vadd.f32 %v4814, %v4842
  %v4844 = vpop.f32.mrf.mxu0
  %v4845 = vadd.f32 %v4816, %v4844
  %4846 = vmatmul.bf16.gmra.mxu0 %v983
  %v4847 = vpop.f32.mrf.mxu0
  %v4848 = vadd.f32 %v4819, %v4847
  %v4849 = vpop.f32.mrf.mxu0
  %v4850 = vadd.f32 %v4821, %v4849
  %4851 = vmatmul.bf16.gmra.mxu0 %v1002
  %v4852 = vpop.f32.mrf.mxu0
  %v4853 = vadd.f32 %v4824, %v4852
  %v4854 = vpop.f32.mrf.mxu0
  %v4855 = vadd.f32 %v4826, %v4854
  %4856 = vdwg.mxu0
  %4857 = vmatpush.bf16.msra.mxu0 %v3137
  %4858 = vmatpush.bf16.msra.mxu0 %v3133
  %4859 = vmatpush.bf16.msra.mxu0 %v3129
  %4860 = vmatpush.bf16.msra.mxu0 %v3125
  %4861 = vmatpush.bf16.msra.mxu0 %v3121
  %4862 = vmatpush.bf16.msra.mxu0 %v3117
  %4863 = vmatpush.bf16.msra.mxu0 %v3113
  %4864 = vmatpush.bf16.msra.mxu0 %v3109
  %4865 = vmatmul.bf16.gmra.mxu0 %v946
  %v4866 = vpop.f32.mrf.mxu0
  %v4867 = vadd.f32 %v4838, %v4866
  %v4868 = vpop.f32.mrf.mxu0
  %v4869 = vadd.f32 %v4840, %v4868
  %4870 = vmatmul.bf16.gmra.mxu0 %v965
  %v4871 = vpop.f32.mrf.mxu0
  %v4872 = vadd.f32 %v4843, %v4871
  %v4873 = vpop.f32.mrf.mxu0
  %v4874 = vadd.f32 %v4845, %v4873
  %4875 = vmatmul.bf16.gmra.mxu0 %v984
  %v4876 = vpop.f32.mrf.mxu0
  %v4877 = vadd.f32 %v4848, %v4876
  %v4878 = vpop.f32.mrf.mxu0
  %v4879 = vadd.f32 %v4850, %v4878
  %4880 = vmatmul.bf16.gmra.mxu0 %v1003
  %v4881 = vpop.f32.mrf.mxu0
  %v4882 = vadd.f32 %v4853, %v4881
  %v4883 = vpop.f32.mrf.mxu0
  %v4884 = vadd.f32 %v4855, %v4883
  %4885 = vdwg.mxu0
  %4886 = vmatpush.bf16.msra.mxu0 %v3169
  %4887 = vmatpush.bf16.msra.mxu0 %v3165
  %4888 = vmatpush.bf16.msra.mxu0 %v3161
  %4889 = vmatpush.bf16.msra.mxu0 %v3157
  %4890 = vmatpush.bf16.msra.mxu0 %v3153
  %4891 = vmatpush.bf16.msra.mxu0 %v3149
  %4892 = vmatpush.bf16.msra.mxu0 %v3145
  %4893 = vmatpush.bf16.msra.mxu0 %v3141
  %4894 = vmatmul.bf16.gmra.mxu0 %v947
  %v4895 = vpop.f32.mrf.mxu0
  %v4896 = vadd.f32 %v4867, %v4895
  %v4897 = vpop.f32.mrf.mxu0
  %v4898 = vadd.f32 %v4869, %v4897
  %4899 = vmatmul.bf16.gmra.mxu0 %v966
  %v4900 = vpop.f32.mrf.mxu0
  %v4901 = vadd.f32 %v4872, %v4900
  %v4902 = vpop.f32.mrf.mxu0
  %v4903 = vadd.f32 %v4874, %v4902
  %4904 = vmatmul.bf16.gmra.mxu0 %v985
  %v4905 = vpop.f32.mrf.mxu0
  %v4906 = vadd.f32 %v4877, %v4905
  %v4907 = vpop.f32.mrf.mxu0
  %v4908 = vadd.f32 %v4879, %v4907
  %4909 = vmatmul.bf16.gmra.mxu0 %v1004
  %v4910 = vpop.f32.mrf.mxu0
  %v4911 = vadd.f32 %v4882, %v4910
  %v4912 = vpop.f32.mrf.mxu0
  %v4913 = vadd.f32 %v4884, %v4912
  %4914 = vdwg.mxu0
  %4915 = vmatpush.bf16.msra.mxu0 %v3201
  %4916 = vmatpush.bf16.msra.mxu0 %v3197
  %4917 = vmatpush.bf16.msra.mxu0 %v3193
  %4918 = vmatpush.bf16.msra.mxu0 %v3189
  %4919 = vmatpush.bf16.msra.mxu0 %v3185
  %4920 = vmatpush.bf16.msra.mxu0 %v3181
  %4921 = vmatpush.bf16.msra.mxu0 %v3177
  %4922 = vmatpush.bf16.msra.mxu0 %v3173
  %4923 = vmatmul.bf16.gmra.mxu0 %v948
  %v4924 = vpop.f32.mrf.mxu0
  %v4925 = vadd.f32 %v4896, %v4924
  %v4926 = vpop.f32.mrf.mxu0
  %v4927 = vadd.f32 %v4898, %v4926
  %4928 = vmatmul.bf16.gmra.mxu0 %v967
  %v4929 = vpop.f32.mrf.mxu0
  %v4930 = vadd.f32 %v4901, %v4929
  %v4931 = vpop.f32.mrf.mxu0
  %v4932 = vadd.f32 %v4903, %v4931
  %4933 = vmatmul.bf16.gmra.mxu0 %v986
  %v4934 = vpop.f32.mrf.mxu0
  %v4935 = vadd.f32 %v4906, %v4934
  %v4936 = vpop.f32.mrf.mxu0
  %v4937 = vadd.f32 %v4908, %v4936
  %4938 = vmatmul.bf16.gmra.mxu0 %v1005
  %v4939 = vpop.f32.mrf.mxu0
  %v4940 = vadd.f32 %v4911, %v4939
  %v4941 = vpop.f32.mrf.mxu0
  %v4942 = vadd.f32 %v4913, %v4941
  %4943 = vdwg.mxu0
  %4944 = vmatpush.bf16.msra.mxu0 %v3233
  %4945 = vmatpush.bf16.msra.mxu0 %v3229
  %4946 = vmatpush.bf16.msra.mxu0 %v3225
  %4947 = vmatpush.bf16.msra.mxu0 %v3221
  %4948 = vmatpush.bf16.msra.mxu0 %v3217
  %4949 = vmatpush.bf16.msra.mxu0 %v3213
  %4950 = vmatpush.bf16.msra.mxu0 %v3209
  %4951 = vmatpush.bf16.msra.mxu0 %v3205
  %4952 = vmatmul.bf16.gmra.mxu0 %v949
  %v4953 = vpop.f32.mrf.mxu0
  %v4954 = vadd.f32 %v4925, %v4953
  %v4955 = vpop.f32.mrf.mxu0
  %v4956 = vadd.f32 %v4927, %v4955
  %4957 = vmatmul.bf16.gmra.mxu0 %v968
  %v4958 = vpop.f32.mrf.mxu0
  %v4959 = vadd.f32 %v4930, %v4958
  %v4960 = vpop.f32.mrf.mxu0
  %v4961 = vadd.f32 %v4932, %v4960
  %4962 = vmatmul.bf16.gmra.mxu0 %v987
  %v4963 = vpop.f32.mrf.mxu0
  %v4964 = vadd.f32 %v4935, %v4963
  %v4965 = vpop.f32.mrf.mxu0
  %v4966 = vadd.f32 %v4937, %v4965
  %4967 = vmatmul.bf16.gmra.mxu0 %v1006
  %v4968 = vpop.f32.mrf.mxu0
  %v4969 = vadd.f32 %v4940, %v4968
  %v4970 = vpop.f32.mrf.mxu0
  %v4971 = vadd.f32 %v4942, %v4970
  %4972 = vdwg.mxu0
  %4973 = vmatpush.bf16.msra.mxu0 %v3265
  %4974 = vmatpush.bf16.msra.mxu0 %v3261
  %4975 = vmatpush.bf16.msra.mxu0 %v3257
  %4976 = vmatpush.bf16.msra.mxu0 %v3253
  %4977 = vmatpush.bf16.msra.mxu0 %v3249
  %4978 = vmatpush.bf16.msra.mxu0 %v3245
  %4979 = vmatpush.bf16.msra.mxu0 %v3241
  %4980 = vmatpush.bf16.msra.mxu0 %v3237
  %4981 = vmatmul.bf16.gmra.mxu0 %v950
  %v4982 = vpop.f32.mrf.mxu0
  %v4983 = vadd.f32 %v4954, %v4982
  %v4984 = vpop.f32.mrf.mxu0
  %v4985 = vadd.f32 %v4956, %v4984
  %4986 = vmatmul.bf16.gmra.mxu0 %v969
  %v4987 = vpop.f32.mrf.mxu0
  %v4988 = vadd.f32 %v4959, %v4987
  %v4989 = vpop.f32.mrf.mxu0
  %v4990 = vadd.f32 %v4961, %v4989
  %4991 = vmatmul.bf16.gmra.mxu0 %v988
  %v4992 = vpop.f32.mrf.mxu0
  %v4993 = vadd.f32 %v4964, %v4992
  %v4994 = vpop.f32.mrf.mxu0
  %v4995 = vadd.f32 %v4966, %v4994
  %4996 = vmatmul.bf16.gmra.mxu0 %v1007
  %v4997 = vpop.f32.mrf.mxu0
  %v4998 = vadd.f32 %v4969, %v4997
  %v4999 = vpop.f32.mrf.mxu0
  %v5000 = vadd.f32 %v4971, %v4999
  %5001 = vdwg.mxu0
  %5002 = vmatpush.bf16.msra.mxu0 %v3297
  %5003 = vmatpush.bf16.msra.mxu0 %v3293
  %5004 = vmatpush.bf16.msra.mxu0 %v3289
  %5005 = vmatpush.bf16.msra.mxu0 %v3285
  %5006 = vmatpush.bf16.msra.mxu0 %v3281
  %5007 = vmatpush.bf16.msra.mxu0 %v3277
  %5008 = vmatpush.bf16.msra.mxu0 %v3273
  %5009 = vmatpush.bf16.msra.mxu0 %v3269
  %5010 = vmatmul.bf16.gmra.mxu0 %v951
  %v5011 = vpop.f32.mrf.mxu0
  %v5012 = vadd.f32 %v4983, %v5011
  %v5013 = vpop.f32.mrf.mxu0
  %v5014 = vadd.f32 %v4985, %v5013
  %5015 = vmatmul.bf16.gmra.mxu0 %v970
  %v5016 = vpop.f32.mrf.mxu0
  %v5017 = vadd.f32 %v4988, %v5016
  %v5018 = vpop.f32.mrf.mxu0
  %v5019 = vadd.f32 %v4990, %v5018
  %5020 = vmatmul.bf16.gmra.mxu0 %v989
  %v5021 = vpop.f32.mrf.mxu0
  %v5022 = vadd.f32 %v4993, %v5021
  %v5023 = vpop.f32.mrf.mxu0
  %v5024 = vadd.f32 %v4995, %v5023
  %5025 = vmatmul.bf16.gmra.mxu0 %v1008
  %v5026 = vpop.f32.mrf.mxu0
  %v5027 = vadd.f32 %v4998, %v5026
  %v5028 = vpop.f32.mrf.mxu0
  %v5029 = vadd.f32 %v5000, %v5028
  %5030 = vdwg.mxu0
  %5031 = vmatpush.bf16.msra.mxu0 %v3329
  %5032 = vmatpush.bf16.msra.mxu0 %v3325
  %5033 = vmatpush.bf16.msra.mxu0 %v3321
  %5034 = vmatpush.bf16.msra.mxu0 %v3317
  %5035 = vmatpush.bf16.msra.mxu0 %v3313
  %5036 = vmatpush.bf16.msra.mxu0 %v3309
  %5037 = vmatpush.bf16.msra.mxu0 %v3305
  %5038 = vmatpush.bf16.msra.mxu0 %v3301
  %5039 = vmatmul.bf16.gmra.mxu0 %v952
  %v5040 = vpop.f32.mrf.mxu0
  %v5041 = vadd.f32 %v5012, %v5040
  %v5042 = vpop.f32.mrf.mxu0
  %v5043 = vadd.f32 %v5014, %v5042
  %5044 = vmatmul.bf16.gmra.mxu0 %v971
  %v5045 = vpop.f32.mrf.mxu0
  %v5046 = vadd.f32 %v5017, %v5045
  %v5047 = vpop.f32.mrf.mxu0
  %v5048 = vadd.f32 %v5019, %v5047
  %5049 = vmatmul.bf16.gmra.mxu0 %v990
  %v5050 = vpop.f32.mrf.mxu0
  %v5051 = vadd.f32 %v5022, %v5050
  %v5052 = vpop.f32.mrf.mxu0
  %v5053 = vadd.f32 %v5024, %v5052
  %5054 = vmatmul.bf16.gmra.mxu0 %v1009
  %v5055 = vpop.f32.mrf.mxu0
  %v5056 = vadd.f32 %v5027, %v5055
  %v5057 = vpop.f32.mrf.mxu0
  %v5058 = vadd.f32 %v5029, %v5057
  %5059 = vdwg.mxu0
  %5060 = vmatpush.bf16.msra.mxu0 %v3361
  %5061 = vmatpush.bf16.msra.mxu0 %v3357
  %5062 = vmatpush.bf16.msra.mxu0 %v3353
  %5063 = vmatpush.bf16.msra.mxu0 %v3349
  %5064 = vmatpush.bf16.msra.mxu0 %v3345
  %5065 = vmatpush.bf16.msra.mxu0 %v3341
  %5066 = vmatpush.bf16.msra.mxu0 %v3337
  %5067 = vmatpush.bf16.msra.mxu0 %v3333
  %5068 = vmatmul.bf16.gmra.mxu0 %v953
  %v5069 = vpop.f32.mrf.mxu0
  %v5070 = vadd.f32 %v5041, %v5069
  %v5071 = vpop.f32.mrf.mxu0
  %v5072 = vadd.f32 %v5043, %v5071
  %5073 = vmatmul.bf16.gmra.mxu0 %v972
  %v5074 = vpop.f32.mrf.mxu0
  %v5075 = vadd.f32 %v5046, %v5074
  %v5076 = vpop.f32.mrf.mxu0
  %v5077 = vadd.f32 %v5048, %v5076
  %5078 = vmatmul.bf16.gmra.mxu0 %v991
  %v5079 = vpop.f32.mrf.mxu0
  %v5080 = vadd.f32 %v5051, %v5079
  %v5081 = vpop.f32.mrf.mxu0
  %v5082 = vadd.f32 %v5053, %v5081
  %5083 = vmatmul.bf16.gmra.mxu0 %v1010
  %v5084 = vpop.f32.mrf.mxu0
  %v5085 = vadd.f32 %v5056, %v5084
  %v5086 = vpop.f32.mrf.mxu0
  %v5087 = vadd.f32 %v5058, %v5086
  %5088 = vdwg.mxu0
  %5089 = vmatpush.bf16.msra.mxu0 %v3393
  %5090 = vmatpush.bf16.msra.mxu0 %v3389
  %5091 = vmatpush.bf16.msra.mxu0 %v3385
  %5092 = vmatpush.bf16.msra.mxu0 %v3381
  %5093 = vmatpush.bf16.msra.mxu0 %v3377
  %5094 = vmatpush.bf16.msra.mxu0 %v3373
  %5095 = vmatpush.bf16.msra.mxu0 %v3369
  %5096 = vmatpush.bf16.msra.mxu0 %v3365
  %5097 = vmatmul.bf16.gmra.mxu0 %v954
  %v5098 = vpop.f32.mrf.mxu0
  %v5099 = vadd.f32 %v5070, %v5098
  %v5100 = vpop.f32.mrf.mxu0
  %v5101 = vadd.f32 %v5072, %v5100
  %5102 = vmatmul.bf16.gmra.mxu0 %v973
  %v5103 = vpop.f32.mrf.mxu0
  %v5104 = vadd.f32 %v5075, %v5103
  %v5105 = vpop.f32.mrf.mxu0
  %v5106 = vadd.f32 %v5077, %v5105
  %5107 = vmatmul.bf16.gmra.mxu0 %v992
  %v5108 = vpop.f32.mrf.mxu0
  %v5109 = vadd.f32 %v5080, %v5108
  %v5110 = vpop.f32.mrf.mxu0
  %v5111 = vadd.f32 %v5082, %v5110
  %5112 = vmatmul.bf16.gmra.mxu0 %v1011
  %v5113 = vpop.f32.mrf.mxu0
  %v5114 = vadd.f32 %v5085, %v5113
  %v5115 = vpop.f32.mrf.mxu0
  %v5116 = vadd.f32 %v5087, %v5115
  %5117 = vdwg.mxu0
  %5118 = vmatpush.bf16.msra.mxu0 %v3425
  %5119 = vmatpush.bf16.msra.mxu0 %v3421
  %5120 = vmatpush.bf16.msra.mxu0 %v3417
  %5121 = vmatpush.bf16.msra.mxu0 %v3413
  %5122 = vmatpush.bf16.msra.mxu0 %v3409
  %5123 = vmatpush.bf16.msra.mxu0 %v3405
  %5124 = vmatpush.bf16.msra.mxu0 %v3401
  %5125 = vmatpush.bf16.msra.mxu0 %v3397
  %5126 = vmatmul.bf16.gmra.mxu0 %v955
  %v5127 = vpop.f32.mrf.mxu0
  %v5128 = vadd.f32 %v5099, %v5127
  %v5129 = vpop.f32.mrf.mxu0
  %v5130 = vadd.f32 %v5101, %v5129
  %5131 = vmatmul.bf16.gmra.mxu0 %v974
  %v5132 = vpop.f32.mrf.mxu0
  %v5133 = vadd.f32 %v5104, %v5132
  %v5134 = vpop.f32.mrf.mxu0
  %v5135 = vadd.f32 %v5106, %v5134
  %5136 = vmatmul.bf16.gmra.mxu0 %v993
  %v5137 = vpop.f32.mrf.mxu0
  %v5138 = vadd.f32 %v5109, %v5137
  %v5139 = vpop.f32.mrf.mxu0
  %v5140 = vadd.f32 %v5111, %v5139
  %5141 = vmatmul.bf16.gmra.mxu0 %v1012
  %v5142 = vpop.f32.mrf.mxu0
  %v5143 = vadd.f32 %v5114, %v5142
  %v5144 = vpop.f32.mrf.mxu0
  %v5145 = vadd.f32 %v5116, %v5144
  %5146 = vdwg.mxu0
  %5147 = vmatpush.bf16.msra.mxu0 %v3457
  %5148 = vmatpush.bf16.msra.mxu0 %v3453
  %5149 = vmatpush.bf16.msra.mxu0 %v3449
  %5150 = vmatpush.bf16.msra.mxu0 %v3445
  %5151 = vmatpush.bf16.msra.mxu0 %v3441
  %5152 = vmatpush.bf16.msra.mxu0 %v3437
  %5153 = vmatpush.bf16.msra.mxu0 %v3433
  %5154 = vmatpush.bf16.msra.mxu0 %v3429
  %5155 = vmatmul.bf16.gmra.mxu0 %v956
  %v5156 = vpop.f32.mrf.mxu0
  %v5157 = vadd.f32 %v5128, %v5156
  %v5158 = vpop.f32.mrf.mxu0
  %v5159 = vadd.f32 %v5130, %v5158
  %5160 = vmatmul.bf16.gmra.mxu0 %v975
  %v5161 = vpop.f32.mrf.mxu0
  %v5162 = vadd.f32 %v5133, %v5161
  %v5163 = vpop.f32.mrf.mxu0
  %v5164 = vadd.f32 %v5135, %v5163
  %5165 = vmatmul.bf16.gmra.mxu0 %v994
  %v5166 = vpop.f32.mrf.mxu0
  %v5167 = vadd.f32 %v5138, %v5166
  %v5168 = vpop.f32.mrf.mxu0
  %v5169 = vadd.f32 %v5140, %v5168
  %5170 = vmatmul.bf16.gmra.mxu0 %v1013
  %v5171 = vpop.f32.mrf.mxu0
  %v5172 = vadd.f32 %v5143, %v5171
  %v5173 = vpop.f32.mrf.mxu0
  %v5174 = vadd.f32 %v5145, %v5173
  %5175 = vdwg.mxu0
  %5176 = vmatpush.bf16.msra.mxu0 %v3489
  %5177 = vmatpush.bf16.msra.mxu0 %v3485
  %5178 = vmatpush.bf16.msra.mxu0 %v3481
  %5179 = vmatpush.bf16.msra.mxu0 %v3477
  %5180 = vmatpush.bf16.msra.mxu0 %v3473
  %5181 = vmatpush.bf16.msra.mxu0 %v3469
  %5182 = vmatpush.bf16.msra.mxu0 %v3465
  %5183 = vmatpush.bf16.msra.mxu0 %v3461
  %5184 = vmatmul.bf16.gmra.mxu0 %v957
  %v5185 = vpop.f32.mrf.mxu0
  %v5186 = vadd.f32 %v5157, %v5185
  %v5187 = vpop.f32.mrf.mxu0
  %v5188 = vadd.f32 %v5159, %v5187
  %5189 = vmatmul.bf16.gmra.mxu0 %v976
  %v5190 = vpop.f32.mrf.mxu0
  %v5191 = vadd.f32 %v5162, %v5190
  %v5192 = vpop.f32.mrf.mxu0
  %v5193 = vadd.f32 %v5164, %v5192
  %5194 = vmatmul.bf16.gmra.mxu0 %v995
  %v5195 = vpop.f32.mrf.mxu0
  %v5196 = vadd.f32 %v5167, %v5195
  %v5197 = vpop.f32.mrf.mxu0
  %v5198 = vadd.f32 %v5169, %v5197
  %5199 = vmatmul.bf16.gmra.mxu0 %v1014
  %v5200 = vpop.f32.mrf.mxu0
  %v5201 = vadd.f32 %v5172, %v5200
  %v5202 = vpop.f32.mrf.mxu0
  %v5203 = vadd.f32 %v5174, %v5202
  %5204 = vdwg.mxu0
  %5205 = vmatpush.bf16.msra.mxu0 %v3521
  %5206 = vmatpush.bf16.msra.mxu0 %v3517
  %5207 = vmatpush.bf16.msra.mxu0 %v3513
  %5208 = vmatpush.bf16.msra.mxu0 %v3509
  %5209 = vmatpush.bf16.msra.mxu0 %v3505
  %5210 = vmatpush.bf16.msra.mxu0 %v3501
  %5211 = vmatpush.bf16.msra.mxu0 %v3497
  %5212 = vmatpush.bf16.msra.mxu0 %v3493
  %5213 = vmatmul.bf16.gmra.mxu0 %v958
  %v5214 = vpop.f32.mrf.mxu0
  %v5215 = vadd.f32 %v5186, %v5214
  %v5216 = vpop.f32.mrf.mxu0
  %v5217 = vadd.f32 %v5188, %v5216
  %5218 = vmatmul.bf16.gmra.mxu0 %v977
  %v5219 = vpop.f32.mrf.mxu0
  %v5220 = vadd.f32 %v5191, %v5219
  %v5221 = vpop.f32.mrf.mxu0
  %v5222 = vadd.f32 %v5193, %v5221
  %5223 = vmatmul.bf16.gmra.mxu0 %v996
  %v5224 = vpop.f32.mrf.mxu0
  %v5225 = vadd.f32 %v5196, %v5224
  %v5226 = vpop.f32.mrf.mxu0
  %v5227 = vadd.f32 %v5198, %v5226
  %5228 = vmatmul.bf16.gmra.mxu0 %v1015
  %v5229 = vpop.f32.mrf.mxu0
  %v5230 = vadd.f32 %v5201, %v5229
  %v5231 = vpop.f32.mrf.mxu0
  %v5232 = vadd.f32 %v5203, %v5231
  %5233 = vdwg.mxu0
  %5234 = vmatpush.bf16.msra.mxu0 %v2946
  %5235 = vmatpush.bf16.msra.mxu0 %v2942
  %5236 = vmatpush.bf16.msra.mxu0 %v2938
  %5237 = vmatpush.bf16.msra.mxu0 %v2934
  %5238 = vmatpush.bf16.msra.mxu0 %v2930
  %5239 = vmatpush.bf16.msra.mxu0 %v2926
  %5240 = vmatpush.bf16.msra.mxu0 %v2922
  %5241 = vmatpush.bf16.msra.mxu0 %v2918
  %5242 = vmatmul.bf16.gmra.mxu0 %v940
  %v5243 = vpop.f32.mrf.mxu0
  %v5244 = vadd.f32 0.0, %v5243
  %v5245 = vpop.f32.mrf.mxu0
  %v5246 = vadd.f32 0.0, %v5245
  %5247 = vmatmul.bf16.gmra.mxu0 %v959
  %v5248 = vpop.f32.mrf.mxu0
  %v5249 = vadd.f32 0.0, %v5248
  %v5250 = vpop.f32.mrf.mxu0
  %v5251 = vadd.f32 0.0, %v5250
  %5252 = vmatmul.bf16.gmra.mxu0 %v978
  %v5253 = vpop.f32.mrf.mxu0
  %v5254 = vadd.f32 0.0, %v5253
  %v5255 = vpop.f32.mrf.mxu0
  %v5256 = vadd.f32 0.0, %v5255
  %5257 = vmatmul.bf16.gmra.mxu0 %v997
  %v5258 = vpop.f32.mrf.mxu0
  %v5259 = vadd.f32 0.0, %v5258
  %v5260 = vpop.f32.mrf.mxu0
  %v5261 = vadd.f32 0.0, %v5260
  %5262 = vdwg.mxu0
  %5263 = vmatpush.bf16.msra.mxu0 %v2978
  %5264 = vmatpush.bf16.msra.mxu0 %v2974
  %5265 = vmatpush.bf16.msra.mxu0 %v2970
  %5266 = vmatpush.bf16.msra.mxu0 %v2966
  %5267 = vmatpush.bf16.msra.mxu0 %v2962
  %5268 = vmatpush.bf16.msra.mxu0 %v2958
  %5269 = vmatpush.bf16.msra.mxu0 %v2954
  %5270 = vmatpush.bf16.msra.mxu0 %v2950
  %5271 = vmatmul.bf16.gmra.mxu0 %v941
  %v5272 = vpop.f32.mrf.mxu0
  %v5273 = vadd.f32 %v5244, %v5272
  %v5274 = vpop.f32.mrf.mxu0
  %v5275 = vadd.f32 %v5246, %v5274
  %5276 = vmatmul.bf16.gmra.mxu0 %v960
  %v5277 = vpop.f32.mrf.mxu0
  %v5278 = vadd.f32 %v5249, %v5277
  %v5279 = vpop.f32.mrf.mxu0
  %v5280 = vadd.f32 %v5251, %v5279
  %5281 = vmatmul.bf16.gmra.mxu0 %v979
  %v5282 = vpop.f32.mrf.mxu0
  %v5283 = vadd.f32 %v5254, %v5282
  %v5284 = vpop.f32.mrf.mxu0
  %v5285 = vadd.f32 %v5256, %v5284
  %5286 = vmatmul.bf16.gmra.mxu0 %v998
  %v5287 = vpop.f32.mrf.mxu0
  %v5288 = vadd.f32 %v5259, %v5287
  %v5289 = vpop.f32.mrf.mxu0
  %v5290 = vadd.f32 %v5261, %v5289
  %5291 = vdwg.mxu0
  %5292 = vmatpush.bf16.msra.mxu0 %v3010
  %5293 = vmatpush.bf16.msra.mxu0 %v3006
  %5294 = vmatpush.bf16.msra.mxu0 %v3002
  %5295 = vmatpush.bf16.msra.mxu0 %v2998
  %5296 = vmatpush.bf16.msra.mxu0 %v2994
  %5297 = vmatpush.bf16.msra.mxu0 %v2990
  %5298 = vmatpush.bf16.msra.mxu0 %v2986
  %5299 = vmatpush.bf16.msra.mxu0 %v2982
  %5300 = vmatmul.bf16.gmra.mxu0 %v942
  %v5301 = vpop.f32.mrf.mxu0
  %v5302 = vadd.f32 %v5273, %v5301
  %v5303 = vpop.f32.mrf.mxu0
  %v5304 = vadd.f32 %v5275, %v5303
  %5305 = vmatmul.bf16.gmra.mxu0 %v961
  %v5306 = vpop.f32.mrf.mxu0
  %v5307 = vadd.f32 %v5278, %v5306
  %v5308 = vpop.f32.mrf.mxu0
  %v5309 = vadd.f32 %v5280, %v5308
  %5310 = vmatmul.bf16.gmra.mxu0 %v980
  %v5311 = vpop.f32.mrf.mxu0
  %v5312 = vadd.f32 %v5283, %v5311
  %v5313 = vpop.f32.mrf.mxu0
  %v5314 = vadd.f32 %v5285, %v5313
  %5315 = vmatmul.bf16.gmra.mxu0 %v999
  %v5316 = vpop.f32.mrf.mxu0
  %v5317 = vadd.f32 %v5288, %v5316
  %v5318 = vpop.f32.mrf.mxu0
  %v5319 = vadd.f32 %v5290, %v5318
  %5320 = vdwg.mxu0
  %5321 = vmatpush.bf16.msra.mxu0 %v3042
  %5322 = vmatpush.bf16.msra.mxu0 %v3038
  %5323 = vmatpush.bf16.msra.mxu0 %v3034
  %5324 = vmatpush.bf16.msra.mxu0 %v3030
  %5325 = vmatpush.bf16.msra.mxu0 %v3026
  %5326 = vmatpush.bf16.msra.mxu0 %v3022
  %5327 = vmatpush.bf16.msra.mxu0 %v3018
  %5328 = vmatpush.bf16.msra.mxu0 %v3014
  %5329 = vmatmul.bf16.gmra.mxu0 %v943
  %v5330 = vpop.f32.mrf.mxu0
  %v5331 = vadd.f32 %v5302, %v5330
  %v5332 = vpop.f32.mrf.mxu0
  %v5333 = vadd.f32 %v5304, %v5332
  %5334 = vmatmul.bf16.gmra.mxu0 %v962
  %v5335 = vpop.f32.mrf.mxu0
  %v5336 = vadd.f32 %v5307, %v5335
  %v5337 = vpop.f32.mrf.mxu0
  %v5338 = vadd.f32 %v5309, %v5337
  %5339 = vmatmul.bf16.gmra.mxu0 %v981
  %v5340 = vpop.f32.mrf.mxu0
  %v5341 = vadd.f32 %v5312, %v5340
  %v5342 = vpop.f32.mrf.mxu0
  %v5343 = vadd.f32 %v5314, %v5342
  %5344 = vmatmul.bf16.gmra.mxu0 %v1000
  %v5345 = vpop.f32.mrf.mxu0
  %v5346 = vadd.f32 %v5317, %v5345
  %v5347 = vpop.f32.mrf.mxu0
  %v5348 = vadd.f32 %v5319, %v5347
  %5349 = vdwg.mxu0
  %5350 = vmatpush.bf16.msra.mxu0 %v3074
  %5351 = vmatpush.bf16.msra.mxu0 %v3070
  %5352 = vmatpush.bf16.msra.mxu0 %v3066
  %5353 = vmatpush.bf16.msra.mxu0 %v3062
  %5354 = vmatpush.bf16.msra.mxu0 %v3058
  %5355 = vmatpush.bf16.msra.mxu0 %v3054
  %5356 = vmatpush.bf16.msra.mxu0 %v3050
  %5357 = vmatpush.bf16.msra.mxu0 %v3046
  %5358 = vmatmul.bf16.gmra.mxu0 %v944
  %v5359 = vpop.f32.mrf.mxu0
  %v5360 = vadd.f32 %v5331, %v5359
  %v5361 = vpop.f32.mrf.mxu0
  %v5362 = vadd.f32 %v5333, %v5361
  %5363 = vmatmul.bf16.gmra.mxu0 %v963
  %v5364 = vpop.f32.mrf.mxu0
  %v5365 = vadd.f32 %v5336, %v5364
  %v5366 = vpop.f32.mrf.mxu0
  %v5367 = vadd.f32 %v5338, %v5366
  %5368 = vmatmul.bf16.gmra.mxu0 %v982
  %v5369 = vpop.f32.mrf.mxu0
  %v5370 = vadd.f32 %v5341, %v5369
  %v5371 = vpop.f32.mrf.mxu0
  %v5372 = vadd.f32 %v5343, %v5371
  %5373 = vmatmul.bf16.gmra.mxu0 %v1001
  %v5374 = vpop.f32.mrf.mxu0
  %v5375 = vadd.f32 %v5346, %v5374
  %v5376 = vpop.f32.mrf.mxu0
  %v5377 = vadd.f32 %v5348, %v5376
  %5378 = vdwg.mxu0
  %5379 = vmatpush.bf16.msra.mxu0 %v3106
  %5380 = vmatpush.bf16.msra.mxu0 %v3102
  %5381 = vmatpush.bf16.msra.mxu0 %v3098
  %5382 = vmatpush.bf16.msra.mxu0 %v3094
  %5383 = vmatpush.bf16.msra.mxu0 %v3090
  %5384 = vmatpush.bf16.msra.mxu0 %v3086
  %5385 = vmatpush.bf16.msra.mxu0 %v3082
  %5386 = vmatpush.bf16.msra.mxu0 %v3078
  %5387 = vmatmul.bf16.gmra.mxu0 %v945
  %v5388 = vpop.f32.mrf.mxu0
  %v5389 = vadd.f32 %v5360, %v5388
  %v5390 = vpop.f32.mrf.mxu0
  %v5391 = vadd.f32 %v5362, %v5390
  %5392 = vmatmul.bf16.gmra.mxu0 %v964
  %v5393 = vpop.f32.mrf.mxu0
  %v5394 = vadd.f32 %v5365, %v5393
  %v5395 = vpop.f32.mrf.mxu0
  %v5396 = vadd.f32 %v5367, %v5395
  %5397 = vmatmul.bf16.gmra.mxu0 %v983
  %v5398 = vpop.f32.mrf.mxu0
  %v5399 = vadd.f32 %v5370, %v5398
  %v5400 = vpop.f32.mrf.mxu0
  %v5401 = vadd.f32 %v5372, %v5400
  %5402 = vmatmul.bf16.gmra.mxu0 %v1002
  %v5403 = vpop.f32.mrf.mxu0
  %v5404 = vadd.f32 %v5375, %v5403
  %v5405 = vpop.f32.mrf.mxu0
  %v5406 = vadd.f32 %v5377, %v5405
  %5407 = vdwg.mxu0
  %5408 = vmatpush.bf16.msra.mxu0 %v3138
  %5409 = vmatpush.bf16.msra.mxu0 %v3134
  %5410 = vmatpush.bf16.msra.mxu0 %v3130
  %5411 = vmatpush.bf16.msra.mxu0 %v3126
  %5412 = vmatpush.bf16.msra.mxu0 %v3122
  %5413 = vmatpush.bf16.msra.mxu0 %v3118
  %5414 = vmatpush.bf16.msra.mxu0 %v3114
  %5415 = vmatpush.bf16.msra.mxu0 %v3110
  %5416 = vmatmul.bf16.gmra.mxu0 %v946
  %v5417 = vpop.f32.mrf.mxu0
  %v5418 = vadd.f32 %v5389, %v5417
  %v5419 = vpop.f32.mrf.mxu0
  %v5420 = vadd.f32 %v5391, %v5419
  %5421 = vmatmul.bf16.gmra.mxu0 %v965
  %v5422 = vpop.f32.mrf.mxu0
  %v5423 = vadd.f32 %v5394, %v5422
  %v5424 = vpop.f32.mrf.mxu0
  %v5425 = vadd.f32 %v5396, %v5424
  %5426 = vmatmul.bf16.gmra.mxu0 %v984
  %v5427 = vpop.f32.mrf.mxu0
  %v5428 = vadd.f32 %v5399, %v5427
  %v5429 = vpop.f32.mrf.mxu0
  %v5430 = vadd.f32 %v5401, %v5429
  %5431 = vmatmul.bf16.gmra.mxu0 %v1003
  %v5432 = vpop.f32.mrf.mxu0
  %v5433 = vadd.f32 %v5404, %v5432
  %v5434 = vpop.f32.mrf.mxu0
  %v5435 = vadd.f32 %v5406, %v5434
  %5436 = vdwg.mxu0
  %5437 = vmatpush.bf16.msra.mxu0 %v3170
  %5438 = vmatpush.bf16.msra.mxu0 %v3166
  %5439 = vmatpush.bf16.msra.mxu0 %v3162
  %5440 = vmatpush.bf16.msra.mxu0 %v3158
  %5441 = vmatpush.bf16.msra.mxu0 %v3154
  %5442 = vmatpush.bf16.msra.mxu0 %v3150
  %5443 = vmatpush.bf16.msra.mxu0 %v3146
  %5444 = vmatpush.bf16.msra.mxu0 %v3142
  %5445 = vmatmul.bf16.gmra.mxu0 %v947
  %v5446 = vpop.f32.mrf.mxu0
  %v5447 = vadd.f32 %v5418, %v5446
  %v5448 = vpop.f32.mrf.mxu0
  %v5449 = vadd.f32 %v5420, %v5448
  %5450 = vmatmul.bf16.gmra.mxu0 %v966
  %v5451 = vpop.f32.mrf.mxu0
  %v5452 = vadd.f32 %v5423, %v5451
  %v5453 = vpop.f32.mrf.mxu0
  %v5454 = vadd.f32 %v5425, %v5453
  %5455 = vmatmul.bf16.gmra.mxu0 %v985
  %v5456 = vpop.f32.mrf.mxu0
  %v5457 = vadd.f32 %v5428, %v5456
  %v5458 = vpop.f32.mrf.mxu0
  %v5459 = vadd.f32 %v5430, %v5458
  %5460 = vmatmul.bf16.gmra.mxu0 %v1004
  %v5461 = vpop.f32.mrf.mxu0
  %v5462 = vadd.f32 %v5433, %v5461
  %v5463 = vpop.f32.mrf.mxu0
  %v5464 = vadd.f32 %v5435, %v5463
  %5465 = vdwg.mxu0
  %5466 = vmatpush.bf16.msra.mxu0 %v3202
  %5467 = vmatpush.bf16.msra.mxu0 %v3198
  %5468 = vmatpush.bf16.msra.mxu0 %v3194
  %5469 = vmatpush.bf16.msra.mxu0 %v3190
  %5470 = vmatpush.bf16.msra.mxu0 %v3186
  %5471 = vmatpush.bf16.msra.mxu0 %v3182
  %5472 = vmatpush.bf16.msra.mxu0 %v3178
  %5473 = vmatpush.bf16.msra.mxu0 %v3174
  %5474 = vmatmul.bf16.gmra.mxu0 %v948
  %v5475 = vpop.f32.mrf.mxu0
  %v5476 = vadd.f32 %v5447, %v5475
  %v5477 = vpop.f32.mrf.mxu0
  %v5478 = vadd.f32 %v5449, %v5477
  %5479 = vmatmul.bf16.gmra.mxu0 %v967
  %v5480 = vpop.f32.mrf.mxu0
  %v5481 = vadd.f32 %v5452, %v5480
  %v5482 = vpop.f32.mrf.mxu0
  %v5483 = vadd.f32 %v5454, %v5482
  %5484 = vmatmul.bf16.gmra.mxu0 %v986
  %v5485 = vpop.f32.mrf.mxu0
  %v5486 = vadd.f32 %v5457, %v5485
  %v5487 = vpop.f32.mrf.mxu0
  %v5488 = vadd.f32 %v5459, %v5487
  %5489 = vmatmul.bf16.gmra.mxu0 %v1005
  %v5490 = vpop.f32.mrf.mxu0
  %v5491 = vadd.f32 %v5462, %v5490
  %v5492 = vpop.f32.mrf.mxu0
  %v5493 = vadd.f32 %v5464, %v5492
  %5494 = vdwg.mxu0
  %5495 = vmatpush.bf16.msra.mxu0 %v3234
  %5496 = vmatpush.bf16.msra.mxu0 %v3230
  %5497 = vmatpush.bf16.msra.mxu0 %v3226
  %5498 = vmatpush.bf16.msra.mxu0 %v3222
  %5499 = vmatpush.bf16.msra.mxu0 %v3218
  %5500 = vmatpush.bf16.msra.mxu0 %v3214
  %5501 = vmatpush.bf16.msra.mxu0 %v3210
  %5502 = vmatpush.bf16.msra.mxu0 %v3206
  %5503 = vmatmul.bf16.gmra.mxu0 %v949
  %v5504 = vpop.f32.mrf.mxu0
  %v5505 = vadd.f32 %v5476, %v5504
  %v5506 = vpop.f32.mrf.mxu0
  %v5507 = vadd.f32 %v5478, %v5506
  %5508 = vmatmul.bf16.gmra.mxu0 %v968
  %v5509 = vpop.f32.mrf.mxu0
  %v5510 = vadd.f32 %v5481, %v5509
  %v5511 = vpop.f32.mrf.mxu0
  %v5512 = vadd.f32 %v5483, %v5511
  %5513 = vmatmul.bf16.gmra.mxu0 %v987
  %v5514 = vpop.f32.mrf.mxu0
  %v5515 = vadd.f32 %v5486, %v5514
  %v5516 = vpop.f32.mrf.mxu0
  %v5517 = vadd.f32 %v5488, %v5516
  %5518 = vmatmul.bf16.gmra.mxu0 %v1006
  %v5519 = vpop.f32.mrf.mxu0
  %v5520 = vadd.f32 %v5491, %v5519
  %v5521 = vpop.f32.mrf.mxu0
  %v5522 = vadd.f32 %v5493, %v5521
  %5523 = vdwg.mxu0
  %5524 = vmatpush.bf16.msra.mxu0 %v3266
  %5525 = vmatpush.bf16.msra.mxu0 %v3262
  %5526 = vmatpush.bf16.msra.mxu0 %v3258
  %5527 = vmatpush.bf16.msra.mxu0 %v3254
  %5528 = vmatpush.bf16.msra.mxu0 %v3250
  %5529 = vmatpush.bf16.msra.mxu0 %v3246
  %5530 = vmatpush.bf16.msra.mxu0 %v3242
  %5531 = vmatpush.bf16.msra.mxu0 %v3238
  %5532 = vmatmul.bf16.gmra.mxu0 %v950
  %v5533 = vpop.f32.mrf.mxu0
  %v5534 = vadd.f32 %v5505, %v5533
  %v5535 = vpop.f32.mrf.mxu0
  %v5536 = vadd.f32 %v5507, %v5535
  %5537 = vmatmul.bf16.gmra.mxu0 %v969
  %v5538 = vpop.f32.mrf.mxu0
  %v5539 = vadd.f32 %v5510, %v5538
  %v5540 = vpop.f32.mrf.mxu0
  %v5541 = vadd.f32 %v5512, %v5540
  %5542 = vmatmul.bf16.gmra.mxu0 %v988
  %v5543 = vpop.f32.mrf.mxu0
  %v5544 = vadd.f32 %v5515, %v5543
  %v5545 = vpop.f32.mrf.mxu0
  %v5546 = vadd.f32 %v5517, %v5545
  %5547 = vmatmul.bf16.gmra.mxu0 %v1007
  %v5548 = vpop.f32.mrf.mxu0
  %v5549 = vadd.f32 %v5520, %v5548
  %v5550 = vpop.f32.mrf.mxu0
  %v5551 = vadd.f32 %v5522, %v5550
  %5552 = vdwg.mxu0
  %5553 = vmatpush.bf16.msra.mxu0 %v3298
  %5554 = vmatpush.bf16.msra.mxu0 %v3294
  %5555 = vmatpush.bf16.msra.mxu0 %v3290
  %5556 = vmatpush.bf16.msra.mxu0 %v3286
  %5557 = vmatpush.bf16.msra.mxu0 %v3282
  %5558 = vmatpush.bf16.msra.mxu0 %v3278
  %5559 = vmatpush.bf16.msra.mxu0 %v3274
  %5560 = vmatpush.bf16.msra.mxu0 %v3270
  %5561 = vmatmul.bf16.gmra.mxu0 %v951
  %v5562 = vpop.f32.mrf.mxu0
  %v5563 = vadd.f32 %v5534, %v5562
  %v5564 = vpop.f32.mrf.mxu0
  %v5565 = vadd.f32 %v5536, %v5564
  %5566 = vmatmul.bf16.gmra.mxu0 %v970
  %v5567 = vpop.f32.mrf.mxu0
  %v5568 = vadd.f32 %v5539, %v5567
  %v5569 = vpop.f32.mrf.mxu0
  %v5570 = vadd.f32 %v5541, %v5569
  %5571 = vmatmul.bf16.gmra.mxu0 %v989
  %v5572 = vpop.f32.mrf.mxu0
  %v5573 = vadd.f32 %v5544, %v5572
  %v5574 = vpop.f32.mrf.mxu0
  %v5575 = vadd.f32 %v5546, %v5574
  %5576 = vmatmul.bf16.gmra.mxu0 %v1008
  %v5577 = vpop.f32.mrf.mxu0
  %v5578 = vadd.f32 %v5549, %v5577
  %v5579 = vpop.f32.mrf.mxu0
  %v5580 = vadd.f32 %v5551, %v5579
  %5581 = vdwg.mxu0
  %5582 = vmatpush.bf16.msra.mxu0 %v3330
  %5583 = vmatpush.bf16.msra.mxu0 %v3326
  %5584 = vmatpush.bf16.msra.mxu0 %v3322
  %5585 = vmatpush.bf16.msra.mxu0 %v3318
  %5586 = vmatpush.bf16.msra.mxu0 %v3314
  %5587 = vmatpush.bf16.msra.mxu0 %v3310
  %5588 = vmatpush.bf16.msra.mxu0 %v3306
  %5589 = vmatpush.bf16.msra.mxu0 %v3302
  %5590 = vmatmul.bf16.gmra.mxu0 %v952
  %v5591 = vpop.f32.mrf.mxu0
  %v5592 = vadd.f32 %v5563, %v5591
  %v5593 = vpop.f32.mrf.mxu0
  %v5594 = vadd.f32 %v5565, %v5593
  %5595 = vmatmul.bf16.gmra.mxu0 %v971
  %v5596 = vpop.f32.mrf.mxu0
  %v5597 = vadd.f32 %v5568, %v5596
  %v5598 = vpop.f32.mrf.mxu0
  %v5599 = vadd.f32 %v5570, %v5598
  %5600 = vmatmul.bf16.gmra.mxu0 %v990
  %v5601 = vpop.f32.mrf.mxu0
  %v5602 = vadd.f32 %v5573, %v5601
  %v5603 = vpop.f32.mrf.mxu0
  %v5604 = vadd.f32 %v5575, %v5603
  %5605 = vmatmul.bf16.gmra.mxu0 %v1009
  %v5606 = vpop.f32.mrf.mxu0
  %v5607 = vadd.f32 %v5578, %v5606
  %v5608 = vpop.f32.mrf.mxu0
  %v5609 = vadd.f32 %v5580, %v5608
  %5610 = vdwg.mxu0
  %5611 = vmatpush.bf16.msra.mxu0 %v3362
  %5612 = vmatpush.bf16.msra.mxu0 %v3358
  %5613 = vmatpush.bf16.msra.mxu0 %v3354
  %5614 = vmatpush.bf16.msra.mxu0 %v3350
  %5615 = vmatpush.bf16.msra.mxu0 %v3346
  %5616 = vmatpush.bf16.msra.mxu0 %v3342
  %5617 = vmatpush.bf16.msra.mxu0 %v3338
  %5618 = vmatpush.bf16.msra.mxu0 %v3334
  %5619 = vmatmul.bf16.gmra.mxu0 %v953
  %v5620 = vpop.f32.mrf.mxu0
  %v5621 = vadd.f32 %v5592, %v5620
  %v5622 = vpop.f32.mrf.mxu0
  %v5623 = vadd.f32 %v5594, %v5622
  %5624 = vmatmul.bf16.gmra.mxu0 %v972
  %v5625 = vpop.f32.mrf.mxu0
  %v5626 = vadd.f32 %v5597, %v5625
  %v5627 = vpop.f32.mrf.mxu0
  %v5628 = vadd.f32 %v5599, %v5627
  %5629 = vmatmul.bf16.gmra.mxu0 %v991
  %v5630 = vpop.f32.mrf.mxu0
  %v5631 = vadd.f32 %v5602, %v5630
  %v5632 = vpop.f32.mrf.mxu0
  %v5633 = vadd.f32 %v5604, %v5632
  %5634 = vmatmul.bf16.gmra.mxu0 %v1010
  %v5635 = vpop.f32.mrf.mxu0
  %v5636 = vadd.f32 %v5607, %v5635
  %v5637 = vpop.f32.mrf.mxu0
  %v5638 = vadd.f32 %v5609, %v5637
  %5639 = vdwg.mxu0
  %5640 = vmatpush.bf16.msra.mxu0 %v3394
  %5641 = vmatpush.bf16.msra.mxu0 %v3390
  %5642 = vmatpush.bf16.msra.mxu0 %v3386
  %5643 = vmatpush.bf16.msra.mxu0 %v3382
  %5644 = vmatpush.bf16.msra.mxu0 %v3378
  %5645 = vmatpush.bf16.msra.mxu0 %v3374
  %5646 = vmatpush.bf16.msra.mxu0 %v3370
  %5647 = vmatpush.bf16.msra.mxu0 %v3366
  %5648 = vmatmul.bf16.gmra.mxu0 %v954
  %v5649 = vpop.f32.mrf.mxu0
  %v5650 = vadd.f32 %v5621, %v5649
  %v5651 = vpop.f32.mrf.mxu0
  %v5652 = vadd.f32 %v5623, %v5651
  %5653 = vmatmul.bf16.gmra.mxu0 %v973
  %v5654 = vpop.f32.mrf.mxu0
  %v5655 = vadd.f32 %v5626, %v5654
  %v5656 = vpop.f32.mrf.mxu0
  %v5657 = vadd.f32 %v5628, %v5656
  %5658 = vmatmul.bf16.gmra.mxu0 %v992
  %v5659 = vpop.f32.mrf.mxu0
  %v5660 = vadd.f32 %v5631, %v5659
  %v5661 = vpop.f32.mrf.mxu0
  %v5662 = vadd.f32 %v5633, %v5661
  %5663 = vmatmul.bf16.gmra.mxu0 %v1011
  %v5664 = vpop.f32.mrf.mxu0
  %v5665 = vadd.f32 %v5636, %v5664
  %v5666 = vpop.f32.mrf.mxu0
  %v5667 = vadd.f32 %v5638, %v5666
  %5668 = vdwg.mxu0
  %5669 = vmatpush.bf16.msra.mxu0 %v3426
  %5670 = vmatpush.bf16.msra.mxu0 %v3422
  %5671 = vmatpush.bf16.msra.mxu0 %v3418
  %5672 = vmatpush.bf16.msra.mxu0 %v3414
  %5673 = vmatpush.bf16.msra.mxu0 %v3410
  %5674 = vmatpush.bf16.msra.mxu0 %v3406
  %5675 = vmatpush.bf16.msra.mxu0 %v3402
  %5676 = vmatpush.bf16.msra.mxu0 %v3398
  %5677 = vmatmul.bf16.gmra.mxu0 %v955
  %v5678 = vpop.f32.mrf.mxu0
  %v5679 = vadd.f32 %v5650, %v5678
  %v5680 = vpop.f32.mrf.mxu0
  %v5681 = vadd.f32 %v5652, %v5680
  %5682 = vmatmul.bf16.gmra.mxu0 %v974
  %v5683 = vpop.f32.mrf.mxu0
  %v5684 = vadd.f32 %v5655, %v5683
  %v5685 = vpop.f32.mrf.mxu0
  %v5686 = vadd.f32 %v5657, %v5685
  %5687 = vmatmul.bf16.gmra.mxu0 %v993
  %v5688 = vpop.f32.mrf.mxu0
  %v5689 = vadd.f32 %v5660, %v5688
  %v5690 = vpop.f32.mrf.mxu0
  %v5691 = vadd.f32 %v5662, %v5690
  %5692 = vmatmul.bf16.gmra.mxu0 %v1012
  %v5693 = vpop.f32.mrf.mxu0
  %v5694 = vadd.f32 %v5665, %v5693
  %v5695 = vpop.f32.mrf.mxu0
  %v5696 = vadd.f32 %v5667, %v5695
  %5697 = vdwg.mxu0
  %5698 = vmatpush.bf16.msra.mxu0 %v3458
  %5699 = vmatpush.bf16.msra.mxu0 %v3454
  %5700 = vmatpush.bf16.msra.mxu0 %v3450
  %5701 = vmatpush.bf16.msra.mxu0 %v3446
  %5702 = vmatpush.bf16.msra.mxu0 %v3442
  %5703 = vmatpush.bf16.msra.mxu0 %v3438
  %5704 = vmatpush.bf16.msra.mxu0 %v3434
  %5705 = vmatpush.bf16.msra.mxu0 %v3430
  %5706 = vmatmul.bf16.gmra.mxu0 %v956
  %v5707 = vpop.f32.mrf.mxu0
  %v5708 = vadd.f32 %v5679, %v5707
  %v5709 = vpop.f32.mrf.mxu0
  %v5710 = vadd.f32 %v5681, %v5709
  %5711 = vmatmul.bf16.gmra.mxu0 %v975
  %v5712 = vpop.f32.mrf.mxu0
  %v5713 = vadd.f32 %v5684, %v5712
  %v5714 = vpop.f32.mrf.mxu0
  %v5715 = vadd.f32 %v5686, %v5714
  %5716 = vmatmul.bf16.gmra.mxu0 %v994
  %v5717 = vpop.f32.mrf.mxu0
  %v5718 = vadd.f32 %v5689, %v5717
  %v5719 = vpop.f32.mrf.mxu0
  %v5720 = vadd.f32 %v5691, %v5719
  %5721 = vmatmul.bf16.gmra.mxu0 %v1013
  %v5722 = vpop.f32.mrf.mxu0
  %v5723 = vadd.f32 %v5694, %v5722
  %v5724 = vpop.f32.mrf.mxu0
  %v5725 = vadd.f32 %v5696, %v5724
  %5726 = vdwg.mxu0
  %5727 = vmatpush.bf16.msra.mxu0 %v3490
  %5728 = vmatpush.bf16.msra.mxu0 %v3486
  %5729 = vmatpush.bf16.msra.mxu0 %v3482
  %5730 = vmatpush.bf16.msra.mxu0 %v3478
  %5731 = vmatpush.bf16.msra.mxu0 %v3474
  %5732 = vmatpush.bf16.msra.mxu0 %v3470
  %5733 = vmatpush.bf16.msra.mxu0 %v3466
  %5734 = vmatpush.bf16.msra.mxu0 %v3462
  %5735 = vmatmul.bf16.gmra.mxu0 %v957
  %v5736 = vpop.f32.mrf.mxu0
  %v5737 = vadd.f32 %v5708, %v5736
  %v5738 = vpop.f32.mrf.mxu0
  %v5739 = vadd.f32 %v5710, %v5738
  %5740 = vmatmul.bf16.gmra.mxu0 %v976
  %v5741 = vpop.f32.mrf.mxu0
  %v5742 = vadd.f32 %v5713, %v5741
  %v5743 = vpop.f32.mrf.mxu0
  %v5744 = vadd.f32 %v5715, %v5743
  %5745 = vmatmul.bf16.gmra.mxu0 %v995
  %v5746 = vpop.f32.mrf.mxu0
  %v5747 = vadd.f32 %v5718, %v5746
  %v5748 = vpop.f32.mrf.mxu0
  %v5749 = vadd.f32 %v5720, %v5748
  %5750 = vmatmul.bf16.gmra.mxu0 %v1014
  %v5751 = vpop.f32.mrf.mxu0
  %v5752 = vadd.f32 %v5723, %v5751
  %v5753 = vpop.f32.mrf.mxu0
  %v5754 = vadd.f32 %v5725, %v5753
  %5755 = vdwg.mxu0
  %5756 = vmatpush.bf16.msra.mxu0 %v3522
  %5757 = vmatpush.bf16.msra.mxu0 %v3518
  %5758 = vmatpush.bf16.msra.mxu0 %v3514
  %5759 = vmatpush.bf16.msra.mxu0 %v3510
  %5760 = vmatpush.bf16.msra.mxu0 %v3506
  %5761 = vmatpush.bf16.msra.mxu0 %v3502
  %5762 = vmatpush.bf16.msra.mxu0 %v3498
  %5763 = vmatpush.bf16.msra.mxu0 %v3494
  %5764 = vmatmul.bf16.gmra.mxu0 %v958
  %v5765 = vpop.f32.mrf.mxu0
  %v5766 = vadd.f32 %v5737, %v5765
  %v5767 = vpop.f32.mrf.mxu0
  %v5768 = vadd.f32 %v5739, %v5767
  %5769 = vmatmul.bf16.gmra.mxu0 %v977
  %v5770 = vpop.f32.mrf.mxu0
  %v5771 = vadd.f32 %v5742, %v5770
  %v5772 = vpop.f32.mrf.mxu0
  %v5773 = vadd.f32 %v5744, %v5772
  %5774 = vmatmul.bf16.gmra.mxu0 %v996
  %v5775 = vpop.f32.mrf.mxu0
  %v5776 = vadd.f32 %v5747, %v5775
  %v5777 = vpop.f32.mrf.mxu0
  %v5778 = vadd.f32 %v5749, %v5777
  %5779 = vmatmul.bf16.gmra.mxu0 %v1015
  %v5780 = vpop.f32.mrf.mxu0
  %v5781 = vadd.f32 %v5752, %v5780
  %v5782 = vpop.f32.mrf.mxu0
  %v5783 = vadd.f32 %v5754, %v5782
  %5784 = vdwg.mxu0
  %5785 = vmatpush.bf16.msra.mxu0 %v2947
  %5786 = vmatpush.bf16.msra.mxu0 %v2943
  %5787 = vmatpush.bf16.msra.mxu0 %v2939
  %5788 = vmatpush.bf16.msra.mxu0 %v2935
  %5789 = vmatpush.bf16.msra.mxu0 %v2931
  %5790 = vmatpush.bf16.msra.mxu0 %v2927
  %5791 = vmatpush.bf16.msra.mxu0 %v2923
  %5792 = vmatpush.bf16.msra.mxu0 %v2919
  %5793 = vmatmul.bf16.gmra.mxu0 %v940
  %v5794 = vpop.f32.mrf.mxu0
  %v5795 = vadd.f32 0.0, %v5794
  %v5796 = vpop.f32.mrf.mxu0
  %v5797 = vadd.f32 0.0, %v5796
  %5798 = vmatmul.bf16.gmra.mxu0 %v959
  %v5799 = vpop.f32.mrf.mxu0
  %v5800 = vadd.f32 0.0, %v5799
  %v5801 = vpop.f32.mrf.mxu0
  %v5802 = vadd.f32 0.0, %v5801
  %5803 = vmatmul.bf16.gmra.mxu0 %v978
  %v5804 = vpop.f32.mrf.mxu0
  %v5805 = vadd.f32 0.0, %v5804
  %v5806 = vpop.f32.mrf.mxu0
  %v5807 = vadd.f32 0.0, %v5806
  %5808 = vmatmul.bf16.gmra.mxu0 %v997
  %v5809 = vpop.f32.mrf.mxu0
  %v5810 = vadd.f32 0.0, %v5809
  %v5811 = vpop.f32.mrf.mxu0
  %v5812 = vadd.f32 0.0, %v5811
  %5813 = vdwg.mxu0
  %5814 = vmatpush.bf16.msra.mxu0 %v2979
  %5815 = vmatpush.bf16.msra.mxu0 %v2975
  %5816 = vmatpush.bf16.msra.mxu0 %v2971
  %5817 = vmatpush.bf16.msra.mxu0 %v2967
  %5818 = vmatpush.bf16.msra.mxu0 %v2963
  %5819 = vmatpush.bf16.msra.mxu0 %v2959
  %5820 = vmatpush.bf16.msra.mxu0 %v2955
  %5821 = vmatpush.bf16.msra.mxu0 %v2951
  %5822 = vmatmul.bf16.gmra.mxu0 %v941
  %v5823 = vpop.f32.mrf.mxu0
  %v5824 = vadd.f32 %v5795, %v5823
  %v5825 = vpop.f32.mrf.mxu0
  %v5826 = vadd.f32 %v5797, %v5825
  %5827 = vmatmul.bf16.gmra.mxu0 %v960
  %v5828 = vpop.f32.mrf.mxu0
  %v5829 = vadd.f32 %v5800, %v5828
  %v5830 = vpop.f32.mrf.mxu0
  %v5831 = vadd.f32 %v5802, %v5830
  %5832 = vmatmul.bf16.gmra.mxu0 %v979
  %v5833 = vpop.f32.mrf.mxu0
  %v5834 = vadd.f32 %v5805, %v5833
  %v5835 = vpop.f32.mrf.mxu0
  %v5836 = vadd.f32 %v5807, %v5835
  %5837 = vmatmul.bf16.gmra.mxu0 %v998
  %v5838 = vpop.f32.mrf.mxu0
  %v5839 = vadd.f32 %v5810, %v5838
  %v5840 = vpop.f32.mrf.mxu0
  %v5841 = vadd.f32 %v5812, %v5840
  %5842 = vdwg.mxu0
  %5843 = vmatpush.bf16.msra.mxu0 %v3011
  %5844 = vmatpush.bf16.msra.mxu0 %v3007
  %5845 = vmatpush.bf16.msra.mxu0 %v3003
  %5846 = vmatpush.bf16.msra.mxu0 %v2999
  %5847 = vmatpush.bf16.msra.mxu0 %v2995
  %5848 = vmatpush.bf16.msra.mxu0 %v2991
  %5849 = vmatpush.bf16.msra.mxu0 %v2987
  %5850 = vmatpush.bf16.msra.mxu0 %v2983
  %5851 = vmatmul.bf16.gmra.mxu0 %v942
  %v5852 = vpop.f32.mrf.mxu0
  %v5853 = vadd.f32 %v5824, %v5852
  %v5854 = vpop.f32.mrf.mxu0
  %v5855 = vadd.f32 %v5826, %v5854
  %5856 = vmatmul.bf16.gmra.mxu0 %v961
  %v5857 = vpop.f32.mrf.mxu0
  %v5858 = vadd.f32 %v5829, %v5857
  %v5859 = vpop.f32.mrf.mxu0
  %v5860 = vadd.f32 %v5831, %v5859
  %5861 = vmatmul.bf16.gmra.mxu0 %v980
  %v5862 = vpop.f32.mrf.mxu0
  %v5863 = vadd.f32 %v5834, %v5862
  %v5864 = vpop.f32.mrf.mxu0
  %v5865 = vadd.f32 %v5836, %v5864
  %5866 = vmatmul.bf16.gmra.mxu0 %v999
  %v5867 = vpop.f32.mrf.mxu0
  %v5868 = vadd.f32 %v5839, %v5867
  %v5869 = vpop.f32.mrf.mxu0
  %v5870 = vadd.f32 %v5841, %v5869
  %5871 = vdwg.mxu0
  %5872 = vmatpush.bf16.msra.mxu0 %v3043
  %5873 = vmatpush.bf16.msra.mxu0 %v3039
  %5874 = vmatpush.bf16.msra.mxu0 %v3035
  %5875 = vmatpush.bf16.msra.mxu0 %v3031
  %5876 = vmatpush.bf16.msra.mxu0 %v3027
  %5877 = vmatpush.bf16.msra.mxu0 %v3023
  %5878 = vmatpush.bf16.msra.mxu0 %v3019
  %5879 = vmatpush.bf16.msra.mxu0 %v3015
  %5880 = vmatmul.bf16.gmra.mxu0 %v943
  %v5881 = vpop.f32.mrf.mxu0
  %v5882 = vadd.f32 %v5853, %v5881
  %v5883 = vpop.f32.mrf.mxu0
  %v5884 = vadd.f32 %v5855, %v5883
  %5885 = vmatmul.bf16.gmra.mxu0 %v962
  %v5886 = vpop.f32.mrf.mxu0
  %v5887 = vadd.f32 %v5858, %v5886
  %v5888 = vpop.f32.mrf.mxu0
  %v5889 = vadd.f32 %v5860, %v5888
  %5890 = vmatmul.bf16.gmra.mxu0 %v981
  %v5891 = vpop.f32.mrf.mxu0
  %v5892 = vadd.f32 %v5863, %v5891
  %v5893 = vpop.f32.mrf.mxu0
  %v5894 = vadd.f32 %v5865, %v5893
  %5895 = vmatmul.bf16.gmra.mxu0 %v1000
  %v5896 = vpop.f32.mrf.mxu0
  %v5897 = vadd.f32 %v5868, %v5896
  %v5898 = vpop.f32.mrf.mxu0
  %v5899 = vadd.f32 %v5870, %v5898
  %5900 = vdwg.mxu0
  %5901 = vmatpush.bf16.msra.mxu0 %v3075
  %5902 = vmatpush.bf16.msra.mxu0 %v3071
  %5903 = vmatpush.bf16.msra.mxu0 %v3067
  %5904 = vmatpush.bf16.msra.mxu0 %v3063
  %5905 = vmatpush.bf16.msra.mxu0 %v3059
  %5906 = vmatpush.bf16.msra.mxu0 %v3055
  %5907 = vmatpush.bf16.msra.mxu0 %v3051
  %5908 = vmatpush.bf16.msra.mxu0 %v3047
  %5909 = vmatmul.bf16.gmra.mxu0 %v944
  %v5910 = vpop.f32.mrf.mxu0
  %v5911 = vadd.f32 %v5882, %v5910
  %v5912 = vpop.f32.mrf.mxu0
  %v5913 = vadd.f32 %v5884, %v5912
  %5914 = vmatmul.bf16.gmra.mxu0 %v963
  %v5915 = vpop.f32.mrf.mxu0
  %v5916 = vadd.f32 %v5887, %v5915
  %v5917 = vpop.f32.mrf.mxu0
  %v5918 = vadd.f32 %v5889, %v5917
  %5919 = vmatmul.bf16.gmra.mxu0 %v982
  %v5920 = vpop.f32.mrf.mxu0
  %v5921 = vadd.f32 %v5892, %v5920
  %v5922 = vpop.f32.mrf.mxu0
  %v5923 = vadd.f32 %v5894, %v5922
  %5924 = vmatmul.bf16.gmra.mxu0 %v1001
  %v5925 = vpop.f32.mrf.mxu0
  %v5926 = vadd.f32 %v5897, %v5925
  %v5927 = vpop.f32.mrf.mxu0
  %v5928 = vadd.f32 %v5899, %v5927
  %5929 = vdwg.mxu0
  %5930 = vmatpush.bf16.msra.mxu0 %v3107
  %5931 = vmatpush.bf16.msra.mxu0 %v3103
  %5932 = vmatpush.bf16.msra.mxu0 %v3099
  %5933 = vmatpush.bf16.msra.mxu0 %v3095
  %5934 = vmatpush.bf16.msra.mxu0 %v3091
  %5935 = vmatpush.bf16.msra.mxu0 %v3087
  %5936 = vmatpush.bf16.msra.mxu0 %v3083
  %5937 = vmatpush.bf16.msra.mxu0 %v3079
  %5938 = vmatmul.bf16.gmra.mxu0 %v945
  %v5939 = vpop.f32.mrf.mxu0
  %v5940 = vadd.f32 %v5911, %v5939
  %v5941 = vpop.f32.mrf.mxu0
  %v5942 = vadd.f32 %v5913, %v5941
  %5943 = vmatmul.bf16.gmra.mxu0 %v964
  %v5944 = vpop.f32.mrf.mxu0
  %v5945 = vadd.f32 %v5916, %v5944
  %v5946 = vpop.f32.mrf.mxu0
  %v5947 = vadd.f32 %v5918, %v5946
  %5948 = vmatmul.bf16.gmra.mxu0 %v983
  %v5949 = vpop.f32.mrf.mxu0
  %v5950 = vadd.f32 %v5921, %v5949
  %v5951 = vpop.f32.mrf.mxu0
  %v5952 = vadd.f32 %v5923, %v5951
  %5953 = vmatmul.bf16.gmra.mxu0 %v1002
  %v5954 = vpop.f32.mrf.mxu0
  %v5955 = vadd.f32 %v5926, %v5954
  %v5956 = vpop.f32.mrf.mxu0
  %v5957 = vadd.f32 %v5928, %v5956
  %5958 = vdwg.mxu0
  %5959 = vmatpush.bf16.msra.mxu0 %v3139
  %5960 = vmatpush.bf16.msra.mxu0 %v3135
  %5961 = vmatpush.bf16.msra.mxu0 %v3131
  %5962 = vmatpush.bf16.msra.mxu0 %v3127
  %5963 = vmatpush.bf16.msra.mxu0 %v3123
  %5964 = vmatpush.bf16.msra.mxu0 %v3119
  %5965 = vmatpush.bf16.msra.mxu0 %v3115
  %5966 = vmatpush.bf16.msra.mxu0 %v3111
  %5967 = vmatmul.bf16.gmra.mxu0 %v946
  %v5968 = vpop.f32.mrf.mxu0
  %v5969 = vadd.f32 %v5940, %v5968
  %v5970 = vpop.f32.mrf.mxu0
  %v5971 = vadd.f32 %v5942, %v5970
  %5972 = vmatmul.bf16.gmra.mxu0 %v965
  %v5973 = vpop.f32.mrf.mxu0
  %v5974 = vadd.f32 %v5945, %v5973
  %v5975 = vpop.f32.mrf.mxu0
  %v5976 = vadd.f32 %v5947, %v5975
  %5977 = vmatmul.bf16.gmra.mxu0 %v984
  %v5978 = vpop.f32.mrf.mxu0
  %v5979 = vadd.f32 %v5950, %v5978
  %v5980 = vpop.f32.mrf.mxu0
  %v5981 = vadd.f32 %v5952, %v5980
  %5982 = vmatmul.bf16.gmra.mxu0 %v1003
  %v5983 = vpop.f32.mrf.mxu0
  %v5984 = vadd.f32 %v5955, %v5983
  %v5985 = vpop.f32.mrf.mxu0
  %v5986 = vadd.f32 %v5957, %v5985
  %5987 = vdwg.mxu0
  %5988 = vmatpush.bf16.msra.mxu0 %v3171
  %5989 = vmatpush.bf16.msra.mxu0 %v3167
  %5990 = vmatpush.bf16.msra.mxu0 %v3163
  %5991 = vmatpush.bf16.msra.mxu0 %v3159
  %5992 = vmatpush.bf16.msra.mxu0 %v3155
  %5993 = vmatpush.bf16.msra.mxu0 %v3151
  %5994 = vmatpush.bf16.msra.mxu0 %v3147
  %5995 = vmatpush.bf16.msra.mxu0 %v3143
  %5996 = vmatmul.bf16.gmra.mxu0 %v947
  %v5997 = vpop.f32.mrf.mxu0
  %v5998 = vadd.f32 %v5969, %v5997
  %v5999 = vpop.f32.mrf.mxu0
  %v6000 = vadd.f32 %v5971, %v5999
  %6001 = vmatmul.bf16.gmra.mxu0 %v966
  %v6002 = vpop.f32.mrf.mxu0
  %v6003 = vadd.f32 %v5974, %v6002
  %v6004 = vpop.f32.mrf.mxu0
  %v6005 = vadd.f32 %v5976, %v6004
  %6006 = vmatmul.bf16.gmra.mxu0 %v985
  %v6007 = vpop.f32.mrf.mxu0
  %v6008 = vadd.f32 %v5979, %v6007
  %v6009 = vpop.f32.mrf.mxu0
  %v6010 = vadd.f32 %v5981, %v6009
  %6011 = vmatmul.bf16.gmra.mxu0 %v1004
  %v6012 = vpop.f32.mrf.mxu0
  %v6013 = vadd.f32 %v5984, %v6012
  %v6014 = vpop.f32.mrf.mxu0
  %v6015 = vadd.f32 %v5986, %v6014
  %6016 = vdwg.mxu0
  %6017 = vmatpush.bf16.msra.mxu0 %v3203
  %6018 = vmatpush.bf16.msra.mxu0 %v3199
  %6019 = vmatpush.bf16.msra.mxu0 %v3195
  %6020 = vmatpush.bf16.msra.mxu0 %v3191
  %6021 = vmatpush.bf16.msra.mxu0 %v3187
  %6022 = vmatpush.bf16.msra.mxu0 %v3183
  %6023 = vmatpush.bf16.msra.mxu0 %v3179
  %6024 = vmatpush.bf16.msra.mxu0 %v3175
  %6025 = vmatmul.bf16.gmra.mxu0 %v948
  %v6026 = vpop.f32.mrf.mxu0
  %v6027 = vadd.f32 %v5998, %v6026
  %v6028 = vpop.f32.mrf.mxu0
  %v6029 = vadd.f32 %v6000, %v6028
  %6030 = vmatmul.bf16.gmra.mxu0 %v967
  %v6031 = vpop.f32.mrf.mxu0
  %v6032 = vadd.f32 %v6003, %v6031
  %v6033 = vpop.f32.mrf.mxu0
  %v6034 = vadd.f32 %v6005, %v6033
  %6035 = vmatmul.bf16.gmra.mxu0 %v986
  %v6036 = vpop.f32.mrf.mxu0
  %v6037 = vadd.f32 %v6008, %v6036
  %v6038 = vpop.f32.mrf.mxu0
  %v6039 = vadd.f32 %v6010, %v6038
  %6040 = vmatmul.bf16.gmra.mxu0 %v1005
  %v6041 = vpop.f32.mrf.mxu0
  %v6042 = vadd.f32 %v6013, %v6041
  %v6043 = vpop.f32.mrf.mxu0
  %v6044 = vadd.f32 %v6015, %v6043
  %6045 = vdwg.mxu0
  %6046 = vmatpush.bf16.msra.mxu0 %v3235
  %6047 = vmatpush.bf16.msra.mxu0 %v3231
  %6048 = vmatpush.bf16.msra.mxu0 %v3227
  %6049 = vmatpush.bf16.msra.mxu0 %v3223
  %6050 = vmatpush.bf16.msra.mxu0 %v3219
  %6051 = vmatpush.bf16.msra.mxu0 %v3215
  %6052 = vmatpush.bf16.msra.mxu0 %v3211
  %6053 = vmatpush.bf16.msra.mxu0 %v3207
  %6054 = vmatmul.bf16.gmra.mxu0 %v949
  %v6055 = vpop.f32.mrf.mxu0
  %v6056 = vadd.f32 %v6027, %v6055
  %v6057 = vpop.f32.mrf.mxu0
  %v6058 = vadd.f32 %v6029, %v6057
  %6059 = vmatmul.bf16.gmra.mxu0 %v968
  %v6060 = vpop.f32.mrf.mxu0
  %v6061 = vadd.f32 %v6032, %v6060
  %v6062 = vpop.f32.mrf.mxu0
  %v6063 = vadd.f32 %v6034, %v6062
  %6064 = vmatmul.bf16.gmra.mxu0 %v987
  %v6065 = vpop.f32.mrf.mxu0
  %v6066 = vadd.f32 %v6037, %v6065
  %v6067 = vpop.f32.mrf.mxu0
  %v6068 = vadd.f32 %v6039, %v6067
  %6069 = vmatmul.bf16.gmra.mxu0 %v1006
  %v6070 = vpop.f32.mrf.mxu0
  %v6071 = vadd.f32 %v6042, %v6070
  %v6072 = vpop.f32.mrf.mxu0
  %v6073 = vadd.f32 %v6044, %v6072
  %6074 = vdwg.mxu0
  %6075 = vmatpush.bf16.msra.mxu0 %v3267
  %6076 = vmatpush.bf16.msra.mxu0 %v3263
  %6077 = vmatpush.bf16.msra.mxu0 %v3259
  %6078 = vmatpush.bf16.msra.mxu0 %v3255
  %6079 = vmatpush.bf16.msra.mxu0 %v3251
  %6080 = vmatpush.bf16.msra.mxu0 %v3247
  %6081 = vmatpush.bf16.msra.mxu0 %v3243
  %6082 = vmatpush.bf16.msra.mxu0 %v3239
  %6083 = vmatmul.bf16.gmra.mxu0 %v950
  %v6084 = vpop.f32.mrf.mxu0
  %v6085 = vadd.f32 %v6056, %v6084
  %v6086 = vpop.f32.mrf.mxu0
  %v6087 = vadd.f32 %v6058, %v6086
  %6088 = vmatmul.bf16.gmra.mxu0 %v969
  %v6089 = vpop.f32.mrf.mxu0
  %v6090 = vadd.f32 %v6061, %v6089
  %v6091 = vpop.f32.mrf.mxu0
  %v6092 = vadd.f32 %v6063, %v6091
  %6093 = vmatmul.bf16.gmra.mxu0 %v988
  %v6094 = vpop.f32.mrf.mxu0
  %v6095 = vadd.f32 %v6066, %v6094
  %v6096 = vpop.f32.mrf.mxu0
  %v6097 = vadd.f32 %v6068, %v6096
  %6098 = vmatmul.bf16.gmra.mxu0 %v1007
  %v6099 = vpop.f32.mrf.mxu0
  %v6100 = vadd.f32 %v6071, %v6099
  %v6101 = vpop.f32.mrf.mxu0
  %v6102 = vadd.f32 %v6073, %v6101
  %6103 = vdwg.mxu0
  %6104 = vmatpush.bf16.msra.mxu0 %v3299
  %6105 = vmatpush.bf16.msra.mxu0 %v3295
  %6106 = vmatpush.bf16.msra.mxu0 %v3291
  %6107 = vmatpush.bf16.msra.mxu0 %v3287
  %6108 = vmatpush.bf16.msra.mxu0 %v3283
  %6109 = vmatpush.bf16.msra.mxu0 %v3279
  %6110 = vmatpush.bf16.msra.mxu0 %v3275
  %6111 = vmatpush.bf16.msra.mxu0 %v3271
  %6112 = vmatmul.bf16.gmra.mxu0 %v951
  %v6113 = vpop.f32.mrf.mxu0
  %v6114 = vadd.f32 %v6085, %v6113
  %v6115 = vpop.f32.mrf.mxu0
  %v6116 = vadd.f32 %v6087, %v6115
  %6117 = vmatmul.bf16.gmra.mxu0 %v970
  %v6118 = vpop.f32.mrf.mxu0
  %v6119 = vadd.f32 %v6090, %v6118
  %v6120 = vpop.f32.mrf.mxu0
  %v6121 = vadd.f32 %v6092, %v6120
  %6122 = vmatmul.bf16.gmra.mxu0 %v989
  %v6123 = vpop.f32.mrf.mxu0
  %v6124 = vadd.f32 %v6095, %v6123
  %v6125 = vpop.f32.mrf.mxu0
  %v6126 = vadd.f32 %v6097, %v6125
  %6127 = vmatmul.bf16.gmra.mxu0 %v1008
  %v6128 = vpop.f32.mrf.mxu0
  %v6129 = vadd.f32 %v6100, %v6128
  %v6130 = vpop.f32.mrf.mxu0
  %v6131 = vadd.f32 %v6102, %v6130
  %6132 = vdwg.mxu0
  %6133 = vmatpush.bf16.msra.mxu0 %v3331
  %6134 = vmatpush.bf16.msra.mxu0 %v3327
  %6135 = vmatpush.bf16.msra.mxu0 %v3323
  %6136 = vmatpush.bf16.msra.mxu0 %v3319
  %6137 = vmatpush.bf16.msra.mxu0 %v3315
  %6138 = vmatpush.bf16.msra.mxu0 %v3311
  %6139 = vmatpush.bf16.msra.mxu0 %v3307
  %6140 = vmatpush.bf16.msra.mxu0 %v3303
  %6141 = vmatmul.bf16.gmra.mxu0 %v952
  %v6142 = vpop.f32.mrf.mxu0
  %v6143 = vadd.f32 %v6114, %v6142
  %v6144 = vpop.f32.mrf.mxu0
  %v6145 = vadd.f32 %v6116, %v6144
  %6146 = vmatmul.bf16.gmra.mxu0 %v971
  %v6147 = vpop.f32.mrf.mxu0
  %v6148 = vadd.f32 %v6119, %v6147
  %v6149 = vpop.f32.mrf.mxu0
  %v6150 = vadd.f32 %v6121, %v6149
  %6151 = vmatmul.bf16.gmra.mxu0 %v990
  %v6152 = vpop.f32.mrf.mxu0
  %v6153 = vadd.f32 %v6124, %v6152
  %v6154 = vpop.f32.mrf.mxu0
  %v6155 = vadd.f32 %v6126, %v6154
  %6156 = vmatmul.bf16.gmra.mxu0 %v1009
  %v6157 = vpop.f32.mrf.mxu0
  %v6158 = vadd.f32 %v6129, %v6157
  %v6159 = vpop.f32.mrf.mxu0
  %v6160 = vadd.f32 %v6131, %v6159
  %6161 = vdwg.mxu0
  %6162 = vmatpush.bf16.msra.mxu0 %v3363
  %6163 = vmatpush.bf16.msra.mxu0 %v3359
  %6164 = vmatpush.bf16.msra.mxu0 %v3355
  %6165 = vmatpush.bf16.msra.mxu0 %v3351
  %6166 = vmatpush.bf16.msra.mxu0 %v3347
  %6167 = vmatpush.bf16.msra.mxu0 %v3343
  %6168 = vmatpush.bf16.msra.mxu0 %v3339
  %6169 = vmatpush.bf16.msra.mxu0 %v3335
  %6170 = vmatmul.bf16.gmra.mxu0 %v953
  %v6171 = vpop.f32.mrf.mxu0
  %v6172 = vadd.f32 %v6143, %v6171
  %v6173 = vpop.f32.mrf.mxu0
  %v6174 = vadd.f32 %v6145, %v6173
  %6175 = vmatmul.bf16.gmra.mxu0 %v972
  %v6176 = vpop.f32.mrf.mxu0
  %v6177 = vadd.f32 %v6148, %v6176
  %v6178 = vpop.f32.mrf.mxu0
  %v6179 = vadd.f32 %v6150, %v6178
  %6180 = vmatmul.bf16.gmra.mxu0 %v991
  %v6181 = vpop.f32.mrf.mxu0
  %v6182 = vadd.f32 %v6153, %v6181
  %v6183 = vpop.f32.mrf.mxu0
  %v6184 = vadd.f32 %v6155, %v6183
  %6185 = vmatmul.bf16.gmra.mxu0 %v1010
  %v6186 = vpop.f32.mrf.mxu0
  %v6187 = vadd.f32 %v6158, %v6186
  %v6188 = vpop.f32.mrf.mxu0
  %v6189 = vadd.f32 %v6160, %v6188
  %6190 = vdwg.mxu0
  %6191 = vmatpush.bf16.msra.mxu0 %v3395
  %6192 = vmatpush.bf16.msra.mxu0 %v3391
  %6193 = vmatpush.bf16.msra.mxu0 %v3387
  %6194 = vmatpush.bf16.msra.mxu0 %v3383
  %6195 = vmatpush.bf16.msra.mxu0 %v3379
  %6196 = vmatpush.bf16.msra.mxu0 %v3375
  %6197 = vmatpush.bf16.msra.mxu0 %v3371
  %6198 = vmatpush.bf16.msra.mxu0 %v3367
  %6199 = vmatmul.bf16.gmra.mxu0 %v954
  %v6200 = vpop.f32.mrf.mxu0
  %v6201 = vadd.f32 %v6172, %v6200
  %v6202 = vpop.f32.mrf.mxu0
  %v6203 = vadd.f32 %v6174, %v6202
  %6204 = vmatmul.bf16.gmra.mxu0 %v973
  %v6205 = vpop.f32.mrf.mxu0
  %v6206 = vadd.f32 %v6177, %v6205
  %v6207 = vpop.f32.mrf.mxu0
  %v6208 = vadd.f32 %v6179, %v6207
  %6209 = vmatmul.bf16.gmra.mxu0 %v992
  %v6210 = vpop.f32.mrf.mxu0
  %v6211 = vadd.f32 %v6182, %v6210
  %v6212 = vpop.f32.mrf.mxu0
  %v6213 = vadd.f32 %v6184, %v6212
  %6214 = vmatmul.bf16.gmra.mxu0 %v1011
  %v6215 = vpop.f32.mrf.mxu0
  %v6216 = vadd.f32 %v6187, %v6215
  %v6217 = vpop.f32.mrf.mxu0
  %v6218 = vadd.f32 %v6189, %v6217
  %6219 = vdwg.mxu0
  %6220 = vmatpush.bf16.msra.mxu0 %v3427
  %6221 = vmatpush.bf16.msra.mxu0 %v3423
  %6222 = vmatpush.bf16.msra.mxu0 %v3419
  %6223 = vmatpush.bf16.msra.mxu0 %v3415
  %6224 = vmatpush.bf16.msra.mxu0 %v3411
  %6225 = vmatpush.bf16.msra.mxu0 %v3407
  %6226 = vmatpush.bf16.msra.mxu0 %v3403
  %6227 = vmatpush.bf16.msra.mxu0 %v3399
  %6228 = vmatmul.bf16.gmra.mxu0 %v955
  %v6229 = vpop.f32.mrf.mxu0
  %v6230 = vadd.f32 %v6201, %v6229
  %v6231 = vpop.f32.mrf.mxu0
  %v6232 = vadd.f32 %v6203, %v6231
  %6233 = vmatmul.bf16.gmra.mxu0 %v974
  %v6234 = vpop.f32.mrf.mxu0
  %v6235 = vadd.f32 %v6206, %v6234
  %v6236 = vpop.f32.mrf.mxu0
  %v6237 = vadd.f32 %v6208, %v6236
  %6238 = vmatmul.bf16.gmra.mxu0 %v993
  %v6239 = vpop.f32.mrf.mxu0
  %v6240 = vadd.f32 %v6211, %v6239
  %v6241 = vpop.f32.mrf.mxu0
  %v6242 = vadd.f32 %v6213, %v6241
  %6243 = vmatmul.bf16.gmra.mxu0 %v1012
  %v6244 = vpop.f32.mrf.mxu0
  %v6245 = vadd.f32 %v6216, %v6244
  %v6246 = vpop.f32.mrf.mxu0
  %v6247 = vadd.f32 %v6218, %v6246
  %6248 = vdwg.mxu0
  %6249 = vmatpush.bf16.msra.mxu0 %v3459
  %6250 = vmatpush.bf16.msra.mxu0 %v3455
  %6251 = vmatpush.bf16.msra.mxu0 %v3451
  %6252 = vmatpush.bf16.msra.mxu0 %v3447
  %6253 = vmatpush.bf16.msra.mxu0 %v3443
  %6254 = vmatpush.bf16.msra.mxu0 %v3439
  %6255 = vmatpush.bf16.msra.mxu0 %v3435
  %6256 = vmatpush.bf16.msra.mxu0 %v3431
  %6257 = vmatmul.bf16.gmra.mxu0 %v956
  %v6258 = vpop.f32.mrf.mxu0
  %v6259 = vadd.f32 %v6230, %v6258
  %v6260 = vpop.f32.mrf.mxu0
  %v6261 = vadd.f32 %v6232, %v6260
  %6262 = vmatmul.bf16.gmra.mxu0 %v975
  %v6263 = vpop.f32.mrf.mxu0
  %v6264 = vadd.f32 %v6235, %v6263
  %v6265 = vpop.f32.mrf.mxu0
  %v6266 = vadd.f32 %v6237, %v6265
  %6267 = vmatmul.bf16.gmra.mxu0 %v994
  %v6268 = vpop.f32.mrf.mxu0
  %v6269 = vadd.f32 %v6240, %v6268
  %v6270 = vpop.f32.mrf.mxu0
  %v6271 = vadd.f32 %v6242, %v6270
  %6272 = vmatmul.bf16.gmra.mxu0 %v1013
  %v6273 = vpop.f32.mrf.mxu0
  %v6274 = vadd.f32 %v6245, %v6273
  %v6275 = vpop.f32.mrf.mxu0
  %v6276 = vadd.f32 %v6247, %v6275
  %6277 = vdwg.mxu0
  %6278 = vmatpush.bf16.msra.mxu0 %v3491
  %6279 = vmatpush.bf16.msra.mxu0 %v3487
  %6280 = vmatpush.bf16.msra.mxu0 %v3483
  %6281 = vmatpush.bf16.msra.mxu0 %v3479
  %6282 = vmatpush.bf16.msra.mxu0 %v3475
  %6283 = vmatpush.bf16.msra.mxu0 %v3471
  %6284 = vmatpush.bf16.msra.mxu0 %v3467
  %6285 = vmatpush.bf16.msra.mxu0 %v3463
  %6286 = vmatmul.bf16.gmra.mxu0 %v957
  %v6287 = vpop.f32.mrf.mxu0
  %v6288 = vadd.f32 %v6259, %v6287
  %v6289 = vpop.f32.mrf.mxu0
  %v6290 = vadd.f32 %v6261, %v6289
  %6291 = vmatmul.bf16.gmra.mxu0 %v976
  %v6292 = vpop.f32.mrf.mxu0
  %v6293 = vadd.f32 %v6264, %v6292
  %v6294 = vpop.f32.mrf.mxu0
  %v6295 = vadd.f32 %v6266, %v6294
  %6296 = vmatmul.bf16.gmra.mxu0 %v995
  %v6297 = vpop.f32.mrf.mxu0
  %v6298 = vadd.f32 %v6269, %v6297
  %v6299 = vpop.f32.mrf.mxu0
  %v6300 = vadd.f32 %v6271, %v6299
  %6301 = vmatmul.bf16.gmra.mxu0 %v1014
  %v6302 = vpop.f32.mrf.mxu0
  %v6303 = vadd.f32 %v6274, %v6302
  %v6304 = vpop.f32.mrf.mxu0
  %v6305 = vadd.f32 %v6276, %v6304
  %6306 = vdwg.mxu0
  %6307 = vmatpush.bf16.msra.mxu0 %v3523
  %6308 = vmatpush.bf16.msra.mxu0 %v3519
  %6309 = vmatpush.bf16.msra.mxu0 %v3515
  %6310 = vmatpush.bf16.msra.mxu0 %v3511
  %6311 = vmatpush.bf16.msra.mxu0 %v3507
  %6312 = vmatpush.bf16.msra.mxu0 %v3503
  %6313 = vmatpush.bf16.msra.mxu0 %v3499
  %6314 = vmatpush.bf16.msra.mxu0 %v3495
  %6315 = vmatmul.bf16.gmra.mxu0 %v958
  %v6316 = vpop.f32.mrf.mxu0
  %v6317 = vadd.f32 %v6288, %v6316
  %v6318 = vpop.f32.mrf.mxu0
  %v6319 = vadd.f32 %v6290, %v6318
  %6320 = vmatmul.bf16.gmra.mxu0 %v977
  %v6321 = vpop.f32.mrf.mxu0
  %v6322 = vadd.f32 %v6293, %v6321
  %v6323 = vpop.f32.mrf.mxu0
  %v6324 = vadd.f32 %v6295, %v6323
  %6325 = vmatmul.bf16.gmra.mxu0 %v996
  %v6326 = vpop.f32.mrf.mxu0
  %v6327 = vadd.f32 %v6298, %v6326
  %v6328 = vpop.f32.mrf.mxu0
  %v6329 = vadd.f32 %v6300, %v6328
  %6330 = vmatmul.bf16.gmra.mxu0 %v1015
  %v6331 = vpop.f32.mrf.mxu0
  %v6332 = vadd.f32 %v6303, %v6331
  %v6333 = vpop.f32.mrf.mxu0
  %v6334 = vadd.f32 %v6305, %v6333
  %6335 = vdwg.mxu0
  %v6336 = vadd.f32 %v4664, 0.0
  %v6337 = vadd.f32 %v5215, 0.0
  %v6338 = vadd.f32 %v5766, 0.0
  %v6339 = vadd.f32 %v6317, 0.0
  %v6340 = vadd.f32 %v6336, 0.0
  %v6341 = vadd.f32 %v6337, 0.0
  %v6342 = vadd.f32 %v6338, 0.0
  %v6343 = vadd.f32 %v6339, 0.0
  %vm6344 = vcmp.ge.f32.partialorder %v6340, 1.25
  %vm6345 = vcmp.ge.f32.partialorder %v6341, 1.25
  %vm6346 = vcmp.ge.f32.partialorder %v6342, 1.25
  %vm6347 = vcmp.ge.f32.partialorder %v6343, 1.25
  %v6348 = vsel %vm6344, 1, 0
  %v6349 = vsel %vm6345, 1, 0
  %v6350 = vsel %vm6346, 1, 0
  %v6351 = vsel %vm6347, 1, 0
  %v6352 = vcvt.s32.f32 %v6348
  %v6353 = vcvt.s32.f32 %v6349
  %v6354 = vcvt.s32.f32 %v6350
  %v6355 = vcvt.s32.f32 %v6351
  %v6356 = vsub.f32 1.0, %v6352
  %v6357 = vsub.f32 1.0, %v6353
  %v6358 = vsub.f32 1.0, %v6354
  %v6359 = vsub.f32 1.0, %v6355
  %v6360 = vmul.f32 %v6340, %v6356
  %v6361 = vmul.f32 %v6341, %v6357
  %v6362 = vmul.f32 %v6342, %v6358
  %v6363 = vmul.f32 %v6343, %v6359
  %v6364 = vmul.f32 %v6336, 0.75
  %v6365 = vmul.f32 %v6337, 0.75
  %v6366 = vmul.f32 %v6338, 0.75
  %v6367 = vmul.f32 %v6339, 0.75
  %v6368 = vadd.f32 %v6364, %v4666
  %v6369 = vadd.f32 %v6365, %v5217
  %v6370 = vadd.f32 %v6366, %v5768
  %v6371 = vadd.f32 %v6367, %v6319
  %v6372 = vmul.f32 %v6360, 0.97
  %v6373 = vmul.f32 %v6361, 0.97
  %v6374 = vmul.f32 %v6362, 0.97
  %v6375 = vmul.f32 %v6363, 0.97
  %v6376 = vadd.f32 %v6372, %v6368
  %v6377 = vadd.f32 %v6373, %v6369
  %v6378 = vadd.f32 %v6374, %v6370
  %v6379 = vadd.f32 %v6375, %v6371
  %vm6380 = vcmp.ge.f32.partialorder %v6376, 1.25
  %vm6381 = vcmp.ge.f32.partialorder %v6377, 1.25
  %vm6382 = vcmp.ge.f32.partialorder %v6378, 1.25
  %vm6383 = vcmp.ge.f32.partialorder %v6379, 1.25
  %v6384 = vsel %vm6380, 1, 0
  %v6385 = vsel %vm6381, 1, 0
  %v6386 = vsel %vm6382, 1, 0
  %v6387 = vsel %vm6383, 1, 0
  %v6388 = vcvt.s32.f32 %v6384
  %v6389 = vcvt.s32.f32 %v6385
  %v6390 = vcvt.s32.f32 %v6386
  %v6391 = vcvt.s32.f32 %v6387
  %v6392 = vsub.f32 1.0, %v6388
  %v6393 = vsub.f32 1.0, %v6389
  %v6394 = vsub.f32 1.0, %v6390
  %v6395 = vsub.f32 1.0, %v6391
  %v6396 = vmul.f32 %v6376, %v6392
  %v6397 = vmul.f32 %v6377, %v6393
  %v6398 = vmul.f32 %v6378, %v6394
  %v6399 = vmul.f32 %v6379, %v6395
  %v6400 = vmul.f32 %v6368, 0.75
  %v6401 = vmul.f32 %v6369, 0.75
  %v6402 = vmul.f32 %v6370, 0.75
  %v6403 = vmul.f32 %v6371, 0.75
  %v6404 = vadd.f32 %v6400, %v4669
  %v6405 = vadd.f32 %v6401, %v5220
  %v6406 = vadd.f32 %v6402, %v5771
  %v6407 = vadd.f32 %v6403, %v6322
  %v6408 = vmul.f32 %v6396, 0.97
  %v6409 = vmul.f32 %v6397, 0.97
  %v6410 = vmul.f32 %v6398, 0.97
  %v6411 = vmul.f32 %v6399, 0.97
  %v6412 = vadd.f32 %v6408, %v6404
  %v6413 = vadd.f32 %v6409, %v6405
  %v6414 = vadd.f32 %v6410, %v6406
  %v6415 = vadd.f32 %v6411, %v6407
  %vm6416 = vcmp.ge.f32.partialorder %v6412, 1.25
  %vm6417 = vcmp.ge.f32.partialorder %v6413, 1.25
  %vm6418 = vcmp.ge.f32.partialorder %v6414, 1.25
  %vm6419 = vcmp.ge.f32.partialorder %v6415, 1.25
  %v6420 = vsel %vm6416, 1, 0
  %v6421 = vsel %vm6417, 1, 0
  %v6422 = vsel %vm6418, 1, 0
  %v6423 = vsel %vm6419, 1, 0
  %v6424 = vcvt.s32.f32 %v6420
  %v6425 = vcvt.s32.f32 %v6421
  %v6426 = vcvt.s32.f32 %v6422
  %v6427 = vcvt.s32.f32 %v6423
  %v6428 = vsub.f32 1.0, %v6424
  %v6429 = vsub.f32 1.0, %v6425
  %v6430 = vsub.f32 1.0, %v6426
  %v6431 = vsub.f32 1.0, %v6427
  %v6432 = vmul.f32 %v6412, %v6428
  %v6433 = vmul.f32 %v6413, %v6429
  %v6434 = vmul.f32 %v6414, %v6430
  %v6435 = vmul.f32 %v6415, %v6431
  %v6436 = vmul.f32 %v6404, 0.75
  %v6437 = vmul.f32 %v6405, 0.75
  %v6438 = vmul.f32 %v6406, 0.75
  %v6439 = vmul.f32 %v6407, 0.75
  %v6440 = vadd.f32 %v6436, %v4671
  %v6441 = vadd.f32 %v6437, %v5222
  %v6442 = vadd.f32 %v6438, %v5773
  %v6443 = vadd.f32 %v6439, %v6324
  %v6444 = vmul.f32 %v6432, 0.97
  %v6445 = vmul.f32 %v6433, 0.97
  %v6446 = vmul.f32 %v6434, 0.97
  %v6447 = vmul.f32 %v6435, 0.97
  %v6448 = vadd.f32 %v6444, %v6440
  %v6449 = vadd.f32 %v6445, %v6441
  %v6450 = vadd.f32 %v6446, %v6442
  %v6451 = vadd.f32 %v6447, %v6443
  %vm6452 = vcmp.ge.f32.partialorder %v6448, 1.25
  %vm6453 = vcmp.ge.f32.partialorder %v6449, 1.25
  %vm6454 = vcmp.ge.f32.partialorder %v6450, 1.25
  %vm6455 = vcmp.ge.f32.partialorder %v6451, 1.25
  %v6456 = vsel %vm6452, 1, 0
  %v6457 = vsel %vm6453, 1, 0
  %v6458 = vsel %vm6454, 1, 0
  %v6459 = vsel %vm6455, 1, 0
  %v6460 = vcvt.s32.f32 %v6456
  %v6461 = vcvt.s32.f32 %v6457
  %v6462 = vcvt.s32.f32 %v6458
  %v6463 = vcvt.s32.f32 %v6459
  %v6464 = vsub.f32 1.0, %v6460
  %v6465 = vsub.f32 1.0, %v6461
  %v6466 = vsub.f32 1.0, %v6462
  %v6467 = vsub.f32 1.0, %v6463
  %v6468 = vmul.f32 %v6448, %v6464
  %v6469 = vmul.f32 %v6449, %v6465
  %v6470 = vmul.f32 %v6450, %v6466
  %v6471 = vmul.f32 %v6451, %v6467
  %v6472 = vmul.f32 %v6440, 0.75
  %v6473 = vmul.f32 %v6441, 0.75
  %v6474 = vmul.f32 %v6442, 0.75
  %v6475 = vmul.f32 %v6443, 0.75
  %v6476 = vadd.f32 %v6472, %v4674
  %v6477 = vadd.f32 %v6473, %v5225
  %v6478 = vadd.f32 %v6474, %v5776
  %v6479 = vadd.f32 %v6475, %v6327
  %v6480 = vmul.f32 %v6468, 0.97
  %v6481 = vmul.f32 %v6469, 0.97
  %v6482 = vmul.f32 %v6470, 0.97
  %v6483 = vmul.f32 %v6471, 0.97
  %v6484 = vadd.f32 %v6480, %v6476
  %v6485 = vadd.f32 %v6481, %v6477
  %v6486 = vadd.f32 %v6482, %v6478
  %v6487 = vadd.f32 %v6483, %v6479
  %vm6488 = vcmp.ge.f32.partialorder %v6484, 1.25
  %vm6489 = vcmp.ge.f32.partialorder %v6485, 1.25
  %vm6490 = vcmp.ge.f32.partialorder %v6486, 1.25
  %vm6491 = vcmp.ge.f32.partialorder %v6487, 1.25
  %v6492 = vsel %vm6488, 1, 0
  %v6493 = vsel %vm6489, 1, 0
  %v6494 = vsel %vm6490, 1, 0
  %v6495 = vsel %vm6491, 1, 0
  %v6496 = vcvt.s32.f32 %v6492
  %v6497 = vcvt.s32.f32 %v6493
  %v6498 = vcvt.s32.f32 %v6494
  %v6499 = vcvt.s32.f32 %v6495
  %v6500 = vsub.f32 1.0, %v6496
  %v6501 = vsub.f32 1.0, %v6497
  %v6502 = vsub.f32 1.0, %v6498
  %v6503 = vsub.f32 1.0, %v6499
  %v6504 = vmul.f32 %v6484, %v6500
  %v6505 = vmul.f32 %v6485, %v6501
  %v6506 = vmul.f32 %v6486, %v6502
  %v6507 = vmul.f32 %v6487, %v6503
  %v6508 = vmul.f32 %v6476, 0.75
  %v6509 = vmul.f32 %v6477, 0.75
  %v6510 = vmul.f32 %v6478, 0.75
  %v6511 = vmul.f32 %v6479, 0.75
  %v6512 = vadd.f32 %v6508, %v4676
  %v6513 = vadd.f32 %v6509, %v5227
  %v6514 = vadd.f32 %v6510, %v5778
  %v6515 = vadd.f32 %v6511, %v6329
  %v6516 = vmul.f32 %v6504, 0.97
  %v6517 = vmul.f32 %v6505, 0.97
  %v6518 = vmul.f32 %v6506, 0.97
  %v6519 = vmul.f32 %v6507, 0.97
  %v6520 = vadd.f32 %v6516, %v6512
  %v6521 = vadd.f32 %v6517, %v6513
  %v6522 = vadd.f32 %v6518, %v6514
  %v6523 = vadd.f32 %v6519, %v6515
  %vm6524 = vcmp.ge.f32.partialorder %v6520, 1.25
  %vm6525 = vcmp.ge.f32.partialorder %v6521, 1.25
  %vm6526 = vcmp.ge.f32.partialorder %v6522, 1.25
  %vm6527 = vcmp.ge.f32.partialorder %v6523, 1.25
  %v6528 = vsel %vm6524, 1, 0
  %v6529 = vsel %vm6525, 1, 0
  %v6530 = vsel %vm6526, 1, 0
  %v6531 = vsel %vm6527, 1, 0
  %v6532 = vcvt.s32.f32 %v6528
  %v6533 = vcvt.s32.f32 %v6529
  %v6534 = vcvt.s32.f32 %v6530
  %v6535 = vcvt.s32.f32 %v6531
  %v6536 = vsub.f32 1.0, %v6532
  %v6537 = vsub.f32 1.0, %v6533
  %v6538 = vsub.f32 1.0, %v6534
  %v6539 = vsub.f32 1.0, %v6535
  %v6540 = vmul.f32 %v6520, %v6536
  %v6541 = vmul.f32 %v6521, %v6537
  %v6542 = vmul.f32 %v6522, %v6538
  %v6543 = vmul.f32 %v6523, %v6539
  %v6544 = vmul.f32 %v6512, 0.75
  %v6545 = vmul.f32 %v6513, 0.75
  %v6546 = vmul.f32 %v6514, 0.75
  %v6547 = vmul.f32 %v6515, 0.75
  %v6548 = vadd.f32 %v6544, %v4679
  %v6549 = vadd.f32 %v6545, %v5230
  %v6550 = vadd.f32 %v6546, %v5781
  %v6551 = vadd.f32 %v6547, %v6332
  %v6552 = vmul.f32 %v6540, 0.97
  %v6553 = vmul.f32 %v6541, 0.97
  %v6554 = vmul.f32 %v6542, 0.97
  %v6555 = vmul.f32 %v6543, 0.97
  %v6556 = vadd.f32 %v6552, %v6548
  %v6557 = vadd.f32 %v6553, %v6549
  %v6558 = vadd.f32 %v6554, %v6550
  %v6559 = vadd.f32 %v6555, %v6551
  %vm6560 = vcmp.ge.f32.partialorder %v6556, 1.25
  %vm6561 = vcmp.ge.f32.partialorder %v6557, 1.25
  %vm6562 = vcmp.ge.f32.partialorder %v6558, 1.25
  %vm6563 = vcmp.ge.f32.partialorder %v6559, 1.25
  %v6564 = vsel %vm6560, 1, 0
  %v6565 = vsel %vm6561, 1, 0
  %v6566 = vsel %vm6562, 1, 0
  %v6567 = vsel %vm6563, 1, 0
  %v6568 = vcvt.s32.f32 %v6564
  %v6569 = vcvt.s32.f32 %v6565
  %v6570 = vcvt.s32.f32 %v6566
  %v6571 = vcvt.s32.f32 %v6567
  %v6572 = vsub.f32 1.0, %v6568
  %v6573 = vsub.f32 1.0, %v6569
  %v6574 = vsub.f32 1.0, %v6570
  %v6575 = vsub.f32 1.0, %v6571
  %v6576 = vmul.f32 %v6556, %v6572
  %v6577 = vmul.f32 %v6557, %v6573
  %v6578 = vmul.f32 %v6558, %v6574
  %v6579 = vmul.f32 %v6559, %v6575
  %v6580 = vmul.f32 %v6548, 0.75
  %v6581 = vmul.f32 %v6549, 0.75
  %v6582 = vmul.f32 %v6550, 0.75
  %v6583 = vmul.f32 %v6551, 0.75
  %v6584 = vadd.f32 %v6580, %v4681
  %v6585 = vadd.f32 %v6581, %v5232
  %v6586 = vadd.f32 %v6582, %v5783
  %v6587 = vadd.f32 %v6583, %v6334
  %v6588 = vmul.f32 %v6576, 0.97
  %v6589 = vmul.f32 %v6577, 0.97
  %v6590 = vmul.f32 %v6578, 0.97
  %v6591 = vmul.f32 %v6579, 0.97
  %v6592 = vadd.f32 %v6588, %v6584
  %v6593 = vadd.f32 %v6589, %v6585
  %v6594 = vadd.f32 %v6590, %v6586
  %v6595 = vadd.f32 %v6591, %v6587
  %vm6596 = vcmp.ge.f32.partialorder %v6592, 1.25
  %vm6597 = vcmp.ge.f32.partialorder %v6593, 1.25
  %vm6598 = vcmp.ge.f32.partialorder %v6594, 1.25
  %vm6599 = vcmp.ge.f32.partialorder %v6595, 1.25
  %v6600 = vsel %vm6596, 1, 0
  %v6601 = vsel %vm6597, 1, 0
  %v6602 = vsel %vm6598, 1, 0
  %v6603 = vsel %vm6599, 1, 0
  %v6604 = vcvt.s32.f32 %v6600
  %v6605 = vcvt.s32.f32 %v6601
  %v6606 = vcvt.s32.f32 %v6602
  %v6607 = vcvt.s32.f32 %v6603
  %v6608 = vpack.c.bf16 %v6388, %v6352
  %v6609 = vpack.c.bf16 %v6389, %v6353
  %v6610 = vpack.c.bf16 %v6390, %v6354
  %v6611 = vpack.c.bf16 %v6391, %v6355
  %v6612 = vpack.c.bf16 %v6460, %v6424
  %v6613 = vpack.c.bf16 %v6461, %v6425
  %v6614 = vpack.c.bf16 %v6462, %v6426
  %v6615 = vpack.c.bf16 %v6463, %v6427
  %v6616 = vpack.c.bf16 %v6532, %v6496
  %v6617 = vpack.c.bf16 %v6533, %v6497
  %v6618 = vpack.c.bf16 %v6534, %v6498
  %v6619 = vpack.c.bf16 %v6535, %v6499
  %v6620 = vpack.c.bf16 %v6604, %v6568
  %v6621 = vpack.c.bf16 %v6605, %v6569
  %v6622 = vpack.c.bf16 %v6606, %v6570
  %v6623 = vpack.c.bf16 %v6607, %v6571
  %v6624 = vld [vmem:[%s2] sm:$0xff]
  %v6625 = vld [vmem:[%s2 + $0x8] sm:$0xff]
  %v6626 = vld [vmem:[%s2 + $0x10] sm:$0xff]
  %v6627 = vld [vmem:[%s2 + $0x18] sm:$0xff]
  %v6628 = vld [vmem:[%s2 + $0x20] sm:$0xff]
  %v6629 = vld [vmem:[%s2 + $0x28] sm:$0xff]
  %v6630 = vld [vmem:[%s2 + $0x30] sm:$0xff]
  %v6631 = vld [vmem:[%s2 + $0x38] sm:$0xff]
  %v6632 = vld [vmem:[%s2 + $0x40] sm:$0xff]
  %v6633 = vld [vmem:[%s2 + $0x48] sm:$0xff]
  %v6634 = vld [vmem:[%s2 + $0x50] sm:$0xff]
  %v6635 = vld [vmem:[%s2 + $0x58] sm:$0xff]
  %v6636 = vld [vmem:[%s2 + $0x60] sm:$0xff]
  %v6637 = vld [vmem:[%s2 + $0x68] sm:$0xff]
  %v6638 = vld [vmem:[%s2 + $0x70] sm:$0xff]
  %v6639 = vld [vmem:[%s2 + $0x78] sm:$0xff]
  %v6640 = vld [vmem:[%s2 + $0x80] sm:$0xff]
  %v6641 = vld [vmem:[%s2 + $0x88] sm:$0xff]
  %v6642 = vld [vmem:[%s2 + $0x90] sm:$0xff]
  %v6643 = vld [vmem:[%s2 + $0x98] sm:$0xff]
  %v6644 = vld [vmem:[%s2 + $0xa0] sm:$0xff]
  %v6645 = vld [vmem:[%s2 + $0xa8] sm:$0xff]
  %v6646 = vld [vmem:[%s2 + $0xb0] sm:$0xff]
  %v6647 = vld [vmem:[%s2 + $0xb8] sm:$0xff]
  %v6648 = vld [vmem:[%s2 + $0xc0] sm:$0xff]
  %v6649 = vld [vmem:[%s2 + $0xc8] sm:$0xff]
  %v6650 = vld [vmem:[%s2 + $0xd0] sm:$0xff]
  %v6651 = vld [vmem:[%s2 + $0xd8] sm:$0xff]
  %v6652 = vld [vmem:[%s2 + $0xe0] sm:$0xff]
  %v6653 = vld [vmem:[%s2 + $0xe8] sm:$0xff]
  %v6654 = vld [vmem:[%s2 + $0xf0] sm:$0xff]
  %v6655 = vld [vmem:[%s2 + $0xf8] sm:$0xff]
  %v6656 = vld [vmem:[%s2 + $0x100] sm:$0xff]
  %v6657 = vld [vmem:[%s2 + $0x108] sm:$0xff]
  %v6658 = vld [vmem:[%s2 + $0x110] sm:$0xff]
  %v6659 = vld [vmem:[%s2 + $0x118] sm:$0xff]
  %v6660 = vld [vmem:[%s2 + $0x120] sm:$0xff]
  %v6661 = vld [vmem:[%s2 + $0x128] sm:$0xff]
  %v6662 = vld [vmem:[%s2 + $0x130] sm:$0xff]
  %v6663 = vld [vmem:[%s2 + $0x138] sm:$0xff]
  %v6664 = vld [vmem:[%s2 + $0x140] sm:$0xff]
  %v6665 = vld [vmem:[%s2 + $0x148] sm:$0xff]
  %v6666 = vld [vmem:[%s2 + $0x150] sm:$0xff]
  %v6667 = vld [vmem:[%s2 + $0x158] sm:$0xff]
  %v6668 = vld [vmem:[%s2 + $0x160] sm:$0xff]
  %v6669 = vld [vmem:[%s2 + $0x168] sm:$0xff]
  %v6670 = vld [vmem:[%s2 + $0x170] sm:$0xff]
  %v6671 = vld [vmem:[%s2 + $0x178] sm:$0xff]
  %v6672 = vld [vmem:[%s2 + $0x180] sm:$0xff]
  %v6673 = vld [vmem:[%s2 + $0x188] sm:$0xff]
  %v6674 = vld [vmem:[%s2 + $0x190] sm:$0xff]
  %v6675 = vld [vmem:[%s2 + $0x198] sm:$0xff]
  %v6676 = vld [vmem:[%s2 + $0x1a0] sm:$0xff]
  %v6677 = vld [vmem:[%s2 + $0x1a8] sm:$0xff]
  %v6678 = vld [vmem:[%s2 + $0x1b0] sm:$0xff]
  %v6679 = vld [vmem:[%s2 + $0x1b8] sm:$0xff]
  %v6680 = vld [vmem:[%s2 + $0x1c0] sm:$0xff]
  %v6681 = vld [vmem:[%s2 + $0x1c8] sm:$0xff]
  %v6682 = vld [vmem:[%s2 + $0x1d0] sm:$0xff]
  %v6683 = vld [vmem:[%s2 + $0x1d8] sm:$0xff]
  %v6684 = vld [vmem:[%s2 + $0x1e0] sm:$0xff]
  %v6685 = vld [vmem:[%s2 + $0x1e8] sm:$0xff]
  %v6686 = vld [vmem:[%s2 + $0x1f0] sm:$0xff]
  %v6687 = vld [vmem:[%s2 + $0x1f8] sm:$0xff]
  %v6688 = vld [vmem:[%s2 + $0x200] sm:$0xff]
  %v6689 = vld [vmem:[%s2 + $0x208] sm:$0xff]
  %v6690 = vld [vmem:[%s2 + $0x210] sm:$0xff]
  %v6691 = vld [vmem:[%s2 + $0x218] sm:$0xff]
  %v6692 = vld [vmem:[%s2 + $0x220] sm:$0xff]
  %v6693 = vld [vmem:[%s2 + $0x228] sm:$0xff]
  %v6694 = vld [vmem:[%s2 + $0x230] sm:$0xff]
  %v6695 = vld [vmem:[%s2 + $0x238] sm:$0xff]
  %v6696 = vld [vmem:[%s2 + $0x240] sm:$0xff]
  %v6697 = vld [vmem:[%s2 + $0x248] sm:$0xff]
  %v6698 = vld [vmem:[%s2 + $0x250] sm:$0xff]
  %v6699 = vld [vmem:[%s2 + $0x258] sm:$0xff]
  %v6700 = vld [vmem:[%s2 + $0x260] sm:$0xff]
  %v6701 = vld [vmem:[%s2 + $0x268] sm:$0xff]
  %v6702 = vld [vmem:[%s2 + $0x270] sm:$0xff]
  %v6703 = vld [vmem:[%s2 + $0x278] sm:$0xff]
  %v6704 = vld [vmem:[%s2 + $0x280] sm:$0xff]
  %v6705 = vld [vmem:[%s2 + $0x288] sm:$0xff]
  %v6706 = vld [vmem:[%s2 + $0x290] sm:$0xff]
  %v6707 = vld [vmem:[%s2 + $0x298] sm:$0xff]
  %v6708 = vld [vmem:[%s2 + $0x2a0] sm:$0xff]
  %v6709 = vld [vmem:[%s2 + $0x2a8] sm:$0xff]
  %v6710 = vld [vmem:[%s2 + $0x2b0] sm:$0xff]
  %v6711 = vld [vmem:[%s2 + $0x2b8] sm:$0xff]
  %v6712 = vld [vmem:[%s2 + $0x2c0] sm:$0xff]
  %v6713 = vld [vmem:[%s2 + $0x2c8] sm:$0xff]
  %v6714 = vld [vmem:[%s2 + $0x2d0] sm:$0xff]
  %v6715 = vld [vmem:[%s2 + $0x2d8] sm:$0xff]
  %v6716 = vld [vmem:[%s2 + $0x2e0] sm:$0xff]
  %v6717 = vld [vmem:[%s2 + $0x2e8] sm:$0xff]
  %v6718 = vld [vmem:[%s2 + $0x2f0] sm:$0xff]
  %v6719 = vld [vmem:[%s2 + $0x2f8] sm:$0xff]
  %v6720 = vld [vmem:[%s2 + $0x300] sm:$0xff]
  %v6721 = vld [vmem:[%s2 + $0x308] sm:$0xff]
  %v6722 = vld [vmem:[%s2 + $0x310] sm:$0xff]
  %v6723 = vld [vmem:[%s2 + $0x318] sm:$0xff]
  %v6724 = vld [vmem:[%s2 + $0x320] sm:$0xff]
  %v6725 = vld [vmem:[%s2 + $0x328] sm:$0xff]
  %v6726 = vld [vmem:[%s2 + $0x330] sm:$0xff]
  %v6727 = vld [vmem:[%s2 + $0x338] sm:$0xff]
  %v6728 = vld [vmem:[%s2 + $0x340] sm:$0xff]
  %v6729 = vld [vmem:[%s2 + $0x348] sm:$0xff]
  %v6730 = vld [vmem:[%s2 + $0x350] sm:$0xff]
  %v6731 = vld [vmem:[%s2 + $0x358] sm:$0xff]
  %v6732 = vld [vmem:[%s2 + $0x360] sm:$0xff]
  %v6733 = vld [vmem:[%s2 + $0x368] sm:$0xff]
  %v6734 = vld [vmem:[%s2 + $0x370] sm:$0xff]
  %v6735 = vld [vmem:[%s2 + $0x378] sm:$0xff]
  %v6736 = vld [vmem:[%s2 + $0x380] sm:$0xff]
  %v6737 = vld [vmem:[%s2 + $0x388] sm:$0xff]
  %v6738 = vld [vmem:[%s2 + $0x390] sm:$0xff]
  %v6739 = vld [vmem:[%s2 + $0x398] sm:$0xff]
  %v6740 = vld [vmem:[%s2 + $0x3a0] sm:$0xff]
  %v6741 = vld [vmem:[%s2 + $0x3a8] sm:$0xff]
  %v6742 = vld [vmem:[%s2 + $0x3b0] sm:$0xff]
  %v6743 = vld [vmem:[%s2 + $0x3b8] sm:$0xff]
  %v6744 = vld [vmem:[%s2 + $0x3c0] sm:$0xff]
  %v6745 = vld [vmem:[%s2 + $0x3c8] sm:$0xff]
  %v6746 = vld [vmem:[%s2 + $0x3d0] sm:$0xff]
  %v6747 = vld [vmem:[%s2 + $0x3d8] sm:$0xff]
  %v6748 = vld [vmem:[%s2 + $0x3e0] sm:$0xff]
  %v6749 = vld [vmem:[%s2 + $0x3e8] sm:$0xff]
  %v6750 = vld [vmem:[%s2 + $0x3f0] sm:$0xff]
  %v6751 = vld [vmem:[%s2 + $0x3f8] sm:$0xff]
  %v6880 = vunpack.c.l.b16 %v6624
  %v6881 = vunpack.c.h.b16 %v6624
  %v6882 = vunpack.c.l.b16 %v6625
  %v6883 = vunpack.c.h.b16 %v6625
  %v6884 = vunpack.c.l.b16 %v6626
  %v6885 = vunpack.c.h.b16 %v6626
  %v6886 = vunpack.c.l.b16 %v6627
  %v6887 = vunpack.c.h.b16 %v6627
  %v6888 = vunpack.c.l.b16 %v6628
  %v6889 = vunpack.c.h.b16 %v6628
  %v6890 = vunpack.c.l.b16 %v6629
  %v6891 = vunpack.c.h.b16 %v6629
  %v6892 = vunpack.c.l.b16 %v6630
  %v6893 = vunpack.c.h.b16 %v6630
  %v6894 = vunpack.c.l.b16 %v6631
  %v6895 = vunpack.c.h.b16 %v6631
  %v6896 = vunpack.c.l.b16 %v6632
  %v6897 = vunpack.c.h.b16 %v6632
  %v6898 = vunpack.c.l.b16 %v6633
  %v6899 = vunpack.c.h.b16 %v6633
  %v6900 = vunpack.c.l.b16 %v6634
  %v6901 = vunpack.c.h.b16 %v6634
  %v6902 = vunpack.c.l.b16 %v6635
  %v6903 = vunpack.c.h.b16 %v6635
  %v6904 = vunpack.c.l.b16 %v6636
  %v6905 = vunpack.c.h.b16 %v6636
  %v6906 = vunpack.c.l.b16 %v6637
  %v6907 = vunpack.c.h.b16 %v6637
  %v6908 = vunpack.c.l.b16 %v6638
  %v6909 = vunpack.c.h.b16 %v6638
  %v6910 = vunpack.c.l.b16 %v6639
  %v6911 = vunpack.c.h.b16 %v6639
  %v6912 = vunpack.c.l.b16 %v6640
  %v6913 = vunpack.c.h.b16 %v6640
  %v6914 = vunpack.c.l.b16 %v6641
  %v6915 = vunpack.c.h.b16 %v6641
  %v6916 = vunpack.c.l.b16 %v6642
  %v6917 = vunpack.c.h.b16 %v6642
  %v6918 = vunpack.c.l.b16 %v6643
  %v6919 = vunpack.c.h.b16 %v6643
  %v6920 = vunpack.c.l.b16 %v6644
  %v6921 = vunpack.c.h.b16 %v6644
  %v6922 = vunpack.c.l.b16 %v6645
  %v6923 = vunpack.c.h.b16 %v6645
  %v6924 = vunpack.c.l.b16 %v6646
  %v6925 = vunpack.c.h.b16 %v6646
  %v6926 = vunpack.c.l.b16 %v6647
  %v6927 = vunpack.c.h.b16 %v6647
  %v6928 = vunpack.c.l.b16 %v6648
  %v6929 = vunpack.c.h.b16 %v6648
  %v6930 = vunpack.c.l.b16 %v6649
  %v6931 = vunpack.c.h.b16 %v6649
  %v6932 = vunpack.c.l.b16 %v6650
  %v6933 = vunpack.c.h.b16 %v6650
  %v6934 = vunpack.c.l.b16 %v6651
  %v6935 = vunpack.c.h.b16 %v6651
  %v6936 = vunpack.c.l.b16 %v6652
  %v6937 = vunpack.c.h.b16 %v6652
  %v6938 = vunpack.c.l.b16 %v6653
  %v6939 = vunpack.c.h.b16 %v6653
  %v6940 = vunpack.c.l.b16 %v6654
  %v6941 = vunpack.c.h.b16 %v6654
  %v6942 = vunpack.c.l.b16 %v6655
  %v6943 = vunpack.c.h.b16 %v6655
  %v6944 = vunpack.c.l.b16 %v6656
  %v6945 = vunpack.c.h.b16 %v6656
  %v6946 = vunpack.c.l.b16 %v6657
  %v6947 = vunpack.c.h.b16 %v6657
  %v6948 = vunpack.c.l.b16 %v6658
  %v6949 = vunpack.c.h.b16 %v6658
  %v6950 = vunpack.c.l.b16 %v6659
  %v6951 = vunpack.c.h.b16 %v6659
  %v6952 = vunpack.c.l.b16 %v6660
  %v6953 = vunpack.c.h.b16 %v6660
  %v6954 = vunpack.c.l.b16 %v6661
  %v6955 = vunpack.c.h.b16 %v6661
  %v6956 = vunpack.c.l.b16 %v6662
  %v6957 = vunpack.c.h.b16 %v6662
  %v6958 = vunpack.c.l.b16 %v6663
  %v6959 = vunpack.c.h.b16 %v6663
  %v6960 = vunpack.c.l.b16 %v6664
  %v6961 = vunpack.c.h.b16 %v6664
  %v6962 = vunpack.c.l.b16 %v6665
  %v6963 = vunpack.c.h.b16 %v6665
  %v6964 = vunpack.c.l.b16 %v6666
  %v6965 = vunpack.c.h.b16 %v6666
  %v6966 = vunpack.c.l.b16 %v6667
  %v6967 = vunpack.c.h.b16 %v6667
  %v6968 = vunpack.c.l.b16 %v6668
  %v6969 = vunpack.c.h.b16 %v6668
  %v6970 = vunpack.c.l.b16 %v6669
  %v6971 = vunpack.c.h.b16 %v6669
  %v6972 = vunpack.c.l.b16 %v6670
  %v6973 = vunpack.c.h.b16 %v6670
  %v6974 = vunpack.c.l.b16 %v6671
  %v6975 = vunpack.c.h.b16 %v6671
  %v6976 = vunpack.c.l.b16 %v6672
  %v6977 = vunpack.c.h.b16 %v6672
  %v6978 = vunpack.c.l.b16 %v6673
  %v6979 = vunpack.c.h.b16 %v6673
  %v6980 = vunpack.c.l.b16 %v6674
  %v6981 = vunpack.c.h.b16 %v6674
  %v6982 = vunpack.c.l.b16 %v6675
  %v6983 = vunpack.c.h.b16 %v6675
  %v6984 = vunpack.c.l.b16 %v6676
  %v6985 = vunpack.c.h.b16 %v6676
  %v6986 = vunpack.c.l.b16 %v6677
  %v6987 = vunpack.c.h.b16 %v6677
  %v6988 = vunpack.c.l.b16 %v6678
  %v6989 = vunpack.c.h.b16 %v6678
  %v6990 = vunpack.c.l.b16 %v6679
  %v6991 = vunpack.c.h.b16 %v6679
  %v6992 = vunpack.c.l.b16 %v6680
  %v6993 = vunpack.c.h.b16 %v6680
  %v6994 = vunpack.c.l.b16 %v6681
  %v6995 = vunpack.c.h.b16 %v6681
  %v6996 = vunpack.c.l.b16 %v6682
  %v6997 = vunpack.c.h.b16 %v6682
  %v6998 = vunpack.c.l.b16 %v6683
  %v6999 = vunpack.c.h.b16 %v6683
  %v7000 = vunpack.c.l.b16 %v6684
  %v7001 = vunpack.c.h.b16 %v6684
  %v7002 = vunpack.c.l.b16 %v6685
  %v7003 = vunpack.c.h.b16 %v6685
  %v7004 = vunpack.c.l.b16 %v6686
  %v7005 = vunpack.c.h.b16 %v6686
  %v7006 = vunpack.c.l.b16 %v6687
  %v7007 = vunpack.c.h.b16 %v6687
  %v7008 = vunpack.c.l.b16 %v6688
  %v7009 = vunpack.c.h.b16 %v6688
  %v7010 = vunpack.c.l.b16 %v6689
  %v7011 = vunpack.c.h.b16 %v6689
  %v7012 = vunpack.c.l.b16 %v6690
  %v7013 = vunpack.c.h.b16 %v6690
  %v7014 = vunpack.c.l.b16 %v6691
  %v7015 = vunpack.c.h.b16 %v6691
  %v7016 = vunpack.c.l.b16 %v6692
  %v7017 = vunpack.c.h.b16 %v6692
  %v7018 = vunpack.c.l.b16 %v6693
  %v7019 = vunpack.c.h.b16 %v6693
  %v7020 = vunpack.c.l.b16 %v6694
  %v7021 = vunpack.c.h.b16 %v6694
  %v7022 = vunpack.c.l.b16 %v6695
  %v7023 = vunpack.c.h.b16 %v6695
  %v7024 = vunpack.c.l.b16 %v6696
  %v7025 = vunpack.c.h.b16 %v6696
  %v7026 = vunpack.c.l.b16 %v6697
  %v7027 = vunpack.c.h.b16 %v6697
  %v7028 = vunpack.c.l.b16 %v6698
  %v7029 = vunpack.c.h.b16 %v6698
  %v7030 = vunpack.c.l.b16 %v6699
  %v7031 = vunpack.c.h.b16 %v6699
  %v7032 = vunpack.c.l.b16 %v6700
  %v7033 = vunpack.c.h.b16 %v6700
  %v7034 = vunpack.c.l.b16 %v6701
  %v7035 = vunpack.c.h.b16 %v6701
  %v7036 = vunpack.c.l.b16 %v6702
  %v7037 = vunpack.c.h.b16 %v6702
  %v7038 = vunpack.c.l.b16 %v6703
  %v7039 = vunpack.c.h.b16 %v6703
  %v7040 = vunpack.c.l.b16 %v6704
  %v7041 = vunpack.c.h.b16 %v6704
  %v7042 = vunpack.c.l.b16 %v6705
  %v7043 = vunpack.c.h.b16 %v6705
  %v7044 = vunpack.c.l.b16 %v6706
  %v7045 = vunpack.c.h.b16 %v6706
  %v7046 = vunpack.c.l.b16 %v6707
  %v7047 = vunpack.c.h.b16 %v6707
  %v7048 = vunpack.c.l.b16 %v6708
  %v7049 = vunpack.c.h.b16 %v6708
  %v7050 = vunpack.c.l.b16 %v6709
  %v7051 = vunpack.c.h.b16 %v6709
  %v7052 = vunpack.c.l.b16 %v6710
  %v7053 = vunpack.c.h.b16 %v6710
  %v7054 = vunpack.c.l.b16 %v6711
  %v7055 = vunpack.c.h.b16 %v6711
  %v7056 = vunpack.c.l.b16 %v6712
  %v7057 = vunpack.c.h.b16 %v6712
  %v7058 = vunpack.c.l.b16 %v6713
  %v7059 = vunpack.c.h.b16 %v6713
  %v7060 = vunpack.c.l.b16 %v6714
  %v7061 = vunpack.c.h.b16 %v6714
  %v7062 = vunpack.c.l.b16 %v6715
  %v7063 = vunpack.c.h.b16 %v6715
  %v7064 = vunpack.c.l.b16 %v6716
  %v7065 = vunpack.c.h.b16 %v6716
  %v7066 = vunpack.c.l.b16 %v6717
  %v7067 = vunpack.c.h.b16 %v6717
  %v7068 = vunpack.c.l.b16 %v6718
  %v7069 = vunpack.c.h.b16 %v6718
  %v7070 = vunpack.c.l.b16 %v6719
  %v7071 = vunpack.c.h.b16 %v6719
  %v7072 = vunpack.c.l.b16 %v6720
  %v7073 = vunpack.c.h.b16 %v6720
  %v7074 = vunpack.c.l.b16 %v6721
  %v7075 = vunpack.c.h.b16 %v6721
  %v7076 = vunpack.c.l.b16 %v6722
  %v7077 = vunpack.c.h.b16 %v6722
  %v7078 = vunpack.c.l.b16 %v6723
  %v7079 = vunpack.c.h.b16 %v6723
  %v7080 = vunpack.c.l.b16 %v6724
  %v7081 = vunpack.c.h.b16 %v6724
  %v7082 = vunpack.c.l.b16 %v6725
  %v7083 = vunpack.c.h.b16 %v6725
  %v7084 = vunpack.c.l.b16 %v6726
  %v7085 = vunpack.c.h.b16 %v6726
  %v7086 = vunpack.c.l.b16 %v6727
  %v7087 = vunpack.c.h.b16 %v6727
  %v7088 = vunpack.c.l.b16 %v6728
  %v7089 = vunpack.c.h.b16 %v6728
  %v7090 = vunpack.c.l.b16 %v6729
  %v7091 = vunpack.c.h.b16 %v6729
  %v7092 = vunpack.c.l.b16 %v6730
  %v7093 = vunpack.c.h.b16 %v6730
  %v7094 = vunpack.c.l.b16 %v6731
  %v7095 = vunpack.c.h.b16 %v6731
  %v7096 = vunpack.c.l.b16 %v6732
  %v7097 = vunpack.c.h.b16 %v6732
  %v7098 = vunpack.c.l.b16 %v6733
  %v7099 = vunpack.c.h.b16 %v6733
  %v7100 = vunpack.c.l.b16 %v6734
  %v7101 = vunpack.c.h.b16 %v6734
  %v7102 = vunpack.c.l.b16 %v6735
  %v7103 = vunpack.c.h.b16 %v6735
  %v7104 = vunpack.c.l.b16 %v6736
  %v7105 = vunpack.c.h.b16 %v6736
  %v7106 = vunpack.c.l.b16 %v6737
  %v7107 = vunpack.c.h.b16 %v6737
  %v7108 = vunpack.c.l.b16 %v6738
  %v7109 = vunpack.c.h.b16 %v6738
  %v7110 = vunpack.c.l.b16 %v6739
  %v7111 = vunpack.c.h.b16 %v6739
  %v7112 = vunpack.c.l.b16 %v6740
  %v7113 = vunpack.c.h.b16 %v6740
  %v7114 = vunpack.c.l.b16 %v6741
  %v7115 = vunpack.c.h.b16 %v6741
  %v7116 = vunpack.c.l.b16 %v6742
  %v7117 = vunpack.c.h.b16 %v6742
  %v7118 = vunpack.c.l.b16 %v6743
  %v7119 = vunpack.c.h.b16 %v6743
  %v7120 = vunpack.c.l.b16 %v6744
  %v7121 = vunpack.c.h.b16 %v6744
  %v7122 = vunpack.c.l.b16 %v6745
  %v7123 = vunpack.c.h.b16 %v6745
  %v7124 = vunpack.c.l.b16 %v6746
  %v7125 = vunpack.c.h.b16 %v6746
  %v7126 = vunpack.c.l.b16 %v6747
  %v7127 = vunpack.c.h.b16 %v6747
  %v7128 = vunpack.c.l.b16 %v6748
  %v7129 = vunpack.c.h.b16 %v6748
  %v7130 = vunpack.c.l.b16 %v6749
  %v7131 = vunpack.c.h.b16 %v6749
  %v7132 = vunpack.c.l.b16 %v6750
  %v7133 = vunpack.c.h.b16 %v6750
  %v7134 = vunpack.c.l.b16 %v6751
  %v7135 = vunpack.c.h.b16 %v6751
  %v7136 = vpack.c.b16 %v6884, %v6880
  %v7137 = vpack.c.b16 %v6885, %v6881
  %v7138 = vpack.c.b16 %v6886, %v6882
  %v7139 = vpack.c.b16 %v6887, %v6883
  %v7140 = vpack.c.b16 %v6892, %v6888
  %v7141 = vpack.c.b16 %v6893, %v6889
  %v7142 = vpack.c.b16 %v6894, %v6890
  %v7143 = vpack.c.b16 %v6895, %v6891
  %v7144 = vpack.c.b16 %v6900, %v6896
  %v7145 = vpack.c.b16 %v6901, %v6897
  %v7146 = vpack.c.b16 %v6902, %v6898
  %v7147 = vpack.c.b16 %v6903, %v6899
  %v7148 = vpack.c.b16 %v6908, %v6904
  %v7149 = vpack.c.b16 %v6909, %v6905
  %v7150 = vpack.c.b16 %v6910, %v6906
  %v7151 = vpack.c.b16 %v6911, %v6907
  %v7152 = vpack.c.b16 %v6916, %v6912
  %v7153 = vpack.c.b16 %v6917, %v6913
  %v7154 = vpack.c.b16 %v6918, %v6914
  %v7155 = vpack.c.b16 %v6919, %v6915
  %v7156 = vpack.c.b16 %v6924, %v6920
  %v7157 = vpack.c.b16 %v6925, %v6921
  %v7158 = vpack.c.b16 %v6926, %v6922
  %v7159 = vpack.c.b16 %v6927, %v6923
  %v7160 = vpack.c.b16 %v6932, %v6928
  %v7161 = vpack.c.b16 %v6933, %v6929
  %v7162 = vpack.c.b16 %v6934, %v6930
  %v7163 = vpack.c.b16 %v6935, %v6931
  %v7164 = vpack.c.b16 %v6940, %v6936
  %v7165 = vpack.c.b16 %v6941, %v6937
  %v7166 = vpack.c.b16 %v6942, %v6938
  %v7167 = vpack.c.b16 %v6943, %v6939
  %v7168 = vpack.c.b16 %v6948, %v6944
  %v7169 = vpack.c.b16 %v6949, %v6945
  %v7170 = vpack.c.b16 %v6950, %v6946
  %v7171 = vpack.c.b16 %v6951, %v6947
  %v7172 = vpack.c.b16 %v6956, %v6952
  %v7173 = vpack.c.b16 %v6957, %v6953
  %v7174 = vpack.c.b16 %v6958, %v6954
  %v7175 = vpack.c.b16 %v6959, %v6955
  %v7176 = vpack.c.b16 %v6964, %v6960
  %v7177 = vpack.c.b16 %v6965, %v6961
  %v7178 = vpack.c.b16 %v6966, %v6962
  %v7179 = vpack.c.b16 %v6967, %v6963
  %v7180 = vpack.c.b16 %v6972, %v6968
  %v7181 = vpack.c.b16 %v6973, %v6969
  %v7182 = vpack.c.b16 %v6974, %v6970
  %v7183 = vpack.c.b16 %v6975, %v6971
  %v7184 = vpack.c.b16 %v6980, %v6976
  %v7185 = vpack.c.b16 %v6981, %v6977
  %v7186 = vpack.c.b16 %v6982, %v6978
  %v7187 = vpack.c.b16 %v6983, %v6979
  %v7188 = vpack.c.b16 %v6988, %v6984
  %v7189 = vpack.c.b16 %v6989, %v6985
  %v7190 = vpack.c.b16 %v6990, %v6986
  %v7191 = vpack.c.b16 %v6991, %v6987
  %v7192 = vpack.c.b16 %v6996, %v6992
  %v7193 = vpack.c.b16 %v6997, %v6993
  %v7194 = vpack.c.b16 %v6998, %v6994
  %v7195 = vpack.c.b16 %v6999, %v6995
  %v7196 = vpack.c.b16 %v7004, %v7000
  %v7197 = vpack.c.b16 %v7005, %v7001
  %v7198 = vpack.c.b16 %v7006, %v7002
  %v7199 = vpack.c.b16 %v7007, %v7003
  %v7200 = vpack.c.b16 %v7012, %v7008
  %v7201 = vpack.c.b16 %v7013, %v7009
  %v7202 = vpack.c.b16 %v7014, %v7010
  %v7203 = vpack.c.b16 %v7015, %v7011
  %v7204 = vpack.c.b16 %v7020, %v7016
  %v7205 = vpack.c.b16 %v7021, %v7017
  %v7206 = vpack.c.b16 %v7022, %v7018
  %v7207 = vpack.c.b16 %v7023, %v7019
  %v7208 = vpack.c.b16 %v7028, %v7024
  %v7209 = vpack.c.b16 %v7029, %v7025
  %v7210 = vpack.c.b16 %v7030, %v7026
  %v7211 = vpack.c.b16 %v7031, %v7027
  %v7212 = vpack.c.b16 %v7036, %v7032
  %v7213 = vpack.c.b16 %v7037, %v7033
  %v7214 = vpack.c.b16 %v7038, %v7034
  %v7215 = vpack.c.b16 %v7039, %v7035
  %v7216 = vpack.c.b16 %v7044, %v7040
  %v7217 = vpack.c.b16 %v7045, %v7041
  %v7218 = vpack.c.b16 %v7046, %v7042
  %v7219 = vpack.c.b16 %v7047, %v7043
  %v7220 = vpack.c.b16 %v7052, %v7048
  %v7221 = vpack.c.b16 %v7053, %v7049
  %v7222 = vpack.c.b16 %v7054, %v7050
  %v7223 = vpack.c.b16 %v7055, %v7051
  %v7224 = vpack.c.b16 %v7060, %v7056
  %v7225 = vpack.c.b16 %v7061, %v7057
  %v7226 = vpack.c.b16 %v7062, %v7058
  %v7227 = vpack.c.b16 %v7063, %v7059
  %v7228 = vpack.c.b16 %v7068, %v7064
  %v7229 = vpack.c.b16 %v7069, %v7065
  %v7230 = vpack.c.b16 %v7070, %v7066
  %v7231 = vpack.c.b16 %v7071, %v7067
  %v7232 = vpack.c.b16 %v7076, %v7072
  %v7233 = vpack.c.b16 %v7077, %v7073
  %v7234 = vpack.c.b16 %v7078, %v7074
  %v7235 = vpack.c.b16 %v7079, %v7075
  %v7236 = vpack.c.b16 %v7084, %v7080
  %v7237 = vpack.c.b16 %v7085, %v7081
  %v7238 = vpack.c.b16 %v7086, %v7082
  %v7239 = vpack.c.b16 %v7087, %v7083
  %v7240 = vpack.c.b16 %v7092, %v7088
  %v7241 = vpack.c.b16 %v7093, %v7089
  %v7242 = vpack.c.b16 %v7094, %v7090
  %v7243 = vpack.c.b16 %v7095, %v7091
  %v7244 = vpack.c.b16 %v7100, %v7096
  %v7245 = vpack.c.b16 %v7101, %v7097
  %v7246 = vpack.c.b16 %v7102, %v7098
  %v7247 = vpack.c.b16 %v7103, %v7099
  %v7248 = vpack.c.b16 %v7108, %v7104
  %v7249 = vpack.c.b16 %v7109, %v7105
  %v7250 = vpack.c.b16 %v7110, %v7106
  %v7251 = vpack.c.b16 %v7111, %v7107
  %v7252 = vpack.c.b16 %v7116, %v7112
  %v7253 = vpack.c.b16 %v7117, %v7113
  %v7254 = vpack.c.b16 %v7118, %v7114
  %v7255 = vpack.c.b16 %v7119, %v7115
  %v7256 = vpack.c.b16 %v7124, %v7120
  %v7257 = vpack.c.b16 %v7125, %v7121
  %v7258 = vpack.c.b16 %v7126, %v7122
  %v7259 = vpack.c.b16 %v7127, %v7123
  %v7260 = vpack.c.b16 %v7132, %v7128
  %v7261 = vpack.c.b16 %v7133, %v7129
  %v7262 = vpack.c.b16 %v7134, %v7130
  %v7263 = vpack.c.b16 %v7135, %v7131
  %7392 = vmatpush.bf16.msra.mxu0 %v7164
  %7393 = vmatpush.bf16.msra.mxu0 %v7160
  %7394 = vmatpush.bf16.msra.mxu0 %v7156
  %7395 = vmatpush.bf16.msra.mxu0 %v7152
  %7396 = vmatpush.bf16.msra.mxu0 %v7148
  %7397 = vmatpush.bf16.msra.mxu0 %v7144
  %7398 = vmatpush.bf16.msra.mxu0 %v7140
  %7399 = vmatpush.bf16.msra.mxu0 %v7136
  %7400 = vmatmul.bf16.gmra.mxu0 %v6608
  %v7401 = vpop.f32.mrf.mxu0
  %v7402 = vadd.f32 0.0, %v7401
  %v7403 = vpop.f32.mrf.mxu0
  %v7404 = vadd.f32 0.0, %v7403
  %7405 = vmatmul.bf16.gmra.mxu0 %v6612
  %v7406 = vpop.f32.mrf.mxu0
  %v7407 = vadd.f32 0.0, %v7406
  %v7408 = vpop.f32.mrf.mxu0
  %v7409 = vadd.f32 0.0, %v7408
  %7410 = vmatmul.bf16.gmra.mxu0 %v6616
  %v7411 = vpop.f32.mrf.mxu0
  %v7412 = vadd.f32 0.0, %v7411
  %v7413 = vpop.f32.mrf.mxu0
  %v7414 = vadd.f32 0.0, %v7413
  %7415 = vmatmul.bf16.gmra.mxu0 %v6620
  %v7416 = vpop.f32.mrf.mxu0
  %v7417 = vadd.f32 0.0, %v7416
  %v7418 = vpop.f32.mrf.mxu0
  %v7419 = vadd.f32 0.0, %v7418
  %7420 = vdwg.mxu0
  %7421 = vmatpush.bf16.msra.mxu0 %v7196
  %7422 = vmatpush.bf16.msra.mxu0 %v7192
  %7423 = vmatpush.bf16.msra.mxu0 %v7188
  %7424 = vmatpush.bf16.msra.mxu0 %v7184
  %7425 = vmatpush.bf16.msra.mxu0 %v7180
  %7426 = vmatpush.bf16.msra.mxu0 %v7176
  %7427 = vmatpush.bf16.msra.mxu0 %v7172
  %7428 = vmatpush.bf16.msra.mxu0 %v7168
  %7429 = vmatmul.bf16.gmra.mxu0 %v6609
  %v7430 = vpop.f32.mrf.mxu0
  %v7431 = vadd.f32 %v7402, %v7430
  %v7432 = vpop.f32.mrf.mxu0
  %v7433 = vadd.f32 %v7404, %v7432
  %7434 = vmatmul.bf16.gmra.mxu0 %v6613
  %v7435 = vpop.f32.mrf.mxu0
  %v7436 = vadd.f32 %v7407, %v7435
  %v7437 = vpop.f32.mrf.mxu0
  %v7438 = vadd.f32 %v7409, %v7437
  %7439 = vmatmul.bf16.gmra.mxu0 %v6617
  %v7440 = vpop.f32.mrf.mxu0
  %v7441 = vadd.f32 %v7412, %v7440
  %v7442 = vpop.f32.mrf.mxu0
  %v7443 = vadd.f32 %v7414, %v7442
  %7444 = vmatmul.bf16.gmra.mxu0 %v6621
  %v7445 = vpop.f32.mrf.mxu0
  %v7446 = vadd.f32 %v7417, %v7445
  %v7447 = vpop.f32.mrf.mxu0
  %v7448 = vadd.f32 %v7419, %v7447
  %7449 = vdwg.mxu0
  %7450 = vmatpush.bf16.msra.mxu0 %v7228
  %7451 = vmatpush.bf16.msra.mxu0 %v7224
  %7452 = vmatpush.bf16.msra.mxu0 %v7220
  %7453 = vmatpush.bf16.msra.mxu0 %v7216
  %7454 = vmatpush.bf16.msra.mxu0 %v7212
  %7455 = vmatpush.bf16.msra.mxu0 %v7208
  %7456 = vmatpush.bf16.msra.mxu0 %v7204
  %7457 = vmatpush.bf16.msra.mxu0 %v7200
  %7458 = vmatmul.bf16.gmra.mxu0 %v6610
  %v7459 = vpop.f32.mrf.mxu0
  %v7460 = vadd.f32 %v7431, %v7459
  %v7461 = vpop.f32.mrf.mxu0
  %v7462 = vadd.f32 %v7433, %v7461
  %7463 = vmatmul.bf16.gmra.mxu0 %v6614
  %v7464 = vpop.f32.mrf.mxu0
  %v7465 = vadd.f32 %v7436, %v7464
  %v7466 = vpop.f32.mrf.mxu0
  %v7467 = vadd.f32 %v7438, %v7466
  %7468 = vmatmul.bf16.gmra.mxu0 %v6618
  %v7469 = vpop.f32.mrf.mxu0
  %v7470 = vadd.f32 %v7441, %v7469
  %v7471 = vpop.f32.mrf.mxu0
  %v7472 = vadd.f32 %v7443, %v7471
  %7473 = vmatmul.bf16.gmra.mxu0 %v6622
  %v7474 = vpop.f32.mrf.mxu0
  %v7475 = vadd.f32 %v7446, %v7474
  %v7476 = vpop.f32.mrf.mxu0
  %v7477 = vadd.f32 %v7448, %v7476
  %7478 = vdwg.mxu0
  %7479 = vmatpush.bf16.msra.mxu0 %v7260
  %7480 = vmatpush.bf16.msra.mxu0 %v7256
  %7481 = vmatpush.bf16.msra.mxu0 %v7252
  %7482 = vmatpush.bf16.msra.mxu0 %v7248
  %7483 = vmatpush.bf16.msra.mxu0 %v7244
  %7484 = vmatpush.bf16.msra.mxu0 %v7240
  %7485 = vmatpush.bf16.msra.mxu0 %v7236
  %7486 = vmatpush.bf16.msra.mxu0 %v7232
  %7487 = vmatmul.bf16.gmra.mxu0 %v6611
  %v7488 = vpop.f32.mrf.mxu0
  %v7489 = vadd.f32 %v7460, %v7488
  %v7490 = vpop.f32.mrf.mxu0
  %v7491 = vadd.f32 %v7462, %v7490
  %7492 = vmatmul.bf16.gmra.mxu0 %v6615
  %v7493 = vpop.f32.mrf.mxu0
  %v7494 = vadd.f32 %v7465, %v7493
  %v7495 = vpop.f32.mrf.mxu0
  %v7496 = vadd.f32 %v7467, %v7495
  %7497 = vmatmul.bf16.gmra.mxu0 %v6619
  %v7498 = vpop.f32.mrf.mxu0
  %v7499 = vadd.f32 %v7470, %v7498
  %v7500 = vpop.f32.mrf.mxu0
  %v7501 = vadd.f32 %v7472, %v7500
  %7502 = vmatmul.bf16.gmra.mxu0 %v6623
  %v7503 = vpop.f32.mrf.mxu0
  %v7504 = vadd.f32 %v7475, %v7503
  %v7505 = vpop.f32.mrf.mxu0
  %v7506 = vadd.f32 %v7477, %v7505
  %7507 = vdwg.mxu0
  %7508 = vmatpush.bf16.msra.mxu0 %v7165
  %7509 = vmatpush.bf16.msra.mxu0 %v7161
  %7510 = vmatpush.bf16.msra.mxu0 %v7157
  %7511 = vmatpush.bf16.msra.mxu0 %v7153
  %7512 = vmatpush.bf16.msra.mxu0 %v7149
  %7513 = vmatpush.bf16.msra.mxu0 %v7145
  %7514 = vmatpush.bf16.msra.mxu0 %v7141
  %7515 = vmatpush.bf16.msra.mxu0 %v7137
  %7516 = vmatmul.bf16.gmra.mxu0 %v6608
  %v7517 = vpop.f32.mrf.mxu0
  %v7518 = vadd.f32 0.0, %v7517
  %v7519 = vpop.f32.mrf.mxu0
  %v7520 = vadd.f32 0.0, %v7519
  %7521 = vmatmul.bf16.gmra.mxu0 %v6612
  %v7522 = vpop.f32.mrf.mxu0
  %v7523 = vadd.f32 0.0, %v7522
  %v7524 = vpop.f32.mrf.mxu0
  %v7525 = vadd.f32 0.0, %v7524
  %7526 = vmatmul.bf16.gmra.mxu0 %v6616
  %v7527 = vpop.f32.mrf.mxu0
  %v7528 = vadd.f32 0.0, %v7527
  %v7529 = vpop.f32.mrf.mxu0
  %v7530 = vadd.f32 0.0, %v7529
  %7531 = vmatmul.bf16.gmra.mxu0 %v6620
  %v7532 = vpop.f32.mrf.mxu0
  %v7533 = vadd.f32 0.0, %v7532
  %v7534 = vpop.f32.mrf.mxu0
  %v7535 = vadd.f32 0.0, %v7534
  %7536 = vdwg.mxu0
  %7537 = vmatpush.bf16.msra.mxu0 %v7197
  %7538 = vmatpush.bf16.msra.mxu0 %v7193
  %7539 = vmatpush.bf16.msra.mxu0 %v7189
  %7540 = vmatpush.bf16.msra.mxu0 %v7185
  %7541 = vmatpush.bf16.msra.mxu0 %v7181
  %7542 = vmatpush.bf16.msra.mxu0 %v7177
  %7543 = vmatpush.bf16.msra.mxu0 %v7173
  %7544 = vmatpush.bf16.msra.mxu0 %v7169
  %7545 = vmatmul.bf16.gmra.mxu0 %v6609
  %v7546 = vpop.f32.mrf.mxu0
  %v7547 = vadd.f32 %v7518, %v7546
  %v7548 = vpop.f32.mrf.mxu0
  %v7549 = vadd.f32 %v7520, %v7548
  %7550 = vmatmul.bf16.gmra.mxu0 %v6613
  %v7551 = vpop.f32.mrf.mxu0
  %v7552 = vadd.f32 %v7523, %v7551
  %v7553 = vpop.f32.mrf.mxu0
  %v7554 = vadd.f32 %v7525, %v7553
  %7555 = vmatmul.bf16.gmra.mxu0 %v6617
  %v7556 = vpop.f32.mrf.mxu0
  %v7557 = vadd.f32 %v7528, %v7556
  %v7558 = vpop.f32.mrf.mxu0
  %v7559 = vadd.f32 %v7530, %v7558
  %7560 = vmatmul.bf16.gmra.mxu0 %v6621
  %v7561 = vpop.f32.mrf.mxu0
  %v7562 = vadd.f32 %v7533, %v7561
  %v7563 = vpop.f32.mrf.mxu0
  %v7564 = vadd.f32 %v7535, %v7563
  %7565 = vdwg.mxu0
  %7566 = vmatpush.bf16.msra.mxu0 %v7229
  %7567 = vmatpush.bf16.msra.mxu0 %v7225
  %7568 = vmatpush.bf16.msra.mxu0 %v7221
  %7569 = vmatpush.bf16.msra.mxu0 %v7217
  %7570 = vmatpush.bf16.msra.mxu0 %v7213
  %7571 = vmatpush.bf16.msra.mxu0 %v7209
  %7572 = vmatpush.bf16.msra.mxu0 %v7205
  %7573 = vmatpush.bf16.msra.mxu0 %v7201
  %7574 = vmatmul.bf16.gmra.mxu0 %v6610
  %v7575 = vpop.f32.mrf.mxu0
  %v7576 = vadd.f32 %v7547, %v7575
  %v7577 = vpop.f32.mrf.mxu0
  %v7578 = vadd.f32 %v7549, %v7577
  %7579 = vmatmul.bf16.gmra.mxu0 %v6614
  %v7580 = vpop.f32.mrf.mxu0
  %v7581 = vadd.f32 %v7552, %v7580
  %v7582 = vpop.f32.mrf.mxu0
  %v7583 = vadd.f32 %v7554, %v7582
  %7584 = vmatmul.bf16.gmra.mxu0 %v6618
  %v7585 = vpop.f32.mrf.mxu0
  %v7586 = vadd.f32 %v7557, %v7585
  %v7587 = vpop.f32.mrf.mxu0
  %v7588 = vadd.f32 %v7559, %v7587
  %7589 = vmatmul.bf16.gmra.mxu0 %v6622
  %v7590 = vpop.f32.mrf.mxu0
  %v7591 = vadd.f32 %v7562, %v7590
  %v7592 = vpop.f32.mrf.mxu0
  %v7593 = vadd.f32 %v7564, %v7592
  %7594 = vdwg.mxu0
  %7595 = vmatpush.bf16.msra.mxu0 %v7261
  %7596 = vmatpush.bf16.msra.mxu0 %v7257
  %7597 = vmatpush.bf16.msra.mxu0 %v7253
  %7598 = vmatpush.bf16.msra.mxu0 %v7249
  %7599 = vmatpush.bf16.msra.mxu0 %v7245
  %7600 = vmatpush.bf16.msra.mxu0 %v7241
  %7601 = vmatpush.bf16.msra.mxu0 %v7237
  %7602 = vmatpush.bf16.msra.mxu0 %v7233
  %7603 = vmatmul.bf16.gmra.mxu0 %v6611
  %v7604 = vpop.f32.mrf.mxu0
  %v7605 = vadd.f32 %v7576, %v7604
  %v7606 = vpop.f32.mrf.mxu0
  %v7607 = vadd.f32 %v7578, %v7606
  %7608 = vmatmul.bf16.gmra.mxu0 %v6615
  %v7609 = vpop.f32.mrf.mxu0
  %v7610 = vadd.f32 %v7581, %v7609
  %v7611 = vpop.f32.mrf.mxu0
  %v7612 = vadd.f32 %v7583, %v7611
  %7613 = vmatmul.bf16.gmra.mxu0 %v6619
  %v7614 = vpop.f32.mrf.mxu0
  %v7615 = vadd.f32 %v7586, %v7614
  %v7616 = vpop.f32.mrf.mxu0
  %v7617 = vadd.f32 %v7588, %v7616
  %7618 = vmatmul.bf16.gmra.mxu0 %v6623
  %v7619 = vpop.f32.mrf.mxu0
  %v7620 = vadd.f32 %v7591, %v7619
  %v7621 = vpop.f32.mrf.mxu0
  %v7622 = vadd.f32 %v7593, %v7621
  %7623 = vdwg.mxu0
  %7624 = vmatpush.bf16.msra.mxu0 %v7166
  %7625 = vmatpush.bf16.msra.mxu0 %v7162
  %7626 = vmatpush.bf16.msra.mxu0 %v7158
  %7627 = vmatpush.bf16.msra.mxu0 %v7154
  %7628 = vmatpush.bf16.msra.mxu0 %v7150
  %7629 = vmatpush.bf16.msra.mxu0 %v7146
  %7630 = vmatpush.bf16.msra.mxu0 %v7142
  %7631 = vmatpush.bf16.msra.mxu0 %v7138
  %7632 = vmatmul.bf16.gmra.mxu0 %v6608
  %v7633 = vpop.f32.mrf.mxu0
  %v7634 = vadd.f32 0.0, %v7633
  %v7635 = vpop.f32.mrf.mxu0
  %v7636 = vadd.f32 0.0, %v7635
  %7637 = vmatmul.bf16.gmra.mxu0 %v6612
  %v7638 = vpop.f32.mrf.mxu0
  %v7639 = vadd.f32 0.0, %v7638
  %v7640 = vpop.f32.mrf.mxu0
  %v7641 = vadd.f32 0.0, %v7640
  %7642 = vmatmul.bf16.gmra.mxu0 %v6616
  %v7643 = vpop.f32.mrf.mxu0
  %v7644 = vadd.f32 0.0, %v7643
  %v7645 = vpop.f32.mrf.mxu0
  %v7646 = vadd.f32 0.0, %v7645
  %7647 = vmatmul.bf16.gmra.mxu0 %v6620
  %v7648 = vpop.f32.mrf.mxu0
  %v7649 = vadd.f32 0.0, %v7648
  %v7650 = vpop.f32.mrf.mxu0
  %v7651 = vadd.f32 0.0, %v7650
  %7652 = vdwg.mxu0
  %7653 = vmatpush.bf16.msra.mxu0 %v7198
  %7654 = vmatpush.bf16.msra.mxu0 %v7194
  %7655 = vmatpush.bf16.msra.mxu0 %v7190
  %7656 = vmatpush.bf16.msra.mxu0 %v7186
  %7657 = vmatpush.bf16.msra.mxu0 %v7182
  %7658 = vmatpush.bf16.msra.mxu0 %v7178
  %7659 = vmatpush.bf16.msra.mxu0 %v7174
  %7660 = vmatpush.bf16.msra.mxu0 %v7170
  %7661 = vmatmul.bf16.gmra.mxu0 %v6609
  %v7662 = vpop.f32.mrf.mxu0
  %v7663 = vadd.f32 %v7634, %v7662
  %v7664 = vpop.f32.mrf.mxu0
  %v7665 = vadd.f32 %v7636, %v7664
  %7666 = vmatmul.bf16.gmra.mxu0 %v6613
  %v7667 = vpop.f32.mrf.mxu0
  %v7668 = vadd.f32 %v7639, %v7667
  %v7669 = vpop.f32.mrf.mxu0
  %v7670 = vadd.f32 %v7641, %v7669
  %7671 = vmatmul.bf16.gmra.mxu0 %v6617
  %v7672 = vpop.f32.mrf.mxu0
  %v7673 = vadd.f32 %v7644, %v7672
  %v7674 = vpop.f32.mrf.mxu0
  %v7675 = vadd.f32 %v7646, %v7674
  %7676 = vmatmul.bf16.gmra.mxu0 %v6621
  %v7677 = vpop.f32.mrf.mxu0
  %v7678 = vadd.f32 %v7649, %v7677
  %v7679 = vpop.f32.mrf.mxu0
  %v7680 = vadd.f32 %v7651, %v7679
  %7681 = vdwg.mxu0
  %7682 = vmatpush.bf16.msra.mxu0 %v7230
  %7683 = vmatpush.bf16.msra.mxu0 %v7226
  %7684 = vmatpush.bf16.msra.mxu0 %v7222
  %7685 = vmatpush.bf16.msra.mxu0 %v7218
  %7686 = vmatpush.bf16.msra.mxu0 %v7214
  %7687 = vmatpush.bf16.msra.mxu0 %v7210
  %7688 = vmatpush.bf16.msra.mxu0 %v7206
  %7689 = vmatpush.bf16.msra.mxu0 %v7202
  %7690 = vmatmul.bf16.gmra.mxu0 %v6610
  %v7691 = vpop.f32.mrf.mxu0
  %v7692 = vadd.f32 %v7663, %v7691
  %v7693 = vpop.f32.mrf.mxu0
  %v7694 = vadd.f32 %v7665, %v7693
  %7695 = vmatmul.bf16.gmra.mxu0 %v6614
  %v7696 = vpop.f32.mrf.mxu0
  %v7697 = vadd.f32 %v7668, %v7696
  %v7698 = vpop.f32.mrf.mxu0
  %v7699 = vadd.f32 %v7670, %v7698
  %7700 = vmatmul.bf16.gmra.mxu0 %v6618
  %v7701 = vpop.f32.mrf.mxu0
  %v7702 = vadd.f32 %v7673, %v7701
  %v7703 = vpop.f32.mrf.mxu0
  %v7704 = vadd.f32 %v7675, %v7703
  %7705 = vmatmul.bf16.gmra.mxu0 %v6622
  %v7706 = vpop.f32.mrf.mxu0
  %v7707 = vadd.f32 %v7678, %v7706
  %v7708 = vpop.f32.mrf.mxu0
  %v7709 = vadd.f32 %v7680, %v7708
  %7710 = vdwg.mxu0
  %7711 = vmatpush.bf16.msra.mxu0 %v7262
  %7712 = vmatpush.bf16.msra.mxu0 %v7258
  %7713 = vmatpush.bf16.msra.mxu0 %v7254
  %7714 = vmatpush.bf16.msra.mxu0 %v7250
  %7715 = vmatpush.bf16.msra.mxu0 %v7246
  %7716 = vmatpush.bf16.msra.mxu0 %v7242
  %7717 = vmatpush.bf16.msra.mxu0 %v7238
  %7718 = vmatpush.bf16.msra.mxu0 %v7234
  %7719 = vmatmul.bf16.gmra.mxu0 %v6611
  %v7720 = vpop.f32.mrf.mxu0
  %v7721 = vadd.f32 %v7692, %v7720
  %v7722 = vpop.f32.mrf.mxu0
  %v7723 = vadd.f32 %v7694, %v7722
  %7724 = vmatmul.bf16.gmra.mxu0 %v6615
  %v7725 = vpop.f32.mrf.mxu0
  %v7726 = vadd.f32 %v7697, %v7725
  %v7727 = vpop.f32.mrf.mxu0
  %v7728 = vadd.f32 %v7699, %v7727
  %7729 = vmatmul.bf16.gmra.mxu0 %v6619
  %v7730 = vpop.f32.mrf.mxu0
  %v7731 = vadd.f32 %v7702, %v7730
  %v7732 = vpop.f32.mrf.mxu0
  %v7733 = vadd.f32 %v7704, %v7732
  %7734 = vmatmul.bf16.gmra.mxu0 %v6623
  %v7735 = vpop.f32.mrf.mxu0
  %v7736 = vadd.f32 %v7707, %v7735
  %v7737 = vpop.f32.mrf.mxu0
  %v7738 = vadd.f32 %v7709, %v7737
  %7739 = vdwg.mxu0
  %7740 = vmatpush.bf16.msra.mxu0 %v7167
  %7741 = vmatpush.bf16.msra.mxu0 %v7163
  %7742 = vmatpush.bf16.msra.mxu0 %v7159
  %7743 = vmatpush.bf16.msra.mxu0 %v7155
  %7744 = vmatpush.bf16.msra.mxu0 %v7151
  %7745 = vmatpush.bf16.msra.mxu0 %v7147
  %7746 = vmatpush.bf16.msra.mxu0 %v7143
  %7747 = vmatpush.bf16.msra.mxu0 %v7139
  %7748 = vmatmul.bf16.gmra.mxu0 %v6608
  %v7749 = vpop.f32.mrf.mxu0
  %v7750 = vadd.f32 0.0, %v7749
  %v7751 = vpop.f32.mrf.mxu0
  %v7752 = vadd.f32 0.0, %v7751
  %7753 = vmatmul.bf16.gmra.mxu0 %v6612
  %v7754 = vpop.f32.mrf.mxu0
  %v7755 = vadd.f32 0.0, %v7754
  %v7756 = vpop.f32.mrf.mxu0
  %v7757 = vadd.f32 0.0, %v7756
  %7758 = vmatmul.bf16.gmra.mxu0 %v6616
  %v7759 = vpop.f32.mrf.mxu0
  %v7760 = vadd.f32 0.0, %v7759
  %v7761 = vpop.f32.mrf.mxu0
  %v7762 = vadd.f32 0.0, %v7761
  %7763 = vmatmul.bf16.gmra.mxu0 %v6620
  %v7764 = vpop.f32.mrf.mxu0
  %v7765 = vadd.f32 0.0, %v7764
  %v7766 = vpop.f32.mrf.mxu0
  %v7767 = vadd.f32 0.0, %v7766
  %7768 = vdwg.mxu0
  %7769 = vmatpush.bf16.msra.mxu0 %v7199
  %7770 = vmatpush.bf16.msra.mxu0 %v7195
  %7771 = vmatpush.bf16.msra.mxu0 %v7191
  %7772 = vmatpush.bf16.msra.mxu0 %v7187
  %7773 = vmatpush.bf16.msra.mxu0 %v7183
  %7774 = vmatpush.bf16.msra.mxu0 %v7179
  %7775 = vmatpush.bf16.msra.mxu0 %v7175
  %7776 = vmatpush.bf16.msra.mxu0 %v7171
  %7777 = vmatmul.bf16.gmra.mxu0 %v6609
  %v7778 = vpop.f32.mrf.mxu0
  %v7779 = vadd.f32 %v7750, %v7778
  %v7780 = vpop.f32.mrf.mxu0
  %v7781 = vadd.f32 %v7752, %v7780
  %7782 = vmatmul.bf16.gmra.mxu0 %v6613
  %v7783 = vpop.f32.mrf.mxu0
  %v7784 = vadd.f32 %v7755, %v7783
  %v7785 = vpop.f32.mrf.mxu0
  %v7786 = vadd.f32 %v7757, %v7785
  %7787 = vmatmul.bf16.gmra.mxu0 %v6617
  %v7788 = vpop.f32.mrf.mxu0
  %v7789 = vadd.f32 %v7760, %v7788
  %v7790 = vpop.f32.mrf.mxu0
  %v7791 = vadd.f32 %v7762, %v7790
  %7792 = vmatmul.bf16.gmra.mxu0 %v6621
  %v7793 = vpop.f32.mrf.mxu0
  %v7794 = vadd.f32 %v7765, %v7793
  %v7795 = vpop.f32.mrf.mxu0
  %v7796 = vadd.f32 %v7767, %v7795
  %7797 = vdwg.mxu0
  %7798 = vmatpush.bf16.msra.mxu0 %v7231
  %7799 = vmatpush.bf16.msra.mxu0 %v7227
  %7800 = vmatpush.bf16.msra.mxu0 %v7223
  %7801 = vmatpush.bf16.msra.mxu0 %v7219
  %7802 = vmatpush.bf16.msra.mxu0 %v7215
  %7803 = vmatpush.bf16.msra.mxu0 %v7211
  %7804 = vmatpush.bf16.msra.mxu0 %v7207
  %7805 = vmatpush.bf16.msra.mxu0 %v7203
  %7806 = vmatmul.bf16.gmra.mxu0 %v6610
  %v7807 = vpop.f32.mrf.mxu0
  %v7808 = vadd.f32 %v7779, %v7807
  %v7809 = vpop.f32.mrf.mxu0
  %v7810 = vadd.f32 %v7781, %v7809
  %7811 = vmatmul.bf16.gmra.mxu0 %v6614
  %v7812 = vpop.f32.mrf.mxu0
  %v7813 = vadd.f32 %v7784, %v7812
  %v7814 = vpop.f32.mrf.mxu0
  %v7815 = vadd.f32 %v7786, %v7814
  %7816 = vmatmul.bf16.gmra.mxu0 %v6618
  %v7817 = vpop.f32.mrf.mxu0
  %v7818 = vadd.f32 %v7789, %v7817
  %v7819 = vpop.f32.mrf.mxu0
  %v7820 = vadd.f32 %v7791, %v7819
  %7821 = vmatmul.bf16.gmra.mxu0 %v6622
  %v7822 = vpop.f32.mrf.mxu0
  %v7823 = vadd.f32 %v7794, %v7822
  %v7824 = vpop.f32.mrf.mxu0
  %v7825 = vadd.f32 %v7796, %v7824
  %7826 = vdwg.mxu0
  %7827 = vmatpush.bf16.msra.mxu0 %v7263
  %7828 = vmatpush.bf16.msra.mxu0 %v7259
  %7829 = vmatpush.bf16.msra.mxu0 %v7255
  %7830 = vmatpush.bf16.msra.mxu0 %v7251
  %7831 = vmatpush.bf16.msra.mxu0 %v7247
  %7832 = vmatpush.bf16.msra.mxu0 %v7243
  %7833 = vmatpush.bf16.msra.mxu0 %v7239
  %7834 = vmatpush.bf16.msra.mxu0 %v7235
  %7835 = vmatmul.bf16.gmra.mxu0 %v6611
  %v7836 = vpop.f32.mrf.mxu0
  %v7837 = vadd.f32 %v7808, %v7836
  %v7838 = vpop.f32.mrf.mxu0
  %v7839 = vadd.f32 %v7810, %v7838
  %7840 = vmatmul.bf16.gmra.mxu0 %v6615
  %v7841 = vpop.f32.mrf.mxu0
  %v7842 = vadd.f32 %v7813, %v7841
  %v7843 = vpop.f32.mrf.mxu0
  %v7844 = vadd.f32 %v7815, %v7843
  %7845 = vmatmul.bf16.gmra.mxu0 %v6619
  %v7846 = vpop.f32.mrf.mxu0
  %v7847 = vadd.f32 %v7818, %v7846
  %v7848 = vpop.f32.mrf.mxu0
  %v7849 = vadd.f32 %v7820, %v7848
  %7850 = vmatmul.bf16.gmra.mxu0 %v6623
  %v7851 = vpop.f32.mrf.mxu0
  %v7852 = vadd.f32 %v7823, %v7851
  %v7853 = vpop.f32.mrf.mxu0
  %v7854 = vadd.f32 %v7825, %v7853
  %7855 = vdwg.mxu0
  %v7856 = vadd.f32 %v7489, 0.0
  %v7857 = vadd.f32 %v7605, 0.0
  %v7858 = vadd.f32 %v7721, 0.0
  %v7859 = vadd.f32 %v7837, 0.0
  %v7860 = vadd.f32 %v7856, 0.0
  %v7861 = vadd.f32 %v7857, 0.0
  %v7862 = vadd.f32 %v7858, 0.0
  %v7863 = vadd.f32 %v7859, 0.0
  %vm7864 = vcmp.ge.f32.partialorder %v7860, 1.25
  %vm7865 = vcmp.ge.f32.partialorder %v7861, 1.25
  %vm7866 = vcmp.ge.f32.partialorder %v7862, 1.25
  %vm7867 = vcmp.ge.f32.partialorder %v7863, 1.25
  %v7868 = vsel %vm7864, 1, 0
  %v7869 = vsel %vm7865, 1, 0
  %v7870 = vsel %vm7866, 1, 0
  %v7871 = vsel %vm7867, 1, 0
  %v7872 = vcvt.s32.f32 %v7868
  %v7873 = vcvt.s32.f32 %v7869
  %v7874 = vcvt.s32.f32 %v7870
  %v7875 = vcvt.s32.f32 %v7871
  %v7876 = vsub.f32 1.0, %v7872
  %v7877 = vsub.f32 1.0, %v7873
  %v7878 = vsub.f32 1.0, %v7874
  %v7879 = vsub.f32 1.0, %v7875
  %v7880 = vmul.f32 %v7860, %v7876
  %v7881 = vmul.f32 %v7861, %v7877
  %v7882 = vmul.f32 %v7862, %v7878
  %v7883 = vmul.f32 %v7863, %v7879
  %v7884 = vmul.f32 %v7856, 0.75
  %v7885 = vmul.f32 %v7857, 0.75
  %v7886 = vmul.f32 %v7858, 0.75
  %v7887 = vmul.f32 %v7859, 0.75
  %v7888 = vadd.f32 %v7884, %v7491
  %v7889 = vadd.f32 %v7885, %v7607
  %v7890 = vadd.f32 %v7886, %v7723
  %v7891 = vadd.f32 %v7887, %v7839
  %v7892 = vmul.f32 %v7880, 0.97
  %v7893 = vmul.f32 %v7881, 0.97
  %v7894 = vmul.f32 %v7882, 0.97
  %v7895 = vmul.f32 %v7883, 0.97
  %v7896 = vadd.f32 %v7892, %v7888
  %v7897 = vadd.f32 %v7893, %v7889
  %v7898 = vadd.f32 %v7894, %v7890
  %v7899 = vadd.f32 %v7895, %v7891
  %vm7900 = vcmp.ge.f32.partialorder %v7896, 1.25
  %vm7901 = vcmp.ge.f32.partialorder %v7897, 1.25
  %vm7902 = vcmp.ge.f32.partialorder %v7898, 1.25
  %vm7903 = vcmp.ge.f32.partialorder %v7899, 1.25
  %v7904 = vsel %vm7900, 1, 0
  %v7905 = vsel %vm7901, 1, 0
  %v7906 = vsel %vm7902, 1, 0
  %v7907 = vsel %vm7903, 1, 0
  %v7908 = vcvt.s32.f32 %v7904
  %v7909 = vcvt.s32.f32 %v7905
  %v7910 = vcvt.s32.f32 %v7906
  %v7911 = vcvt.s32.f32 %v7907
  %v7912 = vsub.f32 1.0, %v7908
  %v7913 = vsub.f32 1.0, %v7909
  %v7914 = vsub.f32 1.0, %v7910
  %v7915 = vsub.f32 1.0, %v7911
  %v7916 = vmul.f32 %v7896, %v7912
  %v7917 = vmul.f32 %v7897, %v7913
  %v7918 = vmul.f32 %v7898, %v7914
  %v7919 = vmul.f32 %v7899, %v7915
  %v7920 = vmul.f32 %v7888, 0.75
  %v7921 = vmul.f32 %v7889, 0.75
  %v7922 = vmul.f32 %v7890, 0.75
  %v7923 = vmul.f32 %v7891, 0.75
  %v7924 = vadd.f32 %v7920, %v7494
  %v7925 = vadd.f32 %v7921, %v7610
  %v7926 = vadd.f32 %v7922, %v7726
  %v7927 = vadd.f32 %v7923, %v7842
  %v7928 = vmul.f32 %v7916, 0.97
  %v7929 = vmul.f32 %v7917, 0.97
  %v7930 = vmul.f32 %v7918, 0.97
  %v7931 = vmul.f32 %v7919, 0.97
  %v7932 = vadd.f32 %v7928, %v7924
  %v7933 = vadd.f32 %v7929, %v7925
  %v7934 = vadd.f32 %v7930, %v7926
  %v7935 = vadd.f32 %v7931, %v7927
  %vm7936 = vcmp.ge.f32.partialorder %v7932, 1.25
  %vm7937 = vcmp.ge.f32.partialorder %v7933, 1.25
  %vm7938 = vcmp.ge.f32.partialorder %v7934, 1.25
  %vm7939 = vcmp.ge.f32.partialorder %v7935, 1.25
  %v7940 = vsel %vm7936, 1, 0
  %v7941 = vsel %vm7937, 1, 0
  %v7942 = vsel %vm7938, 1, 0
  %v7943 = vsel %vm7939, 1, 0
  %v7944 = vcvt.s32.f32 %v7940
  %v7945 = vcvt.s32.f32 %v7941
  %v7946 = vcvt.s32.f32 %v7942
  %v7947 = vcvt.s32.f32 %v7943
  %v7948 = vsub.f32 1.0, %v7944
  %v7949 = vsub.f32 1.0, %v7945
  %v7950 = vsub.f32 1.0, %v7946
  %v7951 = vsub.f32 1.0, %v7947
  %v7952 = vmul.f32 %v7932, %v7948
  %v7953 = vmul.f32 %v7933, %v7949
  %v7954 = vmul.f32 %v7934, %v7950
  %v7955 = vmul.f32 %v7935, %v7951
  %v7956 = vmul.f32 %v7924, 0.75
  %v7957 = vmul.f32 %v7925, 0.75
  %v7958 = vmul.f32 %v7926, 0.75
  %v7959 = vmul.f32 %v7927, 0.75
  %v7960 = vadd.f32 %v7956, %v7496
  %v7961 = vadd.f32 %v7957, %v7612
  %v7962 = vadd.f32 %v7958, %v7728
  %v7963 = vadd.f32 %v7959, %v7844
  %v7964 = vmul.f32 %v7952, 0.97
  %v7965 = vmul.f32 %v7953, 0.97
  %v7966 = vmul.f32 %v7954, 0.97
  %v7967 = vmul.f32 %v7955, 0.97
  %v7968 = vadd.f32 %v7964, %v7960
  %v7969 = vadd.f32 %v7965, %v7961
  %v7970 = vadd.f32 %v7966, %v7962
  %v7971 = vadd.f32 %v7967, %v7963
  %vm7972 = vcmp.ge.f32.partialorder %v7968, 1.25
  %vm7973 = vcmp.ge.f32.partialorder %v7969, 1.25
  %vm7974 = vcmp.ge.f32.partialorder %v7970, 1.25
  %vm7975 = vcmp.ge.f32.partialorder %v7971, 1.25
  %v7976 = vsel %vm7972, 1, 0
  %v7977 = vsel %vm7973, 1, 0
  %v7978 = vsel %vm7974, 1, 0
  %v7979 = vsel %vm7975, 1, 0
  %v7980 = vcvt.s32.f32 %v7976
  %v7981 = vcvt.s32.f32 %v7977
  %v7982 = vcvt.s32.f32 %v7978
  %v7983 = vcvt.s32.f32 %v7979
  %v7984 = vsub.f32 1.0, %v7980
  %v7985 = vsub.f32 1.0, %v7981
  %v7986 = vsub.f32 1.0, %v7982
  %v7987 = vsub.f32 1.0, %v7983
  %v7988 = vmul.f32 %v7968, %v7984
  %v7989 = vmul.f32 %v7969, %v7985
  %v7990 = vmul.f32 %v7970, %v7986
  %v7991 = vmul.f32 %v7971, %v7987
  %v7992 = vmul.f32 %v7960, 0.75
  %v7993 = vmul.f32 %v7961, 0.75
  %v7994 = vmul.f32 %v7962, 0.75
  %v7995 = vmul.f32 %v7963, 0.75
  %v7996 = vadd.f32 %v7992, %v7499
  %v7997 = vadd.f32 %v7993, %v7615
  %v7998 = vadd.f32 %v7994, %v7731
  %v7999 = vadd.f32 %v7995, %v7847
  %v8000 = vmul.f32 %v7988, 0.97
  %v8001 = vmul.f32 %v7989, 0.97
  %v8002 = vmul.f32 %v7990, 0.97
  %v8003 = vmul.f32 %v7991, 0.97
  %v8004 = vadd.f32 %v8000, %v7996
  %v8005 = vadd.f32 %v8001, %v7997
  %v8006 = vadd.f32 %v8002, %v7998
  %v8007 = vadd.f32 %v8003, %v7999
  %vm8008 = vcmp.ge.f32.partialorder %v8004, 1.25
  %vm8009 = vcmp.ge.f32.partialorder %v8005, 1.25
  %vm8010 = vcmp.ge.f32.partialorder %v8006, 1.25
  %vm8011 = vcmp.ge.f32.partialorder %v8007, 1.25
  %v8012 = vsel %vm8008, 1, 0
  %v8013 = vsel %vm8009, 1, 0
  %v8014 = vsel %vm8010, 1, 0
  %v8015 = vsel %vm8011, 1, 0
  %v8016 = vcvt.s32.f32 %v8012
  %v8017 = vcvt.s32.f32 %v8013
  %v8018 = vcvt.s32.f32 %v8014
  %v8019 = vcvt.s32.f32 %v8015
  %v8020 = vsub.f32 1.0, %v8016
  %v8021 = vsub.f32 1.0, %v8017
  %v8022 = vsub.f32 1.0, %v8018
  %v8023 = vsub.f32 1.0, %v8019
  %v8024 = vmul.f32 %v8004, %v8020
  %v8025 = vmul.f32 %v8005, %v8021
  %v8026 = vmul.f32 %v8006, %v8022
  %v8027 = vmul.f32 %v8007, %v8023
  %v8028 = vmul.f32 %v7996, 0.75
  %v8029 = vmul.f32 %v7997, 0.75
  %v8030 = vmul.f32 %v7998, 0.75
  %v8031 = vmul.f32 %v7999, 0.75
  %v8032 = vadd.f32 %v8028, %v7501
  %v8033 = vadd.f32 %v8029, %v7617
  %v8034 = vadd.f32 %v8030, %v7733
  %v8035 = vadd.f32 %v8031, %v7849
  %v8036 = vmul.f32 %v8024, 0.97
  %v8037 = vmul.f32 %v8025, 0.97
  %v8038 = vmul.f32 %v8026, 0.97
  %v8039 = vmul.f32 %v8027, 0.97
  %v8040 = vadd.f32 %v8036, %v8032
  %v8041 = vadd.f32 %v8037, %v8033
  %v8042 = vadd.f32 %v8038, %v8034
  %v8043 = vadd.f32 %v8039, %v8035
  %vm8044 = vcmp.ge.f32.partialorder %v8040, 1.25
  %vm8045 = vcmp.ge.f32.partialorder %v8041, 1.25
  %vm8046 = vcmp.ge.f32.partialorder %v8042, 1.25
  %vm8047 = vcmp.ge.f32.partialorder %v8043, 1.25
  %v8048 = vsel %vm8044, 1, 0
  %v8049 = vsel %vm8045, 1, 0
  %v8050 = vsel %vm8046, 1, 0
  %v8051 = vsel %vm8047, 1, 0
  %v8052 = vcvt.s32.f32 %v8048
  %v8053 = vcvt.s32.f32 %v8049
  %v8054 = vcvt.s32.f32 %v8050
  %v8055 = vcvt.s32.f32 %v8051
  %v8056 = vsub.f32 1.0, %v8052
  %v8057 = vsub.f32 1.0, %v8053
  %v8058 = vsub.f32 1.0, %v8054
  %v8059 = vsub.f32 1.0, %v8055
  %v8060 = vmul.f32 %v8040, %v8056
  %v8061 = vmul.f32 %v8041, %v8057
  %v8062 = vmul.f32 %v8042, %v8058
  %v8063 = vmul.f32 %v8043, %v8059
  %v8064 = vmul.f32 %v8032, 0.75
  %v8065 = vmul.f32 %v8033, 0.75
  %v8066 = vmul.f32 %v8034, 0.75
  %v8067 = vmul.f32 %v8035, 0.75
  %v8068 = vadd.f32 %v8064, %v7504
  %v8069 = vadd.f32 %v8065, %v7620
  %v8070 = vadd.f32 %v8066, %v7736
  %v8071 = vadd.f32 %v8067, %v7852
  %v8072 = vmul.f32 %v8060, 0.97
  %v8073 = vmul.f32 %v8061, 0.97
  %v8074 = vmul.f32 %v8062, 0.97
  %v8075 = vmul.f32 %v8063, 0.97
  %v8076 = vadd.f32 %v8072, %v8068
  %v8077 = vadd.f32 %v8073, %v8069
  %v8078 = vadd.f32 %v8074, %v8070
  %v8079 = vadd.f32 %v8075, %v8071
  %vm8080 = vcmp.ge.f32.partialorder %v8076, 1.25
  %vm8081 = vcmp.ge.f32.partialorder %v8077, 1.25
  %vm8082 = vcmp.ge.f32.partialorder %v8078, 1.25
  %vm8083 = vcmp.ge.f32.partialorder %v8079, 1.25
  %v8084 = vsel %vm8080, 1, 0
  %v8085 = vsel %vm8081, 1, 0
  %v8086 = vsel %vm8082, 1, 0
  %v8087 = vsel %vm8083, 1, 0
  %v8088 = vcvt.s32.f32 %v8084
  %v8089 = vcvt.s32.f32 %v8085
  %v8090 = vcvt.s32.f32 %v8086
  %v8091 = vcvt.s32.f32 %v8087
  %v8092 = vsub.f32 1.0, %v8088
  %v8093 = vsub.f32 1.0, %v8089
  %v8094 = vsub.f32 1.0, %v8090
  %v8095 = vsub.f32 1.0, %v8091
  %v8096 = vmul.f32 %v8076, %v8092
  %v8097 = vmul.f32 %v8077, %v8093
  %v8098 = vmul.f32 %v8078, %v8094
  %v8099 = vmul.f32 %v8079, %v8095
  %v8100 = vmul.f32 %v8068, 0.75
  %v8101 = vmul.f32 %v8069, 0.75
  %v8102 = vmul.f32 %v8070, 0.75
  %v8103 = vmul.f32 %v8071, 0.75
  %v8104 = vadd.f32 %v8100, %v7506
  %v8105 = vadd.f32 %v8101, %v7622
  %v8106 = vadd.f32 %v8102, %v7738
  %v8107 = vadd.f32 %v8103, %v7854
  %v8108 = vmul.f32 %v8096, 0.97
  %v8109 = vmul.f32 %v8097, 0.97
  %v8110 = vmul.f32 %v8098, 0.97
  %v8111 = vmul.f32 %v8099, 0.97
  %v8112 = vadd.f32 %v8108, %v8104
  %v8113 = vadd.f32 %v8109, %v8105
  %v8114 = vadd.f32 %v8110, %v8106
  %v8115 = vadd.f32 %v8111, %v8107
  %vm8116 = vcmp.ge.f32.partialorder %v8112, 1.25
  %vm8117 = vcmp.ge.f32.partialorder %v8113, 1.25
  %vm8118 = vcmp.ge.f32.partialorder %v8114, 1.25
  %vm8119 = vcmp.ge.f32.partialorder %v8115, 1.25
  %v8120 = vsel %vm8116, 1, 0
  %v8121 = vsel %vm8117, 1, 0
  %v8122 = vsel %vm8118, 1, 0
  %v8123 = vsel %vm8119, 1, 0
  %v8124 = vcvt.s32.f32 %v8120
  %v8125 = vcvt.s32.f32 %v8121
  %v8126 = vcvt.s32.f32 %v8122
  %v8127 = vcvt.s32.f32 %v8123
  %v8128 = vpack.c.bf16 %v7908, %v7872
  %v8129 = vpack.c.bf16 %v7909, %v7873
  %v8130 = vpack.c.bf16 %v7910, %v7874
  %v8131 = vpack.c.bf16 %v7911, %v7875
  %v8132 = vpack.c.bf16 %v7980, %v7944
  %v8133 = vpack.c.bf16 %v7981, %v7945
  %v8134 = vpack.c.bf16 %v7982, %v7946
  %v8135 = vpack.c.bf16 %v7983, %v7947
  %v8136 = vpack.c.bf16 %v8052, %v8016
  %v8137 = vpack.c.bf16 %v8053, %v8017
  %v8138 = vpack.c.bf16 %v8054, %v8018
  %v8139 = vpack.c.bf16 %v8055, %v8019
  %v8140 = vpack.c.bf16 %v8124, %v8088
  %v8141 = vpack.c.bf16 %v8125, %v8089
  %v8142 = vpack.c.bf16 %v8126, %v8090
  %v8143 = vpack.c.bf16 %v8127, %v8091
  %v8144 = vld [vmem:[%s3] sm:$0xff]
  %v8145 = vld [vmem:[%s3 + $0x8] sm:$0xff]
  %v8146 = vld [vmem:[%s3 + $0x10] sm:$0xff]
  %v8147 = vld [vmem:[%s3 + $0x18] sm:$0xff]
  %v8148 = vld [vmem:[%s3 + $0x20] sm:$0xff]
  %v8149 = vld [vmem:[%s3 + $0x28] sm:$0xff]
  %v8150 = vld [vmem:[%s3 + $0x30] sm:$0xff]
  %v8151 = vld [vmem:[%s3 + $0x38] sm:$0xff]
  %v8152 = vld [vmem:[%s3 + $0x40] sm:$0xff]
  %v8153 = vld [vmem:[%s3 + $0x48] sm:$0xff]
  %v8154 = vld [vmem:[%s3 + $0x50] sm:$0xff]
  %v8155 = vld [vmem:[%s3 + $0x58] sm:$0xff]
  %v8156 = vld [vmem:[%s3 + $0x60] sm:$0xff]
  %v8157 = vld [vmem:[%s3 + $0x68] sm:$0xff]
  %v8158 = vld [vmem:[%s3 + $0x70] sm:$0xff]
  %v8159 = vld [vmem:[%s3 + $0x78] sm:$0xff]
  %v8160 = vld [vmem:[%s3 + $0x80] sm:$0xff]
  %v8161 = vld [vmem:[%s3 + $0x88] sm:$0xff]
  %v8162 = vld [vmem:[%s3 + $0x90] sm:$0xff]
  %v8163 = vld [vmem:[%s3 + $0x98] sm:$0xff]
  %v8164 = vld [vmem:[%s3 + $0xa0] sm:$0xff]
  %v8165 = vld [vmem:[%s3 + $0xa8] sm:$0xff]
  %v8166 = vld [vmem:[%s3 + $0xb0] sm:$0xff]
  %v8167 = vld [vmem:[%s3 + $0xb8] sm:$0xff]
  %v8168 = vld [vmem:[%s3 + $0xc0] sm:$0xff]
  %v8169 = vld [vmem:[%s3 + $0xc8] sm:$0xff]
  %v8170 = vld [vmem:[%s3 + $0xd0] sm:$0xff]
  %v8171 = vld [vmem:[%s3 + $0xd8] sm:$0xff]
  %v8172 = vld [vmem:[%s3 + $0xe0] sm:$0xff]
  %v8173 = vld [vmem:[%s3 + $0xe8] sm:$0xff]
  %v8174 = vld [vmem:[%s3 + $0xf0] sm:$0xff]
  %v8175 = vld [vmem:[%s3 + $0xf8] sm:$0xff]
  %v8176 = vld [vmem:[%s3 + $0x100] sm:$0xff]
  %v8177 = vld [vmem:[%s3 + $0x108] sm:$0xff]
  %v8178 = vld [vmem:[%s3 + $0x110] sm:$0xff]
  %v8179 = vld [vmem:[%s3 + $0x118] sm:$0xff]
  %v8180 = vld [vmem:[%s3 + $0x120] sm:$0xff]
  %v8181 = vld [vmem:[%s3 + $0x128] sm:$0xff]
  %v8182 = vld [vmem:[%s3 + $0x130] sm:$0xff]
  %v8183 = vld [vmem:[%s3 + $0x138] sm:$0xff]
  %v8184 = vld [vmem:[%s3 + $0x140] sm:$0xff]
  %v8185 = vld [vmem:[%s3 + $0x148] sm:$0xff]
  %v8186 = vld [vmem:[%s3 + $0x150] sm:$0xff]
  %v8187 = vld [vmem:[%s3 + $0x158] sm:$0xff]
  %v8188 = vld [vmem:[%s3 + $0x160] sm:$0xff]
  %v8189 = vld [vmem:[%s3 + $0x168] sm:$0xff]
  %v8190 = vld [vmem:[%s3 + $0x170] sm:$0xff]
  %v8191 = vld [vmem:[%s3 + $0x178] sm:$0xff]
  %v8192 = vld [vmem:[%s3 + $0x180] sm:$0xff]
  %v8193 = vld [vmem:[%s3 + $0x188] sm:$0xff]
  %v8194 = vld [vmem:[%s3 + $0x190] sm:$0xff]
  %v8195 = vld [vmem:[%s3 + $0x198] sm:$0xff]
  %v8196 = vld [vmem:[%s3 + $0x1a0] sm:$0xff]
  %v8197 = vld [vmem:[%s3 + $0x1a8] sm:$0xff]
  %v8198 = vld [vmem:[%s3 + $0x1b0] sm:$0xff]
  %v8199 = vld [vmem:[%s3 + $0x1b8] sm:$0xff]
  %v8200 = vld [vmem:[%s3 + $0x1c0] sm:$0xff]
  %v8201 = vld [vmem:[%s3 + $0x1c8] sm:$0xff]
  %v8202 = vld [vmem:[%s3 + $0x1d0] sm:$0xff]
  %v8203 = vld [vmem:[%s3 + $0x1d8] sm:$0xff]
  %v8204 = vld [vmem:[%s3 + $0x1e0] sm:$0xff]
  %v8205 = vld [vmem:[%s3 + $0x1e8] sm:$0xff]
  %v8206 = vld [vmem:[%s3 + $0x1f0] sm:$0xff]
  %v8207 = vld [vmem:[%s3 + $0x1f8] sm:$0xff]
  %v8272 = vunpack.c.l.b16 %v8144
  %v8273 = vunpack.c.h.b16 %v8144
  %v8274 = vunpack.c.l.b16 %v8145
  %v8275 = vunpack.c.h.b16 %v8145
  %v8276 = vunpack.c.l.b16 %v8146
  %v8277 = vunpack.c.h.b16 %v8146
  %v8278 = vunpack.c.l.b16 %v8147
  %v8279 = vunpack.c.h.b16 %v8147
  %v8280 = vunpack.c.l.b16 %v8148
  %v8281 = vunpack.c.h.b16 %v8148
  %v8282 = vunpack.c.l.b16 %v8149
  %v8283 = vunpack.c.h.b16 %v8149
  %v8284 = vunpack.c.l.b16 %v8150
  %v8285 = vunpack.c.h.b16 %v8150
  %v8286 = vunpack.c.l.b16 %v8151
  %v8287 = vunpack.c.h.b16 %v8151
  %v8288 = vunpack.c.l.b16 %v8152
  %v8289 = vunpack.c.h.b16 %v8152
  %v8290 = vunpack.c.l.b16 %v8153
  %v8291 = vunpack.c.h.b16 %v8153
  %v8292 = vunpack.c.l.b16 %v8154
  %v8293 = vunpack.c.h.b16 %v8154
  %v8294 = vunpack.c.l.b16 %v8155
  %v8295 = vunpack.c.h.b16 %v8155
  %v8296 = vunpack.c.l.b16 %v8156
  %v8297 = vunpack.c.h.b16 %v8156
  %v8298 = vunpack.c.l.b16 %v8157
  %v8299 = vunpack.c.h.b16 %v8157
  %v8300 = vunpack.c.l.b16 %v8158
  %v8301 = vunpack.c.h.b16 %v8158
  %v8302 = vunpack.c.l.b16 %v8159
  %v8303 = vunpack.c.h.b16 %v8159
  %v8304 = vunpack.c.l.b16 %v8160
  %v8305 = vunpack.c.h.b16 %v8160
  %v8306 = vunpack.c.l.b16 %v8161
  %v8307 = vunpack.c.h.b16 %v8161
  %v8308 = vunpack.c.l.b16 %v8162
  %v8309 = vunpack.c.h.b16 %v8162
  %v8310 = vunpack.c.l.b16 %v8163
  %v8311 = vunpack.c.h.b16 %v8163
  %v8312 = vunpack.c.l.b16 %v8164
  %v8313 = vunpack.c.h.b16 %v8164
  %v8314 = vunpack.c.l.b16 %v8165
  %v8315 = vunpack.c.h.b16 %v8165
  %v8316 = vunpack.c.l.b16 %v8166
  %v8317 = vunpack.c.h.b16 %v8166
  %v8318 = vunpack.c.l.b16 %v8167
  %v8319 = vunpack.c.h.b16 %v8167
  %v8320 = vunpack.c.l.b16 %v8168
  %v8321 = vunpack.c.h.b16 %v8168
  %v8322 = vunpack.c.l.b16 %v8169
  %v8323 = vunpack.c.h.b16 %v8169
  %v8324 = vunpack.c.l.b16 %v8170
  %v8325 = vunpack.c.h.b16 %v8170
  %v8326 = vunpack.c.l.b16 %v8171
  %v8327 = vunpack.c.h.b16 %v8171
  %v8328 = vunpack.c.l.b16 %v8172
  %v8329 = vunpack.c.h.b16 %v8172
  %v8330 = vunpack.c.l.b16 %v8173
  %v8331 = vunpack.c.h.b16 %v8173
  %v8332 = vunpack.c.l.b16 %v8174
  %v8333 = vunpack.c.h.b16 %v8174
  %v8334 = vunpack.c.l.b16 %v8175
  %v8335 = vunpack.c.h.b16 %v8175
  %v8336 = vunpack.c.l.b16 %v8176
  %v8337 = vunpack.c.h.b16 %v8176
  %v8338 = vunpack.c.l.b16 %v8177
  %v8339 = vunpack.c.h.b16 %v8177
  %v8340 = vunpack.c.l.b16 %v8178
  %v8341 = vunpack.c.h.b16 %v8178
  %v8342 = vunpack.c.l.b16 %v8179
  %v8343 = vunpack.c.h.b16 %v8179
  %v8344 = vunpack.c.l.b16 %v8180
  %v8345 = vunpack.c.h.b16 %v8180
  %v8346 = vunpack.c.l.b16 %v8181
  %v8347 = vunpack.c.h.b16 %v8181
  %v8348 = vunpack.c.l.b16 %v8182
  %v8349 = vunpack.c.h.b16 %v8182
  %v8350 = vunpack.c.l.b16 %v8183
  %v8351 = vunpack.c.h.b16 %v8183
  %v8352 = vunpack.c.l.b16 %v8184
  %v8353 = vunpack.c.h.b16 %v8184
  %v8354 = vunpack.c.l.b16 %v8185
  %v8355 = vunpack.c.h.b16 %v8185
  %v8356 = vunpack.c.l.b16 %v8186
  %v8357 = vunpack.c.h.b16 %v8186
  %v8358 = vunpack.c.l.b16 %v8187
  %v8359 = vunpack.c.h.b16 %v8187
  %v8360 = vunpack.c.l.b16 %v8188
  %v8361 = vunpack.c.h.b16 %v8188
  %v8362 = vunpack.c.l.b16 %v8189
  %v8363 = vunpack.c.h.b16 %v8189
  %v8364 = vunpack.c.l.b16 %v8190
  %v8365 = vunpack.c.h.b16 %v8190
  %v8366 = vunpack.c.l.b16 %v8191
  %v8367 = vunpack.c.h.b16 %v8191
  %v8368 = vunpack.c.l.b16 %v8192
  %v8369 = vunpack.c.h.b16 %v8192
  %v8370 = vunpack.c.l.b16 %v8193
  %v8371 = vunpack.c.h.b16 %v8193
  %v8372 = vunpack.c.l.b16 %v8194
  %v8373 = vunpack.c.h.b16 %v8194
  %v8374 = vunpack.c.l.b16 %v8195
  %v8375 = vunpack.c.h.b16 %v8195
  %v8376 = vunpack.c.l.b16 %v8196
  %v8377 = vunpack.c.h.b16 %v8196
  %v8378 = vunpack.c.l.b16 %v8197
  %v8379 = vunpack.c.h.b16 %v8197
  %v8380 = vunpack.c.l.b16 %v8198
  %v8381 = vunpack.c.h.b16 %v8198
  %v8382 = vunpack.c.l.b16 %v8199
  %v8383 = vunpack.c.h.b16 %v8199
  %v8384 = vunpack.c.l.b16 %v8200
  %v8385 = vunpack.c.h.b16 %v8200
  %v8386 = vunpack.c.l.b16 %v8201
  %v8387 = vunpack.c.h.b16 %v8201
  %v8388 = vunpack.c.l.b16 %v8202
  %v8389 = vunpack.c.h.b16 %v8202
  %v8390 = vunpack.c.l.b16 %v8203
  %v8391 = vunpack.c.h.b16 %v8203
  %v8392 = vunpack.c.l.b16 %v8204
  %v8393 = vunpack.c.h.b16 %v8204
  %v8394 = vunpack.c.l.b16 %v8205
  %v8395 = vunpack.c.h.b16 %v8205
  %v8396 = vunpack.c.l.b16 %v8206
  %v8397 = vunpack.c.h.b16 %v8206
  %v8398 = vunpack.c.l.b16 %v8207
  %v8399 = vunpack.c.h.b16 %v8207
  %v8400 = vpack.c.b16 %v8274, %v8272
  %v8401 = vpack.c.b16 %v8275, %v8273
  %v8402 = vpack.c.b16 %v8278, %v8276
  %v8403 = vpack.c.b16 %v8279, %v8277
  %v8404 = vpack.c.b16 %v8282, %v8280
  %v8405 = vpack.c.b16 %v8283, %v8281
  %v8406 = vpack.c.b16 %v8286, %v8284
  %v8407 = vpack.c.b16 %v8287, %v8285
  %v8408 = vpack.c.b16 %v8290, %v8288
  %v8409 = vpack.c.b16 %v8291, %v8289
  %v8410 = vpack.c.b16 %v8294, %v8292
  %v8411 = vpack.c.b16 %v8295, %v8293
  %v8412 = vpack.c.b16 %v8298, %v8296
  %v8413 = vpack.c.b16 %v8299, %v8297
  %v8414 = vpack.c.b16 %v8302, %v8300
  %v8415 = vpack.c.b16 %v8303, %v8301
  %v8416 = vpack.c.b16 %v8306, %v8304
  %v8417 = vpack.c.b16 %v8307, %v8305
  %v8418 = vpack.c.b16 %v8310, %v8308
  %v8419 = vpack.c.b16 %v8311, %v8309
  %v8420 = vpack.c.b16 %v8314, %v8312
  %v8421 = vpack.c.b16 %v8315, %v8313
  %v8422 = vpack.c.b16 %v8318, %v8316
  %v8423 = vpack.c.b16 %v8319, %v8317
  %v8424 = vpack.c.b16 %v8322, %v8320
  %v8425 = vpack.c.b16 %v8323, %v8321
  %v8426 = vpack.c.b16 %v8326, %v8324
  %v8427 = vpack.c.b16 %v8327, %v8325
  %v8428 = vpack.c.b16 %v8330, %v8328
  %v8429 = vpack.c.b16 %v8331, %v8329
  %v8430 = vpack.c.b16 %v8334, %v8332
  %v8431 = vpack.c.b16 %v8335, %v8333
  %v8432 = vpack.c.b16 %v8338, %v8336
  %v8433 = vpack.c.b16 %v8339, %v8337
  %v8434 = vpack.c.b16 %v8342, %v8340
  %v8435 = vpack.c.b16 %v8343, %v8341
  %v8436 = vpack.c.b16 %v8346, %v8344
  %v8437 = vpack.c.b16 %v8347, %v8345
  %v8438 = vpack.c.b16 %v8350, %v8348
  %v8439 = vpack.c.b16 %v8351, %v8349
  %v8440 = vpack.c.b16 %v8354, %v8352
  %v8441 = vpack.c.b16 %v8355, %v8353
  %v8442 = vpack.c.b16 %v8358, %v8356
  %v8443 = vpack.c.b16 %v8359, %v8357
  %v8444 = vpack.c.b16 %v8362, %v8360
  %v8445 = vpack.c.b16 %v8363, %v8361
  %v8446 = vpack.c.b16 %v8366, %v8364
  %v8447 = vpack.c.b16 %v8367, %v8365
  %v8448 = vpack.c.b16 %v8370, %v8368
  %v8449 = vpack.c.b16 %v8371, %v8369
  %v8450 = vpack.c.b16 %v8374, %v8372
  %v8451 = vpack.c.b16 %v8375, %v8373
  %v8452 = vpack.c.b16 %v8378, %v8376
  %v8453 = vpack.c.b16 %v8379, %v8377
  %v8454 = vpack.c.b16 %v8382, %v8380
  %v8455 = vpack.c.b16 %v8383, %v8381
  %v8456 = vpack.c.b16 %v8386, %v8384
  %v8457 = vpack.c.b16 %v8387, %v8385
  %v8458 = vpack.c.b16 %v8390, %v8388
  %v8459 = vpack.c.b16 %v8391, %v8389
  %v8460 = vpack.c.b16 %v8394, %v8392
  %v8461 = vpack.c.b16 %v8395, %v8393
  %v8462 = vpack.c.b16 %v8398, %v8396
  %v8463 = vpack.c.b16 %v8399, %v8397
  %8528 = vmatpush.bf16.msra.mxu0 %v8414
  %8529 = vmatpush.bf16.msra.mxu0 %v8412
  %8530 = vmatpush.bf16.msra.mxu0 %v8410
  %8531 = vmatpush.bf16.msra.mxu0 %v8408
  %8532 = vmatpush.bf16.msra.mxu0 %v8406
  %8533 = vmatpush.bf16.msra.mxu0 %v8404
  %8534 = vmatpush.bf16.msra.mxu0 %v8402
  %8535 = vmatpush.bf16.msra.mxu0 %v8400
  %8536 = vmatmul.bf16.gmra.mxu0 %v8128
  %v8537 = vpop.f32.mrf.mxu0
  %v8538 = vadd.f32 0.0, %v8537
  %v8539 = vpop.f32.mrf.mxu0
  %v8540 = vadd.f32 0.0, %v8539
  %8541 = vmatmul.bf16.gmra.mxu0 %v8132
  %v8542 = vpop.f32.mrf.mxu0
  %v8543 = vadd.f32 0.0, %v8542
  %v8544 = vpop.f32.mrf.mxu0
  %v8545 = vadd.f32 0.0, %v8544
  %8546 = vmatmul.bf16.gmra.mxu0 %v8136
  %v8547 = vpop.f32.mrf.mxu0
  %v8548 = vadd.f32 0.0, %v8547
  %v8549 = vpop.f32.mrf.mxu0
  %v8550 = vadd.f32 0.0, %v8549
  %8551 = vmatmul.bf16.gmra.mxu0 %v8140
  %v8552 = vpop.f32.mrf.mxu0
  %v8553 = vadd.f32 0.0, %v8552
  %v8554 = vpop.f32.mrf.mxu0
  %v8555 = vadd.f32 0.0, %v8554
  %8556 = vdwg.mxu0
  %8557 = vmatpush.bf16.msra.mxu0 %v8430
  %8558 = vmatpush.bf16.msra.mxu0 %v8428
  %8559 = vmatpush.bf16.msra.mxu0 %v8426
  %8560 = vmatpush.bf16.msra.mxu0 %v8424
  %8561 = vmatpush.bf16.msra.mxu0 %v8422
  %8562 = vmatpush.bf16.msra.mxu0 %v8420
  %8563 = vmatpush.bf16.msra.mxu0 %v8418
  %8564 = vmatpush.bf16.msra.mxu0 %v8416
  %8565 = vmatmul.bf16.gmra.mxu0 %v8129
  %v8566 = vpop.f32.mrf.mxu0
  %v8567 = vadd.f32 %v8538, %v8566
  %v8568 = vpop.f32.mrf.mxu0
  %v8569 = vadd.f32 %v8540, %v8568
  %8570 = vmatmul.bf16.gmra.mxu0 %v8133
  %v8571 = vpop.f32.mrf.mxu0
  %v8572 = vadd.f32 %v8543, %v8571
  %v8573 = vpop.f32.mrf.mxu0
  %v8574 = vadd.f32 %v8545, %v8573
  %8575 = vmatmul.bf16.gmra.mxu0 %v8137
  %v8576 = vpop.f32.mrf.mxu0
  %v8577 = vadd.f32 %v8548, %v8576
  %v8578 = vpop.f32.mrf.mxu0
  %v8579 = vadd.f32 %v8550, %v8578
  %8580 = vmatmul.bf16.gmra.mxu0 %v8141
  %v8581 = vpop.f32.mrf.mxu0
  %v8582 = vadd.f32 %v8553, %v8581
  %v8583 = vpop.f32.mrf.mxu0
  %v8584 = vadd.f32 %v8555, %v8583
  %8585 = vdwg.mxu0
  %8586 = vmatpush.bf16.msra.mxu0 %v8446
  %8587 = vmatpush.bf16.msra.mxu0 %v8444
  %8588 = vmatpush.bf16.msra.mxu0 %v8442
  %8589 = vmatpush.bf16.msra.mxu0 %v8440
  %8590 = vmatpush.bf16.msra.mxu0 %v8438
  %8591 = vmatpush.bf16.msra.mxu0 %v8436
  %8592 = vmatpush.bf16.msra.mxu0 %v8434
  %8593 = vmatpush.bf16.msra.mxu0 %v8432
  %8594 = vmatmul.bf16.gmra.mxu0 %v8130
  %v8595 = vpop.f32.mrf.mxu0
  %v8596 = vadd.f32 %v8567, %v8595
  %v8597 = vpop.f32.mrf.mxu0
  %v8598 = vadd.f32 %v8569, %v8597
  %8599 = vmatmul.bf16.gmra.mxu0 %v8134
  %v8600 = vpop.f32.mrf.mxu0
  %v8601 = vadd.f32 %v8572, %v8600
  %v8602 = vpop.f32.mrf.mxu0
  %v8603 = vadd.f32 %v8574, %v8602
  %8604 = vmatmul.bf16.gmra.mxu0 %v8138
  %v8605 = vpop.f32.mrf.mxu0
  %v8606 = vadd.f32 %v8577, %v8605
  %v8607 = vpop.f32.mrf.mxu0
  %v8608 = vadd.f32 %v8579, %v8607
  %8609 = vmatmul.bf16.gmra.mxu0 %v8142
  %v8610 = vpop.f32.mrf.mxu0
  %v8611 = vadd.f32 %v8582, %v8610
  %v8612 = vpop.f32.mrf.mxu0
  %v8613 = vadd.f32 %v8584, %v8612
  %8614 = vdwg.mxu0
  %8615 = vmatpush.bf16.msra.mxu0 %v8462
  %8616 = vmatpush.bf16.msra.mxu0 %v8460
  %8617 = vmatpush.bf16.msra.mxu0 %v8458
  %8618 = vmatpush.bf16.msra.mxu0 %v8456
  %8619 = vmatpush.bf16.msra.mxu0 %v8454
  %8620 = vmatpush.bf16.msra.mxu0 %v8452
  %8621 = vmatpush.bf16.msra.mxu0 %v8450
  %8622 = vmatpush.bf16.msra.mxu0 %v8448
  %8623 = vmatmul.bf16.gmra.mxu0 %v8131
  %v8624 = vpop.f32.mrf.mxu0
  %v8625 = vadd.f32 %v8596, %v8624
  %v8626 = vpop.f32.mrf.mxu0
  %v8627 = vadd.f32 %v8598, %v8626
  %8628 = vmatmul.bf16.gmra.mxu0 %v8135
  %v8629 = vpop.f32.mrf.mxu0
  %v8630 = vadd.f32 %v8601, %v8629
  %v8631 = vpop.f32.mrf.mxu0
  %v8632 = vadd.f32 %v8603, %v8631
  %8633 = vmatmul.bf16.gmra.mxu0 %v8139
  %v8634 = vpop.f32.mrf.mxu0
  %v8635 = vadd.f32 %v8606, %v8634
  %v8636 = vpop.f32.mrf.mxu0
  %v8637 = vadd.f32 %v8608, %v8636
  %8638 = vmatmul.bf16.gmra.mxu0 %v8143
  %v8639 = vpop.f32.mrf.mxu0
  %v8640 = vadd.f32 %v8611, %v8639
  %v8641 = vpop.f32.mrf.mxu0
  %v8642 = vadd.f32 %v8613, %v8641
  %8643 = vdwg.mxu0
  %8644 = vmatpush.bf16.msra.mxu0 %v8415
  %8645 = vmatpush.bf16.msra.mxu0 %v8413
  %8646 = vmatpush.bf16.msra.mxu0 %v8411
  %8647 = vmatpush.bf16.msra.mxu0 %v8409
  %8648 = vmatpush.bf16.msra.mxu0 %v8407
  %8649 = vmatpush.bf16.msra.mxu0 %v8405
  %8650 = vmatpush.bf16.msra.mxu0 %v8403
  %8651 = vmatpush.bf16.msra.mxu0 %v8401
  %8652 = vmatmul.bf16.gmra.mxu0 %v8128
  %v8653 = vpop.f32.mrf.mxu0
  %v8654 = vadd.f32 0.0, %v8653
  %v8655 = vpop.f32.mrf.mxu0
  %v8656 = vadd.f32 0.0, %v8655
  %8657 = vmatmul.bf16.gmra.mxu0 %v8132
  %v8658 = vpop.f32.mrf.mxu0
  %v8659 = vadd.f32 0.0, %v8658
  %v8660 = vpop.f32.mrf.mxu0
  %v8661 = vadd.f32 0.0, %v8660
  %8662 = vmatmul.bf16.gmra.mxu0 %v8136
  %v8663 = vpop.f32.mrf.mxu0
  %v8664 = vadd.f32 0.0, %v8663
  %v8665 = vpop.f32.mrf.mxu0
  %v8666 = vadd.f32 0.0, %v8665
  %8667 = vmatmul.bf16.gmra.mxu0 %v8140
  %v8668 = vpop.f32.mrf.mxu0
  %v8669 = vadd.f32 0.0, %v8668
  %v8670 = vpop.f32.mrf.mxu0
  %v8671 = vadd.f32 0.0, %v8670
  %8672 = vdwg.mxu0
  %8673 = vmatpush.bf16.msra.mxu0 %v8431
  %8674 = vmatpush.bf16.msra.mxu0 %v8429
  %8675 = vmatpush.bf16.msra.mxu0 %v8427
  %8676 = vmatpush.bf16.msra.mxu0 %v8425
  %8677 = vmatpush.bf16.msra.mxu0 %v8423
  %8678 = vmatpush.bf16.msra.mxu0 %v8421
  %8679 = vmatpush.bf16.msra.mxu0 %v8419
  %8680 = vmatpush.bf16.msra.mxu0 %v8417
  %8681 = vmatmul.bf16.gmra.mxu0 %v8129
  %v8682 = vpop.f32.mrf.mxu0
  %v8683 = vadd.f32 %v8654, %v8682
  %v8684 = vpop.f32.mrf.mxu0
  %v8685 = vadd.f32 %v8656, %v8684
  %8686 = vmatmul.bf16.gmra.mxu0 %v8133
  %v8687 = vpop.f32.mrf.mxu0
  %v8688 = vadd.f32 %v8659, %v8687
  %v8689 = vpop.f32.mrf.mxu0
  %v8690 = vadd.f32 %v8661, %v8689
  %8691 = vmatmul.bf16.gmra.mxu0 %v8137
  %v8692 = vpop.f32.mrf.mxu0
  %v8693 = vadd.f32 %v8664, %v8692
  %v8694 = vpop.f32.mrf.mxu0
  %v8695 = vadd.f32 %v8666, %v8694
  %8696 = vmatmul.bf16.gmra.mxu0 %v8141
  %v8697 = vpop.f32.mrf.mxu0
  %v8698 = vadd.f32 %v8669, %v8697
  %v8699 = vpop.f32.mrf.mxu0
  %v8700 = vadd.f32 %v8671, %v8699
  %8701 = vdwg.mxu0
  %8702 = vmatpush.bf16.msra.mxu0 %v8447
  %8703 = vmatpush.bf16.msra.mxu0 %v8445
  %8704 = vmatpush.bf16.msra.mxu0 %v8443
  %8705 = vmatpush.bf16.msra.mxu0 %v8441
  %8706 = vmatpush.bf16.msra.mxu0 %v8439
  %8707 = vmatpush.bf16.msra.mxu0 %v8437
  %8708 = vmatpush.bf16.msra.mxu0 %v8435
  %8709 = vmatpush.bf16.msra.mxu0 %v8433
  %8710 = vmatmul.bf16.gmra.mxu0 %v8130
  %v8711 = vpop.f32.mrf.mxu0
  %v8712 = vadd.f32 %v8683, %v8711
  %v8713 = vpop.f32.mrf.mxu0
  %v8714 = vadd.f32 %v8685, %v8713
  %8715 = vmatmul.bf16.gmra.mxu0 %v8134
  %v8716 = vpop.f32.mrf.mxu0
  %v8717 = vadd.f32 %v8688, %v8716
  %v8718 = vpop.f32.mrf.mxu0
  %v8719 = vadd.f32 %v8690, %v8718
  %8720 = vmatmul.bf16.gmra.mxu0 %v8138
  %v8721 = vpop.f32.mrf.mxu0
  %v8722 = vadd.f32 %v8693, %v8721
  %v8723 = vpop.f32.mrf.mxu0
  %v8724 = vadd.f32 %v8695, %v8723
  %8725 = vmatmul.bf16.gmra.mxu0 %v8142
  %v8726 = vpop.f32.mrf.mxu0
  %v8727 = vadd.f32 %v8698, %v8726
  %v8728 = vpop.f32.mrf.mxu0
  %v8729 = vadd.f32 %v8700, %v8728
  %8730 = vdwg.mxu0
  %8731 = vmatpush.bf16.msra.mxu0 %v8463
  %8732 = vmatpush.bf16.msra.mxu0 %v8461
  %8733 = vmatpush.bf16.msra.mxu0 %v8459
  %8734 = vmatpush.bf16.msra.mxu0 %v8457
  %8735 = vmatpush.bf16.msra.mxu0 %v8455
  %8736 = vmatpush.bf16.msra.mxu0 %v8453
  %8737 = vmatpush.bf16.msra.mxu0 %v8451
  %8738 = vmatpush.bf16.msra.mxu0 %v8449
  %8739 = vmatmul.bf16.gmra.mxu0 %v8131
  %v8740 = vpop.f32.mrf.mxu0
  %v8741 = vadd.f32 %v8712, %v8740
  %v8742 = vpop.f32.mrf.mxu0
  %v8743 = vadd.f32 %v8714, %v8742
  %8744 = vmatmul.bf16.gmra.mxu0 %v8135
  %v8745 = vpop.f32.mrf.mxu0
  %v8746 = vadd.f32 %v8717, %v8745
  %v8747 = vpop.f32.mrf.mxu0
  %v8748 = vadd.f32 %v8719, %v8747
  %8749 = vmatmul.bf16.gmra.mxu0 %v8139
  %v8750 = vpop.f32.mrf.mxu0
  %v8751 = vadd.f32 %v8722, %v8750
  %v8752 = vpop.f32.mrf.mxu0
  %v8753 = vadd.f32 %v8724, %v8752
  %8754 = vmatmul.bf16.gmra.mxu0 %v8143
  %v8755 = vpop.f32.mrf.mxu0
  %v8756 = vadd.f32 %v8727, %v8755
  %v8757 = vpop.f32.mrf.mxu0
  %v8758 = vadd.f32 %v8729, %v8757
  %8759 = vdwg.mxu0
  %v8760 = vadd.f32 %v8625, 0.0
  %v8761 = vadd.f32 %v8741, 0.0
  %v8762 = vadd.f32 %v8760, 0.0
  %v8763 = vadd.f32 %v8761, 0.0
  %vm8764 = vcmp.ge.f32.partialorder %v8762, 1.25
  %vm8765 = vcmp.ge.f32.partialorder %v8763, 1.25
  %v8766 = vsel %vm8764, 1, 0
  %v8767 = vsel %vm8765, 1, 0
  %v8768 = vcvt.s32.f32 %v8766
  %v8769 = vcvt.s32.f32 %v8767
  %v8770 = vsub.f32 1.0, %v8768
  %v8771 = vsub.f32 1.0, %v8769
  %v8772 = vmul.f32 %v8762, %v8770
  %v8773 = vmul.f32 %v8763, %v8771
  %v8774 = vmul.f32 %v8760, 0.75
  %v8775 = vmul.f32 %v8761, 0.75
  %v8776 = vadd.f32 %v8774, %v8627
  %v8777 = vadd.f32 %v8775, %v8743
  %v8778 = vmul.f32 %v8772, 0.97
  %v8779 = vmul.f32 %v8773, 0.97
  %v8780 = vadd.f32 %v8778, %v8776
  %v8781 = vadd.f32 %v8779, %v8777
  %vm8782 = vcmp.ge.f32.partialorder %v8780, 1.25
  %vm8783 = vcmp.ge.f32.partialorder %v8781, 1.25
  %v8784 = vsel %vm8782, 1, 0
  %v8785 = vsel %vm8783, 1, 0
  %v8786 = vcvt.s32.f32 %v8784
  %v8787 = vcvt.s32.f32 %v8785
  %v8788 = vsub.f32 1.0, %v8786
  %v8789 = vsub.f32 1.0, %v8787
  %v8790 = vmul.f32 %v8780, %v8788
  %v8791 = vmul.f32 %v8781, %v8789
  %v8792 = vmul.f32 %v8776, 0.75
  %v8793 = vmul.f32 %v8777, 0.75
  %v8794 = vadd.f32 %v8792, %v8630
  %v8795 = vadd.f32 %v8793, %v8746
  %v8796 = vmul.f32 %v8790, 0.97
  %v8797 = vmul.f32 %v8791, 0.97
  %v8798 = vadd.f32 %v8796, %v8794
  %v8799 = vadd.f32 %v8797, %v8795
  %vm8800 = vcmp.ge.f32.partialorder %v8798, 1.25
  %vm8801 = vcmp.ge.f32.partialorder %v8799, 1.25
  %v8802 = vsel %vm8800, 1, 0
  %v8803 = vsel %vm8801, 1, 0
  %v8804 = vcvt.s32.f32 %v8802
  %v8805 = vcvt.s32.f32 %v8803
  %v8806 = vsub.f32 1.0, %v8804
  %v8807 = vsub.f32 1.0, %v8805
  %v8808 = vmul.f32 %v8798, %v8806
  %v8809 = vmul.f32 %v8799, %v8807
  %v8810 = vmul.f32 %v8794, 0.75
  %v8811 = vmul.f32 %v8795, 0.75
  %v8812 = vadd.f32 %v8810, %v8632
  %v8813 = vadd.f32 %v8811, %v8748
  %v8814 = vmul.f32 %v8808, 0.97
  %v8815 = vmul.f32 %v8809, 0.97
  %v8816 = vadd.f32 %v8814, %v8812
  %v8817 = vadd.f32 %v8815, %v8813
  %vm8818 = vcmp.ge.f32.partialorder %v8816, 1.25
  %vm8819 = vcmp.ge.f32.partialorder %v8817, 1.25
  %v8820 = vsel %vm8818, 1, 0
  %v8821 = vsel %vm8819, 1, 0
  %v8822 = vcvt.s32.f32 %v8820
  %v8823 = vcvt.s32.f32 %v8821
  %v8824 = vsub.f32 1.0, %v8822
  %v8825 = vsub.f32 1.0, %v8823
  %v8826 = vmul.f32 %v8816, %v8824
  %v8827 = vmul.f32 %v8817, %v8825
  %v8828 = vmul.f32 %v8812, 0.75
  %v8829 = vmul.f32 %v8813, 0.75
  %v8830 = vadd.f32 %v8828, %v8635
  %v8831 = vadd.f32 %v8829, %v8751
  %v8832 = vmul.f32 %v8826, 0.97
  %v8833 = vmul.f32 %v8827, 0.97
  %v8834 = vadd.f32 %v8832, %v8830
  %v8835 = vadd.f32 %v8833, %v8831
  %vm8836 = vcmp.ge.f32.partialorder %v8834, 1.25
  %vm8837 = vcmp.ge.f32.partialorder %v8835, 1.25
  %v8838 = vsel %vm8836, 1, 0
  %v8839 = vsel %vm8837, 1, 0
  %v8840 = vcvt.s32.f32 %v8838
  %v8841 = vcvt.s32.f32 %v8839
  %v8842 = vsub.f32 1.0, %v8840
  %v8843 = vsub.f32 1.0, %v8841
  %v8844 = vmul.f32 %v8834, %v8842
  %v8845 = vmul.f32 %v8835, %v8843
  %v8846 = vmul.f32 %v8830, 0.75
  %v8847 = vmul.f32 %v8831, 0.75
  %v8848 = vadd.f32 %v8846, %v8637
  %v8849 = vadd.f32 %v8847, %v8753
  %v8850 = vmul.f32 %v8844, 0.97
  %v8851 = vmul.f32 %v8845, 0.97
  %v8852 = vadd.f32 %v8850, %v8848
  %v8853 = vadd.f32 %v8851, %v8849
  %vm8854 = vcmp.ge.f32.partialorder %v8852, 1.25
  %vm8855 = vcmp.ge.f32.partialorder %v8853, 1.25
  %v8856 = vsel %vm8854, 1, 0
  %v8857 = vsel %vm8855, 1, 0
  %v8858 = vcvt.s32.f32 %v8856
  %v8859 = vcvt.s32.f32 %v8857
  %v8860 = vsub.f32 1.0, %v8858
  %v8861 = vsub.f32 1.0, %v8859
  %v8862 = vmul.f32 %v8852, %v8860
  %v8863 = vmul.f32 %v8853, %v8861
  %v8864 = vmul.f32 %v8848, 0.75
  %v8865 = vmul.f32 %v8849, 0.75
  %v8866 = vadd.f32 %v8864, %v8640
  %v8867 = vadd.f32 %v8865, %v8756
  %v8868 = vmul.f32 %v8862, 0.97
  %v8869 = vmul.f32 %v8863, 0.97
  %v8870 = vadd.f32 %v8868, %v8866
  %v8871 = vadd.f32 %v8869, %v8867
  %vm8872 = vcmp.ge.f32.partialorder %v8870, 1.25
  %vm8873 = vcmp.ge.f32.partialorder %v8871, 1.25
  %v8874 = vsel %vm8872, 1, 0
  %v8875 = vsel %vm8873, 1, 0
  %v8876 = vcvt.s32.f32 %v8874
  %v8877 = vcvt.s32.f32 %v8875
  %v8878 = vsub.f32 1.0, %v8876
  %v8879 = vsub.f32 1.0, %v8877
  %v8880 = vmul.f32 %v8870, %v8878
  %v8881 = vmul.f32 %v8871, %v8879
  %v8882 = vmul.f32 %v8866, 0.75
  %v8883 = vmul.f32 %v8867, 0.75
  %v8884 = vadd.f32 %v8882, %v8642
  %v8885 = vadd.f32 %v8883, %v8758
  %v8886 = vmul.f32 %v8880, 0.97
  %v8887 = vmul.f32 %v8881, 0.97
  %v8888 = vadd.f32 %v8886, %v8884
  %v8889 = vadd.f32 %v8887, %v8885
  %vm8890 = vcmp.ge.f32.partialorder %v8888, 1.25
  %vm8891 = vcmp.ge.f32.partialorder %v8889, 1.25
  %v8892 = vsel %vm8890, 1, 0
  %v8893 = vsel %vm8891, 1, 0
  %v8894 = vcvt.s32.f32 %v8892
  %v8895 = vcvt.s32.f32 %v8893
  %v8896 = vpack.c.bf16 %v8786, %v8768
  %v8897 = vpack.c.bf16 %v8787, %v8769
  %v8898 = vpack.c.bf16 %v8822, %v8804
  %v8899 = vpack.c.bf16 %v8823, %v8805
  %v8900 = vpack.c.bf16 %v8858, %v8840
  %v8901 = vpack.c.bf16 %v8859, %v8841
  %v8902 = vpack.c.bf16 %v8894, %v8876
  %v8903 = vpack.c.bf16 %v8895, %v8877
  %v8904 = vld [vmem:[%s4] sm:$0xf]
  %v8905 = vld [vmem:[%s4 + $0x4] sm:$0xf]
  %v8906 = vld [vmem:[%s4 + $0x8] sm:$0xf]
  %v8907 = vld [vmem:[%s4 + $0xc] sm:$0xf]
  %v8908 = vld [vmem:[%s4 + $0x10] sm:$0xf]
  %v8909 = vld [vmem:[%s4 + $0x14] sm:$0xf]
  %v8910 = vld [vmem:[%s4 + $0x18] sm:$0xf]
  %v8911 = vld [vmem:[%s4 + $0x1c] sm:$0xf]
  %v8912 = vld [vmem:[%s4 + $0x20] sm:$0xf]
  %v8913 = vld [vmem:[%s4 + $0x24] sm:$0xf]
  %v8914 = vld [vmem:[%s4 + $0x28] sm:$0xf]
  %v8915 = vld [vmem:[%s4 + $0x2c] sm:$0xf]
  %v8916 = vld [vmem:[%s4 + $0x30] sm:$0xf]
  %v8917 = vld [vmem:[%s4 + $0x34] sm:$0xf]
  %v8918 = vld [vmem:[%s4 + $0x38] sm:$0xf]
  %v8919 = vld [vmem:[%s4 + $0x3c] sm:$0xf]
  %v8920 = vld [vmem:[%s4 + $0x40] sm:$0xf]
  %v8921 = vld [vmem:[%s4 + $0x44] sm:$0xf]
  %v8922 = vld [vmem:[%s4 + $0x48] sm:$0xf]
  %v8923 = vld [vmem:[%s4 + $0x4c] sm:$0xf]
  %v8924 = vld [vmem:[%s4 + $0x50] sm:$0xf]
  %v8925 = vld [vmem:[%s4 + $0x54] sm:$0xf]
  %v8926 = vld [vmem:[%s4 + $0x58] sm:$0xf]
  %v8927 = vld [vmem:[%s4 + $0x5c] sm:$0xf]
  %v8928 = vld [vmem:[%s4 + $0x60] sm:$0xf]
  %v8929 = vld [vmem:[%s4 + $0x64] sm:$0xf]
  %v8930 = vld [vmem:[%s4 + $0x68] sm:$0xf]
  %v8931 = vld [vmem:[%s4 + $0x6c] sm:$0xf]
  %v8932 = vld [vmem:[%s4 + $0x70] sm:$0xf]
  %v8933 = vld [vmem:[%s4 + $0x74] sm:$0xf]
  %v8934 = vld [vmem:[%s4 + $0x78] sm:$0xf]
  %v8935 = vld [vmem:[%s4 + $0x7c] sm:$0xf]
  %v8968 = vunpack.c.l.b16 %v8904
  %v8969 = vunpack.c.l.b16 %v8905
  %v8970 = vunpack.c.l.b16 %v8906
  %v8971 = vunpack.c.l.b16 %v8907
  %v8972 = vunpack.c.l.b16 %v8908
  %v8973 = vunpack.c.l.b16 %v8909
  %v8974 = vunpack.c.l.b16 %v8910
  %v8975 = vunpack.c.l.b16 %v8911
  %v8976 = vunpack.c.l.b16 %v8912
  %v8977 = vunpack.c.l.b16 %v8913
  %v8978 = vunpack.c.l.b16 %v8914
  %v8979 = vunpack.c.l.b16 %v8915
  %v8980 = vunpack.c.l.b16 %v8916
  %v8981 = vunpack.c.l.b16 %v8917
  %v8982 = vunpack.c.l.b16 %v8918
  %v8983 = vunpack.c.l.b16 %v8919
  %v8984 = vunpack.c.l.b16 %v8920
  %v8985 = vunpack.c.l.b16 %v8921
  %v8986 = vunpack.c.l.b16 %v8922
  %v8987 = vunpack.c.l.b16 %v8923
  %v8988 = vunpack.c.l.b16 %v8924
  %v8989 = vunpack.c.l.b16 %v8925
  %v8990 = vunpack.c.l.b16 %v8926
  %v8991 = vunpack.c.l.b16 %v8927
  %v8992 = vunpack.c.l.b16 %v8928
  %v8993 = vunpack.c.l.b16 %v8929
  %v8994 = vunpack.c.l.b16 %v8930
  %v8995 = vunpack.c.l.b16 %v8931
  %v8996 = vunpack.c.l.b16 %v8932
  %v8997 = vunpack.c.l.b16 %v8933
  %v8998 = vunpack.c.l.b16 %v8934
  %v8999 = vunpack.c.l.b16 %v8935
  %v9000 = vpack.c.b16 %v8969, %v8968
  %v9001 = vpack.c.b16 %v8971, %v8970
  %v9002 = vpack.c.b16 %v8973, %v8972
  %v9003 = vpack.c.b16 %v8975, %v8974
  %v9004 = vpack.c.b16 %v8977, %v8976
  %v9005 = vpack.c.b16 %v8979, %v8978
  %v9006 = vpack.c.b16 %v8981, %v8980
  %v9007 = vpack.c.b16 %v8983, %v8982
  %v9008 = vpack.c.b16 %v8985, %v8984
  %v9009 = vpack.c.b16 %v8987, %v8986
  %v9010 = vpack.c.b16 %v8989, %v8988
  %v9011 = vpack.c.b16 %v8991, %v8990
  %v9012 = vpack.c.b16 %v8993, %v8992
  %v9013 = vpack.c.b16 %v8995, %v8994
  %v9014 = vpack.c.b16 %v8997, %v8996
  %v9015 = vpack.c.b16 %v8999, %v8998
  %9032 = vmatpush.bf16.msra.mxu0 %v9007
  %9033 = vmatpush.bf16.msra.mxu0 %v9006
  %9034 = vmatpush.bf16.msra.mxu0 %v9005
  %9035 = vmatpush.bf16.msra.mxu0 %v9004
  %9036 = vmatpush.bf16.msra.mxu0 %v9003
  %9037 = vmatpush.bf16.msra.mxu0 %v9002
  %9038 = vmatpush.bf16.msra.mxu0 %v9001
  %9039 = vmatpush.bf16.msra.mxu0 %v9000
  %9040 = vmatmul.bf16.gmra.mxu0 %v8896
  %v9041 = vpop.f32.mrf.mxu0
  %v9042 = vadd.f32 0.0, %v9041
  %v9043 = vpop.f32.mrf.mxu0
  %v9044 = vadd.f32 0.0, %v9043
  %9045 = vmatmul.bf16.gmra.mxu0 %v8898
  %v9046 = vpop.f32.mrf.mxu0
  %v9047 = vadd.f32 0.0, %v9046
  %v9048 = vpop.f32.mrf.mxu0
  %v9049 = vadd.f32 0.0, %v9048
  %9050 = vmatmul.bf16.gmra.mxu0 %v8900
  %v9051 = vpop.f32.mrf.mxu0
  %v9052 = vadd.f32 0.0, %v9051
  %v9053 = vpop.f32.mrf.mxu0
  %v9054 = vadd.f32 0.0, %v9053
  %9055 = vmatmul.bf16.gmra.mxu0 %v8902
  %v9056 = vpop.f32.mrf.mxu0
  %v9057 = vadd.f32 0.0, %v9056
  %v9058 = vpop.f32.mrf.mxu0
  %v9059 = vadd.f32 0.0, %v9058
  %9060 = vdwg.mxu0
  %9061 = vmatpush.bf16.msra.mxu0 %v9015
  %9062 = vmatpush.bf16.msra.mxu0 %v9014
  %9063 = vmatpush.bf16.msra.mxu0 %v9013
  %9064 = vmatpush.bf16.msra.mxu0 %v9012
  %9065 = vmatpush.bf16.msra.mxu0 %v9011
  %9066 = vmatpush.bf16.msra.mxu0 %v9010
  %9067 = vmatpush.bf16.msra.mxu0 %v9009
  %9068 = vmatpush.bf16.msra.mxu0 %v9008
  %9069 = vmatmul.bf16.gmra.mxu0 %v8897
  %v9070 = vpop.f32.mrf.mxu0
  %v9071 = vadd.f32 %v9042, %v9070
  %v9072 = vpop.f32.mrf.mxu0
  %v9073 = vadd.f32 %v9044, %v9072
  %9074 = vmatmul.bf16.gmra.mxu0 %v8899
  %v9075 = vpop.f32.mrf.mxu0
  %v9076 = vadd.f32 %v9047, %v9075
  %v9077 = vpop.f32.mrf.mxu0
  %v9078 = vadd.f32 %v9049, %v9077
  %9079 = vmatmul.bf16.gmra.mxu0 %v8901
  %v9080 = vpop.f32.mrf.mxu0
  %v9081 = vadd.f32 %v9052, %v9080
  %v9082 = vpop.f32.mrf.mxu0
  %v9083 = vadd.f32 %v9054, %v9082
  %9084 = vmatmul.bf16.gmra.mxu0 %v8903
  %v9085 = vpop.f32.mrf.mxu0
  %v9086 = vadd.f32 %v9057, %v9085
  %v9087 = vpop.f32.mrf.mxu0
  %v9088 = vadd.f32 %v9059, %v9087
  %9089 = vdwg.mxu0
  %v9090 = vadd.f32 %v9071, 0.0
  %v9091 = vadd.f32 %v9090, 0.0
  %vm9092 = vcmp.ge.f32.partialorder %v9091, 1.25
  %v9093 = vsel %vm9092, 1, 0
  %v9094 = vcvt.s32.f32 %v9093
  %v9095 = vsub.f32 1.0, %v9094
  %v9096 = vmul.f32 %v9091, %v9095
  %9097 = vst [vmem:[%s5] sm:$0xff] %v9094
  %v9098 = vmul.f32 %v9090, 0.75
  %v9099 = vadd.f32 %v9098, %v9073
  %v9100 = vmul.f32 %v9096, 0.97
  %v9101 = vadd.f32 %v9100, %v9099
  %vm9102 = vcmp.ge.f32.partialorder %v9101, 1.25
  %v9103 = vsel %vm9102, 1, 0
  %v9104 = vcvt.s32.f32 %v9103
  %v9105 = vsub.f32 1.0, %v9104
  %v9106 = vmul.f32 %v9101, %v9105
  %9107 = vst [vmem:[%s5 + $0x8] sm:$0xff] %v9104
  %v9108 = vmul.f32 %v9099, 0.75
  %v9109 = vadd.f32 %v9108, %v9076
  %v9110 = vmul.f32 %v9106, 0.97
  %v9111 = vadd.f32 %v9110, %v9109
  %vm9112 = vcmp.ge.f32.partialorder %v9111, 1.25
  %v9113 = vsel %vm9112, 1, 0
  %v9114 = vcvt.s32.f32 %v9113
  %v9115 = vsub.f32 1.0, %v9114
  %v9116 = vmul.f32 %v9111, %v9115
  %9117 = vst [vmem:[%s5 + $0x10] sm:$0xff] %v9114
  %v9118 = vmul.f32 %v9109, 0.75
  %v9119 = vadd.f32 %v9118, %v9078
  %v9120 = vmul.f32 %v9116, 0.97
  %v9121 = vadd.f32 %v9120, %v9119
  %vm9122 = vcmp.ge.f32.partialorder %v9121, 1.25
  %v9123 = vsel %vm9122, 1, 0
  %v9124 = vcvt.s32.f32 %v9123
  %v9125 = vsub.f32 1.0, %v9124
  %v9126 = vmul.f32 %v9121, %v9125
  %9127 = vst [vmem:[%s5 + $0x18] sm:$0xff] %v9124
  %v9128 = vmul.f32 %v9119, 0.75
  %v9129 = vadd.f32 %v9128, %v9081
  %v9130 = vmul.f32 %v9126, 0.97
  %v9131 = vadd.f32 %v9130, %v9129
  %vm9132 = vcmp.ge.f32.partialorder %v9131, 1.25
  %v9133 = vsel %vm9132, 1, 0
  %v9134 = vcvt.s32.f32 %v9133
  %v9135 = vsub.f32 1.0, %v9134
  %v9136 = vmul.f32 %v9131, %v9135
  %9137 = vst [vmem:[%s5 + $0x20] sm:$0xff] %v9134
  %v9138 = vmul.f32 %v9129, 0.75
  %v9139 = vadd.f32 %v9138, %v9083
  %v9140 = vmul.f32 %v9136, 0.97
  %v9141 = vadd.f32 %v9140, %v9139
  %vm9142 = vcmp.ge.f32.partialorder %v9141, 1.25
  %v9143 = vsel %vm9142, 1, 0
  %v9144 = vcvt.s32.f32 %v9143
  %v9145 = vsub.f32 1.0, %v9144
  %v9146 = vmul.f32 %v9141, %v9145
  %9147 = vst [vmem:[%s5 + $0x28] sm:$0xff] %v9144
  %v9148 = vmul.f32 %v9139, 0.75
  %v9149 = vadd.f32 %v9148, %v9086
  %v9150 = vmul.f32 %v9146, 0.97
  %v9151 = vadd.f32 %v9150, %v9149
  %vm9152 = vcmp.ge.f32.partialorder %v9151, 1.25
  %v9153 = vsel %vm9152, 1, 0
  %v9154 = vcvt.s32.f32 %v9153
  %v9155 = vsub.f32 1.0, %v9154
  %v9156 = vmul.f32 %v9151, %v9155
  %9157 = vst [vmem:[%s5 + $0x30] sm:$0xff] %v9154
  %v9158 = vmul.f32 %v9149, 0.75
  %v9159 = vadd.f32 %v9158, %v9088
  %v9160 = vmul.f32 %v9156, 0.97
  %v9161 = vadd.f32 %v9160, %v9159
  %vm9162 = vcmp.ge.f32.partialorder %v9161, 1.25
  %v9163 = vsel %vm9162, 1, 0
  %v9164 = vcvt.s32.f32 %v9163
  %9165 = vst [vmem:[%s5 + $0x38] sm:$0xff] %v9164
  // Predicated region
  $region22: #{network_forward.1} parent=0 // pred_check
    _
  $region23: #{network_forward.1} parent=0 // pred_check_branch
    %9167 = sbr.rel (0) target = $region25
  $region24: #{network_forward.1} parent=0 // pred_region
    _
  $region25: #{network_forward.1} parent=0 // pred_fallthru
    _
  // Predicated region
  $region26: #{network_forward.1} parent=0 // pred_check
    _
  $region27: #{network_forward.1} parent=0 // pred_check_branch
    %9169 = sbr.rel (0) target = $region29
  $region28: #{network_forward.1} parent=0 // pred_region
    _
  $region29: #{network_forward.1} parent=0 // pred_fallthru
    _

</llo_original>
